<compile_context>
chip_gen: v7x
topology: tpu7x:2x2x1
jax: 0.10.0
libtpu: 0.0.40
codegen_flags: <defaults>
</compile_context>

<pallas_src>
import functools

import jax
import jax.numpy as jnp
from jax import lax
from jax.experimental import pallas as pl
from jax.experimental.pallas import tpu as pltpu

HEIGHT = 32          # small spatial size for the synthetic example
WIDTH = 32
CLASS_NUM = 36       # external constant in the original repo (captcha alphabet)
HIDDEN = 128         # nn.LSTM(hidden_size=128)
NUM_LAYERS = 2       # num_layers=2, bidirectional=True
NP_FC = 128          # FC output lanes (CLASS_NUM padded to 128)


# --------------------------------------------------------------------------
# Conv-as-GEMM kernel: bf16 MXU matmul with fused BatchNorm(eval)+ReLU.
# --------------------------------------------------------------------------
def _conv_bn_relu_kernel(a_ref, w_ref, scale_ref, shift_ref, o_ref):
    acc = jnp.dot(a_ref[...], w_ref[...], preferred_element_type=jnp.float32)
    o_ref[...] = jnp.maximum(acc * scale_ref[...] + shift_ref[...], 0.0)


def _conv_gemm(rows, w, scale, shift, max_tile_m=512):
    """(M,K)@(K,N) with per-column scale/shift + ReLU epilogue.
    At this size it runs as a single grid step (M=512); larger M tiles on a
    'parallel' grid axis."""
    M, K = rows.shape
    N = w.shape[1]
    tm = max_tile_m if (M > max_tile_m and M % max_tile_m == 0) else M
    grid = (M // tm,)
    return pl.pallas_call(
        _conv_bn_relu_kernel,
        out_shape=jax.ShapeDtypeStruct((M, N), jnp.float32),
        grid=grid,
        in_specs=[pl.BlockSpec((tm, K), lambda i: (i, 0)),
                  pl.BlockSpec((K, N), lambda i: (0, 0)),
                  pl.BlockSpec((1, N), lambda i: (0, 0)),
                  pl.BlockSpec((1, N), lambda i: (0, 0))],
        out_specs=pl.BlockSpec((tm, N), lambda i: (i, 0)),
        compiler_params=pltpu.CompilerParams(
            dimension_semantics=("parallel",),
            vmem_limit_bytes=32 * 1024 * 1024),
    )(rows, w, scale, shift)


# --------------------------------------------------------------------------
# Fused recurrent head: one pallas_call for
#   x-proj L0 -> biLSTM L0 -> x-proj L1 -> biLSTM L1 -> FC.
#
# Weight layouts (pre-packed at init):
#   w_in{k} : (I_k, 8H) bf16, columns [i_f f_f g_f o_f | i_r f_r g_r o_r]
#   b_in{k} : (1, 8H)  f32   (b_ih + b_hh, both directions)
#   whh{k}  : (2H, 4H) bf16, rows [W_hh_fwd ; W_hh_rev], cols [i f g o]
#   fc_w    : (2H, 128) bf16, fc_b : (1, 128) f32   (CLASS_NUM padded to 128)
# --------------------------------------------------------------------------
def _recurrent_head_kernel(seq_ref, w_in0_ref, b_in0_ref, whh0_ref,
                           w_in1_ref, b_in1_ref, whh1_ref,
                           fcw_ref, fcb_ref, out_ref,
                           xp_ref, hf_ref, hr_ref, *, T, H):
    B = seq_ref.shape[1]

    def run_layer(x2d, w_in_ref, b_in_ref, whh_ref):
        # x2d: (T*B, I) bf16.  One big input-projection matmul for both
        # directions, result stashed in VMEM scratch for per-step reads.
        proj = (jnp.dot(x2d, w_in_ref[...], preferred_element_type=jnp.float32)
                + b_in_ref[...])
        xp_ref[...] = proj.reshape(T, B, 8 * H)

        whh = whh_ref[...]                       # (2H, 4H) bf16
        whh_f = whh[:H, :]
        whh_r = whh[H:, :]

        def cell(gates, c):
            i_g = jax.nn.sigmoid(gates[:, 0 * H:1 * H])
            f_g = jax.nn.sigmoid(gates[:, 1 * H:2 * H])
            g_g = jnp.tanh(gates[:, 2 * H:3 * H])
            o_g = jax.nn.sigmoid(gates[:, 3 * H:4 * H])
            c_new = f_g * c + i_g * g_g
            return o_g * jnp.tanh(c_new), c_new

        def step(t, carry):
            h_f, c_f, h_r, c_r = carry
            xf = xp_ref[t]                       # (B, 8H): fwd cols at time t
            xr = xp_ref[T - 1 - t]               # rev cols at time T-1-t
            g_f = xf[:, :4 * H] + jnp.dot(h_f.astype(jnp.bfloat16), whh_f,
                                          preferred_element_type=jnp.float32)
            g_r = xr[:, 4 * H:] + jnp.dot(h_r.astype(jnp.bfloat16), whh_r,
                                          preferred_element_type=jnp.float32)
            h_f, c_f = cell(g_f, c_f)
            h_r, c_r = cell(g_r, c_r)
            hf_ref[t] = h_f                      # time-aligned forward output
            hr_ref[T - 1 - t] = h_r              # time-aligned reverse output
            return (h_f, c_f, h_r, c_r)

        z = jnp.zeros((B, H), jnp.float32)
        lax.fori_loop(0, T, step, (z, z, z, z), unroll=True)

    # ----- layer 0 -----
    x0 = seq_ref[...].astype(jnp.bfloat16).reshape(T * B, seq_ref.shape[2])
    run_layer(x0, w_in0_ref, b_in0_ref, whh0_ref)

    # ----- layer 1 (input = time-aligned [fwd | rev] of layer 0) -----
    l0 = jnp.concatenate([hf_ref[...], hr_ref[...]], axis=-1)      # (T,B,2H)
    x1 = l0.astype(jnp.bfloat16).reshape(T * B, 2 * H)
    run_layer(x1, w_in1_ref, b_in1_ref, whh1_ref)

    # ----- FC epilogue (lane-dense 128-wide output, sliced in wrapper) -----
    l1 = jnp.concatenate([hf_ref[...], hr_ref[...]], axis=-1)      # (T,B,2H)
    logits = (jnp.dot(l1.astype(jnp.bfloat16).reshape(T * B, 2 * H), fcw_ref[...],
                      preferred_element_type=jnp.float32) + fcb_ref[...])
    out_ref[...] = logits.reshape(T, B, out_ref.shape[2])


def recurrent_head(seq, hp):
    """seq: (T, B, I) f32 -> (T, B, 128) f32 logits (padded lanes)."""
    T, B, I = seq.shape
    H = HIDDEN
    kernel = functools.partial(_recurrent_head_kernel, T=T, H=H)
    return pl.pallas_call(
        kernel,
        out_shape=jax.ShapeDtypeStruct((T, B, NP_FC), jnp.float32),
        grid=(1,),
        in_specs=[
            pl.BlockSpec((T, B, I), lambda i: (0, 0, 0)),
            pl.BlockSpec(hp['w_in0'].shape, lambda i: (0, 0)),
            pl.BlockSpec(hp['b_in0'].shape, lambda i: (0, 0)),
            pl.BlockSpec(hp['whh0'].shape, lambda i: (0, 0)),
            pl.BlockSpec(hp['w_in1'].shape, lambda i: (0, 0)),
            pl.BlockSpec(hp['b_in1'].shape, lambda i: (0, 0)),
            pl.BlockSpec(hp['whh1'].shape, lambda i: (0, 0)),
            pl.BlockSpec(hp['fc_w'].shape, lambda i: (0, 0)),
            pl.BlockSpec(hp['fc_b'].shape, lambda i: (0, 0)),
        ],
        out_specs=pl.BlockSpec((T, B, NP_FC), lambda i: (0, 0, 0)),
        scratch_shapes=[
            pltpu.VMEM((T, B, 8 * H), jnp.float32),   # x-projection buffer
            pltpu.VMEM((T, B, H), jnp.float32),       # forward outputs
            pltpu.VMEM((T, B, H), jnp.float32),       # reverse outputs
        ],
        compiler_params=pltpu.CompilerParams(
            dimension_semantics=("arbitrary",),
            vmem_limit_bytes=32 * 1024 * 1024),
    )(seq, hp['w_in0'], hp['b_in0'], hp['whh0'],
      hp['w_in1'], hp['b_in1'], hp['whh1'], hp['fc_w'], hp['fc_b'])


# --------------------------------------------------------------------------
# CNN feature extractor (ResNet stem), channels-last end-to-end.
# Conv = channels-last im2col (wrapper glue) + Pallas matmul with fused
# BN(eval)+ReLU; weights are pre-packed/padded/bf16-cast at init.
# --------------------------------------------------------------------------
def cnn_stem(x, params):
    B, C, H, W = x.shape
    x_nhwc = jnp.transpose(x, (0, 2, 3, 1))                       # (B,H,W,C)
    K, stride, pad = 7, 2, 3
    Ho = (H + 2 * pad - K) // stride + 1
    Wo = (W + 2 * pad - K) // stride + 1
    xp = jnp.pad(x_nhwc, ((0, 0), (pad, pad), (pad, pad), (0, 0)))
    # TODO(synk): im2col patch extraction stays as wrapper XLA glue (input-
    # dependent); could be moved in-kernel with a manual VMEM DMA if needed.
    cols = [xp[:, kh:kh + stride * Ho:stride, kw:kw + stride * Wo:stride, :]
            for kh in range(K) for kw in range(K)]
    rows = jnp.concatenate(cols, axis=-1).reshape(B * Ho * Wo, K * K * C)
    Kp = params['conv_w'].shape[0]                                # 256 (padded)
    rows = jnp.pad(rows, ((0, 0), (0, Kp - K * K * C))).astype(jnp.bfloat16)
    y = _conv_gemm(rows, params['conv_w'],
                   params['bn_scale'], params['bn_shift'])        # (M, 128)
    y = y[:, :64].reshape(B, Ho, Wo, 64)
    # maxpool 3x3 / stride 2 / pad 1, NHWC (glue, not a hot path)
    y = lax.reduce_window(y, -jnp.inf, lax.max,
                          window_dimensions=(1, 3, 3, 1),
                          window_strides=(1, 2, 2, 1),
                          padding=((0, 0), (1, 1), (1, 1), (0, 0)))
    return y                                                      # (B,Hf,Wf,64)


# --------------------------------------------------------------------------
# Parameters: deterministic synthetic init + one-time prepack (all repacking,
# padding and bf16 casts live here, NOT in the jitted forward).
# --------------------------------------------------------------------------
def init_params(key):
    ks = iter(jax.random.split(key, 32))
    params = {}

    # --- conv1 (ResNet stem) + BatchNorm(eval) folded to scale/shift ---
    n = 7 * 7 * 64
    conv_w = (jax.random.normal(next(ks), (64, 3, 7, 7), jnp.float32)
              * jnp.sqrt(2.0 / n))
    eps = 1e-5
    gamma, beta = jnp.ones((64,)), jnp.zeros((64,))
    rmean, rvar = jnp.zeros((64,)), jnp.ones((64,))
    scale = gamma / jnp.sqrt(rvar + eps)
    shift = beta - rmean * scale
    Kc = 7 * 7 * 3
    Kp = ((Kc + 127) // 128) * 128            # 147 -> 256 (K lane-aligned)
    Nc = 128                                  # 64 -> 128 (lane-dense stores)
    w = jnp.transpose(conv_w, (2, 3, 1, 0)).reshape(Kc, 64)   # (kh,kw,c)->rows
    params['conv_w'] = jnp.pad(w, ((0, Kp - Kc), (0, Nc - 64))).astype(jnp.bfloat16)
    params['bn_scale'] = jnp.pad(scale, (0, Nc - 64)).reshape(1, Nc).astype(jnp.float32)
    params['bn_shift'] = jnp.pad(shift, (0, Nc - 64)).reshape(1, Nc).astype(jnp.float32)

    # --- LSTM (2 layers, bidirectional) + FC, pre-packed for the head kernel ---
    feat_in = 64 * (HEIGHT // 4)              # C_out * H_out of the CNN features
    H = HIDDEN
    bound = 1.0 / jnp.sqrt(H)
    head = {}
    for layer in range(NUM_LAYERS):
        in_sz = feat_in if layer == 0 else 2 * H
        per_dir = []
        for _ in range(2):                    # forward, reverse
            per_dir.append(dict(
                w_ih=jax.random.uniform(next(ks), (4 * H, in_sz),
                                        minval=-bound, maxval=bound),
                w_hh=jax.random.uniform(next(ks), (4 * H, H),
                                        minval=-bound, maxval=bound),
                b_ih=jax.random.uniform(next(ks), (4 * H,),
                                        minval=-bound, maxval=bound),
                b_hh=jax.random.uniform(next(ks), (4 * H,),
                                        minval=-bound, maxval=bound)))
        pf, pr = per_dir
        w_in = jnp.concatenate([pf['w_ih'].T, pr['w_ih'].T], axis=1)   # (I, 8H)
        b_in = jnp.concatenate([pf['b_ih'] + pf['b_hh'],
                                pr['b_ih'] + pr['b_hh']])              # (8H,)
        whh = jnp.concatenate([pf['w_hh'].T, pr['w_hh'].T], axis=0)    # (2H, 4H)
        head[f'w_in{layer}'] = w_in.astype(jnp.bfloat16)
        head[f'b_in{layer}'] = b_in.reshape(1, 8 * H).astype(jnp.float32)
        head[f'whh{layer}'] = whh.astype(jnp.bfloat16)

    fb = 1.0 / jnp.sqrt(2 * H)
    fc_w = jax.random.uniform(next(ks), (CLASS_NUM, 2 * H), minval=-fb, maxval=fb)
    fc_b = jax.random.uniform(next(ks), (CLASS_NUM,), minval=-fb, maxval=fb)
    head['fc_w'] = jnp.pad(fc_w.T, ((0, 0), (0, NP_FC - CLASS_NUM))).astype(jnp.bfloat16)
    head['fc_b'] = jnp.pad(fc_b, (0, NP_FC - CLASS_NUM)).reshape(1, NP_FC).astype(jnp.float32)
    params['head'] = head
    return params


# --------------------------------------------------------------------------
# CaptchaSolver.forward
# --------------------------------------------------------------------------
@jax.jit
def captcha_solver_forward(x, params):
    feat = cnn_stem(x, params)                            # (B, Hf, Wf, 64) NHWC
    B, Hf, Wf, C = feat.shape
    # PyTorch: x.reshape(B, C*Hf, Wf).permute(2, 0, 1) with NCHW feature index
    # c*Hf + h.  Single transpose from NHWC:
    seq = jnp.transpose(feat, (2, 0, 3, 1)).reshape(Wf, B, C * Hf)   # (T,B,512)
    logits = recurrent_head(seq, params['head'])          # (T, B, 128)
    return logits[:, :, :CLASS_NUM]                       # (T, B, CLASS_NUM)


if __name__ == "__main__":
    key = jax.random.PRNGKey(0)
    x = jax.random.normal(key, (2, 3, HEIGHT, WIDTH), jnp.float32)   # NCHW
    params = init_params(jax.random.PRNGKey(1))

    out = captcha_solver_forward(x, params)
    out = jax.block_until_ready(out)

    expected_T = WIDTH // 4
    assert out.shape == (expected_T, 2, CLASS_NUM), out.shape
    assert out.dtype == jnp.float32
    assert bool(jnp.all(jnp.isfinite(out)))
    print("KERNEL_OK")
</pallas_src>

<mosaic_0001>
module attributes {stable_mosaic.version = 11 : i64} {
  func.func @_conv_bn_relu_kernel(%arg0: i32, %arg1: memref<512x256xbf16, #tpu.memory_space<vmem>>, %arg2: memref<256x128xbf16, #tpu.memory_space<vmem>>, %arg3: memref<1x128xf32, #tpu.memory_space<vmem>>, %arg4: memref<1x128xf32, #tpu.memory_space<vmem>>, %arg5: memref<512x128xf32, #tpu.memory_space<vmem>>) attributes {dimension_semantics = [#tpu.dimension_semantics<parallel>], iteration_bounds = array<i64: 1>, scalar_prefetch = 0 : i64, scratch_operands = 0 : i64, tpu.core_type = #tpu.core_type<tc>, window_params = [{transform_indices = @transform_0, window_bounds = array<i64: 512, 256>}, {pipeline_mode = #tpu.pipeline_mode<synchronous>, transform_indices = @transform_1, window_bounds = array<i64: 256, 128>}, {pipeline_mode = #tpu.pipeline_mode<synchronous>, transform_indices = @transform_2, window_bounds = array<i64: 1, 128>}, {pipeline_mode = #tpu.pipeline_mode<synchronous>, transform_indices = @transform_3, window_bounds = array<i64: 1, 128>}, {transform_indices = @transform_4, window_bounds = array<i64: 512, 128>}]} {
    %c0 = arith.constant 0 : index
    %c0_0 = arith.constant 0 : index
    %0 = vector.load %arg1[%c0, %c0_0] : memref<512x256xbf16, #tpu.memory_space<vmem>>, vector<512x256xbf16>
    %c0_1 = arith.constant 0 : index
    %c0_2 = arith.constant 0 : index
    %1 = vector.load %arg2[%c0_1, %c0_2] : memref<256x128xbf16, #tpu.memory_space<vmem>>, vector<256x128xbf16>
    %cst = arith.constant dense<0.000000e+00> : vector<512x128xf32>
    %2 = tpu.matmul %0, %1, %cst {dimension_numbers = #tpu.dot_dimension_numbers<[1], [0], [0], [1], [0, 0, 1, 1], [], []>} : vector<512x256xbf16>, vector<256x128xbf16>, vector<512x128xf32> -> vector<512x128xf32>
    %c0_3 = arith.constant 0 : index
    %c0_4 = arith.constant 0 : index
    %3 = vector.load %arg3[%c0_3, %c0_4] : memref<1x128xf32, #tpu.memory_space<vmem>>, vector<1x128xf32>
    %4 = vector.broadcast %3 : vector<1x128xf32> to vector<512x128xf32>
    %5 = arith.mulf %2, %4 : vector<512x128xf32>
    %c0_5 = arith.constant 0 : index
    %c0_6 = arith.constant 0 : index
    %6 = vector.load %arg4[%c0_5, %c0_6] : memref<1x128xf32, #tpu.memory_space<vmem>>, vector<1x128xf32>
    %7 = vector.broadcast %6 : vector<1x128xf32> to vector<512x128xf32>
    %8 = arith.addf %5, %7 : vector<512x128xf32>
    %cst_7 = arith.constant 0.000000e+00 : f32
    %9 = vector.broadcast %cst_7 : f32 to vector<512x128xf32>
    %10 = arith.maximumf %8, %9 : vector<512x128xf32>
    %c0_8 = arith.constant 0 : index
    %c0_9 = arith.constant 0 : index
    %11 = vector.load %arg5[%c0_8, %c0_9] : memref<512x128xf32, #tpu.memory_space<vmem>>, vector<512x128xf32>
    tpu.vector_store %arg5[%c0_8, %c0_9], %10 {strides = array<i32>} : memref<512x128xf32, #tpu.memory_space<vmem>>, vector<512x128xf32>,
    return
  }
  func.func @transform_0(%arg0: i32) -> (i32, i32) {
    %c0_i32 = arith.constant 0 : i32
    %c0_i32_0 = arith.constant 0 : i32
    return %arg0, %c0_i32 : i32, i32
  }
  func.func @transform_1(%arg0: i32) -> (i32, i32) {
    %c0_i32 = arith.constant 0 : i32
    %c0_i32_0 = arith.constant 0 : i32
    %c0_i32_1 = arith.constant 0 : i32
    return %c0_i32, %c0_i32_0 : i32, i32
  }
  func.func @transform_2(%arg0: i32) -> (i32, i32) {
    %c0_i32 = arith.constant 0 : i32
    %c0_i32_0 = arith.constant 0 : i32
    %c0_i32_1 = arith.constant 0 : i32
    return %c0_i32, %c0_i32_0 : i32, i32
  }
  func.func @transform_3(%arg0: i32) -> (i32, i32) {
    %c0_i32 = arith.constant 0 : i32
    %c0_i32_0 = arith.constant 0 : i32
    %c0_i32_1 = arith.constant 0 : i32
    return %c0_i32, %c0_i32_0 : i32, i32
  }
  func.func @transform_4(%arg0: i32) -> (i32, i32) {
    %c0_i32 = arith.constant 0 : i32
    %c0_i32_0 = arith.constant 0 : i32
    return %arg0, %c0_i32 : i32, i32
  }
}

module attributes {stable_mosaic.version = 11 : i64} {
  func.func @_recurrent_head_kernel(%arg0: i32, %arg1: memref<8x2x512xf32, #tpu.memory_space<vmem>>, %arg2: memref<512x1024xbf16, #tpu.memory_space<vmem>>, %arg3: memref<1x1024xf32, #tpu.memory_space<vmem>>, %arg4: memref<256x512xbf16, #tpu.memory_space<vmem>>, %arg5: memref<256x1024xbf16, #tpu.memory_space<vmem>>, %arg6: memref<1x1024xf32, #tpu.memory_space<vmem>>, %arg7: memref<256x512xbf16, #tpu.memory_space<vmem>>, %arg8: memref<256x128xbf16, #tpu.memory_space<vmem>>, %arg9: memref<1x128xf32, #tpu.memory_space<vmem>>, %arg10: memref<8x2x128xf32, #tpu.memory_space<vmem>>, %arg11: memref<8x2x1024xf32, #tpu.memory_space<vmem>>, %arg12: memref<8x2x128xf32, #tpu.memory_space<vmem>>, %arg13: memref<8x2x128xf32, #tpu.memory_space<vmem>>) attributes {dimension_semantics = [#tpu.dimension_semantics<arbitrary>], iteration_bounds = array<i64: 1>, scalar_prefetch = 0 : i64, scratch_operands = 3 : i64, tpu.core_type = #tpu.core_type<tc>, window_params = [{pipeline_mode = #tpu.pipeline_mode<synchronous>, transform_indices = @transform_0, window_bounds = array<i64: 8, 2, 512>}, {pipeline_mode = #tpu.pipeline_mode<synchronous>, transform_indices = @transform_1, window_bounds = array<i64: 512, 1024>}, {pipeline_mode = #tpu.pipeline_mode<synchronous>, transform_indices = @transform_2, window_bounds = array<i64: 1, 1024>}, {pipeline_mode = #tpu.pipeline_mode<synchronous>, transform_indices = @transform_3, window_bounds = array<i64: 256, 512>}, {pipeline_mode = #tpu.pipeline_mode<synchronous>, transform_indices = @transform_4, window_bounds = array<i64: 256, 1024>}, {pipeline_mode = #tpu.pipeline_mode<synchronous>, transform_indices = @transform_5, window_bounds = array<i64: 1, 1024>}, {pipeline_mode = #tpu.pipeline_mode<synchronous>, transform_indices = @transform_6, window_bounds = array<i64: 256, 512>}, {pipeline_mode = #tpu.pipeline_mode<synchronous>, transform_indices = @transform_7, window_bounds = array<i64: 256, 128>}, {pipeline_mode = #tpu.pipeline_mode<synchronous>, transform_indices = @transform_8, window_bounds = array<i64: 1, 128>}, {pipeline_mode = #tpu.pipeline_mode<synchronous>, transform_indices = @transform_9, window_bounds = array<i64: 8, 2, 128>}]} {
    %c0 = arith.constant 0 : index
    %c0_0 = arith.constant 0 : index
    %c0_1 = arith.constant 0 : index
    %0 = vector.load %arg1[%c0, %c0_0, %c0_1] : memref<8x2x512xf32, #tpu.memory_space<vmem>>, vector<8x2x512xf32>
    %1 = arith.truncf %0 : vector<8x2x512xf32> to vector<8x2x512xbf16>
    %2 = vector.shape_cast %1 : vector<8x2x512xbf16> to vector<16x512xbf16>
    %c0_2 = arith.constant 0 : index
    %c0_3 = arith.constant 0 : index
    %3 = vector.load %arg2[%c0_2, %c0_3] : memref<512x1024xbf16, #tpu.memory_space<vmem>>, vector<512x1024xbf16>
    %cst = arith.constant dense<0.000000e+00> : vector<16x1024xf32>
    %4 = tpu.matmul %2, %3, %cst {dimension_numbers = #tpu.dot_dimension_numbers<[1], [0], [0], [1], [0, 0, 1, 1], [], []>} : vector<16x512xbf16>, vector<512x1024xbf16>, vector<16x1024xf32> -> vector<16x1024xf32>
    %c0_4 = arith.constant 0 : index
    %c0_5 = arith.constant 0 : index
    %5 = vector.load %arg3[%c0_4, %c0_5] : memref<1x1024xf32, #tpu.memory_space<vmem>>, vector<1x1024xf32>
    %6 = vector.broadcast %5 : vector<1x1024xf32> to vector<16x1024xf32>
    %7 = arith.addf %4, %6 : vector<16x1024xf32>
    %8 = vector.shape_cast %7 : vector<16x1024xf32> to vector<8x2x1024xf32>
    %c0_6 = arith.constant 0 : index
    %c0_7 = arith.constant 0 : index
    %c0_8 = arith.constant 0 : index
    %9 = vector.load %arg11[%c0_6, %c0_7, %c0_8] : memref<8x2x1024xf32, #tpu.memory_space<vmem>>, vector<8x2x1024xf32>
    tpu.vector_store %arg11[%c0_6, %c0_7, %c0_8], %8 {strides = array<i32>} : memref<8x2x1024xf32, #tpu.memory_space<vmem>>, vector<8x2x1024xf32>,
    %c0_9 = arith.constant 0 : index
    %c0_10 = arith.constant 0 : index
    %10 = vector.load %arg4[%c0_9, %c0_10] : memref<256x512xbf16, #tpu.memory_space<vmem>>, vector<256x512xbf16>
    %11 = vector.extract_strided_slice %10 {offsets = [0, 0], sizes = [128, 512], strides = [1, 1]} : vector<256x512xbf16> to vector<128x512xbf16>
    %12 = vector.extract_strided_slice %10 {offsets = [128, 0], sizes = [128, 512], strides = [1, 1]} : vector<256x512xbf16> to vector<128x512xbf16>
    %cst_11 = arith.constant 0.000000e+00 : f32
    %13 = vector.broadcast %cst_11 : f32 to vector<2x128xf32>
    %c0_i32 = arith.constant 0 : i32
    %14 = arith.index_cast %c0_i32 : i32 to index
    %c0_12 = arith.constant 0 : index
    %c0_13 = arith.constant 0 : index
    %15 = vector.load %arg11[%14, %c0_12, %c0_13] : memref<8x2x1024xf32, #tpu.memory_space<vmem>>, vector<1x2x1024xf32>
    %16 = vector.shape_cast %15 : vector<1x2x1024xf32> to vector<2x1024xf32>
    %c7_i32 = arith.constant 7 : i32
    %17 = arith.subi %c7_i32, %c0_i32 : i32
    %18 = arith.index_cast %17 : i32 to index
    %c0_14 = arith.constant 0 : index
    %c0_15 = arith.constant 0 : index
    %19 = vector.load %arg11[%18, %c0_14, %c0_15] : memref<8x2x1024xf32, #tpu.memory_space<vmem>>, vector<1x2x1024xf32>
    %20 = vector.shape_cast %19 : vector<1x2x1024xf32> to vector<2x1024xf32>
    %21 = vector.extract_strided_slice %16 {offsets = [0, 0], sizes = [2, 512], strides = [1, 1]} : vector<2x1024xf32> to vector<2x512xf32>
    %22 = arith.truncf %13 : vector<2x128xf32> to vector<2x128xbf16>
    %cst_16 = arith.constant dense<0.000000e+00> : vector<2x512xf32>
    %23 = tpu.matmul %22, %11, %cst_16 {dimension_numbers = #tpu.dot_dimension_numbers<[1], [0], [0], [1], [0, 0, 1, 1], [], []>} : vector<2x128xbf16>, vector<128x512xbf16>, vector<2x512xf32> -> vector<2x512xf32>
    %24 = arith.addf %21, %23 : vector<2x512xf32>
    %25 = vector.extract_strided_slice %20 {offsets = [0, 512], sizes = [2, 512], strides = [1, 1]} : vector<2x1024xf32> to vector<2x512xf32>
    %26 = arith.truncf %13 : vector<2x128xf32> to vector<2x128xbf16>
    %cst_17 = arith.constant dense<0.000000e+00> : vector<2x512xf32>
    %27 = tpu.matmul %26, %12, %cst_17 {dimension_numbers = #tpu.dot_dimension_numbers<[1], [0], [0], [1], [0, 0, 1, 1], [], []>} : vector<2x128xbf16>, vector<128x512xbf16>, vector<2x512xf32> -> vector<2x512xf32>
    %28 = arith.addf %25, %27 : vector<2x512xf32>
    %29 = vector.extract_strided_slice %24 {offsets = [0, 0], sizes = [2, 128], strides = [1, 1]} : vector<2x512xf32> to vector<2x128xf32>
    %30 = arith.negf %29 : vector<2x128xf32>
    %31 = math.exp %30 : vector<2x128xf32>
    %cst_18 = arith.constant 1.000000e+00 : f32
    %32 = vector.broadcast %cst_18 : f32 to vector<2x128xf32>
    %33 = arith.addf %32, %31 : vector<2x128xf32>
    %34 = arith.divf %32, %33 : vector<2x128xf32>
    %35 = vector.extract_strided_slice %24 {offsets = [0, 128], sizes = [2, 128], strides = [1, 1]} : vector<2x512xf32> to vector<2x128xf32>
    %36 = arith.negf %35 : vector<2x128xf32>
    %37 = math.exp %36 : vector<2x128xf32>
    %cst_19 = arith.constant 1.000000e+00 : f32
    %38 = vector.broadcast %cst_19 : f32 to vector<2x128xf32>
    %39 = arith.addf %38, %37 : vector<2x128xf32>
    %40 = arith.divf %38, %39 : vector<2x128xf32>
    %41 = vector.extract_strided_slice %24 {offsets = [0, 256], sizes = [2, 128], strides = [1, 1]} : vector<2x512xf32> to vector<2x128xf32>
    %42 = math.tanh %41 : vector<2x128xf32>
    %43 = vector.extract_strided_slice %24 {offsets = [0, 384], sizes = [2, 128], strides = [1, 1]} : vector<2x512xf32> to vector<2x128xf32>
    %44 = arith.negf %43 : vector<2x128xf32>
    %45 = math.exp %44 : vector<2x128xf32>
    %cst_20 = arith.constant 1.000000e+00 : f32
    %46 = vector.broadcast %cst_20 : f32 to vector<2x128xf32>
    %47 = arith.addf %46, %45 : vector<2x128xf32>
    %48 = arith.divf %46, %47 : vector<2x128xf32>
    %49 = arith.mulf %40, %13 : vector<2x128xf32>
    %50 = arith.mulf %34, %42 : vector<2x128xf32>
    %51 = arith.addf %49, %50 : vector<2x128xf32>
    %52 = math.tanh %51 : vector<2x128xf32>
    %53 = arith.mulf %48, %52 : vector<2x128xf32>
    %54 = vector.extract_strided_slice %28 {offsets = [0, 0], sizes = [2, 128], strides = [1, 1]} : vector<2x512xf32> to vector<2x128xf32>
    %55 = arith.negf %54 : vector<2x128xf32>
    %56 = math.exp %55 : vector<2x128xf32>
    %cst_21 = arith.constant 1.000000e+00 : f32
    %57 = vector.broadcast %cst_21 : f32 to vector<2x128xf32>
    %58 = arith.addf %57, %56 : vector<2x128xf32>
    %59 = arith.divf %57, %58 : vector<2x128xf32>
    %60 = vector.extract_strided_slice %28 {offsets = [0, 128], sizes = [2, 128], strides = [1, 1]} : vector<2x512xf32> to vector<2x128xf32>
    %61 = arith.negf %60 : vector<2x128xf32>
    %62 = math.exp %61 : vector<2x128xf32>
    %cst_22 = arith.constant 1.000000e+00 : f32
    %63 = vector.broadcast %cst_22 : f32 to vector<2x128xf32>
    %64 = arith.addf %63, %62 : vector<2x128xf32>
    %65 = arith.divf %63, %64 : vector<2x128xf32>
    %66 = vector.extract_strided_slice %28 {offsets = [0, 256], sizes = [2, 128], strides = [1, 1]} : vector<2x512xf32> to vector<2x128xf32>
    %67 = math.tanh %66 : vector<2x128xf32>
    %68 = vector.extract_strided_slice %28 {offsets = [0, 384], sizes = [2, 128], strides = [1, 1]} : vector<2x512xf32> to vector<2x128xf32>
    %69 = arith.negf %68 : vector<2x128xf32>
    %70 = math.exp %69 : vector<2x128xf32>
    %cst_23 = arith.constant 1.000000e+00 : f32
    %71 = vector.broadcast %cst_23 : f32 to vector<2x128xf32>
    %72 = arith.addf %71, %70 : vector<2x128xf32>
    %73 = arith.divf %71, %72 : vector<2x128xf32>
    %74 = arith.mulf %65, %13 : vector<2x128xf32>
    %75 = arith.mulf %59, %67 : vector<2x128xf32>
    %76 = arith.addf %74, %75 : vector<2x128xf32>
    %77 = math.tanh %76 : vector<2x128xf32>
    %78 = arith.mulf %73, %77 : vector<2x128xf32>
    %79 = arith.index_cast %c0_i32 : i32 to index
    %c0_24 = arith.constant 0 : index
    %c0_25 = arith.constant 0 : index
    %80 = vector.load %arg12[%79, %c0_24, %c0_25] : memref<8x2x128xf32, #tpu.memory_space<vmem>>, vector<1x2x128xf32>
    %81 = vector.shape_cast %80 : vector<1x2x128xf32> to vector<2x128xf32>
    %82 = vector.shape_cast %53 : vector<2x128xf32> to vector<1x2x128xf32>
    tpu.vector_store %arg12[%79, %c0_24, %c0_25], %82 {strides = array<i32>} : memref<8x2x128xf32, #tpu.memory_space<vmem>>, vector<1x2x128xf32>,
    %c7_i32_26 = arith.constant 7 : i32
    %83 = arith.subi %c7_i32_26, %c0_i32 : i32
    %84 = arith.index_cast %83 : i32 to index
    %c0_27 = arith.constant 0 : index
    %c0_28 = arith.constant 0 : index
    %85 = vector.load %arg13[%84, %c0_27, %c0_28] : memref<8x2x128xf32, #tpu.memory_space<vmem>>, vector<1x2x128xf32>
    %86 = vector.shape_cast %85 : vector<1x2x128xf32> to vector<2x128xf32>
    %87 = vector.shape_cast %78 : vector<2x128xf32> to vector<1x2x128xf32>
    tpu.vector_store %arg13[%84, %c0_27, %c0_28], %87 {strides = array<i32>} : memref<8x2x128xf32, #tpu.memory_space<vmem>>, vector<1x2x128xf32>,
    %c1_i32 = arith.constant 1 : i32
    %88 = arith.index_cast %c1_i32 : i32 to index
    %c0_29 = arith.constant 0 : index
    %c0_30 = arith.constant 0 : index
    %89 = vector.load %arg11[%88, %c0_29, %c0_30] : memref<8x2x1024xf32, #tpu.memory_space<vmem>>, vector<1x2x1024xf32>
    %90 = vector.shape_cast %89 : vector<1x2x1024xf32> to vector<2x1024xf32>
    %c7_i32_31 = arith.constant 7 : i32
    %91 = arith.subi %c7_i32_31, %c1_i32 : i32
    %92 = arith.index_cast %91 : i32 to index
    %c0_32 = arith.constant 0 : index
    %c0_33 = arith.constant 0 : index
    %93 = vector.load %arg11[%92, %c0_32, %c0_33] : memref<8x2x1024xf32, #tpu.memory_space<vmem>>, vector<1x2x1024xf32>
    %94 = vector.shape_cast %93 : vector<1x2x1024xf32> to vector<2x1024xf32>
    %95 = vector.extract_strided_slice %90 {offsets = [0, 0], sizes = [2, 512], strides = [1, 1]} : vector<2x1024xf32> to vector<2x512xf32>
    %96 = arith.truncf %53 : vector<2x128xf32> to vector<2x128xbf16>
    %cst_34 = arith.constant dense<0.000000e+00> : vector<2x512xf32>
    %97 = tpu.matmul %96, %11, %cst_34 {dimension_numbers = #tpu.dot_dimension_numbers<[1], [0], [0], [1], [0, 0, 1, 1], [], []>} : vector<2x128xbf16>, vector<128x512xbf16>, vector<2x512xf32> -> vector<2x512xf32>
    %98 = arith.addf %95, %97 : vector<2x512xf32>
    %99 = vector.extract_strided_slice %94 {offsets = [0, 512], sizes = [2, 512], strides = [1, 1]} : vector<2x1024xf32> to vector<2x512xf32>
    %100 = arith.truncf %78 : vector<2x128xf32> to vector<2x128xbf16>
    %cst_35 = arith.constant dense<0.000000e+00> : vector<2x512xf32>
    %101 = tpu.matmul %100, %12, %cst_35 {dimension_numbers = #tpu.dot_dimension_numbers<[1], [0], [0], [1], [0, 0, 1, 1], [], []>} : vector<2x128xbf16>, vector<128x512xbf16>, vector<2x512xf32> -> vector<2x512xf32>
    %102 = arith.addf %99, %101 : vector<2x512xf32>
    %103 = vector.extract_strided_slice %98 {offsets = [0, 0], sizes = [2, 128], strides = [1, 1]} : vector<2x512xf32> to vector<2x128xf32>
    %104 = arith.negf %103 : vector<2x128xf32>
    %105 = math.exp %104 : vector<2x128xf32>
    %cst_36 = arith.constant 1.000000e+00 : f32
    %106 = vector.broadcast %cst_36 : f32 to vector<2x128xf32>
    %107 = arith.addf %106, %105 : vector<2x128xf32>
    %108 = arith.divf %106, %107 : vector<2x128xf32>
    %109 = vector.extract_strided_slice %98 {offsets = [0, 128], sizes = [2, 128], strides = [1, 1]} : vector<2x512xf32> to vector<2x128xf32>
    %110 = arith.negf %109 : vector<2x128xf32>
    %111 = math.exp %110 : vector<2x128xf32>
    %cst_37 = arith.constant 1.000000e+00 : f32
    %112 = vector.broadcast %cst_37 : f32 to vector<2x128xf32>
    %113 = arith.addf %112, %111 : vector<2x128xf32>
    %114 = arith.divf %112, %113 : vector<2x128xf32>
    %115 = vector.extract_strided_slice %98 {offsets = [0, 256], sizes = [2, 128], strides = [1, 1]} : vector<2x512xf32> to vector<2x128xf32>
    %116 = math.tanh %115 : vector<2x128xf32>
    %117 = vector.extract_strided_slice %98 {offsets = [0, 384], sizes = [2, 128], strides = [1, 1]} : vector<2x512xf32> to vector<2x128xf32>
    %118 = arith.negf %117 : vector<2x128xf32>
    %119 = math.exp %118 : vector<2x128xf32>
    %cst_38 = arith.constant 1.000000e+00 : f32
    %120 = vector.broadcast %cst_38 : f32 to vector<2x128xf32>
    %121 = arith.addf %120, %119 : vector<2x128xf32>
    %122 = arith.divf %120, %121 : vector<2x128xf32>
    %123 = arith.mulf %114, %51 : vector<2x128xf32>
    %124 = arith.mulf %108, %116 : vector<2x128xf32>
    %125 = arith.addf %123, %124 : vector<2x128xf32>
    %126 = math.tanh %125 : vector<2x128xf32>
    %127 = arith.mulf %122, %126 : vector<2x128xf32>
    %128 = vector.extract_strided_slice %102 {offsets = [0, 0], sizes = [2, 128], strides = [1, 1]} : vector<2x512xf32> to vector<2x128xf32>
    %129 = arith.negf %128 : vector<2x128xf32>
    %130 = math.exp %129 : vector<2x128xf32>
    %cst_39 = arith.constant 1.000000e+00 : f32
    %131 = vector.broadcast %cst_39 : f32 to vector<2x128xf32>
    %132 = arith.addf %131, %130 : vector<2x128xf32>
    %133 = arith.divf %131, %132 : vector<2x128xf32>
    %134 = vector.extract_strided_slice %102 {offsets = [0, 128], sizes = [2, 128], strides = [1, 1]} : vector<2x512xf32> to vector<2x128xf32>
    %135 = arith.negf %134 : vector<2x128xf32>
    %136 = math.exp %135 : vector<2x128xf32>
    %cst_40 = arith.constant 1.000000e+00 : f32
    %137 = vector.broadcast %cst_40 : f32 to vector<2x128xf32>
    %138 = arith.addf %137, %136 : vector<2x128xf32>
    %139 = arith.divf %137, %138 : vector<2x128xf32>
    %140 = vector.extract_strided_slice %102 {offsets = [0, 256], sizes = [2, 128], strides = [1, 1]} : vector<2x512xf32> to vector<2x128xf32>
    %141 = math.tanh %140 : vector<2x128xf32>
    %142 = vector.extract_strided_slice %102 {offsets = [0, 384], sizes = [2, 128], strides = [1, 1]} : vector<2x512xf32> to vector<2x128xf32>
    %143 = arith.negf %142 : vector<2x128xf32>
    %144 = math.exp %143 : vector<2x128xf32>
    %cst_41 = arith.constant 1.000000e+00 : f32
    %145 = vector.broadcast %cst_41 : f32 to vector<2x128xf32>
    %146 = arith.addf %145, %144 : vector<2x128xf32>
    %147 = arith.divf %145, %146 : vector<2x128xf32>
    %148 = arith.mulf %139, %76 : vector<2x128xf32>
    %149 = arith.mulf %133, %141 : vector<2x128xf32>
    %150 = arith.addf %148, %149 : vector<2x128xf32>
    %151 = math.tanh %150 : vector<2x128xf32>
    %152 = arith.mulf %147, %151 : vector<2x128xf32>
    %153 = arith.index_cast %c1_i32 : i32 to index
    %c0_42 = arith.constant 0 : index
    %c0_43 = arith.constant 0 : index
    %154 = vector.load %arg12[%153, %c0_42, %c0_43] : memref<8x2x128xf32, #tpu.memory_space<vmem>>, vector<1x2x128xf32>
    %155 = vector.shape_cast %154 : vector<1x2x128xf32> to vector<2x128xf32>
    %156 = vector.shape_cast %127 : vector<2x128xf32> to vector<1x2x128xf32>
    tpu.vector_store %arg12[%153, %c0_42, %c0_43], %156 {strides = array<i32>} : memref<8x2x128xf32, #tpu.memory_space<vmem>>, vector<1x2x128xf32>,
    %c7_i32_44 = arith.constant 7 : i32
    %157 = arith.subi %c7_i32_44, %c1_i32 : i32
    %158 = arith.index_cast %157 : i32 to index
    %c0_45 = arith.constant 0 : index
    %c0_46 = arith.constant 0 : index
    %159 = vector.load %arg13[%158, %c0_45, %c0_46] : memref<8x2x128xf32, #tpu.memory_space<vmem>>, vector<1x2x128xf32>
    %160 = vector.shape_cast %159 : vector<1x2x128xf32> to vector<2x128xf32>
    %161 = vector.shape_cast %152 : vector<2x128xf32> to vector<1x2x128xf32>
    tpu.vector_store %arg13[%158, %c0_45, %c0_46], %161 {strides = array<i32>} : memref<8x2x128xf32, #tpu.memory_space<vmem>>, vector<1x2x128xf32>,
    %c2_i32 = arith.constant 2 : i32
    %162 = arith.index_cast %c2_i32 : i32 to index
    %c0_47 = arith.constant 0 : index
    %c0_48 = arith.constant 0 : index
    %163 = vector.load %arg11[%162, %c0_47, %c0_48] : memref<8x2x1024xf32, #tpu.memory_space<vmem>>, vector<1x2x1024xf32>
    %164 = vector.shape_cast %163 : vector<1x2x1024xf32> to vector<2x1024xf32>
    %c7_i32_49 = arith.constant 7 : i32
    %165 = arith.subi %c7_i32_49, %c2_i32 : i32
    %166 = arith.index_cast %165 : i32 to index
    %c0_50 = arith.constant 0 : index
    %c0_51 = arith.constant 0 : index
    %167 = vector.load %arg11[%166, %c0_50, %c0_51] : memref<8x2x1024xf32, #tpu.memory_space<vmem>>, vector<1x2x1024xf32>
    %168 = vector.shape_cast %167 : vector<1x2x1024xf32> to vector<2x1024xf32>
    %169 = vector.extract_strided_slice %164 {offsets = [0, 0], sizes = [2, 512], strides = [1, 1]} : vector<2x1024xf32> to vector<2x512xf32>
    %170 = arith.truncf %127 : vector<2x128xf32> to vector<2x128xbf16>
    %cst_52 = arith.constant dense<0.000000e+00> : vector<2x512xf32>
    %171 = tpu.matmul %170, %11, %cst_52 {dimension_numbers = #tpu.dot_dimension_numbers<[1], [0], [0], [1], [0, 0, 1, 1], [], []>} : vector<2x128xbf16>, vector<128x512xbf16>, vector<2x512xf32> -> vector<2x512xf32>
    %172 = arith.addf %169, %171 : vector<2x512xf32>
    %173 = vector.extract_strided_slice %168 {offsets = [0, 512], sizes = [2, 512], strides = [1, 1]} : vector<2x1024xf32> to vector<2x512xf32>
    %174 = arith.truncf %152 : vector<2x128xf32> to vector<2x128xbf16>
    %cst_53 = arith.constant dense<0.000000e+00> : vector<2x512xf32>
    %175 = tpu.matmul %174, %12, %cst_53 {dimension_numbers = #tpu.dot_dimension_numbers<[1], [0], [0], [1], [0, 0, 1, 1], [], []>} : vector<2x128xbf16>, vector<128x512xbf16>, vector<2x512xf32> -> vector<2x512xf32>
    %176 = arith.addf %173, %175 : vector<2x512xf32>
    %177 = vector.extract_strided_slice %172 {offsets = [0, 0], sizes = [2, 128], strides = [1, 1]} : vector<2x512xf32> to vector<2x128xf32>
    %178 = arith.negf %177 : vector<2x128xf32>
    %179 = math.exp %178 : vector<2x128xf32>
    %cst_54 = arith.constant 1.000000e+00 : f32
    %180 = vector.broadcast %cst_54 : f32 to vector<2x128xf32>
    %181 = arith.addf %180, %179 : vector<2x128xf32>
    %182 = arith.divf %180, %181 : vector<2x128xf32>
    %183 = vector.extract_strided_slice %172 {offsets = [0, 128], sizes = [2, 128], strides = [1, 1]} : vector<2x512xf32> to vector<2x128xf32>
    %184 = arith.negf %183 : vector<2x128xf32>
    %185 = math.exp %184 : vector<2x128xf32>
    %cst_55 = arith.constant 1.000000e+00 : f32
    %186 = vector.broadcast %cst_55 : f32 to vector<2x128xf32>
    %187 = arith.addf %186, %185 : vector<2x128xf32>
    %188 = arith.divf %186, %187 : vector<2x128xf32>
    %189 = vector.extract_strided_slice %172 {offsets = [0, 256], sizes = [2, 128], strides = [1, 1]} : vector<2x512xf32> to vector<2x128xf32>
    %190 = math.tanh %189 : vector<2x128xf32>
    %191 = vector.extract_strided_slice %172 {offsets = [0, 384], sizes = [2, 128], strides = [1, 1]} : vector<2x512xf32> to vector<2x128xf32>
    %192 = arith.negf %191 : vector<2x128xf32>
    %193 = math.exp %192 : vector<2x128xf32>
    %cst_56 = arith.constant 1.000000e+00 : f32
    %194 = vector.broadcast %cst_56 : f32 to vector<2x128xf32>
    %195 = arith.addf %194, %193 : vector<2x128xf32>
    %196 = arith.divf %194, %195 : vector<2x128xf32>
    %197 = arith.mulf %188, %125 : vector<2x128xf32>
    %198 = arith.mulf %182, %190 : vector<2x128xf32>
    %199 = arith.addf %197, %198 : vector<2x128xf32>
    %200 = math.tanh %199 : vector<2x128xf32>
    %201 = arith.mulf %196, %200 : vector<2x128xf32>
    %202 = vector.extract_strided_slice %176 {offsets = [0, 0], sizes = [2, 128], strides = [1, 1]} : vector<2x512xf32> to vector<2x128xf32>
    %203 = arith.negf %202 : vector<2x128xf32>
    %204 = math.exp %203 : vector<2x128xf32>
    %cst_57 = arith.constant 1.000000e+00 : f32
    %205 = vector.broadcast %cst_57 : f32 to vector<2x128xf32>
    %206 = arith.addf %205, %204 : vector<2x128xf32>
    %207 = arith.divf %205, %206 : vector<2x128xf32>
    %208 = vector.extract_strided_slice %176 {offsets = [0, 128], sizes = [2, 128], strides = [1, 1]} : vector<2x512xf32> to vector<2x128xf32>
    %209 = arith.negf %208 : vector<2x128xf32>
    %210 = math.exp %209 : vector<2x128xf32>
    %cst_58 = arith.constant 1.000000e+00 : f32
    %211 = vector.broadcast %cst_58 : f32 to vector<2x128xf32>
    %212 = arith.addf %211, %210 : vector<2x128xf32>
    %213 = arith.divf %211, %212 : vector<2x128xf32>
    %214 = vector.extract_strided_slice %176 {offsets = [0, 256], sizes = [2, 128], strides = [1, 1]} : vector<2x512xf32> to vector<2x128xf32>
    %215 = math.tanh %214 : vector<2x128xf32>
    %216 = vector.extract_strided_slice %176 {offsets = [0, 384], sizes = [2, 128], strides = [1, 1]} : vector<2x512xf32> to vector<2x128xf32>
    %217 = arith.negf %216 : vector<2x128xf32>
    %218 = math.exp %217 : vector<2x128xf32>
    %cst_59 = arith.constant 1.000000e+00 : f32
    %219 = vector.broadcast %cst_59 : f32 to vector<2x128xf32>
    %220 = arith.addf %219, %218 : vector<2x128xf32>
    %221 = arith.divf %219, %220 : vector<2x128xf32>
    %222 = arith.mulf %213, %150 : vector<2x128xf32>
    %223 = arith.mulf %207, %215 : vector<2x128xf32>
    %224 = arith.addf %222, %223 : vector<2x128xf32>
    %225 = math.tanh %224 : vector<2x128xf32>
    %226 = arith.mulf %221, %225 : vector<2x128xf32>
    %227 = arith.index_cast %c2_i32 : i32 to index
    %c0_60 = arith.constant 0 : index
    %c0_61 = arith.constant 0 : index
    %228 = vector.load %arg12[%227, %c0_60, %c0_61] : memref<8x2x128xf32, #tpu.memory_space<vmem>>, vector<1x2x128xf32>
    %229 = vector.shape_cast %228 : vector<1x2x128xf32> to vector<2x128xf32>
    %230 = vector.shape_cast %201 : vector<2x128xf32> to vector<1x2x128xf32>
    tpu.vector_store %arg12[%227, %c0_60, %c0_61], %230 {strides = array<i32>} : memref<8x2x128xf32, #tpu.memory_space<vmem>>, vector<1x2x128xf32>,
    %c7_i32_62 = arith.constant 7 : i32
    %231 = arith.subi %c7_i32_62, %c2_i32 : i32
    %232 = arith.index_cast %231 : i32 to index
    %c0_63 = arith.constant 0 : index
    %c0_64 = arith.constant 0 : index
    %233 = vector.load %arg13[%232, %c0_63, %c0_64] : memref<8x2x128xf32, #tpu.memory_space<vmem>>, vector<1x2x128xf32>
    %234 = vector.shape_cast %233 : vector<1x2x128xf32> to vector<2x128xf32>
    %235 = vector.shape_cast %226 : vector<2x128xf32> to vector<1x2x128xf32>
    tpu.vector_store %arg13[%232, %c0_63, %c0_64], %235 {strides = array<i32>} : memref<8x2x128xf32, #tpu.memory_space<vmem>>, vector<1x2x128xf32>,
    %c3_i32 = arith.constant 3 : i32
    %236 = arith.index_cast %c3_i32 : i32 to index
    %c0_65 = arith.constant 0 : index
    %c0_66 = arith.constant 0 : index
    %237 = vector.load %arg11[%236, %c0_65, %c0_66] : memref<8x2x1024xf32, #tpu.memory_space<vmem>>, vector<1x2x1024xf32>
    %238 = vector.shape_cast %237 : vector<1x2x1024xf32> to vector<2x1024xf32>
    %c7_i32_67 = arith.constant 7 : i32
    %239 = arith.subi %c7_i32_67, %c3_i32 : i32
    %240 = arith.index_cast %239 : i32 to index
    %c0_68 = arith.constant 0 : index
    %c0_69 = arith.constant 0 : index
    %241 = vector.load %arg11[%240, %c0_68, %c0_69] : memref<8x2x1024xf32, #tpu.memory_space<vmem>>, vector<1x2x1024xf32>
    %242 = vector.shape_cast %241 : vector<1x2x1024xf32> to vector<2x1024xf32>
    %243 = vector.extract_strided_slice %238 {offsets = [0, 0], sizes = [2, 512], strides = [1, 1]} : vector<2x1024xf32> to vector<2x512xf32>
    %244 = arith.truncf %201 : vector<2x128xf32> to vector<2x128xbf16>
    %cst_70 = arith.constant dense<0.000000e+00> : vector<2x512xf32>
    %245 = tpu.matmul %244, %11, %cst_70 {dimension_numbers = #tpu.dot_dimension_numbers<[1], [0], [0], [1], [0, 0, 1, 1], [], []>} : vector<2x128xbf16>, vector<128x512xbf16>, vector<2x512xf32> -> vector<2x512xf32>
    %246 = arith.addf %243, %245 : vector<2x512xf32>
    %247 = vector.extract_strided_slice %242 {offsets = [0, 512], sizes = [2, 512], strides = [1, 1]} : vector<2x1024xf32> to vector<2x512xf32>
    %248 = arith.truncf %226 : vector<2x128xf32> to vector<2x128xbf16>
    %cst_71 = arith.constant dense<0.000000e+00> : vector<2x512xf32>
    %249 = tpu.matmul %248, %12, %cst_71 {dimension_numbers = #tpu.dot_dimension_numbers<[1], [0], [0], [1], [0, 0, 1, 1], [], []>} : vector<2x128xbf16>, vector<128x512xbf16>, vector<2x512xf32> -> vector<2x512xf32>
    %250 = arith.addf %247, %249 : vector<2x512xf32>
    %251 = vector.extract_strided_slice %246 {offsets = [0, 0], sizes = [2, 128], strides = [1, 1]} : vector<2x512xf32> to vector<2x128xf32>
    %252 = arith.negf %251 : vector<2x128xf32>
    %253 = math.exp %252 : vector<2x128xf32>
    %cst_72 = arith.constant 1.000000e+00 : f32
    %254 = vector.broadcast %cst_72 : f32 to vector<2x128xf32>
    %255 = arith.addf %254, %253 : vector<2x128xf32>
    %256 = arith.divf %254, %255 : vector<2x128xf32>
    %257 = vector.extract_strided_slice %246 {offsets = [0, 128], sizes = [2, 128], strides = [1, 1]} : vector<2x512xf32> to vector<2x128xf32>
    %258 = arith.negf %257 : vector<2x128xf32>
    %259 = math.exp %258 : vector<2x128xf32>
    %cst_73 = arith.constant 1.000000e+00 : f32
    %260 = vector.broadcast %cst_73 : f32 to vector<2x128xf32>
    %261 = arith.addf %260, %259 : vector<2x128xf32>
    %262 = arith.divf %260, %261 : vector<2x128xf32>
    %263 = vector.extract_strided_slice %246 {offsets = [0, 256], sizes = [2, 128], strides = [1, 1]} : vector<2x512xf32> to vector<2x128xf32>
    %264 = math.tanh %263 : vector<2x128xf32>
    %265 = vector.extract_strided_slice %246 {offsets = [0, 384], sizes = [2, 128], strides = [1, 1]} : vector<2x512xf32> to vector<2x128xf32>
    %266 = arith.negf %265 : vector<2x128xf32>
    %267 = math.exp %266 : vector<2x128xf32>
    %cst_74 = arith.constant 1.000000e+00 : f32
    %268 = vector.broadcast %cst_74 : f32 to vector<2x128xf32>
    %269 = arith.addf %268, %267 : vector<2x128xf32>
    %270 = arith.divf %268, %269 : vector<2x128xf32>
    %271 = arith.mulf %262, %199 : vector<2x128xf32>
    %272 = arith.mulf %256, %264 : vector<2x128xf32>
    %273 = arith.addf %271, %272 : vector<2x128xf32>
    %274 = math.tanh %273 : vector<2x128xf32>
    %275 = arith.mulf %270, %274 : vector<2x128xf32>
    %276 = vector.extract_strided_slice %250 {offsets = [0, 0], sizes = [2, 128], strides = [1, 1]} : vector<2x512xf32> to vector<2x128xf32>
    %277 = arith.negf %276 : vector<2x128xf32>
    %278 = math.exp %277 : vector<2x128xf32>
    %cst_75 = arith.constant 1.000000e+00 : f32
    %279 = vector.broadcast %cst_75 : f32 to vector<2x128xf32>
    %280 = arith.addf %279, %278 : vector<2x128xf32>
    %281 = arith.divf %279, %280 : vector<2x128xf32>
    %282 = vector.extract_strided_slice %250 {offsets = [0, 128], sizes = [2, 128], strides = [1, 1]} : vector<2x512xf32> to vector<2x128xf32>
    %283 = arith.negf %282 : vector<2x128xf32>
    %284 = math.exp %283 : vector<2x128xf32>
    %cst_76 = arith.constant 1.000000e+00 : f32
    %285 = vector.broadcast %cst_76 : f32 to vector<2x128xf32>
    %286 = arith.addf %285, %284 : vector<2x128xf32>
    %287 = arith.divf %285, %286 : vector<2x128xf32>
    %288 = vector.extract_strided_slice %250 {offsets = [0, 256], sizes = [2, 128], strides = [1, 1]} : vector<2x512xf32> to vector<2x128xf32>
    %289 = math.tanh %288 : vector<2x128xf32>
    %290 = vector.extract_strided_slice %250 {offsets = [0, 384], sizes = [2, 128], strides = [1, 1]} : vector<2x512xf32> to vector<2x128xf32>
    %291 = arith.negf %290 : vector<2x128xf32>
    %292 = math.exp %291 : vector<2x128xf32>
    %cst_77 = arith.constant 1.000000e+00 : f32
    %293 = vector.broadcast %cst_77 : f32 to vector<2x128xf32>
    %294 = arith.addf %293, %292 : vector<2x128xf32>
    %295 = arith.divf %293, %294 : vector<2x128xf32>
    %296 = arith.mulf %287, %224 : vector<2x128xf32>
    %297 = arith.mulf %281, %289 : vector<2x128xf32>
    %298 = arith.addf %296, %297 : vector<2x128xf32>
    %299 = math.tanh %298 : vector<2x128xf32>
    %300 = arith.mulf %295, %299 : vector<2x128xf32>
    %301 = arith.index_cast %c3_i32 : i32 to index
    %c0_78 = arith.constant 0 : index
    %c0_79 = arith.constant 0 : index
    %302 = vector.load %arg12[%301, %c0_78, %c0_79] : memref<8x2x128xf32, #tpu.memory_space<vmem>>, vector<1x2x128xf32>
    %303 = vector.shape_cast %302 : vector<1x2x128xf32> to vector<2x128xf32>
    %304 = vector.shape_cast %275 : vector<2x128xf32> to vector<1x2x128xf32>
    tpu.vector_store %arg12[%301, %c0_78, %c0_79], %304 {strides = array<i32>} : memref<8x2x128xf32, #tpu.memory_space<vmem>>, vector<1x2x128xf32>,
    %c7_i32_80 = arith.constant 7 : i32
    %305 = arith.subi %c7_i32_80, %c3_i32 : i32
    %306 = arith.index_cast %305 : i32 to index
    %c0_81 = arith.constant 0 : index
    %c0_82 = arith.constant 0 : index
    %307 = vector.load %arg13[%306, %c0_81, %c0_82] : memref<8x2x128xf32, #tpu.memory_space<vmem>>, vector<1x2x128xf32>
    %308 = vector.shape_cast %307 : vector<1x2x128xf32> to vector<2x128xf32>
    %309 = vector.shape_cast %300 : vector<2x128xf32> to vector<1x2x128xf32>
    tpu.vector_store %arg13[%306, %c0_81, %c0_82], %309 {strides = array<i32>} : memref<8x2x128xf32, #tpu.memory_space<vmem>>, vector<1x2x128xf32>,
    %c4_i32 = arith.constant 4 : i32
    %310 = arith.index_cast %c4_i32 : i32 to index
    %c0_83 = arith.constant 0 : index
    %c0_84 = arith.constant 0 : index
    %311 = vector.load %arg11[%310, %c0_83, %c0_84] : memref<8x2x1024xf32, #tpu.memory_space<vmem>>, vector<1x2x1024xf32>
    %312 = vector.shape_cast %311 : vector<1x2x1024xf32> to vector<2x1024xf32>
    %c7_i32_85 = arith.constant 7 : i32
    %313 = arith.subi %c7_i32_85, %c4_i32 : i32
    %314 = arith.index_cast %313 : i32 to index
    %c0_86 = arith.constant 0 : index
    %c0_87 = arith.constant 0 : index
    %315 = vector.load %arg11[%314, %c0_86, %c0_87] : memref<8x2x1024xf32, #tpu.memory_space<vmem>>, vector<1x2x1024xf32>
    %316 = vector.shape_cast %315 : vector<1x2x1024xf32> to vector<2x1024xf32>
    %317 = vector.extract_strided_slice %312 {offsets = [0, 0], sizes = [2, 512], strides = [1, 1]} : vector<2x1024xf32> to vector<2x512xf32>
    %318 = arith.truncf %275 : vector<2x128xf32> to vector<2x128xbf16>
    %cst_88 = arith.constant dense<0.000000e+00> : vector<2x512xf32>
    %319 = tpu.matmul %318, %11, %cst_88 {dimension_numbers = #tpu.dot_dimension_numbers<[1], [0], [0], [1], [0, 0, 1, 1], [], []>} : vector<2x128xbf16>, vector<128x512xbf16>, vector<2x512xf32> -> vector<2x512xf32>
    %320 = arith.addf %317, %319 : vector<2x512xf32>
    %321 = vector.extract_strided_slice %316 {offsets = [0, 512], sizes = [2, 512], strides = [1, 1]} : vector<2x1024xf32> to vector<2x512xf32>
    %322 = arith.truncf %300 : vector<2x128xf32> to vector<2x128xbf16>
    %cst_89 = arith.constant dense<0.000000e+00> : vector<2x512xf32>
    %323 = tpu.matmul %322, %12, %cst_89 {dimension_numbers = #tpu.dot_dimension_numbers<[1], [0], [0], [1], [0, 0, 1, 1], [], []>} : vector<2x128xbf16>, vector<128x512xbf16>, vector<2x512xf32> -> vector<2x512xf32>
    %324 = arith.addf %321, %323 : vector<2x512xf32>
    %325 = vector.extract_strided_slice %320 {offsets = [0, 0], sizes = [2, 128], strides = [1, 1]} : vector<2x512xf32> to vector<2x128xf32>
    %326 = arith.negf %325 : vector<2x128xf32>
    %327 = math.exp %326 : vector<2x128xf32>
    %cst_90 = arith.constant 1.000000e+00 : f32
    %328 = vector.broadcast %cst_90 : f32 to vector<2x128xf32>
    %329 = arith.addf %328, %327 : vector<2x128xf32>
    %330 = arith.divf %328, %329 : vector<2x128xf32>
    %331 = vector.extract_strided_slice %320 {offsets = [0, 128], sizes = [2, 128], strides = [1, 1]} : vector<2x512xf32> to vector<2x128xf32>
    %332 = arith.negf %331 : vector<2x128xf32>
    %333 = math.exp %332 : vector<2x128xf32>
    %cst_91 = arith.constant 1.000000e+00 : f32
    %334 = vector.broadcast %cst_91 : f32 to vector<2x128xf32>
    %335 = arith.addf %334, %333 : vector<2x128xf32>
    %336 = arith.divf %334, %335 : vector<2x128xf32>
    %337 = vector.extract_strided_slice %320 {offsets = [0, 256], sizes = [2, 128], strides = [1, 1]} : vector<2x512xf32> to vector<2x128xf32>
    %338 = math.tanh %337 : vector<2x128xf32>
    %339 = vector.extract_strided_slice %320 {offsets = [0, 384], sizes = [2, 128], strides = [1, 1]} : vector<2x512xf32> to vector<2x128xf32>
    %340 = arith.negf %339 : vector<2x128xf32>
    %341 = math.exp %340 : vector<2x128xf32>
    %cst_92 = arith.constant 1.000000e+00 : f32
    %342 = vector.broadcast %cst_92 : f32 to vector<2x128xf32>
    %343 = arith.addf %342, %341 : vector<2x128xf32>
    %344 = arith.divf %342, %343 : vector<2x128xf32>
    %345 = arith.mulf %336, %273 : vector<2x128xf32>
    %346 = arith.mulf %330, %338 : vector<2x128xf32>
    %347 = arith.addf %345, %346 : vector<2x128xf32>
    %348 = math.tanh %347 : vector<2x128xf32>
    %349 = arith.mulf %344, %348 : vector<2x128xf32>
    %350 = vector.extract_strided_slice %324 {offsets = [0, 0], sizes = [2, 128], strides = [1, 1]} : vector<2x512xf32> to vector<2x128xf32>
    %351 = arith.negf %350 : vector<2x128xf32>
    %352 = math.exp %351 : vector<2x128xf32>
    %cst_93 = arith.constant 1.000000e+00 : f32
    %353 = vector.broadcast %cst_93 : f32 to vector<2x128xf32>
    %354 = arith.addf %353, %352 : vector<2x128xf32>
    %355 = arith.divf %353, %354 : vector<2x128xf32>
    %356 = vector.extract_strided_slice %324 {offsets = [0, 128], sizes = [2, 128], strides = [1, 1]} : vector<2x512xf32> to vector<2x128xf32>
    %357 = arith.negf %356 : vector<2x128xf32>
    %358 = math.exp %357 : vector<2x128xf32>
    %cst_94 = arith.constant 1.000000e+00 : f32
    %359 = vector.broadcast %cst_94 : f32 to vector<2x128xf32>
    %360 = arith.addf %359, %358 : vector<2x128xf32>
    %361 = arith.divf %359, %360 : vector<2x128xf32>
    %362 = vector.extract_strided_slice %324 {offsets = [0, 256], sizes = [2, 128], strides = [1, 1]} : vector<2x512xf32> to vector<2x128xf32>
    %363 = math.tanh %362 : vector<2x128xf32>
    %364 = vector.extract_strided_slice %324 {offsets = [0, 384], sizes = [2, 128], strides = [1, 1]} : vector<2x512xf32> to vector<2x128xf32>
    %365 = arith.negf %364 : vector<2x128xf32>
    %366 = math.exp %365 : vector<2x128xf32>
    %cst_95 = arith.constant 1.000000e+00 : f32
    %367 = vector.broadcast %cst_95 : f32 to vector<2x128xf32>
    %368 = arith.addf %367, %366 : vector<2x128xf32>
    %369 = arith.divf %367, %368 : vector<2x128xf32>
    %370 = arith.mulf %361, %298 : vector<2x128xf32>
    %371 = arith.mulf %355, %363 : vector<2x128xf32>
    %372 = arith.addf %370, %371 : vector<2x128xf32>
    %373 = math.tanh %372 : vector<2x128xf32>
    %374 = arith.mulf %369, %373 : vector<2x128xf32>
    %375 = arith.index_cast %c4_i32 : i32 to index
    %c0_96 = arith.constant 0 : index
    %c0_97 = arith.constant 0 : index
    %376 = vector.load %arg12[%375, %c0_96, %c0_97] : memref<8x2x128xf32, #tpu.memory_space<vmem>>, vector<1x2x128xf32>
    %377 = vector.shape_cast %376 : vector<1x2x128xf32> to vector<2x128xf32>
    %378 = vector.shape_cast %349 : vector<2x128xf32> to vector<1x2x128xf32>
    tpu.vector_store %arg12[%375, %c0_96, %c0_97], %378 {strides = array<i32>} : memref<8x2x128xf32, #tpu.memory_space<vmem>>, vector<1x2x128xf32>,
    %c7_i32_98 = arith.constant 7 : i32
    %379 = arith.subi %c7_i32_98, %c4_i32 : i32
    %380 = arith.index_cast %379 : i32 to index
    %c0_99 = arith.constant 0 : index
    %c0_100 = arith.constant 0 : index
    %381 = vector.load %arg13[%380, %c0_99, %c0_100] : memref<8x2x128xf32, #tpu.memory_space<vmem>>, vector<1x2x128xf32>
    %382 = vector.shape_cast %381 : vector<1x2x128xf32> to vector<2x128xf32>
    %383 = vector.shape_cast %374 : vector<2x128xf32> to vector<1x2x128xf32>
    tpu.vector_store %arg13[%380, %c0_99, %c0_100], %383 {strides = array<i32>} : memref<8x2x128xf32, #tpu.memory_space<vmem>>, vector<1x2x128xf32>,
    %c5_i32 = arith.constant 5 : i32
    %384 = arith.index_cast %c5_i32 : i32 to index
    %c0_101 = arith.constant 0 : index
    %c0_102 = arith.constant 0 : index
    %385 = vector.load %arg11[%384, %c0_101, %c0_102] : memref<8x2x1024xf32, #tpu.memory_space<vmem>>, vector<1x2x1024xf32>
    %386 = vector.shape_cast %385 : vector<1x2x1024xf32> to vector<2x1024xf32>
    %c7_i32_103 = arith.constant 7 : i32
    %387 = arith.subi %c7_i32_103, %c5_i32 : i32
    %388 = arith.index_cast %387 : i32 to index
    %c0_104 = arith.constant 0 : index
    %c0_105 = arith.constant 0 : index
    %389 = vector.load %arg11[%388, %c0_104, %c0_105] : memref<8x2x1024xf32, #tpu.memory_space<vmem>>, vector<1x2x1024xf32>
    %390 = vector.shape_cast %389 : vector<1x2x1024xf32> to vector<2x1024xf32>
    %391 = vector.extract_strided_slice %386 {offsets = [0, 0], sizes = [2, 512], strides = [1, 1]} : vector<2x1024xf32> to vector<2x512xf32>
    %392 = arith.truncf %349 : vector<2x128xf32> to vector<2x128xbf16>
    %cst_106 = arith.constant dense<0.000000e+00> : vector<2x512xf32>
    %393 = tpu.matmul %392, %11, %cst_106 {dimension_numbers = #tpu.dot_dimension_numbers<[1], [0], [0], [1], [0, 0, 1, 1], [], []>} : vector<2x128xbf16>, vector<128x512xbf16>, vector<2x512xf32> -> vector<2x512xf32>
    %394 = arith.addf %391, %393 : vector<2x512xf32>
    %395 = vector.extract_strided_slice %390 {offsets = [0, 512], sizes = [2, 512], strides = [1, 1]} : vector<2x1024xf32> to vector<2x512xf32>
    %396 = arith.truncf %374 : vector<2x128xf32> to vector<2x128xbf16>
    %cst_107 = arith.constant dense<0.000000e+00> : vector<2x512xf32>
    %397 = tpu.matmul %396, %12, %cst_107 {dimension_numbers = #tpu.dot_dimension_numbers<[1], [0], [0], [1], [0, 0, 1, 1], [], []>} : vector<2x128xbf16>, vector<128x512xbf16>, vector<2x512xf32> -> vector<2x512xf32>
    %398 = arith.addf %395, %397 : vector<2x512xf32>
    %399 = vector.extract_strided_slice %394 {offsets = [0, 0], sizes = [2, 128], strides = [1, 1]} : vector<2x512xf32> to vector<2x128xf32>
    %400 = arith.negf %399 : vector<2x128xf32>
    %401 = math.exp %400 : vector<2x128xf32>
    %cst_108 = arith.constant 1.000000e+00 : f32
    %402 = vector.broadcast %cst_108 : f32 to vector<2x128xf32>
    %403 = arith.addf %402, %401 : vector<2x128xf32>
    %404 = arith.divf %402, %403 : vector<2x128xf32>
    %405 = vector.extract_strided_slice %394 {offsets = [0, 128], sizes = [2, 128], strides = [1, 1]} : vector<2x512xf32> to vector<2x128xf32>
    %406 = arith.negf %405 : vector<2x128xf32>
    %407 = math.exp %406 : vector<2x128xf32>
    %cst_109 = arith.constant 1.000000e+00 : f32
    %408 = vector.broadcast %cst_109 : f32 to vector<2x128xf32>
    %409 = arith.addf %408, %407 : vector<2x128xf32>
    %410 = arith.divf %408, %409 : vector<2x128xf32>
    %411 = vector.extract_strided_slice %394 {offsets = [0, 256], sizes = [2, 128], strides = [1, 1]} : vector<2x512xf32> to vector<2x128xf32>
    %412 = math.tanh %411 : vector<2x128xf32>
    %413 = vector.extract_strided_slice %394 {offsets = [0, 384], sizes = [2, 128], strides = [1, 1]} : vector<2x512xf32> to vector<2x128xf32>
    %414 = arith.negf %413 : vector<2x128xf32>
    %415 = math.exp %414 : vector<2x128xf32>
    %cst_110 = arith.constant 1.000000e+00 : f32
    %416 = vector.broadcast %cst_110 : f32 to vector<2x128xf32>
    %417 = arith.addf %416, %415 : vector<2x128xf32>
    %418 = arith.divf %416, %417 : vector<2x128xf32>
    %419 = arith.mulf %410, %347 : vector<2x128xf32>
    %420 = arith.mulf %404, %412 : vector<2x128xf32>
    %421 = arith.addf %419, %420 : vector<2x128xf32>
    %422 = math.tanh %421 : vector<2x128xf32>
    %423 = arith.mulf %418, %422 : vector<2x128xf32>
    %424 = vector.extract_strided_slice %398 {offsets = [0, 0], sizes = [2, 128], strides = [1, 1]} : vector<2x512xf32> to vector<2x128xf32>
    %425 = arith.negf %424 : vector<2x128xf32>
    %426 = math.exp %425 : vector<2x128xf32>
    %cst_111 = arith.constant 1.000000e+00 : f32
    %427 = vector.broadcast %cst_111 : f32 to vector<2x128xf32>
    %428 = arith.addf %427, %426 : vector<2x128xf32>
    %429 = arith.divf %427, %428 : vector<2x128xf32>
    %430 = vector.extract_strided_slice %398 {offsets = [0, 128], sizes = [2, 128], strides = [1, 1]} : vector<2x512xf32> to vector<2x128xf32>
    %431 = arith.negf %430 : vector<2x128xf32>
    %432 = math.exp %431 : vector<2x128xf32>
    %cst_112 = arith.constant 1.000000e+00 : f32
    %433 = vector.broadcast %cst_112 : f32 to vector<2x128xf32>
    %434 = arith.addf %433, %432 : vector<2x128xf32>
    %435 = arith.divf %433, %434 : vector<2x128xf32>
    %436 = vector.extract_strided_slice %398 {offsets = [0, 256], sizes = [2, 128], strides = [1, 1]} : vector<2x512xf32> to vector<2x128xf32>
    %437 = math.tanh %436 : vector<2x128xf32>
    %438 = vector.extract_strided_slice %398 {offsets = [0, 384], sizes = [2, 128], strides = [1, 1]} : vector<2x512xf32> to vector<2x128xf32>
    %439 = arith.negf %438 : vector<2x128xf32>
    %440 = math.exp %439 : vector<2x128xf32>
    %cst_113 = arith.constant 1.000000e+00 : f32
    %441 = vector.broadcast %cst_113 : f32 to vector<2x128xf32>
    %442 = arith.addf %441, %440 : vector<2x128xf32>
    %443 = arith.divf %441, %442 : vector<2x128xf32>
    %444 = arith.mulf %435, %372 : vector<2x128xf32>
    %445 = arith.mulf %429, %437 : vector<2x128xf32>
    %446 = arith.addf %444, %445 : vector<2x128xf32>
    %447 = math.tanh %446 : vector<2x128xf32>
    %448 = arith.mulf %443, %447 : vector<2x128xf32>
    %449 = arith.index_cast %c5_i32 : i32 to index
    %c0_114 = arith.constant 0 : index
    %c0_115 = arith.constant 0 : index
    %450 = vector.load %arg12[%449, %c0_114, %c0_115] : memref<8x2x128xf32, #tpu.memory_space<vmem>>, vector<1x2x128xf32>
    %451 = vector.shape_cast %450 : vector<1x2x128xf32> to vector<2x128xf32>
    %452 = vector.shape_cast %423 : vector<2x128xf32> to vector<1x2x128xf32>
    tpu.vector_store %arg12[%449, %c0_114, %c0_115], %452 {strides = array<i32>} : memref<8x2x128xf32, #tpu.memory_space<vmem>>, vector<1x2x128xf32>,
    %c7_i32_116 = arith.constant 7 : i32
    %453 = arith.subi %c7_i32_116, %c5_i32 : i32
    %454 = arith.index_cast %453 : i32 to index
    %c0_117 = arith.constant 0 : index
    %c0_118 = arith.constant 0 : index
    %455 = vector.load %arg13[%454, %c0_117, %c0_118] : memref<8x2x128xf32, #tpu.memory_space<vmem>>, vector<1x2x128xf32>
    %456 = vector.shape_cast %455 : vector<1x2x128xf32> to vector<2x128xf32>
    %457 = vector.shape_cast %448 : vector<2x128xf32> to vector<1x2x128xf32>
    tpu.vector_store %arg13[%454, %c0_117, %c0_118], %457 {strides = array<i32>} : memref<8x2x128xf32, #tpu.memory_space<vmem>>, vector<1x2x128xf32>,
    %c6_i32 = arith.constant 6 : i32
    %458 = arith.index_cast %c6_i32 : i32 to index
    %c0_119 = arith.constant 0 : index
    %c0_120 = arith.constant 0 : index
    %459 = vector.load %arg11[%458, %c0_119, %c0_120] : memref<8x2x1024xf32, #tpu.memory_space<vmem>>, vector<1x2x1024xf32>
    %460 = vector.shape_cast %459 : vector<1x2x1024xf32> to vector<2x1024xf32>
    %c7_i32_121 = arith.constant 7 : i32
    %461 = arith.subi %c7_i32_121, %c6_i32 : i32
    %462 = arith.index_cast %461 : i32 to index
    %c0_122 = arith.constant 0 : index
    %c0_123 = arith.constant 0 : index
    %463 = vector.load %arg11[%462, %c0_122, %c0_123] : memref<8x2x1024xf32, #tpu.memory_space<vmem>>, vector<1x2x1024xf32>
    %464 = vector.shape_cast %463 : vector<1x2x1024xf32> to vector<2x1024xf32>
    %465 = vector.extract_strided_slice %460 {offsets = [0, 0], sizes = [2, 512], strides = [1, 1]} : vector<2x1024xf32> to vector<2x512xf32>
    %466 = arith.truncf %423 : vector<2x128xf32> to vector<2x128xbf16>
    %cst_124 = arith.constant dense<0.000000e+00> : vector<2x512xf32>
    %467 = tpu.matmul %466, %11, %cst_124 {dimension_numbers = #tpu.dot_dimension_numbers<[1], [0], [0], [1], [0, 0, 1, 1], [], []>} : vector<2x128xbf16>, vector<128x512xbf16>, vector<2x512xf32> -> vector<2x512xf32>
    %468 = arith.addf %465, %467 : vector<2x512xf32>
    %469 = vector.extract_strided_slice %464 {offsets = [0, 512], sizes = [2, 512], strides = [1, 1]} : vector<2x1024xf32> to vector<2x512xf32>
    %470 = arith.truncf %448 : vector<2x128xf32> to vector<2x128xbf16>
    %cst_125 = arith.constant dense<0.000000e+00> : vector<2x512xf32>
    %471 = tpu.matmul %470, %12, %cst_125 {dimension_numbers = #tpu.dot_dimension_numbers<[1], [0], [0], [1], [0, 0, 1, 1], [], []>} : vector<2x128xbf16>, vector<128x512xbf16>, vector<2x512xf32> -> vector<2x512xf32>
    %472 = arith.addf %469, %471 : vector<2x512xf32>
    %473 = vector.extract_strided_slice %468 {offsets = [0, 0], sizes = [2, 128], strides = [1, 1]} : vector<2x512xf32> to vector<2x128xf32>
    %474 = arith.negf %473 : vector<2x128xf32>
    %475 = math.exp %474 : vector<2x128xf32>
    %cst_126 = arith.constant 1.000000e+00 : f32
    %476 = vector.broadcast %cst_126 : f32 to vector<2x128xf32>
    %477 = arith.addf %476, %475 : vector<2x128xf32>
    %478 = arith.divf %476, %477 : vector<2x128xf32>
    %479 = vector.extract_strided_slice %468 {offsets = [0, 128], sizes = [2, 128], strides = [1, 1]} : vector<2x512xf32> to vector<2x128xf32>
    %480 = arith.negf %479 : vector<2x128xf32>
    %481 = math.exp %480 : vector<2x128xf32>
    %cst_127 = arith.constant 1.000000e+00 : f32
    %482 = vector.broadcast %cst_127 : f32 to vector<2x128xf32>
    %483 = arith.addf %482, %481 : vector<2x128xf32>
    %484 = arith.divf %482, %483 : vector<2x128xf32>
    %485 = vector.extract_strided_slice %468 {offsets = [0, 256], sizes = [2, 128], strides = [1, 1]} : vector<2x512xf32> to vector<2x128xf32>
    %486 = math.tanh %485 : vector<2x128xf32>
    %487 = vector.extract_strided_slice %468 {offsets = [0, 384], sizes = [2, 128], strides = [1, 1]} : vector<2x512xf32> to vector<2x128xf32>
    %488 = arith.negf %487 : vector<2x128xf32>
    %489 = math.exp %488 : vector<2x128xf32>
    %cst_128 = arith.constant 1.000000e+00 : f32
    %490 = vector.broadcast %cst_128 : f32 to vector<2x128xf32>
    %491 = arith.addf %490, %489 : vector<2x128xf32>
    %492 = arith.divf %490, %491 : vector<2x128xf32>
    %493 = arith.mulf %484, %421 : vector<2x128xf32>
    %494 = arith.mulf %478, %486 : vector<2x128xf32>
    %495 = arith.addf %493, %494 : vector<2x128xf32>
    %496 = math.tanh %495 : vector<2x128xf32>
    %497 = arith.mulf %492, %496 : vector<2x128xf32>
    %498 = vector.extract_strided_slice %472 {offsets = [0, 0], sizes = [2, 128], strides = [1, 1]} : vector<2x512xf32> to vector<2x128xf32>
    %499 = arith.negf %498 : vector<2x128xf32>
    %500 = math.exp %499 : vector<2x128xf32>
    %cst_129 = arith.constant 1.000000e+00 : f32
    %501 = vector.broadcast %cst_129 : f32 to vector<2x128xf32>
    %502 = arith.addf %501, %500 : vector<2x128xf32>
    %503 = arith.divf %501, %502 : vector<2x128xf32>
    %504 = vector.extract_strided_slice %472 {offsets = [0, 128], sizes = [2, 128], strides = [1, 1]} : vector<2x512xf32> to vector<2x128xf32>
    %505 = arith.negf %504 : vector<2x128xf32>
    %506 = math.exp %505 : vector<2x128xf32>
    %cst_130 = arith.constant 1.000000e+00 : f32
    %507 = vector.broadcast %cst_130 : f32 to vector<2x128xf32>
    %508 = arith.addf %507, %506 : vector<2x128xf32>
    %509 = arith.divf %507, %508 : vector<2x128xf32>
    %510 = vector.extract_strided_slice %472 {offsets = [0, 256], sizes = [2, 128], strides = [1, 1]} : vector<2x512xf32> to vector<2x128xf32>
    %511 = math.tanh %510 : vector<2x128xf32>
    %512 = vector.extract_strided_slice %472 {offsets = [0, 384], sizes = [2, 128], strides = [1, 1]} : vector<2x512xf32> to vector<2x128xf32>
    %513 = arith.negf %512 : vector<2x128xf32>
    %514 = math.exp %513 : vector<2x128xf32>
    %cst_131 = arith.constant 1.000000e+00 : f32
    %515 = vector.broadcast %cst_131 : f32 to vector<2x128xf32>
    %516 = arith.addf %515, %514 : vector<2x128xf32>
    %517 = arith.divf %515, %516 : vector<2x128xf32>
    %518 = arith.mulf %509, %446 : vector<2x128xf32>
    %519 = arith.mulf %503, %511 : vector<2x128xf32>
    %520 = arith.addf %518, %519 : vector<2x128xf32>
    %521 = math.tanh %520 : vector<2x128xf32>
    %522 = arith.mulf %517, %521 : vector<2x128xf32>
    %523 = arith.index_cast %c6_i32 : i32 to index
    %c0_132 = arith.constant 0 : index
    %c0_133 = arith.constant 0 : index
    %524 = vector.load %arg12[%523, %c0_132, %c0_133] : memref<8x2x128xf32, #tpu.memory_space<vmem>>, vector<1x2x128xf32>
    %525 = vector.shape_cast %524 : vector<1x2x128xf32> to vector<2x128xf32>
    %526 = vector.shape_cast %497 : vector<2x128xf32> to vector<1x2x128xf32>
    tpu.vector_store %arg12[%523, %c0_132, %c0_133], %526 {strides = array<i32>} : memref<8x2x128xf32, #tpu.memory_space<vmem>>, vector<1x2x128xf32>,
    %c7_i32_134 = arith.constant 7 : i32
    %527 = arith.subi %c7_i32_134, %c6_i32 : i32
    %528 = arith.index_cast %527 : i32 to index
    %c0_135 = arith.constant 0 : index
    %c0_136 = arith.constant 0 : index
    %529 = vector.load %arg13[%528, %c0_135, %c0_136] : memref<8x2x128xf32, #tpu.memory_space<vmem>>, vector<1x2x128xf32>
    %530 = vector.shape_cast %529 : vector<1x2x128xf32> to vector<2x128xf32>
    %531 = vector.shape_cast %522 : vector<2x128xf32> to vector<1x2x128xf32>
    tpu.vector_store %arg13[%528, %c0_135, %c0_136], %531 {strides = array<i32>} : memref<8x2x128xf32, #tpu.memory_space<vmem>>, vector<1x2x128xf32>,
    %c7_i32_137 = arith.constant 7 : i32
    %532 = arith.index_cast %c7_i32_137 : i32 to index
    %c0_138 = arith.constant 0 : index
    %c0_139 = arith.constant 0 : index
    %533 = vector.load %arg11[%532, %c0_138, %c0_139] : memref<8x2x1024xf32, #tpu.memory_space<vmem>>, vector<1x2x1024xf32>
    %534 = vector.shape_cast %533 : vector<1x2x1024xf32> to vector<2x1024xf32>
    %c7_i32_140 = arith.constant 7 : i32
    %535 = arith.subi %c7_i32_140, %c7_i32_137 : i32
    %536 = arith.index_cast %535 : i32 to index
    %c0_141 = arith.constant 0 : index
    %c0_142 = arith.constant 0 : index
    %537 = vector.load %arg11[%536, %c0_141, %c0_142] : memref<8x2x1024xf32, #tpu.memory_space<vmem>>, vector<1x2x1024xf32>
    %538 = vector.shape_cast %537 : vector<1x2x1024xf32> to vector<2x1024xf32>
    %539 = vector.extract_strided_slice %534 {offsets = [0, 0], sizes = [2, 512], strides = [1, 1]} : vector<2x1024xf32> to vector<2x512xf32>
    %540 = arith.truncf %497 : vector<2x128xf32> to vector<2x128xbf16>
    %cst_143 = arith.constant dense<0.000000e+00> : vector<2x512xf32>
    %541 = tpu.matmul %540, %11, %cst_143 {dimension_numbers = #tpu.dot_dimension_numbers<[1], [0], [0], [1], [0, 0, 1, 1], [], []>} : vector<2x128xbf16>, vector<128x512xbf16>, vector<2x512xf32> -> vector<2x512xf32>
    %542 = arith.addf %539, %541 : vector<2x512xf32>
    %543 = vector.extract_strided_slice %538 {offsets = [0, 512], sizes = [2, 512], strides = [1, 1]} : vector<2x1024xf32> to vector<2x512xf32>
    %544 = arith.truncf %522 : vector<2x128xf32> to vector<2x128xbf16>
    %cst_144 = arith.constant dense<0.000000e+00> : vector<2x512xf32>
    %545 = tpu.matmul %544, %12, %cst_144 {dimension_numbers = #tpu.dot_dimension_numbers<[1], [0], [0], [1], [0, 0, 1, 1], [], []>} : vector<2x128xbf16>, vector<128x512xbf16>, vector<2x512xf32> -> vector<2x512xf32>
    %546 = arith.addf %543, %545 : vector<2x512xf32>
    %547 = vector.extract_strided_slice %542 {offsets = [0, 0], sizes = [2, 128], strides = [1, 1]} : vector<2x512xf32> to vector<2x128xf32>
    %548 = arith.negf %547 : vector<2x128xf32>
    %549 = math.exp %548 : vector<2x128xf32>
    %cst_145 = arith.constant 1.000000e+00 : f32
    %550 = vector.broadcast %cst_145 : f32 to vector<2x128xf32>
    %551 = arith.addf %550, %549 : vector<2x128xf32>
    %552 = arith.divf %550, %551 : vector<2x128xf32>
    %553 = vector.extract_strided_slice %542 {offsets = [0, 128], sizes = [2, 128], strides = [1, 1]} : vector<2x512xf32> to vector<2x128xf32>
    %554 = arith.negf %553 : vector<2x128xf32>
    %555 = math.exp %554 : vector<2x128xf32>
    %cst_146 = arith.constant 1.000000e+00 : f32
    %556 = vector.broadcast %cst_146 : f32 to vector<2x128xf32>
    %557 = arith.addf %556, %555 : vector<2x128xf32>
    %558 = arith.divf %556, %557 : vector<2x128xf32>
    %559 = vector.extract_strided_slice %542 {offsets = [0, 256], sizes = [2, 128], strides = [1, 1]} : vector<2x512xf32> to vector<2x128xf32>
    %560 = math.tanh %559 : vector<2x128xf32>
    %561 = vector.extract_strided_slice %542 {offsets = [0, 384], sizes = [2, 128], strides = [1, 1]} : vector<2x512xf32> to vector<2x128xf32>
    %562 = arith.negf %561 : vector<2x128xf32>
    %563 = math.exp %562 : vector<2x128xf32>
    %cst_147 = arith.constant 1.000000e+00 : f32
    %564 = vector.broadcast %cst_147 : f32 to vector<2x128xf32>
    %565 = arith.addf %564, %563 : vector<2x128xf32>
    %566 = arith.divf %564, %565 : vector<2x128xf32>
    %567 = arith.mulf %558, %495 : vector<2x128xf32>
    %568 = arith.mulf %552, %560 : vector<2x128xf32>
    %569 = arith.addf %567, %568 : vector<2x128xf32>
    %570 = math.tanh %569 : vector<2x128xf32>
    %571 = arith.mulf %566, %570 : vector<2x128xf32>
    %572 = vector.extract_strided_slice %546 {offsets = [0, 0], sizes = [2, 128], strides = [1, 1]} : vector<2x512xf32> to vector<2x128xf32>
    %573 = arith.negf %572 : vector<2x128xf32>
    %574 = math.exp %573 : vector<2x128xf32>
    %cst_148 = arith.constant 1.000000e+00 : f32
    %575 = vector.broadcast %cst_148 : f32 to vector<2x128xf32>
    %576 = arith.addf %575, %574 : vector<2x128xf32>
    %577 = arith.divf %575, %576 : vector<2x128xf32>
    %578 = vector.extract_strided_slice %546 {offsets = [0, 128], sizes = [2, 128], strides = [1, 1]} : vector<2x512xf32> to vector<2x128xf32>
    %579 = arith.negf %578 : vector<2x128xf32>
    %580 = math.exp %579 : vector<2x128xf32>
    %cst_149 = arith.constant 1.000000e+00 : f32
    %581 = vector.broadcast %cst_149 : f32 to vector<2x128xf32>
    %582 = arith.addf %581, %580 : vector<2x128xf32>
    %583 = arith.divf %581, %582 : vector<2x128xf32>
    %584 = vector.extract_strided_slice %546 {offsets = [0, 256], sizes = [2, 128], strides = [1, 1]} : vector<2x512xf32> to vector<2x128xf32>
    %585 = math.tanh %584 : vector<2x128xf32>
    %586 = vector.extract_strided_slice %546 {offsets = [0, 384], sizes = [2, 128], strides = [1, 1]} : vector<2x512xf32> to vector<2x128xf32>
    %587 = arith.negf %586 : vector<2x128xf32>
    %588 = math.exp %587 : vector<2x128xf32>
    %cst_150 = arith.constant 1.000000e+00 : f32
    %589 = vector.broadcast %cst_150 : f32 to vector<2x128xf32>
    %590 = arith.addf %589, %588 : vector<2x128xf32>
    %591 = arith.divf %589, %590 : vector<2x128xf32>
    %592 = arith.mulf %583, %520 : vector<2x128xf32>
    %593 = arith.mulf %577, %585 : vector<2x128xf32>
    %594 = arith.addf %592, %593 : vector<2x128xf32>
    %595 = math.tanh %594 : vector<2x128xf32>
    %596 = arith.mulf %591, %595 : vector<2x128xf32>
    %597 = arith.index_cast %c7_i32_137 : i32 to index
    %c0_151 = arith.constant 0 : index
    %c0_152 = arith.constant 0 : index
    %598 = vector.load %arg12[%597, %c0_151, %c0_152] : memref<8x2x128xf32, #tpu.memory_space<vmem>>, vector<1x2x128xf32>
    %599 = vector.shape_cast %598 : vector<1x2x128xf32> to vector<2x128xf32>
    %600 = vector.shape_cast %571 : vector<2x128xf32> to vector<1x2x128xf32>
    tpu.vector_store %arg12[%597, %c0_151, %c0_152], %600 {strides = array<i32>} : memref<8x2x128xf32, #tpu.memory_space<vmem>>, vector<1x2x128xf32>,
    %c7_i32_153 = arith.constant 7 : i32
    %601 = arith.subi %c7_i32_153, %c7_i32_137 : i32
    %602 = arith.index_cast %601 : i32 to index
    %c0_154 = arith.constant 0 : index
    %c0_155 = arith.constant 0 : index
    %603 = vector.load %arg13[%602, %c0_154, %c0_155] : memref<8x2x128xf32, #tpu.memory_space<vmem>>, vector<1x2x128xf32>
    %604 = vector.shape_cast %603 : vector<1x2x128xf32> to vector<2x128xf32>
    %605 = vector.shape_cast %596 : vector<2x128xf32> to vector<1x2x128xf32>
    tpu.vector_store %arg13[%602, %c0_154, %c0_155], %605 {strides = array<i32>} : memref<8x2x128xf32, #tpu.memory_space<vmem>>, vector<1x2x128xf32>,
    %c8_i32 = arith.constant 8 : i32
    %c0_156 = arith.constant 0 : index
    %c0_157 = arith.constant 0 : index
    %c0_158 = arith.constant 0 : index
    %606 = vector.load %arg12[%c0_156, %c0_157, %c0_158] : memref<8x2x128xf32, #tpu.memory_space<vmem>>, vector<8x2x128xf32>
    %c0_159 = arith.constant 0 : index
    %c0_160 = arith.constant 0 : index
    %c0_161 = arith.constant 0 : index
    %607 = vector.load %arg13[%c0_159, %c0_160, %c0_161] : memref<8x2x128xf32, #tpu.memory_space<vmem>>, vector<8x2x128xf32>
    %608 = tpu.concatenate %606, %607 in 2 : vector<8x2x128xf32>, vector<8x2x128xf32> -> vector<8x2x256xf32>
    %609 = arith.truncf %608 : vector<8x2x256xf32> to vector<8x2x256xbf16>
    %610 = vector.shape_cast %609 : vector<8x2x256xbf16> to vector<16x256xbf16>
    %c0_162 = arith.constant 0 : index
    %c0_163 = arith.constant 0 : index
    %611 = vector.load %arg5[%c0_162, %c0_163] : memref<256x1024xbf16, #tpu.memory_space<vmem>>, vector<256x1024xbf16>
    %cst_164 = arith.constant dense<0.000000e+00> : vector<16x1024xf32>
    %612 = tpu.matmul %610, %611, %cst_164 {dimension_numbers = #tpu.dot_dimension_numbers<[1], [0], [0], [1], [0, 0, 1, 1], [], []>} : vector<16x256xbf16>, vector<256x1024xbf16>, vector<16x1024xf32> -> vector<16x1024xf32>
    %c0_165 = arith.constant 0 : index
    %c0_166 = arith.constant 0 : index
    %613 = vector.load %arg6[%c0_165, %c0_166] : memref<1x1024xf32, #tpu.memory_space<vmem>>, vector<1x1024xf32>
    %614 = vector.broadcast %613 : vector<1x1024xf32> to vector<16x1024xf32>
    %615 = arith.addf %612, %614 : vector<16x1024xf32>
    %616 = vector.shape_cast %615 : vector<16x1024xf32> to vector<8x2x1024xf32>
    %c0_167 = arith.constant 0 : index
    %c0_168 = arith.constant 0 : index
    %c0_169 = arith.constant 0 : index
    %617 = vector.load %arg11[%c0_167, %c0_168, %c0_169] : memref<8x2x1024xf32, #tpu.memory_space<vmem>>, vector<8x2x1024xf32>
    tpu.vector_store %arg11[%c0_167, %c0_168, %c0_169], %616 {strides = array<i32>} : memref<8x2x1024xf32, #tpu.memory_space<vmem>>, vector<8x2x1024xf32>,
    %c0_170 = arith.constant 0 : index
    %c0_171 = arith.constant 0 : index
    %618 = vector.load %arg7[%c0_170, %c0_171] : memref<256x512xbf16, #tpu.memory_space<vmem>>, vector<256x512xbf16>
    %619 = vector.extract_strided_slice %618 {offsets = [0, 0], sizes = [128, 512], strides = [1, 1]} : vector<256x512xbf16> to vector<128x512xbf16>
    %620 = vector.extract_strided_slice %618 {offsets = [128, 0], sizes = [128, 512], strides = [1, 1]} : vector<256x512xbf16> to vector<128x512xbf16>
    %cst_172 = arith.constant 0.000000e+00 : f32
    %621 = vector.broadcast %cst_172 : f32 to vector<2x128xf32>
    %c0_i32_173 = arith.constant 0 : i32
    %622 = arith.index_cast %c0_i32_173 : i32 to index
    %c0_174 = arith.constant 0 : index
    %c0_175 = arith.constant 0 : index
    %623 = vector.load %arg11[%622, %c0_174, %c0_175] : memref<8x2x1024xf32, #tpu.memory_space<vmem>>, vector<1x2x1024xf32>
    %624 = vector.shape_cast %623 : vector<1x2x1024xf32> to vector<2x1024xf32>
    %c7_i32_176 = arith.constant 7 : i32
    %625 = arith.subi %c7_i32_176, %c0_i32_173 : i32
    %626 = arith.index_cast %625 : i32 to index
    %c0_177 = arith.constant 0 : index
    %c0_178 = arith.constant 0 : index
    %627 = vector.load %arg11[%626, %c0_177, %c0_178] : memref<8x2x1024xf32, #tpu.memory_space<vmem>>, vector<1x2x1024xf32>
    %628 = vector.shape_cast %627 : vector<1x2x1024xf32> to vector<2x1024xf32>
    %629 = vector.extract_strided_slice %624 {offsets = [0, 0], sizes = [2, 512], strides = [1, 1]} : vector<2x1024xf32> to vector<2x512xf32>
    %630 = arith.truncf %621 : vector<2x128xf32> to vector<2x128xbf16>
    %cst_179 = arith.constant dense<0.000000e+00> : vector<2x512xf32>
    %631 = tpu.matmul %630, %619, %cst_179 {dimension_numbers = #tpu.dot_dimension_numbers<[1], [0], [0], [1], [0, 0, 1, 1], [], []>} : vector<2x128xbf16>, vector<128x512xbf16>, vector<2x512xf32> -> vector<2x512xf32>
    %632 = arith.addf %629, %631 : vector<2x512xf32>
    %633 = vector.extract_strided_slice %628 {offsets = [0, 512], sizes = [2, 512], strides = [1, 1]} : vector<2x1024xf32> to vector<2x512xf32>
    %634 = arith.truncf %621 : vector<2x128xf32> to vector<2x128xbf16>
    %cst_180 = arith.constant dense<0.000000e+00> : vector<2x512xf32>
    %635 = tpu.matmul %634, %620, %cst_180 {dimension_numbers = #tpu.dot_dimension_numbers<[1], [0], [0], [1], [0, 0, 1, 1], [], []>} : vector<2x128xbf16>, vector<128x512xbf16>, vector<2x512xf32> -> vector<2x512xf32>
    %636 = arith.addf %633, %635 : vector<2x512xf32>
    %637 = vector.extract_strided_slice %632 {offsets = [0, 0], sizes = [2, 128], strides = [1, 1]} : vector<2x512xf32> to vector<2x128xf32>
    %638 = arith.negf %637 : vector<2x128xf32>
    %639 = math.exp %638 : vector<2x128xf32>
    %cst_181 = arith.constant 1.000000e+00 : f32
    %640 = vector.broadcast %cst_181 : f32 to vector<2x128xf32>
    %641 = arith.addf %640, %639 : vector<2x128xf32>
    %642 = arith.divf %640, %641 : vector<2x128xf32>
    %643 = vector.extract_strided_slice %632 {offsets = [0, 128], sizes = [2, 128], strides = [1, 1]} : vector<2x512xf32> to vector<2x128xf32>
    %644 = arith.negf %643 : vector<2x128xf32>
    %645 = math.exp %644 : vector<2x128xf32>
    %cst_182 = arith.constant 1.000000e+00 : f32
    %646 = vector.broadcast %cst_182 : f32 to vector<2x128xf32>
    %647 = arith.addf %646, %645 : vector<2x128xf32>
    %648 = arith.divf %646, %647 : vector<2x128xf32>
    %649 = vector.extract_strided_slice %632 {offsets = [0, 256], sizes = [2, 128], strides = [1, 1]} : vector<2x512xf32> to vector<2x128xf32>
    %650 = math.tanh %649 : vector<2x128xf32>
    %651 = vector.extract_strided_slice %632 {offsets = [0, 384], sizes = [2, 128], strides = [1, 1]} : vector<2x512xf32> to vector<2x128xf32>
    %652 = arith.negf %651 : vector<2x128xf32>
    %653 = math.exp %652 : vector<2x128xf32>
    %cst_183 = arith.constant 1.000000e+00 : f32
    %654 = vector.broadcast %cst_183 : f32 to vector<2x128xf32>
    %655 = arith.addf %654, %653 : vector<2x128xf32>
    %656 = arith.divf %654, %655 : vector<2x128xf32>
    %657 = arith.mulf %648, %621 : vector<2x128xf32>
    %658 = arith.mulf %642, %650 : vector<2x128xf32>
    %659 = arith.addf %657, %658 : vector<2x128xf32>
    %660 = math.tanh %659 : vector<2x128xf32>
    %661 = arith.mulf %656, %660 : vector<2x128xf32>
    %662 = vector.extract_strided_slice %636 {offsets = [0, 0], sizes = [2, 128], strides = [1, 1]} : vector<2x512xf32> to vector<2x128xf32>
    %663 = arith.negf %662 : vector<2x128xf32>
    %664 = math.exp %663 : vector<2x128xf32>
    %cst_184 = arith.constant 1.000000e+00 : f32
    %665 = vector.broadcast %cst_184 : f32 to vector<2x128xf32>
    %666 = arith.addf %665, %664 : vector<2x128xf32>
    %667 = arith.divf %665, %666 : vector<2x128xf32>
    %668 = vector.extract_strided_slice %636 {offsets = [0, 128], sizes = [2, 128], strides = [1, 1]} : vector<2x512xf32> to vector<2x128xf32>
    %669 = arith.negf %668 : vector<2x128xf32>
    %670 = math.exp %669 : vector<2x128xf32>
    %cst_185 = arith.constant 1.000000e+00 : f32
    %671 = vector.broadcast %cst_185 : f32 to vector<2x128xf32>
    %672 = arith.addf %671, %670 : vector<2x128xf32>
    %673 = arith.divf %671, %672 : vector<2x128xf32>
    %674 = vector.extract_strided_slice %636 {offsets = [0, 256], sizes = [2, 128], strides = [1, 1]} : vector<2x512xf32> to vector<2x128xf32>
    %675 = math.tanh %674 : vector<2x128xf32>
    %676 = vector.extract_strided_slice %636 {offsets = [0, 384], sizes = [2, 128], strides = [1, 1]} : vector<2x512xf32> to vector<2x128xf32>
    %677 = arith.negf %676 : vector<2x128xf32>
    %678 = math.exp %677 : vector<2x128xf32>
    %cst_186 = arith.constant 1.000000e+00 : f32
    %679 = vector.broadcast %cst_186 : f32 to vector<2x128xf32>
    %680 = arith.addf %679, %678 : vector<2x128xf32>
    %681 = arith.divf %679, %680 : vector<2x128xf32>
    %682 = arith.mulf %673, %621 : vector<2x128xf32>
    %683 = arith.mulf %667, %675 : vector<2x128xf32>
    %684 = arith.addf %682, %683 : vector<2x128xf32>
    %685 = math.tanh %684 : vector<2x128xf32>
    %686 = arith.mulf %681, %685 : vector<2x128xf32>
    %687 = arith.index_cast %c0_i32_173 : i32 to index
    %c0_187 = arith.constant 0 : index
    %c0_188 = arith.constant 0 : index
    %688 = vector.load %arg12[%687, %c0_187, %c0_188] : memref<8x2x128xf32, #tpu.memory_space<vmem>>, vector<1x2x128xf32>
    %689 = vector.shape_cast %688 : vector<1x2x128xf32> to vector<2x128xf32>
    %690 = vector.shape_cast %661 : vector<2x128xf32> to vector<1x2x128xf32>
    tpu.vector_store %arg12[%687, %c0_187, %c0_188], %690 {strides = array<i32>} : memref<8x2x128xf32, #tpu.memory_space<vmem>>, vector<1x2x128xf32>,
    %c7_i32_189 = arith.constant 7 : i32
    %691 = arith.subi %c7_i32_189, %c0_i32_173 : i32
    %692 = arith.index_cast %691 : i32 to index
    %c0_190 = arith.constant 0 : index
    %c0_191 = arith.constant 0 : index
    %693 = vector.load %arg13[%692, %c0_190, %c0_191] : memref<8x2x128xf32, #tpu.memory_space<vmem>>, vector<1x2x128xf32>
    %694 = vector.shape_cast %693 : vector<1x2x128xf32> to vector<2x128xf32>
    %695 = vector.shape_cast %686 : vector<2x128xf32> to vector<1x2x128xf32>
    tpu.vector_store %arg13[%692, %c0_190, %c0_191], %695 {strides = array<i32>} : memref<8x2x128xf32, #tpu.memory_space<vmem>>, vector<1x2x128xf32>,
    %c1_i32_192 = arith.constant 1 : i32
    %696 = arith.index_cast %c1_i32_192 : i32 to index
    %c0_193 = arith.constant 0 : index
    %c0_194 = arith.constant 0 : index
    %697 = vector.load %arg11[%696, %c0_193, %c0_194] : memref<8x2x1024xf32, #tpu.memory_space<vmem>>, vector<1x2x1024xf32>
    %698 = vector.shape_cast %697 : vector<1x2x1024xf32> to vector<2x1024xf32>
    %c7_i32_195 = arith.constant 7 : i32
    %699 = arith.subi %c7_i32_195, %c1_i32_192 : i32
    %700 = arith.index_cast %699 : i32 to index
    %c0_196 = arith.constant 0 : index
    %c0_197 = arith.constant 0 : index
    %701 = vector.load %arg11[%700, %c0_196, %c0_197] : memref<8x2x1024xf32, #tpu.memory_space<vmem>>, vector<1x2x1024xf32>
    %702 = vector.shape_cast %701 : vector<1x2x1024xf32> to vector<2x1024xf32>
    %703 = vector.extract_strided_slice %698 {offsets = [0, 0], sizes = [2, 512], strides = [1, 1]} : vector<2x1024xf32> to vector<2x512xf32>
    %704 = arith.truncf %661 : vector<2x128xf32> to vector<2x128xbf16>
    %cst_198 = arith.constant dense<0.000000e+00> : vector<2x512xf32>
    %705 = tpu.matmul %704, %619, %cst_198 {dimension_numbers = #tpu.dot_dimension_numbers<[1], [0], [0], [1], [0, 0, 1, 1], [], []>} : vector<2x128xbf16>, vector<128x512xbf16>, vector<2x512xf32> -> vector<2x512xf32>
    %706 = arith.addf %703, %705 : vector<2x512xf32>
    %707 = vector.extract_strided_slice %702 {offsets = [0, 512], sizes = [2, 512], strides = [1, 1]} : vector<2x1024xf32> to vector<2x512xf32>
    %708 = arith.truncf %686 : vector<2x128xf32> to vector<2x128xbf16>
    %cst_199 = arith.constant dense<0.000000e+00> : vector<2x512xf32>
    %709 = tpu.matmul %708, %620, %cst_199 {dimension_numbers = #tpu.dot_dimension_numbers<[1], [0], [0], [1], [0, 0, 1, 1], [], []>} : vector<2x128xbf16>, vector<128x512xbf16>, vector<2x512xf32> -> vector<2x512xf32>
    %710 = arith.addf %707, %709 : vector<2x512xf32>
    %711 = vector.extract_strided_slice %706 {offsets = [0, 0], sizes = [2, 128], strides = [1, 1]} : vector<2x512xf32> to vector<2x128xf32>
    %712 = arith.negf %711 : vector<2x128xf32>
    %713 = math.exp %712 : vector<2x128xf32>
    %cst_200 = arith.constant 1.000000e+00 : f32
    %714 = vector.broadcast %cst_200 : f32 to vector<2x128xf32>
    %715 = arith.addf %714, %713 : vector<2x128xf32>
    %716 = arith.divf %714, %715 : vector<2x128xf32>
    %717 = vector.extract_strided_slice %706 {offsets = [0, 128], sizes = [2, 128], strides = [1, 1]} : vector<2x512xf32> to vector<2x128xf32>
    %718 = arith.negf %717 : vector<2x128xf32>
    %719 = math.exp %718 : vector<2x128xf32>
    %cst_201 = arith.constant 1.000000e+00 : f32
    %720 = vector.broadcast %cst_201 : f32 to vector<2x128xf32>
    %721 = arith.addf %720, %719 : vector<2x128xf32>
    %722 = arith.divf %720, %721 : vector<2x128xf32>
    %723 = vector.extract_strided_slice %706 {offsets = [0, 256], sizes = [2, 128], strides = [1, 1]} : vector<2x512xf32> to vector<2x128xf32>
    %724 = math.tanh %723 : vector<2x128xf32>
    %725 = vector.extract_strided_slice %706 {offsets = [0, 384], sizes = [2, 128], strides = [1, 1]} : vector<2x512xf32> to vector<2x128xf32>
    %726 = arith.negf %725 : vector<2x128xf32>
    %727 = math.exp %726 : vector<2x128xf32>
    %cst_202 = arith.constant 1.000000e+00 : f32
    %728 = vector.broadcast %cst_202 : f32 to vector<2x128xf32>
    %729 = arith.addf %728, %727 : vector<2x128xf32>
    %730 = arith.divf %728, %729 : vector<2x128xf32>
    %731 = arith.mulf %722, %659 : vector<2x128xf32>
    %732 = arith.mulf %716, %724 : vector<2x128xf32>
    %733 = arith.addf %731, %732 : vector<2x128xf32>
    %734 = math.tanh %733 : vector<2x128xf32>
    %735 = arith.mulf %730, %734 : vector<2x128xf32>
    %736 = vector.extract_strided_slice %710 {offsets = [0, 0], sizes = [2, 128], strides = [1, 1]} : vector<2x512xf32> to vector<2x128xf32>
    %737 = arith.negf %736 : vector<2x128xf32>
    %738 = math.exp %737 : vector<2x128xf32>
    %cst_203 = arith.constant 1.000000e+00 : f32
    %739 = vector.broadcast %cst_203 : f32 to vector<2x128xf32>
    %740 = arith.addf %739, %738 : vector<2x128xf32>
    %741 = arith.divf %739, %740 : vector<2x128xf32>
    %742 = vector.extract_strided_slice %710 {offsets = [0, 128], sizes = [2, 128], strides = [1, 1]} : vector<2x512xf32> to vector<2x128xf32>
    %743 = arith.negf %742 : vector<2x128xf32>
    %744 = math.exp %743 : vector<2x128xf32>
    %cst_204 = arith.constant 1.000000e+00 : f32
    %745 = vector.broadcast %cst_204 : f32 to vector<2x128xf32>
    %746 = arith.addf %745, %744 : vector<2x128xf32>
    %747 = arith.divf %745, %746 : vector<2x128xf32>
    %748 = vector.extract_strided_slice %710 {offsets = [0, 256], sizes = [2, 128], strides = [1, 1]} : vector<2x512xf32> to vector<2x128xf32>
    %749 = math.tanh %748 : vector<2x128xf32>
    %750 = vector.extract_strided_slice %710 {offsets = [0, 384], sizes = [2, 128], strides = [1, 1]} : vector<2x512xf32> to vector<2x128xf32>
    %751 = arith.negf %750 : vector<2x128xf32>
    %752 = math.exp %751 : vector<2x128xf32>
    %cst_205 = arith.constant 1.000000e+00 : f32
    %753 = vector.broadcast %cst_205 : f32 to vector<2x128xf32>
    %754 = arith.addf %753, %752 : vector<2x128xf32>
    %755 = arith.divf %753, %754 : vector<2x128xf32>
    %756 = arith.mulf %747, %684 : vector<2x128xf32>
    %757 = arith.mulf %741, %749 : vector<2x128xf32>
    %758 = arith.addf %756, %757 : vector<2x128xf32>
    %759 = math.tanh %758 : vector<2x128xf32>
    %760 = arith.mulf %755, %759 : vector<2x128xf32>
    %761 = arith.index_cast %c1_i32_192 : i32 to index
    %c0_206 = arith.constant 0 : index
    %c0_207 = arith.constant 0 : index
    %762 = vector.load %arg12[%761, %c0_206, %c0_207] : memref<8x2x128xf32, #tpu.memory_space<vmem>>, vector<1x2x128xf32>
    %763 = vector.shape_cast %762 : vector<1x2x128xf32> to vector<2x128xf32>
    %764 = vector.shape_cast %735 : vector<2x128xf32> to vector<1x2x128xf32>
    tpu.vector_store %arg12[%761, %c0_206, %c0_207], %764 {strides = array<i32>} : memref<8x2x128xf32, #tpu.memory_space<vmem>>, vector<1x2x128xf32>,
    %c7_i32_208 = arith.constant 7 : i32
    %765 = arith.subi %c7_i32_208, %c1_i32_192 : i32
    %766 = arith.index_cast %765 : i32 to index
    %c0_209 = arith.constant 0 : index
    %c0_210 = arith.constant 0 : index
    %767 = vector.load %arg13[%766, %c0_209, %c0_210] : memref<8x2x128xf32, #tpu.memory_space<vmem>>, vector<1x2x128xf32>
    %768 = vector.shape_cast %767 : vector<1x2x128xf32> to vector<2x128xf32>
    %769 = vector.shape_cast %760 : vector<2x128xf32> to vector<1x2x128xf32>
    tpu.vector_store %arg13[%766, %c0_209, %c0_210], %769 {strides = array<i32>} : memref<8x2x128xf32, #tpu.memory_space<vmem>>, vector<1x2x128xf32>,
    %c2_i32_211 = arith.constant 2 : i32
    %770 = arith.index_cast %c2_i32_211 : i32 to index
    %c0_212 = arith.constant 0 : index
    %c0_213 = arith.constant 0 : index
    %771 = vector.load %arg11[%770, %c0_212, %c0_213] : memref<8x2x1024xf32, #tpu.memory_space<vmem>>, vector<1x2x1024xf32>
    %772 = vector.shape_cast %771 : vector<1x2x1024xf32> to vector<2x1024xf32>
    %c7_i32_214 = arith.constant 7 : i32
    %773 = arith.subi %c7_i32_214, %c2_i32_211 : i32
    %774 = arith.index_cast %773 : i32 to index
    %c0_215 = arith.constant 0 : index
    %c0_216 = arith.constant 0 : index
    %775 = vector.load %arg11[%774, %c0_215, %c0_216] : memref<8x2x1024xf32, #tpu.memory_space<vmem>>, vector<1x2x1024xf32>
    %776 = vector.shape_cast %775 : vector<1x2x1024xf32> to vector<2x1024xf32>
    %777 = vector.extract_strided_slice %772 {offsets = [0, 0], sizes = [2, 512], strides = [1, 1]} : vector<2x1024xf32> to vector<2x512xf32>
    %778 = arith.truncf %735 : vector<2x128xf32> to vector<2x128xbf16>
    %cst_217 = arith.constant dense<0.000000e+00> : vector<2x512xf32>
    %779 = tpu.matmul %778, %619, %cst_217 {dimension_numbers = #tpu.dot_dimension_numbers<[1], [0], [0], [1], [0, 0, 1, 1], [], []>} : vector<2x128xbf16>, vector<128x512xbf16>, vector<2x512xf32> -> vector<2x512xf32>
    %780 = arith.addf %777, %779 : vector<2x512xf32>
    %781 = vector.extract_strided_slice %776 {offsets = [0, 512], sizes = [2, 512], strides = [1, 1]} : vector<2x1024xf32> to vector<2x512xf32>
    %782 = arith.truncf %760 : vector<2x128xf32> to vector<2x128xbf16>
    %cst_218 = arith.constant dense<0.000000e+00> : vector<2x512xf32>
    %783 = tpu.matmul %782, %620, %cst_218 {dimension_numbers = #tpu.dot_dimension_numbers<[1], [0], [0], [1], [0, 0, 1, 1], [], []>} : vector<2x128xbf16>, vector<128x512xbf16>, vector<2x512xf32> -> vector<2x512xf32>
    %784 = arith.addf %781, %783 : vector<2x512xf32>
    %785 = vector.extract_strided_slice %780 {offsets = [0, 0], sizes = [2, 128], strides = [1, 1]} : vector<2x512xf32> to vector<2x128xf32>
    %786 = arith.negf %785 : vector<2x128xf32>
    %787 = math.exp %786 : vector<2x128xf32>
    %cst_219 = arith.constant 1.000000e+00 : f32
    %788 = vector.broadcast %cst_219 : f32 to vector<2x128xf32>
    %789 = arith.addf %788, %787 : vector<2x128xf32>
    %790 = arith.divf %788, %789 : vector<2x128xf32>
    %791 = vector.extract_strided_slice %780 {offsets = [0, 128], sizes = [2, 128], strides = [1, 1]} : vector<2x512xf32> to vector<2x128xf32>
    %792 = arith.negf %791 : vector<2x128xf32>
    %793 = math.exp %792 : vector<2x128xf32>
    %cst_220 = arith.constant 1.000000e+00 : f32
    %794 = vector.broadcast %cst_220 : f32 to vector<2x128xf32>
    %795 = arith.addf %794, %793 : vector<2x128xf32>
    %796 = arith.divf %794, %795 : vector<2x128xf32>
    %797 = vector.extract_strided_slice %780 {offsets = [0, 256], sizes = [2, 128], strides = [1, 1]} : vector<2x512xf32> to vector<2x128xf32>
    %798 = math.tanh %797 : vector<2x128xf32>
    %799 = vector.extract_strided_slice %780 {offsets = [0, 384], sizes = [2, 128], strides = [1, 1]} : vector<2x512xf32> to vector<2x128xf32>
    %800 = arith.negf %799 : vector<2x128xf32>
    %801 = math.exp %800 : vector<2x128xf32>
    %cst_221 = arith.constant 1.000000e+00 : f32
    %802 = vector.broadcast %cst_221 : f32 to vector<2x128xf32>
    %803 = arith.addf %802, %801 : vector<2x128xf32>
    %804 = arith.divf %802, %803 : vector<2x128xf32>
    %805 = arith.mulf %796, %733 : vector<2x128xf32>
    %806 = arith.mulf %790, %798 : vector<2x128xf32>
    %807 = arith.addf %805, %806 : vector<2x128xf32>
    %808 = math.tanh %807 : vector<2x128xf32>
    %809 = arith.mulf %804, %808 : vector<2x128xf32>
    %810 = vector.extract_strided_slice %784 {offsets = [0, 0], sizes = [2, 128], strides = [1, 1]} : vector<2x512xf32> to vector<2x128xf32>
    %811 = arith.negf %810 : vector<2x128xf32>
    %812 = math.exp %811 : vector<2x128xf32>
    %cst_222 = arith.constant 1.000000e+00 : f32
    %813 = vector.broadcast %cst_222 : f32 to vector<2x128xf32>
    %814 = arith.addf %813, %812 : vector<2x128xf32>
    %815 = arith.divf %813, %814 : vector<2x128xf32>
    %816 = vector.extract_strided_slice %784 {offsets = [0, 128], sizes = [2, 128], strides = [1, 1]} : vector<2x512xf32> to vector<2x128xf32>
    %817 = arith.negf %816 : vector<2x128xf32>
    %818 = math.exp %817 : vector<2x128xf32>
    %cst_223 = arith.constant 1.000000e+00 : f32
    %819 = vector.broadcast %cst_223 : f32 to vector<2x128xf32>
    %820 = arith.addf %819, %818 : vector<2x128xf32>
    %821 = arith.divf %819, %820 : vector<2x128xf32>
    %822 = vector.extract_strided_slice %784 {offsets = [0, 256], sizes = [2, 128], strides = [1, 1]} : vector<2x512xf32> to vector<2x128xf32>
    %823 = math.tanh %822 : vector<2x128xf32>
    %824 = vector.extract_strided_slice %784 {offsets = [0, 384], sizes = [2, 128], strides = [1, 1]} : vector<2x512xf32> to vector<2x128xf32>
    %825 = arith.negf %824 : vector<2x128xf32>
    %826 = math.exp %825 : vector<2x128xf32>
    %cst_224 = arith.constant 1.000000e+00 : f32
    %827 = vector.broadcast %cst_224 : f32 to vector<2x128xf32>
    %828 = arith.addf %827, %826 : vector<2x128xf32>
    %829 = arith.divf %827, %828 : vector<2x128xf32>
    %830 = arith.mulf %821, %758 : vector<2x128xf32>
    %831 = arith.mulf %815, %823 : vector<2x128xf32>
    %832 = arith.addf %830, %831 : vector<2x128xf32>
    %833 = math.tanh %832 : vector<2x128xf32>
    %834 = arith.mulf %829, %833 : vector<2x128xf32>
    %835 = arith.index_cast %c2_i32_211 : i32 to index
    %c0_225 = arith.constant 0 : index
    %c0_226 = arith.constant 0 : index
    %836 = vector.load %arg12[%835, %c0_225, %c0_226] : memref<8x2x128xf32, #tpu.memory_space<vmem>>, vector<1x2x128xf32>
    %837 = vector.shape_cast %836 : vector<1x2x128xf32> to vector<2x128xf32>
    %838 = vector.shape_cast %809 : vector<2x128xf32> to vector<1x2x128xf32>
    tpu.vector_store %arg12[%835, %c0_225, %c0_226], %838 {strides = array<i32>} : memref<8x2x128xf32, #tpu.memory_space<vmem>>, vector<1x2x128xf32>,
    %c7_i32_227 = arith.constant 7 : i32
    %839 = arith.subi %c7_i32_227, %c2_i32_211 : i32
    %840 = arith.index_cast %839 : i32 to index
    %c0_228 = arith.constant 0 : index
    %c0_229 = arith.constant 0 : index
    %841 = vector.load %arg13[%840, %c0_228, %c0_229] : memref<8x2x128xf32, #tpu.memory_space<vmem>>, vector<1x2x128xf32>
    %842 = vector.shape_cast %841 : vector<1x2x128xf32> to vector<2x128xf32>
    %843 = vector.shape_cast %834 : vector<2x128xf32> to vector<1x2x128xf32>
    tpu.vector_store %arg13[%840, %c0_228, %c0_229], %843 {strides = array<i32>} : memref<8x2x128xf32, #tpu.memory_space<vmem>>, vector<1x2x128xf32>,
    %c3_i32_230 = arith.constant 3 : i32
    %844 = arith.index_cast %c3_i32_230 : i32 to index
    %c0_231 = arith.constant 0 : index
    %c0_232 = arith.constant 0 : index
    %845 = vector.load %arg11[%844, %c0_231, %c0_232] : memref<8x2x1024xf32, #tpu.memory_space<vmem>>, vector<1x2x1024xf32>
    %846 = vector.shape_cast %845 : vector<1x2x1024xf32> to vector<2x1024xf32>
    %c7_i32_233 = arith.constant 7 : i32
    %847 = arith.subi %c7_i32_233, %c3_i32_230 : i32
    %848 = arith.index_cast %847 : i32 to index
    %c0_234 = arith.constant 0 : index
    %c0_235 = arith.constant 0 : index
    %849 = vector.load %arg11[%848, %c0_234, %c0_235] : memref<8x2x1024xf32, #tpu.memory_space<vmem>>, vector<1x2x1024xf32>
    %850 = vector.shape_cast %849 : vector<1x2x1024xf32> to vector<2x1024xf32>
    %851 = vector.extract_strided_slice %846 {offsets = [0, 0], sizes = [2, 512], strides = [1, 1]} : vector<2x1024xf32> to vector<2x512xf32>
    %852 = arith.truncf %809 : vector<2x128xf32> to vector<2x128xbf16>
    %cst_236 = arith.constant dense<0.000000e+00> : vector<2x512xf32>
    %853 = tpu.matmul %852, %619, %cst_236 {dimension_numbers = #tpu.dot_dimension_numbers<[1], [0], [0], [1], [0, 0, 1, 1], [], []>} : vector<2x128xbf16>, vector<128x512xbf16>, vector<2x512xf32> -> vector<2x512xf32>
    %854 = arith.addf %851, %853 : vector<2x512xf32>
    %855 = vector.extract_strided_slice %850 {offsets = [0, 512], sizes = [2, 512], strides = [1, 1]} : vector<2x1024xf32> to vector<2x512xf32>
    %856 = arith.truncf %834 : vector<2x128xf32> to vector<2x128xbf16>
    %cst_237 = arith.constant dense<0.000000e+00> : vector<2x512xf32>
    %857 = tpu.matmul %856, %620, %cst_237 {dimension_numbers = #tpu.dot_dimension_numbers<[1], [0], [0], [1], [0, 0, 1, 1], [], []>} : vector<2x128xbf16>, vector<128x512xbf16>, vector<2x512xf32> -> vector<2x512xf32>
    %858 = arith.addf %855, %857 : vector<2x512xf32>
    %859 = vector.extract_strided_slice %854 {offsets = [0, 0], sizes = [2, 128], strides = [1, 1]} : vector<2x512xf32> to vector<2x128xf32>
    %860 = arith.negf %859 : vector<2x128xf32>
    %861 = math.exp %860 : vector<2x128xf32>
    %cst_238 = arith.constant 1.000000e+00 : f32
    %862 = vector.broadcast %cst_238 : f32 to vector<2x128xf32>
    %863 = arith.addf %862, %861 : vector<2x128xf32>
    %864 = arith.divf %862, %863 : vector<2x128xf32>
    %865 = vector.extract_strided_slice %854 {offsets = [0, 128], sizes = [2, 128], strides = [1, 1]} : vector<2x512xf32> to vector<2x128xf32>
    %866 = arith.negf %865 : vector<2x128xf32>
    %867 = math.exp %866 : vector<2x128xf32>
    %cst_239 = arith.constant 1.000000e+00 : f32
    %868 = vector.broadcast %cst_239 : f32 to vector<2x128xf32>
    %869 = arith.addf %868, %867 : vector<2x128xf32>
    %870 = arith.divf %868, %869 : vector<2x128xf32>
    %871 = vector.extract_strided_slice %854 {offsets = [0, 256], sizes = [2, 128], strides = [1, 1]} : vector<2x512xf32> to vector<2x128xf32>
    %872 = math.tanh %871 : vector<2x128xf32>
    %873 = vector.extract_strided_slice %854 {offsets = [0, 384], sizes = [2, 128], strides = [1, 1]} : vector<2x512xf32> to vector<2x128xf32>
    %874 = arith.negf %873 : vector<2x128xf32>
    %875 = math.exp %874 : vector<2x128xf32>
    %cst_240 = arith.constant 1.000000e+00 : f32
    %876 = vector.broadcast %cst_240 : f32 to vector<2x128xf32>
    %877 = arith.addf %876, %875 : vector<2x128xf32>
    %878 = arith.divf %876, %877 : vector<2x128xf32>
    %879 = arith.mulf %870, %807 : vector<2x128xf32>
    %880 = arith.mulf %864, %872 : vector<2x128xf32>
    %881 = arith.addf %879, %880 : vector<2x128xf32>
    %882 = math.tanh %881 : vector<2x128xf32>
    %883 = arith.mulf %878, %882 : vector<2x128xf32>
    %884 = vector.extract_strided_slice %858 {offsets = [0, 0], sizes = [2, 128], strides = [1, 1]} : vector<2x512xf32> to vector<2x128xf32>
    %885 = arith.negf %884 : vector<2x128xf32>
    %886 = math.exp %885 : vector<2x128xf32>
    %cst_241 = arith.constant 1.000000e+00 : f32
    %887 = vector.broadcast %cst_241 : f32 to vector<2x128xf32>
    %888 = arith.addf %887, %886 : vector<2x128xf32>
    %889 = arith.divf %887, %888 : vector<2x128xf32>
    %890 = vector.extract_strided_slice %858 {offsets = [0, 128], sizes = [2, 128], strides = [1, 1]} : vector<2x512xf32> to vector<2x128xf32>
    %891 = arith.negf %890 : vector<2x128xf32>
    %892 = math.exp %891 : vector<2x128xf32>
    %cst_242 = arith.constant 1.000000e+00 : f32
    %893 = vector.broadcast %cst_242 : f32 to vector<2x128xf32>
    %894 = arith.addf %893, %892 : vector<2x128xf32>
    %895 = arith.divf %893, %894 : vector<2x128xf32>
    %896 = vector.extract_strided_slice %858 {offsets = [0, 256], sizes = [2, 128], strides = [1, 1]} : vector<2x512xf32> to vector<2x128xf32>
    %897 = math.tanh %896 : vector<2x128xf32>
    %898 = vector.extract_strided_slice %858 {offsets = [0, 384], sizes = [2, 128], strides = [1, 1]} : vector<2x512xf32> to vector<2x128xf32>
    %899 = arith.negf %898 : vector<2x128xf32>
    %900 = math.exp %899 : vector<2x128xf32>
    %cst_243 = arith.constant 1.000000e+00 : f32
    %901 = vector.broadcast %cst_243 : f32 to vector<2x128xf32>
    %902 = arith.addf %901, %900 : vector<2x128xf32>
    %903 = arith.divf %901, %902 : vector<2x128xf32>
    %904 = arith.mulf %895, %832 : vector<2x128xf32>
    %905 = arith.mulf %889, %897 : vector<2x128xf32>
    %906 = arith.addf %904, %905 : vector<2x128xf32>
    %907 = math.tanh %906 : vector<2x128xf32>
    %908 = arith.mulf %903, %907 : vector<2x128xf32>
    %909 = arith.index_cast %c3_i32_230 : i32 to index
    %c0_244 = arith.constant 0 : index
    %c0_245 = arith.constant 0 : index
    %910 = vector.load %arg12[%909, %c0_244, %c0_245] : memref<8x2x128xf32, #tpu.memory_space<vmem>>, vector<1x2x128xf32>
    %911 = vector.shape_cast %910 : vector<1x2x128xf32> to vector<2x128xf32>
    %912 = vector.shape_cast %883 : vector<2x128xf32> to vector<1x2x128xf32>
    tpu.vector_store %arg12[%909, %c0_244, %c0_245], %912 {strides = array<i32>} : memref<8x2x128xf32, #tpu.memory_space<vmem>>, vector<1x2x128xf32>,
    %c7_i32_246 = arith.constant 7 : i32
    %913 = arith.subi %c7_i32_246, %c3_i32_230 : i32
    %914 = arith.index_cast %913 : i32 to index
    %c0_247 = arith.constant 0 : index
    %c0_248 = arith.constant 0 : index
    %915 = vector.load %arg13[%914, %c0_247, %c0_248] : memref<8x2x128xf32, #tpu.memory_space<vmem>>, vector<1x2x128xf32>
    %916 = vector.shape_cast %915 : vector<1x2x128xf32> to vector<2x128xf32>
    %917 = vector.shape_cast %908 : vector<2x128xf32> to vector<1x2x128xf32>
    tpu.vector_store %arg13[%914, %c0_247, %c0_248], %917 {strides = array<i32>} : memref<8x2x128xf32, #tpu.memory_space<vmem>>, vector<1x2x128xf32>,
    %c4_i32_249 = arith.constant 4 : i32
    %918 = arith.index_cast %c4_i32_249 : i32 to index
    %c0_250 = arith.constant 0 : index
    %c0_251 = arith.constant 0 : index
    %919 = vector.load %arg11[%918, %c0_250, %c0_251] : memref<8x2x1024xf32, #tpu.memory_space<vmem>>, vector<1x2x1024xf32>
    %920 = vector.shape_cast %919 : vector<1x2x1024xf32> to vector<2x1024xf32>
    %c7_i32_252 = arith.constant 7 : i32
    %921 = arith.subi %c7_i32_252, %c4_i32_249 : i32
    %922 = arith.index_cast %921 : i32 to index
    %c0_253 = arith.constant 0 : index
    %c0_254 = arith.constant 0 : index
    %923 = vector.load %arg11[%922, %c0_253, %c0_254] : memref<8x2x1024xf32, #tpu.memory_space<vmem>>, vector<1x2x1024xf32>
    %924 = vector.shape_cast %923 : vector<1x2x1024xf32> to vector<2x1024xf32>
    %925 = vector.extract_strided_slice %920 {offsets = [0, 0], sizes = [2, 512], strides = [1, 1]} : vector<2x1024xf32> to vector<2x512xf32>
    %926 = arith.truncf %883 : vector<2x128xf32> to vector<2x128xbf16>
    %cst_255 = arith.constant dense<0.000000e+00> : vector<2x512xf32>
    %927 = tpu.matmul %926, %619, %cst_255 {dimension_numbers = #tpu.dot_dimension_numbers<[1], [0], [0], [1], [0, 0, 1, 1], [], []>} : vector<2x128xbf16>, vector<128x512xbf16>, vector<2x512xf32> -> vector<2x512xf32>
    %928 = arith.addf %925, %927 : vector<2x512xf32>
    %929 = vector.extract_strided_slice %924 {offsets = [0, 512], sizes = [2, 512], strides = [1, 1]} : vector<2x1024xf32> to vector<2x512xf32>
    %930 = arith.truncf %908 : vector<2x128xf32> to vector<2x128xbf16>
    %cst_256 = arith.constant dense<0.000000e+00> : vector<2x512xf32>
    %931 = tpu.matmul %930, %620, %cst_256 {dimension_numbers = #tpu.dot_dimension_numbers<[1], [0], [0], [1], [0, 0, 1, 1], [], []>} : vector<2x128xbf16>, vector<128x512xbf16>, vector<2x512xf32> -> vector<2x512xf32>
    %932 = arith.addf %929, %931 : vector<2x512xf32>
    %933 = vector.extract_strided_slice %928 {offsets = [0, 0], sizes = [2, 128], strides = [1, 1]} : vector<2x512xf32> to vector<2x128xf32>
    %934 = arith.negf %933 : vector<2x128xf32>
    %935 = math.exp %934 : vector<2x128xf32>
    %cst_257 = arith.constant 1.000000e+00 : f32
    %936 = vector.broadcast %cst_257 : f32 to vector<2x128xf32>
    %937 = arith.addf %936, %935 : vector<2x128xf32>
    %938 = arith.divf %936, %937 : vector<2x128xf32>
    %939 = vector.extract_strided_slice %928 {offsets = [0, 128], sizes = [2, 128], strides = [1, 1]} : vector<2x512xf32> to vector<2x128xf32>
    %940 = arith.negf %939 : vector<2x128xf32>
    %941 = math.exp %940 : vector<2x128xf32>
    %cst_258 = arith.constant 1.000000e+00 : f32
    %942 = vector.broadcast %cst_258 : f32 to vector<2x128xf32>
    %943 = arith.addf %942, %941 : vector<2x128xf32>
    %944 = arith.divf %942, %943 : vector<2x128xf32>
    %945 = vector.extract_strided_slice %928 {offsets = [0, 256], sizes = [2, 128], strides = [1, 1]} : vector<2x512xf32> to vector<2x128xf32>
    %946 = math.tanh %945 : vector<2x128xf32>
    %947 = vector.extract_strided_slice %928 {offsets = [0, 384], sizes = [2, 128], strides = [1, 1]} : vector<2x512xf32> to vector<2x128xf32>
    %948 = arith.negf %947 : vector<2x128xf32>
    %949 = math.exp %948 : vector<2x128xf32>
    %cst_259 = arith.constant 1.000000e+00 : f32
    %950 = vector.broadcast %cst_259 : f32 to vector<2x128xf32>
    %951 = arith.addf %950, %949 : vector<2x128xf32>
    %952 = arith.divf %950, %951 : vector<2x128xf32>
    %953 = arith.mulf %944, %881 : vector<2x128xf32>
    %954 = arith.mulf %938, %946 : vector<2x128xf32>
    %955 = arith.addf %953, %954 : vector<2x128xf32>
    %956 = math.tanh %955 : vector<2x128xf32>
    %957 = arith.mulf %952, %956 : vector<2x128xf32>
    %958 = vector.extract_strided_slice %932 {offsets = [0, 0], sizes = [2, 128], strides = [1, 1]} : vector<2x512xf32> to vector<2x128xf32>
    %959 = arith.negf %958 : vector<2x128xf32>
    %960 = math.exp %959 : vector<2x128xf32>
    %cst_260 = arith.constant 1.000000e+00 : f32
    %961 = vector.broadcast %cst_260 : f32 to vector<2x128xf32>
    %962 = arith.addf %961, %960 : vector<2x128xf32>
    %963 = arith.divf %961, %962 : vector<2x128xf32>
    %964 = vector.extract_strided_slice %932 {offsets = [0, 128], sizes = [2, 128], strides = [1, 1]} : vector<2x512xf32> to vector<2x128xf32>
    %965 = arith.negf %964 : vector<2x128xf32>
    %966 = math.exp %965 : vector<2x128xf32>
    %cst_261 = arith.constant 1.000000e+00 : f32
    %967 = vector.broadcast %cst_261 : f32 to vector<2x128xf32>
    %968 = arith.addf %967, %966 : vector<2x128xf32>
    %969 = arith.divf %967, %968 : vector<2x128xf32>
    %970 = vector.extract_strided_slice %932 {offsets = [0, 256], sizes = [2, 128], strides = [1, 1]} : vector<2x512xf32> to vector<2x128xf32>
    %971 = math.tanh %970 : vector<2x128xf32>
    %972 = vector.extract_strided_slice %932 {offsets = [0, 384], sizes = [2, 128], strides = [1, 1]} : vector<2x512xf32> to vector<2x128xf32>
    %973 = arith.negf %972 : vector<2x128xf32>
    %974 = math.exp %973 : vector<2x128xf32>
    %cst_262 = arith.constant 1.000000e+00 : f32
    %975 = vector.broadcast %cst_262 : f32 to vector<2x128xf32>
    %976 = arith.addf %975, %974 : vector<2x128xf32>
    %977 = arith.divf %975, %976 : vector<2x128xf32>
    %978 = arith.mulf %969, %906 : vector<2x128xf32>
    %979 = arith.mulf %963, %971 : vector<2x128xf32>
    %980 = arith.addf %978, %979 : vector<2x128xf32>
    %981 = math.tanh %980 : vector<2x128xf32>
    %982 = arith.mulf %977, %981 : vector<2x128xf32>
    %983 = arith.index_cast %c4_i32_249 : i32 to index
    %c0_263 = arith.constant 0 : index
    %c0_264 = arith.constant 0 : index
    %984 = vector.load %arg12[%983, %c0_263, %c0_264] : memref<8x2x128xf32, #tpu.memory_space<vmem>>, vector<1x2x128xf32>
    %985 = vector.shape_cast %984 : vector<1x2x128xf32> to vector<2x128xf32>
    %986 = vector.shape_cast %957 : vector<2x128xf32> to vector<1x2x128xf32>
    tpu.vector_store %arg12[%983, %c0_263, %c0_264], %986 {strides = array<i32>} : memref<8x2x128xf32, #tpu.memory_space<vmem>>, vector<1x2x128xf32>,
    %c7_i32_265 = arith.constant 7 : i32
    %987 = arith.subi %c7_i32_265, %c4_i32_249 : i32
    %988 = arith.index_cast %987 : i32 to index
    %c0_266 = arith.constant 0 : index
    %c0_267 = arith.constant 0 : index
    %989 = vector.load %arg13[%988, %c0_266, %c0_267] : memref<8x2x128xf32, #tpu.memory_space<vmem>>, vector<1x2x128xf32>
    %990 = vector.shape_cast %989 : vector<1x2x128xf32> to vector<2x128xf32>
    %991 = vector.shape_cast %982 : vector<2x128xf32> to vector<1x2x128xf32>
    tpu.vector_store %arg13[%988, %c0_266, %c0_267], %991 {strides = array<i32>} : memref<8x2x128xf32, #tpu.memory_space<vmem>>, vector<1x2x128xf32>,
    %c5_i32_268 = arith.constant 5 : i32
    %992 = arith.index_cast %c5_i32_268 : i32 to index
    %c0_269 = arith.constant 0 : index
    %c0_270 = arith.constant 0 : index
    %993 = vector.load %arg11[%992, %c0_269, %c0_270] : memref<8x2x1024xf32, #tpu.memory_space<vmem>>, vector<1x2x1024xf32>
    %994 = vector.shape_cast %993 : vector<1x2x1024xf32> to vector<2x1024xf32>
    %c7_i32_271 = arith.constant 7 : i32
    %995 = arith.subi %c7_i32_271, %c5_i32_268 : i32
    %996 = arith.index_cast %995 : i32 to index
    %c0_272 = arith.constant 0 : index
    %c0_273 = arith.constant 0 : index
    %997 = vector.load %arg11[%996, %c0_272, %c0_273] : memref<8x2x1024xf32, #tpu.memory_space<vmem>>, vector<1x2x1024xf32>
    %998 = vector.shape_cast %997 : vector<1x2x1024xf32> to vector<2x1024xf32>
    %999 = vector.extract_strided_slice %994 {offsets = [0, 0], sizes = [2, 512], strides = [1, 1]} : vector<2x1024xf32> to vector<2x512xf32>
    %1000 = arith.truncf %957 : vector<2x128xf32> to vector<2x128xbf16>
    %cst_274 = arith.constant dense<0.000000e+00> : vector<2x512xf32>
    %1001 = tpu.matmul %1000, %619, %cst_274 {dimension_numbers = #tpu.dot_dimension_numbers<[1], [0], [0], [1], [0, 0, 1, 1], [], []>} : vector<2x128xbf16>, vector<128x512xbf16>, vector<2x512xf32> -> vector<2x512xf32>
    %1002 = arith.addf %999, %1001 : vector<2x512xf32>
    %1003 = vector.extract_strided_slice %998 {offsets = [0, 512], sizes = [2, 512], strides = [1, 1]} : vector<2x1024xf32> to vector<2x512xf32>
    %1004 = arith.truncf %982 : vector<2x128xf32> to vector<2x128xbf16>
    %cst_275 = arith.constant dense<0.000000e+00> : vector<2x512xf32>
    %1005 = tpu.matmul %1004, %620, %cst_275 {dimension_numbers = #tpu.dot_dimension_numbers<[1], [0], [0], [1], [0, 0, 1, 1], [], []>} : vector<2x128xbf16>, vector<128x512xbf16>, vector<2x512xf32> -> vector<2x512xf32>
    %1006 = arith.addf %1003, %1005 : vector<2x512xf32>
    %1007 = vector.extract_strided_slice %1002 {offsets = [0, 0], sizes = [2, 128], strides = [1, 1]} : vector<2x512xf32> to vector<2x128xf32>
    %1008 = arith.negf %1007 : vector<2x128xf32>
    %1009 = math.exp %1008 : vector<2x128xf32>
    %cst_276 = arith.constant 1.000000e+00 : f32
    %1010 = vector.broadcast %cst_276 : f32 to vector<2x128xf32>
    %1011 = arith.addf %1010, %1009 : vector<2x128xf32>
    %1012 = arith.divf %1010, %1011 : vector<2x128xf32>
    %1013 = vector.extract_strided_slice %1002 {offsets = [0, 128], sizes = [2, 128], strides = [1, 1]} : vector<2x512xf32> to vector<2x128xf32>
    %1014 = arith.negf %1013 : vector<2x128xf32>
    %1015 = math.exp %1014 : vector<2x128xf32>
    %cst_277 = arith.constant 1.000000e+00 : f32
    %1016 = vector.broadcast %cst_277 : f32 to vector<2x128xf32>
    %1017 = arith.addf %1016, %1015 : vector<2x128xf32>
    %1018 = arith.divf %1016, %1017 : vector<2x128xf32>
    %1019 = vector.extract_strided_slice %1002 {offsets = [0, 256], sizes = [2, 128], strides = [1, 1]} : vector<2x512xf32> to vector<2x128xf32>
    %1020 = math.tanh %1019 : vector<2x128xf32>
    %1021 = vector.extract_strided_slice %1002 {offsets = [0, 384], sizes = [2, 128], strides = [1, 1]} : vector<2x512xf32> to vector<2x128xf32>
    %1022 = arith.negf %1021 : vector<2x128xf32>
    %1023 = math.exp %1022 : vector<2x128xf32>
    %cst_278 = arith.constant 1.000000e+00 : f32
    %1024 = vector.broadcast %cst_278 : f32 to vector<2x128xf32>
    %1025 = arith.addf %1024, %1023 : vector<2x128xf32>
    %1026 = arith.divf %1024, %1025 : vector<2x128xf32>
    %1027 = arith.mulf %1018, %955 : vector<2x128xf32>
    %1028 = arith.mulf %1012, %1020 : vector<2x128xf32>
    %1029 = arith.addf %1027, %1028 : vector<2x128xf32>
    %1030 = math.tanh %1029 : vector<2x128xf32>
    %1031 = arith.mulf %1026, %1030 : vector<2x128xf32>
    %1032 = vector.extract_strided_slice %1006 {offsets = [0, 0], sizes = [2, 128], strides = [1, 1]} : vector<2x512xf32> to vector<2x128xf32>
    %1033 = arith.negf %1032 : vector<2x128xf32>
    %1034 = math.exp %1033 : vector<2x128xf32>
    %cst_279 = arith.constant 1.000000e+00 : f32
    %1035 = vector.broadcast %cst_279 : f32 to vector<2x128xf32>
    %1036 = arith.addf %1035, %1034 : vector<2x128xf32>
    %1037 = arith.divf %1035, %1036 : vector<2x128xf32>
    %1038 = vector.extract_strided_slice %1006 {offsets = [0, 128], sizes = [2, 128], strides = [1, 1]} : vector<2x512xf32> to vector<2x128xf32>
    %1039 = arith.negf %1038 : vector<2x128xf32>
    %1040 = math.exp %1039 : vector<2x128xf32>
    %cst_280 = arith.constant 1.000000e+00 : f32
    %1041 = vector.broadcast %cst_280 : f32 to vector<2x128xf32>
    %1042 = arith.addf %1041, %1040 : vector<2x128xf32>
    %1043 = arith.divf %1041, %1042 : vector<2x128xf32>
    %1044 = vector.extract_strided_slice %1006 {offsets = [0, 256], sizes = [2, 128], strides = [1, 1]} : vector<2x512xf32> to vector<2x128xf32>
    %1045 = math.tanh %1044 : vector<2x128xf32>
    %1046 = vector.extract_strided_slice %1006 {offsets = [0, 384], sizes = [2, 128], strides = [1, 1]} : vector<2x512xf32> to vector<2x128xf32>
    %1047 = arith.negf %1046 : vector<2x128xf32>
    %1048 = math.exp %1047 : vector<2x128xf32>
    %cst_281 = arith.constant 1.000000e+00 : f32
    %1049 = vector.broadcast %cst_281 : f32 to vector<2x128xf32>
    %1050 = arith.addf %1049, %1048 : vector<2x128xf32>
    %1051 = arith.divf %1049, %1050 : vector<2x128xf32>
    %1052 = arith.mulf %1043, %980 : vector<2x128xf32>
    %1053 = arith.mulf %1037, %1045 : vector<2x128xf32>
    %1054 = arith.addf %1052, %1053 : vector<2x128xf32>
    %1055 = math.tanh %1054 : vector<2x128xf32>
    %1056 = arith.mulf %1051, %1055 : vector<2x128xf32>
    %1057 = arith.index_cast %c5_i32_268 : i32 to index
    %c0_282 = arith.constant 0 : index
    %c0_283 = arith.constant 0 : index
    %1058 = vector.load %arg12[%1057, %c0_282, %c0_283] : memref<8x2x128xf32, #tpu.memory_space<vmem>>, vector<1x2x128xf32>
    %1059 = vector.shape_cast %1058 : vector<1x2x128xf32> to vector<2x128xf32>
    %1060 = vector.shape_cast %1031 : vector<2x128xf32> to vector<1x2x128xf32>
    tpu.vector_store %arg12[%1057, %c0_282, %c0_283], %1060 {strides = array<i32>} : memref<8x2x128xf32, #tpu.memory_space<vmem>>, vector<1x2x128xf32>,
    %c7_i32_284 = arith.constant 7 : i32
    %1061 = arith.subi %c7_i32_284, %c5_i32_268 : i32
    %1062 = arith.index_cast %1061 : i32 to index
    %c0_285 = arith.constant 0 : index
    %c0_286 = arith.constant 0 : index
    %1063 = vector.load %arg13[%1062, %c0_285, %c0_286] : memref<8x2x128xf32, #tpu.memory_space<vmem>>, vector<1x2x128xf32>
    %1064 = vector.shape_cast %1063 : vector<1x2x128xf32> to vector<2x128xf32>
    %1065 = vector.shape_cast %1056 : vector<2x128xf32> to vector<1x2x128xf32>
    tpu.vector_store %arg13[%1062, %c0_285, %c0_286], %1065 {strides = array<i32>} : memref<8x2x128xf32, #tpu.memory_space<vmem>>, vector<1x2x128xf32>,
    %c6_i32_287 = arith.constant 6 : i32
    %1066 = arith.index_cast %c6_i32_287 : i32 to index
    %c0_288 = arith.constant 0 : index
    %c0_289 = arith.constant 0 : index
    %1067 = vector.load %arg11[%1066, %c0_288, %c0_289] : memref<8x2x1024xf32, #tpu.memory_space<vmem>>, vector<1x2x1024xf32>
    %1068 = vector.shape_cast %1067 : vector<1x2x1024xf32> to vector<2x1024xf32>
    %c7_i32_290 = arith.constant 7 : i32
    %1069 = arith.subi %c7_i32_290, %c6_i32_287 : i32
    %1070 = arith.index_cast %1069 : i32 to index
    %c0_291 = arith.constant 0 : index
    %c0_292 = arith.constant 0 : index
    %1071 = vector.load %arg11[%1070, %c0_291, %c0_292] : memref<8x2x1024xf32, #tpu.memory_space<vmem>>, vector<1x2x1024xf32>
    %1072 = vector.shape_cast %1071 : vector<1x2x1024xf32> to vector<2x1024xf32>
    %1073 = vector.extract_strided_slice %1068 {offsets = [0, 0], sizes = [2, 512], strides = [1, 1]} : vector<2x1024xf32> to vector<2x512xf32>
    %1074 = arith.truncf %1031 : vector<2x128xf32> to vector<2x128xbf16>
    %cst_293 = arith.constant dense<0.000000e+00> : vector<2x512xf32>
    %1075 = tpu.matmul %1074, %619, %cst_293 {dimension_numbers = #tpu.dot_dimension_numbers<[1], [0], [0], [1], [0, 0, 1, 1], [], []>} : vector<2x128xbf16>, vector<128x512xbf16>, vector<2x512xf32> -> vector<2x512xf32>
    %1076 = arith.addf %1073, %1075 : vector<2x512xf32>
    %1077 = vector.extract_strided_slice %1072 {offsets = [0, 512], sizes = [2, 512], strides = [1, 1]} : vector<2x1024xf32> to vector<2x512xf32>
    %1078 = arith.truncf %1056 : vector<2x128xf32> to vector<2x128xbf16>
    %cst_294 = arith.constant dense<0.000000e+00> : vector<2x512xf32>
    %1079 = tpu.matmul %1078, %620, %cst_294 {dimension_numbers = #tpu.dot_dimension_numbers<[1], [0], [0], [1], [0, 0, 1, 1], [], []>} : vector<2x128xbf16>, vector<128x512xbf16>, vector<2x512xf32> -> vector<2x512xf32>
    %1080 = arith.addf %1077, %1079 : vector<2x512xf32>
    %1081 = vector.extract_strided_slice %1076 {offsets = [0, 0], sizes = [2, 128], strides = [1, 1]} : vector<2x512xf32> to vector<2x128xf32>
    %1082 = arith.negf %1081 : vector<2x128xf32>
    %1083 = math.exp %1082 : vector<2x128xf32>
    %cst_295 = arith.constant 1.000000e+00 : f32
    %1084 = vector.broadcast %cst_295 : f32 to vector<2x128xf32>
    %1085 = arith.addf %1084, %1083 : vector<2x128xf32>
    %1086 = arith.divf %1084, %1085 : vector<2x128xf32>
    %1087 = vector.extract_strided_slice %1076 {offsets = [0, 128], sizes = [2, 128], strides = [1, 1]} : vector<2x512xf32> to vector<2x128xf32>
    %1088 = arith.negf %1087 : vector<2x128xf32>
    %1089 = math.exp %1088 : vector<2x128xf32>
    %cst_296 = arith.constant 1.000000e+00 : f32
    %1090 = vector.broadcast %cst_296 : f32 to vector<2x128xf32>
    %1091 = arith.addf %1090, %1089 : vector<2x128xf32>
    %1092 = arith.divf %1090, %1091 : vector<2x128xf32>
    %1093 = vector.extract_strided_slice %1076 {offsets = [0, 256], sizes = [2, 128], strides = [1, 1]} : vector<2x512xf32> to vector<2x128xf32>
    %1094 = math.tanh %1093 : vector<2x128xf32>
    %1095 = vector.extract_strided_slice %1076 {offsets = [0, 384], sizes = [2, 128], strides = [1, 1]} : vector<2x512xf32> to vector<2x128xf32>
    %1096 = arith.negf %1095 : vector<2x128xf32>
    %1097 = math.exp %1096 : vector<2x128xf32>
    %cst_297 = arith.constant 1.000000e+00 : f32
    %1098 = vector.broadcast %cst_297 : f32 to vector<2x128xf32>
    %1099 = arith.addf %1098, %1097 : vector<2x128xf32>
    %1100 = arith.divf %1098, %1099 : vector<2x128xf32>
    %1101 = arith.mulf %1092, %1029 : vector<2x128xf32>
    %1102 = arith.mulf %1086, %1094 : vector<2x128xf32>
    %1103 = arith.addf %1101, %1102 : vector<2x128xf32>
    %1104 = math.tanh %1103 : vector<2x128xf32>
    %1105 = arith.mulf %1100, %1104 : vector<2x128xf32>
    %1106 = vector.extract_strided_slice %1080 {offsets = [0, 0], sizes = [2, 128], strides = [1, 1]} : vector<2x512xf32> to vector<2x128xf32>
    %1107 = arith.negf %1106 : vector<2x128xf32>
    %1108 = math.exp %1107 : vector<2x128xf32>
    %cst_298 = arith.constant 1.000000e+00 : f32
    %1109 = vector.broadcast %cst_298 : f32 to vector<2x128xf32>
    %1110 = arith.addf %1109, %1108 : vector<2x128xf32>
    %1111 = arith.divf %1109, %1110 : vector<2x128xf32>
    %1112 = vector.extract_strided_slice %1080 {offsets = [0, 128], sizes = [2, 128], strides = [1, 1]} : vector<2x512xf32> to vector<2x128xf32>
    %1113 = arith.negf %1112 : vector<2x128xf32>
    %1114 = math.exp %1113 : vector<2x128xf32>
    %cst_299 = arith.constant 1.000000e+00 : f32
    %1115 = vector.broadcast %cst_299 : f32 to vector<2x128xf32>
    %1116 = arith.addf %1115, %1114 : vector<2x128xf32>
    %1117 = arith.divf %1115, %1116 : vector<2x128xf32>
    %1118 = vector.extract_strided_slice %1080 {offsets = [0, 256], sizes = [2, 128], strides = [1, 1]} : vector<2x512xf32> to vector<2x128xf32>
    %1119 = math.tanh %1118 : vector<2x128xf32>
    %1120 = vector.extract_strided_slice %1080 {offsets = [0, 384], sizes = [2, 128], strides = [1, 1]} : vector<2x512xf32> to vector<2x128xf32>
    %1121 = arith.negf %1120 : vector<2x128xf32>
    %1122 = math.exp %1121 : vector<2x128xf32>
    %cst_300 = arith.constant 1.000000e+00 : f32
    %1123 = vector.broadcast %cst_300 : f32 to vector<2x128xf32>
    %1124 = arith.addf %1123, %1122 : vector<2x128xf32>
    %1125 = arith.divf %1123, %1124 : vector<2x128xf32>
    %1126 = arith.mulf %1117, %1054 : vector<2x128xf32>
    %1127 = arith.mulf %1111, %1119 : vector<2x128xf32>
    %1128 = arith.addf %1126, %1127 : vector<2x128xf32>
    %1129 = math.tanh %1128 : vector<2x128xf32>
    %1130 = arith.mulf %1125, %1129 : vector<2x128xf32>
    %1131 = arith.index_cast %c6_i32_287 : i32 to index
    %c0_301 = arith.constant 0 : index
    %c0_302 = arith.constant 0 : index
    %1132 = vector.load %arg12[%1131, %c0_301, %c0_302] : memref<8x2x128xf32, #tpu.memory_space<vmem>>, vector<1x2x128xf32>
    %1133 = vector.shape_cast %1132 : vector<1x2x128xf32> to vector<2x128xf32>
    %1134 = vector.shape_cast %1105 : vector<2x128xf32> to vector<1x2x128xf32>
    tpu.vector_store %arg12[%1131, %c0_301, %c0_302], %1134 {strides = array<i32>} : memref<8x2x128xf32, #tpu.memory_space<vmem>>, vector<1x2x128xf32>,
    %c7_i32_303 = arith.constant 7 : i32
    %1135 = arith.subi %c7_i32_303, %c6_i32_287 : i32
    %1136 = arith.index_cast %1135 : i32 to index
    %c0_304 = arith.constant 0 : index
    %c0_305 = arith.constant 0 : index
    %1137 = vector.load %arg13[%1136, %c0_304, %c0_305] : memref<8x2x128xf32, #tpu.memory_space<vmem>>, vector<1x2x128xf32>
    %1138 = vector.shape_cast %1137 : vector<1x2x128xf32> to vector<2x128xf32>
    %1139 = vector.shape_cast %1130 : vector<2x128xf32> to vector<1x2x128xf32>
    tpu.vector_store %arg13[%1136, %c0_304, %c0_305], %1139 {strides = array<i32>} : memref<8x2x128xf32, #tpu.memory_space<vmem>>, vector<1x2x128xf32>,
    %c7_i32_306 = arith.constant 7 : i32
    %1140 = arith.index_cast %c7_i32_306 : i32 to index
    %c0_307 = arith.constant 0 : index
    %c0_308 = arith.constant 0 : index
    %1141 = vector.load %arg11[%1140, %c0_307, %c0_308] : memref<8x2x1024xf32, #tpu.memory_space<vmem>>, vector<1x2x1024xf32>
    %1142 = vector.shape_cast %1141 : vector<1x2x1024xf32> to vector<2x1024xf32>
    %c7_i32_309 = arith.constant 7 : i32
    %1143 = arith.subi %c7_i32_309, %c7_i32_306 : i32
    %1144 = arith.index_cast %1143 : i32 to index
    %c0_310 = arith.constant 0 : index
    %c0_311 = arith.constant 0 : index
    %1145 = vector.load %arg11[%1144, %c0_310, %c0_311] : memref<8x2x1024xf32, #tpu.memory_space<vmem>>, vector<1x2x1024xf32>
    %1146 = vector.shape_cast %1145 : vector<1x2x1024xf32> to vector<2x1024xf32>
    %1147 = vector.extract_strided_slice %1142 {offsets = [0, 0], sizes = [2, 512], strides = [1, 1]} : vector<2x1024xf32> to vector<2x512xf32>
    %1148 = arith.truncf %1105 : vector<2x128xf32> to vector<2x128xbf16>
    %cst_312 = arith.constant dense<0.000000e+00> : vector<2x512xf32>
    %1149 = tpu.matmul %1148, %619, %cst_312 {dimension_numbers = #tpu.dot_dimension_numbers<[1], [0], [0], [1], [0, 0, 1, 1], [], []>} : vector<2x128xbf16>, vector<128x512xbf16>, vector<2x512xf32> -> vector<2x512xf32>
    %1150 = arith.addf %1147, %1149 : vector<2x512xf32>
    %1151 = vector.extract_strided_slice %1146 {offsets = [0, 512], sizes = [2, 512], strides = [1, 1]} : vector<2x1024xf32> to vector<2x512xf32>
    %1152 = arith.truncf %1130 : vector<2x128xf32> to vector<2x128xbf16>
    %cst_313 = arith.constant dense<0.000000e+00> : vector<2x512xf32>
    %1153 = tpu.matmul %1152, %620, %cst_313 {dimension_numbers = #tpu.dot_dimension_numbers<[1], [0], [0], [1], [0, 0, 1, 1], [], []>} : vector<2x128xbf16>, vector<128x512xbf16>, vector<2x512xf32> -> vector<2x512xf32>
    %1154 = arith.addf %1151, %1153 : vector<2x512xf32>
    %1155 = vector.extract_strided_slice %1150 {offsets = [0, 0], sizes = [2, 128], strides = [1, 1]} : vector<2x512xf32> to vector<2x128xf32>
    %1156 = arith.negf %1155 : vector<2x128xf32>
    %1157 = math.exp %1156 : vector<2x128xf32>
    %cst_314 = arith.constant 1.000000e+00 : f32
    %1158 = vector.broadcast %cst_314 : f32 to vector<2x128xf32>
    %1159 = arith.addf %1158, %1157 : vector<2x128xf32>
    %1160 = arith.divf %1158, %1159 : vector<2x128xf32>
    %1161 = vector.extract_strided_slice %1150 {offsets = [0, 128], sizes = [2, 128], strides = [1, 1]} : vector<2x512xf32> to vector<2x128xf32>
    %1162 = arith.negf %1161 : vector<2x128xf32>
    %1163 = math.exp %1162 : vector<2x128xf32>
    %cst_315 = arith.constant 1.000000e+00 : f32
    %1164 = vector.broadcast %cst_315 : f32 to vector<2x128xf32>
    %1165 = arith.addf %1164, %1163 : vector<2x128xf32>
    %1166 = arith.divf %1164, %1165 : vector<2x128xf32>
    %1167 = vector.extract_strided_slice %1150 {offsets = [0, 256], sizes = [2, 128], strides = [1, 1]} : vector<2x512xf32> to vector<2x128xf32>
    %1168 = math.tanh %1167 : vector<2x128xf32>
    %1169 = vector.extract_strided_slice %1150 {offsets = [0, 384], sizes = [2, 128], strides = [1, 1]} : vector<2x512xf32> to vector<2x128xf32>
    %1170 = arith.negf %1169 : vector<2x128xf32>
    %1171 = math.exp %1170 : vector<2x128xf32>
    %cst_316 = arith.constant 1.000000e+00 : f32
    %1172 = vector.broadcast %cst_316 : f32 to vector<2x128xf32>
    %1173 = arith.addf %1172, %1171 : vector<2x128xf32>
    %1174 = arith.divf %1172, %1173 : vector<2x128xf32>
    %1175 = arith.mulf %1166, %1103 : vector<2x128xf32>
    %1176 = arith.mulf %1160, %1168 : vector<2x128xf32>
    %1177 = arith.addf %1175, %1176 : vector<2x128xf32>
    %1178 = math.tanh %1177 : vector<2x128xf32>
    %1179 = arith.mulf %1174, %1178 : vector<2x128xf32>
    %1180 = vector.extract_strided_slice %1154 {offsets = [0, 0], sizes = [2, 128], strides = [1, 1]} : vector<2x512xf32> to vector<2x128xf32>
    %1181 = arith.negf %1180 : vector<2x128xf32>
    %1182 = math.exp %1181 : vector<2x128xf32>
    %cst_317 = arith.constant 1.000000e+00 : f32
    %1183 = vector.broadcast %cst_317 : f32 to vector<2x128xf32>
    %1184 = arith.addf %1183, %1182 : vector<2x128xf32>
    %1185 = arith.divf %1183, %1184 : vector<2x128xf32>
    %1186 = vector.extract_strided_slice %1154 {offsets = [0, 128], sizes = [2, 128], strides = [1, 1]} : vector<2x512xf32> to vector<2x128xf32>
    %1187 = arith.negf %1186 : vector<2x128xf32>
    %1188 = math.exp %1187 : vector<2x128xf32>
    %cst_318 = arith.constant 1.000000e+00 : f32
    %1189 = vector.broadcast %cst_318 : f32 to vector<2x128xf32>
    %1190 = arith.addf %1189, %1188 : vector<2x128xf32>
    %1191 = arith.divf %1189, %1190 : vector<2x128xf32>
    %1192 = vector.extract_strided_slice %1154 {offsets = [0, 256], sizes = [2, 128], strides = [1, 1]} : vector<2x512xf32> to vector<2x128xf32>
    %1193 = math.tanh %1192 : vector<2x128xf32>
    %1194 = vector.extract_strided_slice %1154 {offsets = [0, 384], sizes = [2, 128], strides = [1, 1]} : vector<2x512xf32> to vector<2x128xf32>
    %1195 = arith.negf %1194 : vector<2x128xf32>
    %1196 = math.exp %1195 : vector<2x128xf32>
    %cst_319 = arith.constant 1.000000e+00 : f32
    %1197 = vector.broadcast %cst_319 : f32 to vector<2x128xf32>
    %1198 = arith.addf %1197, %1196 : vector<2x128xf32>
    %1199 = arith.divf %1197, %1198 : vector<2x128xf32>
    %1200 = arith.mulf %1191, %1128 : vector<2x128xf32>
    %1201 = arith.mulf %1185, %1193 : vector<2x128xf32>
    %1202 = arith.addf %1200, %1201 : vector<2x128xf32>
    %1203 = math.tanh %1202 : vector<2x128xf32>
    %1204 = arith.mulf %1199, %1203 : vector<2x128xf32>
    %1205 = arith.index_cast %c7_i32_306 : i32 to index
    %c0_320 = arith.constant 0 : index
    %c0_321 = arith.constant 0 : index
    %1206 = vector.load %arg12[%1205, %c0_320, %c0_321] : memref<8x2x128xf32, #tpu.memory_space<vmem>>, vector<1x2x128xf32>
    %1207 = vector.shape_cast %1206 : vector<1x2x128xf32> to vector<2x128xf32>
    %1208 = vector.shape_cast %1179 : vector<2x128xf32> to vector<1x2x128xf32>
    tpu.vector_store %arg12[%1205, %c0_320, %c0_321], %1208 {strides = array<i32>} : memref<8x2x128xf32, #tpu.memory_space<vmem>>, vector<1x2x128xf32>,
    %c7_i32_322 = arith.constant 7 : i32
    %1209 = arith.subi %c7_i32_322, %c7_i32_306 : i32
    %1210 = arith.index_cast %1209 : i32 to index
    %c0_323 = arith.constant 0 : index
    %c0_324 = arith.constant 0 : index
    %1211 = vector.load %arg13[%1210, %c0_323, %c0_324] : memref<8x2x128xf32, #tpu.memory_space<vmem>>, vector<1x2x128xf32>
    %1212 = vector.shape_cast %1211 : vector<1x2x128xf32> to vector<2x128xf32>
    %1213 = vector.shape_cast %1204 : vector<2x128xf32> to vector<1x2x128xf32>
    tpu.vector_store %arg13[%1210, %c0_323, %c0_324], %1213 {strides = array<i32>} : memref<8x2x128xf32, #tpu.memory_space<vmem>>, vector<1x2x128xf32>,
    %c8_i32_325 = arith.constant 8 : i32
    %c0_326 = arith.constant 0 : index
    %c0_327 = arith.constant 0 : index
    %c0_328 = arith.constant 0 : index
    %1214 = vector.load %arg12[%c0_326, %c0_327, %c0_328] : memref<8x2x128xf32, #tpu.memory_space<vmem>>, vector<8x2x128xf32>
    %c0_329 = arith.constant 0 : index
    %c0_330 = arith.constant 0 : index
    %c0_331 = arith.constant 0 : index
    %1215 = vector.load %arg13[%c0_329, %c0_330, %c0_331] : memref<8x2x128xf32, #tpu.memory_space<vmem>>, vector<8x2x128xf32>
    %1216 = tpu.concatenate %1214, %1215 in 2 : vector<8x2x128xf32>, vector<8x2x128xf32> -> vector<8x2x256xf32>
    %1217 = arith.truncf %1216 : vector<8x2x256xf32> to vector<8x2x256xbf16>
    %1218 = vector.shape_cast %1217 : vector<8x2x256xbf16> to vector<16x256xbf16>
    %c0_332 = arith.constant 0 : index
    %c0_333 = arith.constant 0 : index
    %1219 = vector.load %arg8[%c0_332, %c0_333] : memref<256x128xbf16, #tpu.memory_space<vmem>>, vector<256x128xbf16>
    %cst_334 = arith.constant dense<0.000000e+00> : vector<16x128xf32>
    %1220 = tpu.matmul %1218, %1219, %cst_334 {dimension_numbers = #tpu.dot_dimension_numbers<[1], [0], [0], [1], [0, 0, 1, 1], [], []>} : vector<16x256xbf16>, vector<256x128xbf16>, vector<16x128xf32> -> vector<16x128xf32>
    %c0_335 = arith.constant 0 : index
    %c0_336 = arith.constant 0 : index
    %1221 = vector.load %arg9[%c0_335, %c0_336] : memref<1x128xf32, #tpu.memory_space<vmem>>, vector<1x128xf32>
    %1222 = vector.broadcast %1221 : vector<1x128xf32> to vector<16x128xf32>
    %1223 = arith.addf %1220, %1222 : vector<16x128xf32>
    %1224 = vector.shape_cast %1223 : vector<16x128xf32> to vector<8x2x128xf32>
    %c0_337 = arith.constant 0 : index
    %c0_338 = arith.constant 0 : index
    %c0_339 = arith.constant 0 : index
    %1225 = vector.load %arg10[%c0_337, %c0_338, %c0_339] : memref<8x2x128xf32, #tpu.memory_space<vmem>>, vector<8x2x128xf32>
    tpu.vector_store %arg10[%c0_337, %c0_338, %c0_339], %1224 {strides = array<i32>} : memref<8x2x128xf32, #tpu.memory_space<vmem>>, vector<8x2x128xf32>,
    return
  }
  func.func @transform_0(%arg0: i32) -> (i32, i32, i32) {
    %c0_i32 = arith.constant 0 : i32
    %c0_i32_0 = arith.constant 0 : i32
    %c0_i32_1 = arith.constant 0 : i32
    %c0_i32_2 = arith.constant 0 : i32
    return %c0_i32, %c0_i32_0, %c0_i32_1 : i32, i32, i32
  }
  func.func @transform_1(%arg0: i32) -> (i32, i32) {
    %c0_i32 = arith.constant 0 : i32
    %c0_i32_0 = arith.constant 0 : i32
    %c0_i32_1 = arith.constant 0 : i32
    return %c0_i32, %c0_i32_0 : i32, i32
  }
  func.func @transform_2(%arg0: i32) -> (i32, i32) {
    %c0_i32 = arith.constant 0 : i32
    %c0_i32_0 = arith.constant 0 : i32
    %c0_i32_1 = arith.constant 0 : i32
    return %c0_i32, %c0_i32_0 : i32, i32
  }
  func.func @transform_3(%arg0: i32) -> (i32, i32) {
    %c0_i32 = arith.constant 0 : i32
    %c0_i32_0 = arith.constant 0 : i32
    %c0_i32_1 = arith.constant 0 : i32
    return %c0_i32, %c0_i32_0 : i32, i32
  }
  func.func @transform_4(%arg0: i32) -> (i32, i32) {
    %c0_i32 = arith.constant 0 : i32
    %c0_i32_0 = arith.constant 0 : i32
    %c0_i32_1 = arith.constant 0 : i32
    return %c0_i32, %c0_i32_0 : i32, i32
  }
  func.func @transform_5(%arg0: i32) -> (i32, i32) {
    %c0_i32 = arith.constant 0 : i32
    %c0_i32_0 = arith.constant 0 : i32
    %c0_i32_1 = arith.constant 0 : i32
    return %c0_i32, %c0_i32_0 : i32, i32
  }
  func.func @transform_6(%arg0: i32) -> (i32, i32) {
    %c0_i32 = arith.constant 0 : i32
    %c0_i32_0 = arith.constant 0 : i32
    %c0_i32_1 = arith.constant 0 : i32
    return %c0_i32, %c0_i32_0 : i32, i32
  }
  func.func @transform_7(%arg0: i32) -> (i32, i32) {
    %c0_i32 = arith.constant 0 : i32
    %c0_i32_0 = arith.constant 0 : i32
    %c0_i32_1 = arith.constant 0 : i32
    return %c0_i32, %c0_i32_0 : i32, i32
  }
  func.func @transform_8(%arg0: i32) -> (i32, i32) {
    %c0_i32 = arith.constant 0 : i32
    %c0_i32_0 = arith.constant 0 : i32
    %c0_i32_1 = arith.constant 0 : i32
    return %c0_i32, %c0_i32_0 : i32, i32
  }
  func.func @transform_9(%arg0: i32) -> (i32, i32, i32) {
    %c0_i32 = arith.constant 0 : i32
    %c0_i32_0 = arith.constant 0 : i32
    %c0_i32_1 = arith.constant 0 : i32
    %c0_i32_2 = arith.constant 0 : i32
    return %c0_i32, %c0_i32_0, %c0_i32_1 : i32, i32, i32
  }
}

</mosaic_0001>

<llo_original>
// kernel: captcha_solver_forward.2
$region0: #{captcha_solver_forward.2}
  #allocation0 [shape = 'u32[]', space=smem, size = 0x4, offset = 0x4, fixed_abs, tag = 'smem constant byte address 0x4 - core index']
  #allocation1 [shape = 'u32[144,128]{1,0:T(1,128)}', space=vmem, size = 0x12000, scoped, tag = 'internal scratch']
  %s0 = inlined_call_operand.vmem [shape: bf16[512,256], index: 0, kind: input, shape index: {}]
  %s1 = inlined_call_operand.vmem [shape: bf16[256,128], index: 1, kind: input, shape index: {}]
  %s2 = inlined_call_operand.vmem [shape: f32[1,128], index: 2, kind: input, shape index: {}]
  %s3 = inlined_call_operand.vmem [shape: f32[1,128], index: 3, kind: input, shape index: {}]
  %s4 = inlined_call_operand.vmem [shape: f32[512,128], index: 4, kind: output, shape index: {}]
  %s5 = sld [smem:[#allocation0]]
  $region26: #{captcha_solver_forward.2} parent=0
    _
  %s7 = ssub.s32 1, %s5
  %s8 = scalar_select 0, %s7, %s5
  // Predicated region
  $region2: #{captcha_solver_forward.2} parent=0 // pred_check
    _
  $region3: #{captcha_solver_forward.2} parent=0 // pred_check_branch
    %10 = sbr.rel (0) target = $region5
  $region4: #{captcha_solver_forward.2} parent=0 // pred_region
    _
  $region5: #{captcha_solver_forward.2} parent=0 // pred_fallthru
    _
  // Predicated region
  $region6: #{captcha_solver_forward.2} parent=0 // pred_check
    _
  $region7: #{captcha_solver_forward.2} parent=0 // pred_check_branch
    %12 = sbr.rel (0) target = $region9
  $region8: #{captcha_solver_forward.2} parent=0 // pred_region
    _
  $region9: #{captcha_solver_forward.2} parent=0 // pred_fallthru
    _
  // Predicated region
  $region10: #{captcha_solver_forward.2} parent=0 // pred_check
    _
  $region11: #{captcha_solver_forward.2} parent=0 // pred_check_branch
    %14 = sbr.rel (0) target = $region13
  $region12: #{captcha_solver_forward.2} parent=0 // pred_region
    _
  $region13: #{captcha_solver_forward.2} parent=0 // pred_fallthru
    _
  // Predicated region
  $region14: #{captcha_solver_forward.2} parent=0 // pred_check
    _
  $region15: #{captcha_solver_forward.2} parent=0 // pred_check_branch
    %16 = sbr.rel (0) target = $region17
  $region16: #{captcha_solver_forward.2} parent=0 // pred_region
    _
  $region17: #{captcha_solver_forward.2} parent=0 // pred_fallthru
    _
  %v18 = vld [vmem:[%s0] sm:$0xff]
  %v19 = vld [vmem:[%s0 + $0x8] sm:$0xff]
  %v20 = vld [vmem:[%s0 + $0x10] sm:$0xff]
  %v21 = vld [vmem:[%s0 + $0x18] sm:$0xff]
  %v22 = vld [vmem:[%s0 + $0x20] sm:$0xff]
  %v23 = vld [vmem:[%s0 + $0x28] sm:$0xff]
  %v24 = vld [vmem:[%s0 + $0x30] sm:$0xff]
  %v25 = vld [vmem:[%s0 + $0x38] sm:$0xff]
  %v26 = vld [vmem:[%s0 + $0x40] sm:$0xff]
  %v27 = vld [vmem:[%s0 + $0x48] sm:$0xff]
  %v28 = vld [vmem:[%s0 + $0x50] sm:$0xff]
  %v29 = vld [vmem:[%s0 + $0x58] sm:$0xff]
  %v30 = vld [vmem:[%s0 + $0x60] sm:$0xff]
  %v31 = vld [vmem:[%s0 + $0x68] sm:$0xff]
  %v32 = vld [vmem:[%s0 + $0x70] sm:$0xff]
  %v33 = vld [vmem:[%s0 + $0x78] sm:$0xff]
  %v34 = vld [vmem:[%s0 + $0x80] sm:$0xff]
  %v35 = vld [vmem:[%s0 + $0x88] sm:$0xff]
  %v36 = vld [vmem:[%s0 + $0x90] sm:$0xff]
  %v37 = vld [vmem:[%s0 + $0x98] sm:$0xff]
  %v38 = vld [vmem:[%s0 + $0xa0] sm:$0xff]
  %v39 = vld [vmem:[%s0 + $0xa8] sm:$0xff]
  %v40 = vld [vmem:[%s0 + $0xb0] sm:$0xff]
  %v41 = vld [vmem:[%s0 + $0xb8] sm:$0xff]
  %v42 = vld [vmem:[%s0 + $0xc0] sm:$0xff]
  %v43 = vld [vmem:[%s0 + $0xc8] sm:$0xff]
  %v44 = vld [vmem:[%s0 + $0xd0] sm:$0xff]
  %v45 = vld [vmem:[%s0 + $0xd8] sm:$0xff]
  %v46 = vld [vmem:[%s0 + $0xe0] sm:$0xff]
  %v47 = vld [vmem:[%s0 + $0xe8] sm:$0xff]
  %v48 = vld [vmem:[%s0 + $0xf0] sm:$0xff]
  %v49 = vld [vmem:[%s0 + $0xf8] sm:$0xff]
  %v50 = vld [vmem:[%s0 + $0x100] sm:$0xff]
  %v51 = vld [vmem:[%s0 + $0x108] sm:$0xff]
  %v52 = vld [vmem:[%s0 + $0x110] sm:$0xff]
  %v53 = vld [vmem:[%s0 + $0x118] sm:$0xff]
  %v54 = vld [vmem:[%s0 + $0x120] sm:$0xff]
  %v55 = vld [vmem:[%s0 + $0x128] sm:$0xff]
  %v56 = vld [vmem:[%s0 + $0x130] sm:$0xff]
  %v57 = vld [vmem:[%s0 + $0x138] sm:$0xff]
  %v58 = vld [vmem:[%s0 + $0x140] sm:$0xff]
  %v59 = vld [vmem:[%s0 + $0x148] sm:$0xff]
  %v60 = vld [vmem:[%s0 + $0x150] sm:$0xff]
  %v61 = vld [vmem:[%s0 + $0x158] sm:$0xff]
  %v62 = vld [vmem:[%s0 + $0x160] sm:$0xff]
  %v63 = vld [vmem:[%s0 + $0x168] sm:$0xff]
  %v64 = vld [vmem:[%s0 + $0x170] sm:$0xff]
  %v65 = vld [vmem:[%s0 + $0x178] sm:$0xff]
  %v66 = vld [vmem:[%s0 + $0x180] sm:$0xff]
  %v67 = vld [vmem:[%s0 + $0x188] sm:$0xff]
  %v68 = vld [vmem:[%s0 + $0x190] sm:$0xff]
  %v69 = vld [vmem:[%s0 + $0x198] sm:$0xff]
  %v70 = vld [vmem:[%s0 + $0x1a0] sm:$0xff]
  %v71 = vld [vmem:[%s0 + $0x1a8] sm:$0xff]
  %v72 = vld [vmem:[%s0 + $0x1b0] sm:$0xff]
  %v73 = vld [vmem:[%s0 + $0x1b8] sm:$0xff]
  %v74 = vld [vmem:[%s0 + $0x1c0] sm:$0xff]
  %v75 = vld [vmem:[%s0 + $0x1c8] sm:$0xff]
  %v76 = vld [vmem:[%s0 + $0x1d0] sm:$0xff]
  %v77 = vld [vmem:[%s0 + $0x1d8] sm:$0xff]
  %v78 = vld [vmem:[%s0 + $0x1e0] sm:$0xff]
  %v79 = vld [vmem:[%s0 + $0x1e8] sm:$0xff]
  %v80 = vld [vmem:[%s0 + $0x1f0] sm:$0xff]
  %v81 = vld [vmem:[%s0 + $0x1f8] sm:$0xff]
  %v82 = vld [vmem:[%s1] sm:$0xf]
  %v83 = vld [vmem:[%s1 + $0x4] sm:$0xf]
  %v84 = vld [vmem:[%s1 + $0x8] sm:$0xf]
  %v85 = vld [vmem:[%s1 + $0xc] sm:$0xf]
  %v86 = vld [vmem:[%s1 + $0x10] sm:$0xf]
  %v87 = vld [vmem:[%s1 + $0x14] sm:$0xf]
  %v88 = vld [vmem:[%s1 + $0x18] sm:$0xf]
  %v89 = vld [vmem:[%s1 + $0x1c] sm:$0xf]
  %v90 = vld [vmem:[%s1 + $0x20] sm:$0xf]
  %v91 = vld [vmem:[%s1 + $0x24] sm:$0xf]
  %v92 = vld [vmem:[%s1 + $0x28] sm:$0xf]
  %v93 = vld [vmem:[%s1 + $0x2c] sm:$0xf]
  %v94 = vld [vmem:[%s1 + $0x30] sm:$0xf]
  %v95 = vld [vmem:[%s1 + $0x34] sm:$0xf]
  %v96 = vld [vmem:[%s1 + $0x38] sm:$0xf]
  %v97 = vld [vmem:[%s1 + $0x3c] sm:$0xf]
  %v98 = vld [vmem:[%s1 + $0x40] sm:$0xf]
  %v99 = vld [vmem:[%s1 + $0x44] sm:$0xf]
  %v100 = vld [vmem:[%s1 + $0x48] sm:$0xf]
  %v101 = vld [vmem:[%s1 + $0x4c] sm:$0xf]
  %v102 = vld [vmem:[%s1 + $0x50] sm:$0xf]
  %v103 = vld [vmem:[%s1 + $0x54] sm:$0xf]
  %v104 = vld [vmem:[%s1 + $0x58] sm:$0xf]
  %v105 = vld [vmem:[%s1 + $0x5c] sm:$0xf]
  %v106 = vld [vmem:[%s1 + $0x60] sm:$0xf]
  %v107 = vld [vmem:[%s1 + $0x64] sm:$0xf]
  %v108 = vld [vmem:[%s1 + $0x68] sm:$0xf]
  %v109 = vld [vmem:[%s1 + $0x6c] sm:$0xf]
  %v110 = vld [vmem:[%s1 + $0x70] sm:$0xf]
  %v111 = vld [vmem:[%s1 + $0x74] sm:$0xf]
  %v112 = vld [vmem:[%s1 + $0x78] sm:$0xf]
  %v113 = vld [vmem:[%s1 + $0x7c] sm:$0xf]
  %v178 = vunpack.c.l.b16 %v18
  %v179 = vunpack.c.h.b16 %v18
  %v180 = vunpack.c.l.b16 %v19
  %v181 = vunpack.c.h.b16 %v19
  %v182 = vunpack.c.l.b16 %v20
  %v183 = vunpack.c.h.b16 %v20
  %v184 = vunpack.c.l.b16 %v21
  %v185 = vunpack.c.h.b16 %v21
  %v186 = vunpack.c.l.b16 %v22
  %v187 = vunpack.c.h.b16 %v22
  %v188 = vunpack.c.l.b16 %v23
  %v189 = vunpack.c.h.b16 %v23
  %v190 = vunpack.c.l.b16 %v24
  %v191 = vunpack.c.h.b16 %v24
  %v192 = vunpack.c.l.b16 %v25
  %v193 = vunpack.c.h.b16 %v25
  %v194 = vunpack.c.l.b16 %v26
  %v195 = vunpack.c.h.b16 %v26
  %v196 = vunpack.c.l.b16 %v27
  %v197 = vunpack.c.h.b16 %v27
  %v198 = vunpack.c.l.b16 %v28
  %v199 = vunpack.c.h.b16 %v28
  %v200 = vunpack.c.l.b16 %v29
  %v201 = vunpack.c.h.b16 %v29
  %v202 = vunpack.c.l.b16 %v30
  %v203 = vunpack.c.h.b16 %v30
  %v204 = vunpack.c.l.b16 %v31
  %v205 = vunpack.c.h.b16 %v31
  %v206 = vunpack.c.l.b16 %v32
  %v207 = vunpack.c.h.b16 %v32
  %v208 = vunpack.c.l.b16 %v33
  %v209 = vunpack.c.h.b16 %v33
  %v210 = vunpack.c.l.b16 %v34
  %v211 = vunpack.c.h.b16 %v34
  %v212 = vunpack.c.l.b16 %v35
  %v213 = vunpack.c.h.b16 %v35
  %v214 = vunpack.c.l.b16 %v36
  %v215 = vunpack.c.h.b16 %v36
  %v216 = vunpack.c.l.b16 %v37
  %v217 = vunpack.c.h.b16 %v37
  %v218 = vunpack.c.l.b16 %v38
  %v219 = vunpack.c.h.b16 %v38
  %v220 = vunpack.c.l.b16 %v39
  %v221 = vunpack.c.h.b16 %v39
  %v222 = vunpack.c.l.b16 %v40
  %v223 = vunpack.c.h.b16 %v40
  %v224 = vunpack.c.l.b16 %v41
  %v225 = vunpack.c.h.b16 %v41
  %v226 = vunpack.c.l.b16 %v42
  %v227 = vunpack.c.h.b16 %v42
  %v228 = vunpack.c.l.b16 %v43
  %v229 = vunpack.c.h.b16 %v43
  %v230 = vunpack.c.l.b16 %v44
  %v231 = vunpack.c.h.b16 %v44
  %v232 = vunpack.c.l.b16 %v45
  %v233 = vunpack.c.h.b16 %v45
  %v234 = vunpack.c.l.b16 %v46
  %v235 = vunpack.c.h.b16 %v46
  %v236 = vunpack.c.l.b16 %v47
  %v237 = vunpack.c.h.b16 %v47
  %v238 = vunpack.c.l.b16 %v48
  %v239 = vunpack.c.h.b16 %v48
  %v240 = vunpack.c.l.b16 %v49
  %v241 = vunpack.c.h.b16 %v49
  %v242 = vunpack.c.l.b16 %v50
  %v243 = vunpack.c.h.b16 %v50
  %v244 = vunpack.c.l.b16 %v51
  %v245 = vunpack.c.h.b16 %v51
  %v246 = vunpack.c.l.b16 %v52
  %v247 = vunpack.c.h.b16 %v52
  %v248 = vunpack.c.l.b16 %v53
  %v249 = vunpack.c.h.b16 %v53
  %v250 = vunpack.c.l.b16 %v54
  %v251 = vunpack.c.h.b16 %v54
  %v252 = vunpack.c.l.b16 %v55
  %v253 = vunpack.c.h.b16 %v55
  %v254 = vunpack.c.l.b16 %v56
  %v255 = vunpack.c.h.b16 %v56
  %v256 = vunpack.c.l.b16 %v57
  %v257 = vunpack.c.h.b16 %v57
  %v258 = vunpack.c.l.b16 %v58
  %v259 = vunpack.c.h.b16 %v58
  %v260 = vunpack.c.l.b16 %v59
  %v261 = vunpack.c.h.b16 %v59
  %v262 = vunpack.c.l.b16 %v60
  %v263 = vunpack.c.h.b16 %v60
  %v264 = vunpack.c.l.b16 %v61
  %v265 = vunpack.c.h.b16 %v61
  %v266 = vunpack.c.l.b16 %v62
  %v267 = vunpack.c.h.b16 %v62
  %v268 = vunpack.c.l.b16 %v63
  %v269 = vunpack.c.h.b16 %v63
  %v270 = vunpack.c.l.b16 %v64
  %v271 = vunpack.c.h.b16 %v64
  %v272 = vunpack.c.l.b16 %v65
  %v273 = vunpack.c.h.b16 %v65
  %v274 = vunpack.c.l.b16 %v66
  %v275 = vunpack.c.h.b16 %v66
  %v276 = vunpack.c.l.b16 %v67
  %v277 = vunpack.c.h.b16 %v67
  %v278 = vunpack.c.l.b16 %v68
  %v279 = vunpack.c.h.b16 %v68
  %v280 = vunpack.c.l.b16 %v69
  %v281 = vunpack.c.h.b16 %v69
  %v282 = vunpack.c.l.b16 %v70
  %v283 = vunpack.c.h.b16 %v70
  %v284 = vunpack.c.l.b16 %v71
  %v285 = vunpack.c.h.b16 %v71
  %v286 = vunpack.c.l.b16 %v72
  %v287 = vunpack.c.h.b16 %v72
  %v288 = vunpack.c.l.b16 %v73
  %v289 = vunpack.c.h.b16 %v73
  %v290 = vunpack.c.l.b16 %v74
  %v291 = vunpack.c.h.b16 %v74
  %v292 = vunpack.c.l.b16 %v75
  %v293 = vunpack.c.h.b16 %v75
  %v294 = vunpack.c.l.b16 %v76
  %v295 = vunpack.c.h.b16 %v76
  %v296 = vunpack.c.l.b16 %v77
  %v297 = vunpack.c.h.b16 %v77
  %v298 = vunpack.c.l.b16 %v78
  %v299 = vunpack.c.h.b16 %v78
  %v300 = vunpack.c.l.b16 %v79
  %v301 = vunpack.c.h.b16 %v79
  %v302 = vunpack.c.l.b16 %v80
  %v303 = vunpack.c.h.b16 %v80
  %v304 = vunpack.c.l.b16 %v81
  %v305 = vunpack.c.h.b16 %v81
  %v306 = vpack.c.b16 %v180, %v178
  %v307 = vpack.c.b16 %v181, %v179
  %v308 = vpack.c.b16 %v184, %v182
  %v309 = vpack.c.b16 %v185, %v183
  %v310 = vpack.c.b16 %v188, %v186
  %v311 = vpack.c.b16 %v189, %v187
  %v312 = vpack.c.b16 %v192, %v190
  %v313 = vpack.c.b16 %v193, %v191
  %v314 = vpack.c.b16 %v196, %v194
  %v315 = vpack.c.b16 %v197, %v195
  %v316 = vpack.c.b16 %v200, %v198
  %v317 = vpack.c.b16 %v201, %v199
  %v318 = vpack.c.b16 %v204, %v202
  %v319 = vpack.c.b16 %v205, %v203
  %v320 = vpack.c.b16 %v208, %v206
  %v321 = vpack.c.b16 %v209, %v207
  %v322 = vpack.c.b16 %v212, %v210
  %v323 = vpack.c.b16 %v213, %v211
  %v324 = vpack.c.b16 %v216, %v214
  %v325 = vpack.c.b16 %v217, %v215
  %v326 = vpack.c.b16 %v220, %v218
  %v327 = vpack.c.b16 %v221, %v219
  %v328 = vpack.c.b16 %v224, %v222
  %v329 = vpack.c.b16 %v225, %v223
  %v330 = vpack.c.b16 %v228, %v226
  %v331 = vpack.c.b16 %v229, %v227
  %v332 = vpack.c.b16 %v232, %v230
  %v333 = vpack.c.b16 %v233, %v231
  %v334 = vpack.c.b16 %v236, %v234
  %v335 = vpack.c.b16 %v237, %v235
  %v336 = vpack.c.b16 %v240, %v238
  %v337 = vpack.c.b16 %v241, %v239
  %v338 = vpack.c.b16 %v244, %v242
  %v339 = vpack.c.b16 %v245, %v243
  %v340 = vpack.c.b16 %v248, %v246
  %v341 = vpack.c.b16 %v249, %v247
  %v342 = vpack.c.b16 %v252, %v250
  %v343 = vpack.c.b16 %v253, %v251
  %v344 = vpack.c.b16 %v256, %v254
  %v345 = vpack.c.b16 %v257, %v255
  %v346 = vpack.c.b16 %v260, %v258
  %v347 = vpack.c.b16 %v261, %v259
  %v348 = vpack.c.b16 %v264, %v262
  %v349 = vpack.c.b16 %v265, %v263
  %v350 = vpack.c.b16 %v268, %v266
  %v351 = vpack.c.b16 %v269, %v267
  %v352 = vpack.c.b16 %v272, %v270
  %v353 = vpack.c.b16 %v273, %v271
  %v354 = vpack.c.b16 %v276, %v274
  %v355 = vpack.c.b16 %v277, %v275
  %v356 = vpack.c.b16 %v280, %v278
  %v357 = vpack.c.b16 %v281, %v279
  %v358 = vpack.c.b16 %v284, %v282
  %v359 = vpack.c.b16 %v285, %v283
  %v360 = vpack.c.b16 %v288, %v286
  %v361 = vpack.c.b16 %v289, %v287
  %v362 = vpack.c.b16 %v292, %v290
  %v363 = vpack.c.b16 %v293, %v291
  %v364 = vpack.c.b16 %v296, %v294
  %v365 = vpack.c.b16 %v297, %v295
  %v366 = vpack.c.b16 %v300, %v298
  %v367 = vpack.c.b16 %v301, %v299
  %v368 = vpack.c.b16 %v304, %v302
  %v369 = vpack.c.b16 %v305, %v303
  %v466 = vunpack.c.l.b16 %v82
  %v467 = vunpack.c.l.b16 %v83
  %v468 = vunpack.c.l.b16 %v84
  %v469 = vunpack.c.l.b16 %v85
  %v470 = vunpack.c.l.b16 %v86
  %v471 = vunpack.c.l.b16 %v87
  %v472 = vunpack.c.l.b16 %v88
  %v473 = vunpack.c.l.b16 %v89
  %v474 = vunpack.c.l.b16 %v90
  %v475 = vunpack.c.l.b16 %v91
  %v476 = vunpack.c.l.b16 %v92
  %v477 = vunpack.c.l.b16 %v93
  %v478 = vunpack.c.l.b16 %v94
  %v479 = vunpack.c.l.b16 %v95
  %v480 = vunpack.c.l.b16 %v96
  %v481 = vunpack.c.l.b16 %v97
  %v482 = vunpack.c.l.b16 %v98
  %v483 = vunpack.c.l.b16 %v99
  %v484 = vunpack.c.l.b16 %v100
  %v485 = vunpack.c.l.b16 %v101
  %v486 = vunpack.c.l.b16 %v102
  %v487 = vunpack.c.l.b16 %v103
  %v488 = vunpack.c.l.b16 %v104
  %v489 = vunpack.c.l.b16 %v105
  %v490 = vunpack.c.l.b16 %v106
  %v491 = vunpack.c.l.b16 %v107
  %v492 = vunpack.c.l.b16 %v108
  %v493 = vunpack.c.l.b16 %v109
  %v494 = vunpack.c.l.b16 %v110
  %v495 = vunpack.c.l.b16 %v111
  %v496 = vunpack.c.l.b16 %v112
  %v497 = vunpack.c.l.b16 %v113
  %v498 = vpack.c.b16 %v467, %v466
  %v499 = vpack.c.b16 %v469, %v468
  %v500 = vpack.c.b16 %v471, %v470
  %v501 = vpack.c.b16 %v473, %v472
  %v502 = vpack.c.b16 %v475, %v474
  %v503 = vpack.c.b16 %v477, %v476
  %v504 = vpack.c.b16 %v479, %v478
  %v505 = vpack.c.b16 %v481, %v480
  %v506 = vpack.c.b16 %v483, %v482
  %v507 = vpack.c.b16 %v485, %v484
  %v508 = vpack.c.b16 %v487, %v486
  %v509 = vpack.c.b16 %v489, %v488
  %v510 = vpack.c.b16 %v491, %v490
  %v511 = vpack.c.b16 %v493, %v492
  %v512 = vpack.c.b16 %v495, %v494
  %v513 = vpack.c.b16 %v497, %v496
  %530 = vmatprep.subr.bf16.mxu0 0
  %531 = vmatpush1.bf16.msra.mxu0 %v498
  %532 = vmatprep.subr.bf16.mxu0 0
  %533 = vmatpush1.bf16.msra.mxu0 %v499
  %534 = vmatprep.subr.bf16.mxu0 0
  %535 = vmatpush1.bf16.msra.mxu0 %v500
  %536 = vmatprep.subr.bf16.mxu0 0
  %537 = vmatpush1.bf16.msra.mxu0 %v501
  %538 = vmatprep.subr.bf16.mxu0 0
  %539 = vmatpush1.bf16.msra.mxu0 %v502
  %540 = vmatprep.subr.bf16.mxu0 0
  %541 = vmatpush1.bf16.msra.mxu0 %v503
  %542 = vmatprep.subr.bf16.mxu0 0
  %543 = vmatpush1.bf16.msra.mxu0 %v504
  %544 = vmatprep.subr.bf16.mxu0 0
  %545 = vmatpush1.bf16.msra.mxu0 %v505
  %546 = vmatprep.subr.bf16.mxu0 0
  %547 = vmatpush1.bf16.msra.mxu0 %v506
  %548 = vmatprep.subr.bf16.mxu0 0
  %549 = vmatpush1.bf16.msra.mxu0 %v507
  %550 = vmatprep.subr.bf16.mxu0 0
  %551 = vmatpush1.bf16.msra.mxu0 %v508
  %552 = vmatprep.subr.bf16.mxu0 0
  %553 = vmatpush1.bf16.msra.mxu0 %v509
  %554 = vmatprep.subr.bf16.mxu0 0
  %555 = vmatpush1.bf16.msra.mxu0 %v510
  %556 = vmatprep.subr.bf16.mxu0 0
  %557 = vmatpush1.bf16.msra.mxu0 %v511
  %558 = vmatprep.subr.bf16.mxu0 0
  %559 = vmatpush1.bf16.msra.mxu0 %v512
  %560 = vmatprep.subr.bf16.mxu0 0
  %561 = vmatpush1.bf16.msra.mxu0 %v513
  %562 = vmatprep.mubr.bf16.mxu0 %v307
  %563 = vmatmul.mubr.bf16.gmra.mrb[0].mxu0 %v306
  %v564 = vpop.f32.mrb[0].mxu0
  %v565 = vadd.f32 0.0, %v564
  %v566 = vpop.f32.mrb[0].mxu0
  %v567 = vpop.f32.mrb[0].mxu0
  %v568 = vadd.f32 0.0, %v567
  %v569 = vpop.f32.mrb[0].mxu0
  %570 = vmatprep.mubr.bf16.mxu0 %v309
  %571 = vmatmul.mubr.bf16.gmra.mrb[0].mxu0 %v308
  %v572 = vpop.f32.mrb[0].mxu0
  %v573 = vadd.f32 0.0, %v572
  %v574 = vpop.f32.mrb[0].mxu0
  %v575 = vpop.f32.mrb[0].mxu0
  %v576 = vadd.f32 0.0, %v575
  %v577 = vpop.f32.mrb[0].mxu0
  %578 = vmatprep.mubr.bf16.mxu0 %v311
  %579 = vmatmul.mubr.bf16.gmra.mrb[0].mxu0 %v310
  %v580 = vpop.f32.mrb[0].mxu0
  %v581 = vadd.f32 0.0, %v580
  %v582 = vpop.f32.mrb[0].mxu0
  %v583 = vpop.f32.mrb[0].mxu0
  %v584 = vadd.f32 0.0, %v583
  %v585 = vpop.f32.mrb[0].mxu0
  %586 = vmatprep.mubr.bf16.mxu0 %v313
  %587 = vmatmul.mubr.bf16.gmra.mrb[0].mxu0 %v312
  %v588 = vpop.f32.mrb[0].mxu0
  %v589 = vadd.f32 0.0, %v588
  %v590 = vpop.f32.mrb[0].mxu0
  %v591 = vpop.f32.mrb[0].mxu0
  %v592 = vadd.f32 0.0, %v591
  %v593 = vpop.f32.mrb[0].mxu0
  %594 = vmatprep.mubr.bf16.mxu0 %v315
  %595 = vmatmul.mubr.bf16.gmra.mrb[0].mxu0 %v314
  %v596 = vpop.f32.mrb[0].mxu0
  %v597 = vadd.f32 0.0, %v596
  %v598 = vpop.f32.mrb[0].mxu0
  %v599 = vpop.f32.mrb[0].mxu0
  %v600 = vadd.f32 0.0, %v599
  %v601 = vpop.f32.mrb[0].mxu0
  %602 = vmatprep.mubr.bf16.mxu0 %v317
  %603 = vmatmul.mubr.bf16.gmra.mrb[0].mxu0 %v316
  %v604 = vpop.f32.mrb[0].mxu0
  %v605 = vadd.f32 0.0, %v604
  %v606 = vpop.f32.mrb[0].mxu0
  %v607 = vpop.f32.mrb[0].mxu0
  %v608 = vadd.f32 0.0, %v607
  %v609 = vpop.f32.mrb[0].mxu0
  %610 = vmatprep.mubr.bf16.mxu0 %v319
  %611 = vmatmul.mubr.bf16.gmra.mrb[0].mxu0 %v318
  %v612 = vpop.f32.mrb[0].mxu0
  %v613 = vadd.f32 0.0, %v612
  %v614 = vpop.f32.mrb[0].mxu0
  %v615 = vpop.f32.mrb[0].mxu0
  %v616 = vadd.f32 0.0, %v615
  %v617 = vpop.f32.mrb[0].mxu0
  %618 = vmatprep.mubr.bf16.mxu0 %v321
  %619 = vmatmul.mubr.bf16.gmra.mrb[0].mxu0 %v320
  %v620 = vpop.f32.mrb[0].mxu0
  %v621 = vadd.f32 0.0, %v620
  %v622 = vpop.f32.mrb[0].mxu0
  %v623 = vpop.f32.mrb[0].mxu0
  %v624 = vadd.f32 0.0, %v623
  %v625 = vpop.f32.mrb[0].mxu0
  %626 = vmatprep.mubr.bf16.mxu0 %v323
  %627 = vmatmul.mubr.bf16.gmra.mrb[0].mxu0 %v322
  %v628 = vpop.f32.mrb[0].mxu0
  %v629 = vadd.f32 0.0, %v628
  %v630 = vpop.f32.mrb[0].mxu0
  %v631 = vpop.f32.mrb[0].mxu0
  %v632 = vadd.f32 0.0, %v631
  %v633 = vpop.f32.mrb[0].mxu0
  %634 = vmatprep.mubr.bf16.mxu0 %v325
  %635 = vmatmul.mubr.bf16.gmra.mrb[0].mxu0 %v324
  %v636 = vpop.f32.mrb[0].mxu0
  %v637 = vadd.f32 0.0, %v636
  %v638 = vpop.f32.mrb[0].mxu0
  %v639 = vpop.f32.mrb[0].mxu0
  %v640 = vadd.f32 0.0, %v639
  %v641 = vpop.f32.mrb[0].mxu0
  %642 = vmatprep.mubr.bf16.mxu0 %v327
  %643 = vmatmul.mubr.bf16.gmra.mrb[0].mxu0 %v326
  %v644 = vpop.f32.mrb[0].mxu0
  %v645 = vadd.f32 0.0, %v644
  %v646 = vpop.f32.mrb[0].mxu0
  %v647 = vpop.f32.mrb[0].mxu0
  %v648 = vadd.f32 0.0, %v647
  %v649 = vpop.f32.mrb[0].mxu0
  %650 = vmatprep.mubr.bf16.mxu0 %v329
  %651 = vmatmul.mubr.bf16.gmra.mrb[0].mxu0 %v328
  %v652 = vpop.f32.mrb[0].mxu0
  %v653 = vadd.f32 0.0, %v652
  %v654 = vpop.f32.mrb[0].mxu0
  %v655 = vpop.f32.mrb[0].mxu0
  %v656 = vadd.f32 0.0, %v655
  %v657 = vpop.f32.mrb[0].mxu0
  %658 = vmatprep.mubr.bf16.mxu0 %v331
  %659 = vmatmul.mubr.bf16.gmra.mrb[0].mxu0 %v330
  %v660 = vpop.f32.mrb[0].mxu0
  %v661 = vadd.f32 0.0, %v660
  %v662 = vpop.f32.mrb[0].mxu0
  %v663 = vpop.f32.mrb[0].mxu0
  %v664 = vadd.f32 0.0, %v663
  %v665 = vpop.f32.mrb[0].mxu0
  %666 = vmatprep.mubr.bf16.mxu0 %v333
  %667 = vmatmul.mubr.bf16.gmra.mrb[0].mxu0 %v332
  %v668 = vpop.f32.mrb[0].mxu0
  %v669 = vadd.f32 0.0, %v668
  %v670 = vpop.f32.mrb[0].mxu0
  %v671 = vpop.f32.mrb[0].mxu0
  %v672 = vadd.f32 0.0, %v671
  %v673 = vpop.f32.mrb[0].mxu0
  %674 = vmatprep.mubr.bf16.mxu0 %v335
  %675 = vmatmul.mubr.bf16.gmra.mrb[0].mxu0 %v334
  %v676 = vpop.f32.mrb[0].mxu0
  %v677 = vadd.f32 0.0, %v676
  %v678 = vpop.f32.mrb[0].mxu0
  %v679 = vpop.f32.mrb[0].mxu0
  %v680 = vadd.f32 0.0, %v679
  %v681 = vpop.f32.mrb[0].mxu0
  %682 = vmatprep.mubr.bf16.mxu0 %v337
  %683 = vmatmul.mubr.bf16.gmra.mrb[0].mxu0 %v336
  %v684 = vpop.f32.mrb[0].mxu0
  %v685 = vadd.f32 0.0, %v684
  %v686 = vpop.f32.mrb[0].mxu0
  %v687 = vpop.f32.mrb[0].mxu0
  %v688 = vadd.f32 0.0, %v687
  %v689 = vpop.f32.mrb[0].mxu0
  %690 = vmatprep.mubr.bf16.mxu0 %v339
  %691 = vmatmul.mubr.bf16.gmra.mrb[0].mxu0 %v338
  %v692 = vpop.f32.mrb[0].mxu0
  %v693 = vadd.f32 0.0, %v692
  %v694 = vpop.f32.mrb[0].mxu0
  %v695 = vpop.f32.mrb[0].mxu0
  %v696 = vadd.f32 0.0, %v695
  %v697 = vpop.f32.mrb[0].mxu0
  %698 = vmatprep.mubr.bf16.mxu0 %v341
  %699 = vmatmul.mubr.bf16.gmra.mrb[0].mxu0 %v340
  %v700 = vpop.f32.mrb[0].mxu0
  %v701 = vadd.f32 0.0, %v700
  %v702 = vpop.f32.mrb[0].mxu0
  %v703 = vpop.f32.mrb[0].mxu0
  %v704 = vadd.f32 0.0, %v703
  %v705 = vpop.f32.mrb[0].mxu0
  %706 = vmatprep.mubr.bf16.mxu0 %v343
  %707 = vmatmul.mubr.bf16.gmra.mrb[0].mxu0 %v342
  %v708 = vpop.f32.mrb[0].mxu0
  %v709 = vadd.f32 0.0, %v708
  %v710 = vpop.f32.mrb[0].mxu0
  %v711 = vpop.f32.mrb[0].mxu0
  %v712 = vadd.f32 0.0, %v711
  %v713 = vpop.f32.mrb[0].mxu0
  %714 = vmatprep.mubr.bf16.mxu0 %v345
  %715 = vmatmul.mubr.bf16.gmra.mrb[0].mxu0 %v344
  %v716 = vpop.f32.mrb[0].mxu0
  %v717 = vadd.f32 0.0, %v716
  %v718 = vpop.f32.mrb[0].mxu0
  %v719 = vpop.f32.mrb[0].mxu0
  %v720 = vadd.f32 0.0, %v719
  %v721 = vpop.f32.mrb[0].mxu0
  %722 = vmatprep.mubr.bf16.mxu0 %v347
  %723 = vmatmul.mubr.bf16.gmra.mrb[0].mxu0 %v346
  %v724 = vpop.f32.mrb[0].mxu0
  %v725 = vadd.f32 0.0, %v724
  %v726 = vpop.f32.mrb[0].mxu0
  %v727 = vpop.f32.mrb[0].mxu0
  %v728 = vadd.f32 0.0, %v727
  %v729 = vpop.f32.mrb[0].mxu0
  %730 = vmatprep.mubr.bf16.mxu0 %v349
  %731 = vmatmul.mubr.bf16.gmra.mrb[0].mxu0 %v348
  %v732 = vpop.f32.mrb[0].mxu0
  %v733 = vadd.f32 0.0, %v732
  %v734 = vpop.f32.mrb[0].mxu0
  %v735 = vpop.f32.mrb[0].mxu0
  %v736 = vadd.f32 0.0, %v735
  %v737 = vpop.f32.mrb[0].mxu0
  %738 = vmatprep.mubr.bf16.mxu0 %v351
  %739 = vmatmul.mubr.bf16.gmra.mrb[0].mxu0 %v350
  %v740 = vpop.f32.mrb[0].mxu0
  %v741 = vadd.f32 0.0, %v740
  %v742 = vpop.f32.mrb[0].mxu0
  %v743 = vpop.f32.mrb[0].mxu0
  %v744 = vadd.f32 0.0, %v743
  %v745 = vpop.f32.mrb[0].mxu0
  %746 = vmatprep.mubr.bf16.mxu0 %v353
  %747 = vmatmul.mubr.bf16.gmra.mrb[0].mxu0 %v352
  %v748 = vpop.f32.mrb[0].mxu0
  %v749 = vadd.f32 0.0, %v748
  %v750 = vpop.f32.mrb[0].mxu0
  %v751 = vpop.f32.mrb[0].mxu0
  %v752 = vadd.f32 0.0, %v751
  %v753 = vpop.f32.mrb[0].mxu0
  %754 = vmatprep.mubr.bf16.mxu0 %v355
  %755 = vmatmul.mubr.bf16.gmra.mrb[0].mxu0 %v354
  %v756 = vpop.f32.mrb[0].mxu0
  %v757 = vadd.f32 0.0, %v756
  %v758 = vpop.f32.mrb[0].mxu0
  %v759 = vpop.f32.mrb[0].mxu0
  %v760 = vadd.f32 0.0, %v759
  %v761 = vpop.f32.mrb[0].mxu0
  %762 = vmatprep.mubr.bf16.mxu0 %v357
  %763 = vmatmul.mubr.bf16.gmra.mrb[0].mxu0 %v356
  %v764 = vpop.f32.mrb[0].mxu0
  %v765 = vadd.f32 0.0, %v764
  %v766 = vpop.f32.mrb[0].mxu0
  %v767 = vpop.f32.mrb[0].mxu0
  %v768 = vadd.f32 0.0, %v767
  %v769 = vpop.f32.mrb[0].mxu0
  %770 = vmatprep.mubr.bf16.mxu0 %v359
  %771 = vmatmul.mubr.bf16.gmra.mrb[0].mxu0 %v358
  %v772 = vpop.f32.mrb[0].mxu0
  %v773 = vadd.f32 0.0, %v772
  %v774 = vpop.f32.mrb[0].mxu0
  %v775 = vpop.f32.mrb[0].mxu0
  %v776 = vadd.f32 0.0, %v775
  %v777 = vpop.f32.mrb[0].mxu0
  %778 = vmatprep.mubr.bf16.mxu0 %v361
  %779 = vmatmul.mubr.bf16.gmra.mrb[0].mxu0 %v360
  %v780 = vpop.f32.mrb[0].mxu0
  %v781 = vadd.f32 0.0, %v780
  %v782 = vpop.f32.mrb[0].mxu0
  %v783 = vpop.f32.mrb[0].mxu0
  %v784 = vadd.f32 0.0, %v783
  %v785 = vpop.f32.mrb[0].mxu0
  %786 = vmatprep.mubr.bf16.mxu0 %v363
  %787 = vmatmul.mubr.bf16.gmra.mrb[0].mxu0 %v362
  %v788 = vpop.f32.mrb[0].mxu0
  %v789 = vadd.f32 0.0, %v788
  %v790 = vpop.f32.mrb[0].mxu0
  %v791 = vpop.f32.mrb[0].mxu0
  %v792 = vadd.f32 0.0, %v791
  %v793 = vpop.f32.mrb[0].mxu0
  %794 = vmatprep.mubr.bf16.mxu0 %v365
  %795 = vmatmul.mubr.bf16.gmra.mrb[0].mxu0 %v364
  %v796 = vpop.f32.mrb[0].mxu0
  %v797 = vadd.f32 0.0, %v796
  %v798 = vpop.f32.mrb[0].mxu0
  %v799 = vpop.f32.mrb[0].mxu0
  %v800 = vadd.f32 0.0, %v799
  %v801 = vpop.f32.mrb[0].mxu0
  %802 = vmatprep.mubr.bf16.mxu0 %v367
  %803 = vmatmul.mubr.bf16.gmra.mrb[0].mxu0 %v366
  %v804 = vpop.f32.mrb[0].mxu0
  %v805 = vadd.f32 0.0, %v804
  %v806 = vpop.f32.mrb[0].mxu0
  %v807 = vpop.f32.mrb[0].mxu0
  %v808 = vadd.f32 0.0, %v807
  %v809 = vpop.f32.mrb[0].mxu0
  %810 = vmatprep.mubr.bf16.mxu0 %v369
  %811 = vmatmul.mubr.bf16.gmra.mrb[0].mxu0 %v368
  %v812 = vpop.f32.mrb[0].mxu0
  %v813 = vadd.f32 0.0, %v812
  %v814 = vpop.f32.mrb[0].mxu0
  %v815 = vpop.f32.mrb[0].mxu0
  %v816 = vadd.f32 0.0, %v815
  %v817 = vpop.f32.mrb[0].mxu0
  %818 = vdwg.mxu0
  %v819 = vld [vmem:[%s2] sm:$0x1]
  %v821 = vlaneseq
  %v822 = vshrl.u32 %v821, 7
  %v823 = vsub.s32 0, %v822
  %v824 = vrot.slane %v819, %v823
  %v826 = vmul.f32 %v565, %v824
  %v827 = vmul.f32 %v568, %v824
  %v828 = vmul.f32 %v573, %v824
  %v829 = vmul.f32 %v576, %v824
  %v830 = vmul.f32 %v581, %v824
  %v831 = vmul.f32 %v584, %v824
  %v832 = vmul.f32 %v589, %v824
  %v833 = vmul.f32 %v592, %v824
  %v834 = vmul.f32 %v597, %v824
  %v835 = vmul.f32 %v600, %v824
  %v836 = vmul.f32 %v605, %v824
  %v837 = vmul.f32 %v608, %v824
  %v838 = vmul.f32 %v613, %v824
  %v839 = vmul.f32 %v616, %v824
  %v840 = vmul.f32 %v621, %v824
  %v841 = vmul.f32 %v624, %v824
  %v842 = vmul.f32 %v629, %v824
  %v843 = vmul.f32 %v632, %v824
  %v844 = vmul.f32 %v637, %v824
  %v845 = vmul.f32 %v640, %v824
  %v846 = vmul.f32 %v645, %v824
  %v847 = vmul.f32 %v648, %v824
  %v848 = vmul.f32 %v653, %v824
  %v849 = vmul.f32 %v656, %v824
  %v850 = vmul.f32 %v661, %v824
  %v851 = vmul.f32 %v664, %v824
  %v852 = vmul.f32 %v669, %v824
  %v853 = vmul.f32 %v672, %v824
  %v854 = vmul.f32 %v677, %v824
  %v855 = vmul.f32 %v680, %v824
  %v856 = vmul.f32 %v685, %v824
  %v857 = vmul.f32 %v688, %v824
  %v858 = vmul.f32 %v693, %v824
  %v859 = vmul.f32 %v696, %v824
  %v860 = vmul.f32 %v701, %v824
  %v861 = vmul.f32 %v704, %v824
  %v862 = vmul.f32 %v709, %v824
  %v863 = vmul.f32 %v712, %v824
  %v864 = vmul.f32 %v717, %v824
  %v865 = vmul.f32 %v720, %v824
  %v866 = vmul.f32 %v725, %v824
  %v867 = vmul.f32 %v728, %v824
  %v868 = vmul.f32 %v733, %v824
  %v869 = vmul.f32 %v736, %v824
  %v870 = vmul.f32 %v741, %v824
  %v871 = vmul.f32 %v744, %v824
  %v872 = vmul.f32 %v749, %v824
  %v873 = vmul.f32 %v752, %v824
  %v874 = vmul.f32 %v757, %v824
  %v875 = vmul.f32 %v760, %v824
  %v876 = vmul.f32 %v765, %v824
  %v877 = vmul.f32 %v768, %v824
  %v878 = vmul.f32 %v773, %v824
  %v879 = vmul.f32 %v776, %v824
  %v880 = vmul.f32 %v781, %v824
  %v881 = vmul.f32 %v784, %v824
  %v882 = vmul.f32 %v789, %v824
  %v883 = vmul.f32 %v792, %v824
  %v884 = vmul.f32 %v797, %v824
  %v885 = vmul.f32 %v800, %v824
  %v886 = vmul.f32 %v805, %v824
  %v887 = vmul.f32 %v808, %v824
  %v888 = vmul.f32 %v813, %v824
  %v889 = vmul.f32 %v816, %v824
  %v890 = vld [vmem:[%s3] sm:$0x1]
  %v892 = vlaneseq
  %v893 = vshrl.u32 %v892, 7
  %v894 = vsub.s32 0, %v893
  %v895 = vrot.slane %v890, %v894
  %v897 = vadd.f32 %v826, %v895
  %v898 = vadd.f32 %v827, %v895
  %v899 = vadd.f32 %v828, %v895
  %v900 = vadd.f32 %v829, %v895
  %v901 = vadd.f32 %v830, %v895
  %v902 = vadd.f32 %v831, %v895
  %v903 = vadd.f32 %v832, %v895
  %v904 = vadd.f32 %v833, %v895
  %v905 = vadd.f32 %v834, %v895
  %v906 = vadd.f32 %v835, %v895
  %v907 = vadd.f32 %v836, %v895
  %v908 = vadd.f32 %v837, %v895
  %v909 = vadd.f32 %v838, %v895
  %v910 = vadd.f32 %v839, %v895
  %v911 = vadd.f32 %v840, %v895
  %v912 = vadd.f32 %v841, %v895
  %v913 = vadd.f32 %v842, %v895
  %v914 = vadd.f32 %v843, %v895
  %v915 = vadd.f32 %v844, %v895
  %v916 = vadd.f32 %v845, %v895
  %v917 = vadd.f32 %v846, %v895
  %v918 = vadd.f32 %v847, %v895
  %v919 = vadd.f32 %v848, %v895
  %v920 = vadd.f32 %v849, %v895
  %v921 = vadd.f32 %v850, %v895
  %v922 = vadd.f32 %v851, %v895
  %v923 = vadd.f32 %v852, %v895
  %v924 = vadd.f32 %v853, %v895
  %v925 = vadd.f32 %v854, %v895
  %v926 = vadd.f32 %v855, %v895
  %v927 = vadd.f32 %v856, %v895
  %v928 = vadd.f32 %v857, %v895
  %v929 = vadd.f32 %v858, %v895
  %v930 = vadd.f32 %v859, %v895
  %v931 = vadd.f32 %v860, %v895
  %v932 = vadd.f32 %v861, %v895
  %v933 = vadd.f32 %v862, %v895
  %v934 = vadd.f32 %v863, %v895
  %v935 = vadd.f32 %v864, %v895
  %v936 = vadd.f32 %v865, %v895
  %v937 = vadd.f32 %v866, %v895
  %v938 = vadd.f32 %v867, %v895
  %v939 = vadd.f32 %v868, %v895
  %v940 = vadd.f32 %v869, %v895
  %v941 = vadd.f32 %v870, %v895
  %v942 = vadd.f32 %v871, %v895
  %v943 = vadd.f32 %v872, %v895
  %v944 = vadd.f32 %v873, %v895
  %v945 = vadd.f32 %v874, %v895
  %v946 = vadd.f32 %v875, %v895
  %v947 = vadd.f32 %v876, %v895
  %v948 = vadd.f32 %v877, %v895
  %v949 = vadd.f32 %v878, %v895
  %v950 = vadd.f32 %v879, %v895
  %v951 = vadd.f32 %v880, %v895
  %v952 = vadd.f32 %v881, %v895
  %v953 = vadd.f32 %v882, %v895
  %v954 = vadd.f32 %v883, %v895
  %v955 = vadd.f32 %v884, %v895
  %v956 = vadd.f32 %v885, %v895
  %v957 = vadd.f32 %v886, %v895
  %v958 = vadd.f32 %v887, %v895
  %v959 = vadd.f32 %v888, %v895
  %v960 = vadd.f32 %v889, %v895
  %v961 = vmax.f32 %v897, 0.0
  %v962 = vmax.f32 %v898, 0.0
  %v963 = vmax.f32 %v899, 0.0
  %v964 = vmax.f32 %v900, 0.0
  %v965 = vmax.f32 %v901, 0.0
  %v966 = vmax.f32 %v902, 0.0
  %v967 = vmax.f32 %v903, 0.0
  %v968 = vmax.f32 %v904, 0.0
  %v969 = vmax.f32 %v905, 0.0
  %v970 = vmax.f32 %v906, 0.0
  %v971 = vmax.f32 %v907, 0.0
  %v972 = vmax.f32 %v908, 0.0
  %v973 = vmax.f32 %v909, 0.0
  %v974 = vmax.f32 %v910, 0.0
  %v975 = vmax.f32 %v911, 0.0
  %v976 = vmax.f32 %v912, 0.0
  %v977 = vmax.f32 %v913, 0.0
  %v978 = vmax.f32 %v914, 0.0
  %v979 = vmax.f32 %v915, 0.0
  %v980 = vmax.f32 %v916, 0.0
  %v981 = vmax.f32 %v917, 0.0
  %v982 = vmax.f32 %v918, 0.0
  %v983 = vmax.f32 %v919, 0.0
  %v984 = vmax.f32 %v920, 0.0
  %v985 = vmax.f32 %v921, 0.0
  %v986 = vmax.f32 %v922, 0.0
  %v987 = vmax.f32 %v923, 0.0
  %v988 = vmax.f32 %v924, 0.0
  %v989 = vmax.f32 %v925, 0.0
  %v990 = vmax.f32 %v926, 0.0
  %v991 = vmax.f32 %v927, 0.0
  %v992 = vmax.f32 %v928, 0.0
  %v993 = vmax.f32 %v929, 0.0
  %v994 = vmax.f32 %v930, 0.0
  %v995 = vmax.f32 %v931, 0.0
  %v996 = vmax.f32 %v932, 0.0
  %v997 = vmax.f32 %v933, 0.0
  %v998 = vmax.f32 %v934, 0.0
  %v999 = vmax.f32 %v935, 0.0
  %v1000 = vmax.f32 %v936, 0.0
  %v1001 = vmax.f32 %v937, 0.0
  %v1002 = vmax.f32 %v938, 0.0
  %v1003 = vmax.f32 %v939, 0.0
  %v1004 = vmax.f32 %v940, 0.0
  %v1005 = vmax.f32 %v941, 0.0
  %v1006 = vmax.f32 %v942, 0.0
  %v1007 = vmax.f32 %v943, 0.0
  %v1008 = vmax.f32 %v944, 0.0
  %v1009 = vmax.f32 %v945, 0.0
  %v1010 = vmax.f32 %v946, 0.0
  %v1011 = vmax.f32 %v947, 0.0
  %v1012 = vmax.f32 %v948, 0.0
  %v1013 = vmax.f32 %v949, 0.0
  %v1014 = vmax.f32 %v950, 0.0
  %v1015 = vmax.f32 %v951, 0.0
  %v1016 = vmax.f32 %v952, 0.0
  %v1017 = vmax.f32 %v953, 0.0
  %v1018 = vmax.f32 %v954, 0.0
  %v1019 = vmax.f32 %v955, 0.0
  %v1020 = vmax.f32 %v956, 0.0
  %v1021 = vmax.f32 %v957, 0.0
  %v1022 = vmax.f32 %v958, 0.0
  %v1023 = vmax.f32 %v959, 0.0
  %v1024 = vmax.f32 %v960, 0.0
  %1025 = vst [vmem:[%s4] sm:$0xff] %v961
  %1026 = vst [vmem:[%s4 + $0x8] sm:$0xff] %v962
  %1027 = vst [vmem:[%s4 + $0x10] sm:$0xff] %v963
  %1028 = vst [vmem:[%s4 + $0x18] sm:$0xff] %v964
  %1029 = vst [vmem:[%s4 + $0x20] sm:$0xff] %v965
  %1030 = vst [vmem:[%s4 + $0x28] sm:$0xff] %v966
  %1031 = vst [vmem:[%s4 + $0x30] sm:$0xff] %v967
  %1032 = vst [vmem:[%s4 + $0x38] sm:$0xff] %v968
  %1033 = vst [vmem:[%s4 + $0x40] sm:$0xff] %v969
  %1034 = vst [vmem:[%s4 + $0x48] sm:$0xff] %v970
  %1035 = vst [vmem:[%s4 + $0x50] sm:$0xff] %v971
  %1036 = vst [vmem:[%s4 + $0x58] sm:$0xff] %v972
  %1037 = vst [vmem:[%s4 + $0x60] sm:$0xff] %v973
  %1038 = vst [vmem:[%s4 + $0x68] sm:$0xff] %v974
  %1039 = vst [vmem:[%s4 + $0x70] sm:$0xff] %v975
  %1040 = vst [vmem:[%s4 + $0x78] sm:$0xff] %v976
  %1041 = vst [vmem:[%s4 + $0x80] sm:$0xff] %v977
  %1042 = vst [vmem:[%s4 + $0x88] sm:$0xff] %v978
  %1043 = vst [vmem:[%s4 + $0x90] sm:$0xff] %v979
  %1044 = vst [vmem:[%s4 + $0x98] sm:$0xff] %v980
  %1045 = vst [vmem:[%s4 + $0xa0] sm:$0xff] %v981
  %1046 = vst [vmem:[%s4 + $0xa8] sm:$0xff] %v982
  %1047 = vst [vmem:[%s4 + $0xb0] sm:$0xff] %v983
  %1048 = vst [vmem:[%s4 + $0xb8] sm:$0xff] %v984
  %1049 = vst [vmem:[%s4 + $0xc0] sm:$0xff] %v985
  %1050 = vst [vmem:[%s4 + $0xc8] sm:$0xff] %v986
  %1051 = vst [vmem:[%s4 + $0xd0] sm:$0xff] %v987
  %1052 = vst [vmem:[%s4 + $0xd8] sm:$0xff] %v988
  %1053 = vst [vmem:[%s4 + $0xe0] sm:$0xff] %v989
  %1054 = vst [vmem:[%s4 + $0xe8] sm:$0xff] %v990
  %1055 = vst [vmem:[%s4 + $0xf0] sm:$0xff] %v991
  %1056 = vst [vmem:[%s4 + $0xf8] sm:$0xff] %v992
  %1057 = vst [vmem:[%s4 + $0x100] sm:$0xff] %v993
  %1058 = vst [vmem:[%s4 + $0x108] sm:$0xff] %v994
  %1059 = vst [vmem:[%s4 + $0x110] sm:$0xff] %v995
  %1060 = vst [vmem:[%s4 + $0x118] sm:$0xff] %v996
  %1061 = vst [vmem:[%s4 + $0x120] sm:$0xff] %v997
  %1062 = vst [vmem:[%s4 + $0x128] sm:$0xff] %v998
  %1063 = vst [vmem:[%s4 + $0x130] sm:$0xff] %v999
  %1064 = vst [vmem:[%s4 + $0x138] sm:$0xff] %v1000
  %1065 = vst [vmem:[%s4 + $0x140] sm:$0xff] %v1001
  %1066 = vst [vmem:[%s4 + $0x148] sm:$0xff] %v1002
  %1067 = vst [vmem:[%s4 + $0x150] sm:$0xff] %v1003
  %1068 = vst [vmem:[%s4 + $0x158] sm:$0xff] %v1004
  %1069 = vst [vmem:[%s4 + $0x160] sm:$0xff] %v1005
  %1070 = vst [vmem:[%s4 + $0x168] sm:$0xff] %v1006
  %1071 = vst [vmem:[%s4 + $0x170] sm:$0xff] %v1007
  %1072 = vst [vmem:[%s4 + $0x178] sm:$0xff] %v1008
  %1073 = vst [vmem:[%s4 + $0x180] sm:$0xff] %v1009
  %1074 = vst [vmem:[%s4 + $0x188] sm:$0xff] %v1010
  %1075 = vst [vmem:[%s4 + $0x190] sm:$0xff] %v1011
  %1076 = vst [vmem:[%s4 + $0x198] sm:$0xff] %v1012
  %1077 = vst [vmem:[%s4 + $0x1a0] sm:$0xff] %v1013
  %1078 = vst [vmem:[%s4 + $0x1a8] sm:$0xff] %v1014
  %1079 = vst [vmem:[%s4 + $0x1b0] sm:$0xff] %v1015
  %1080 = vst [vmem:[%s4 + $0x1b8] sm:$0xff] %v1016
  %1081 = vst [vmem:[%s4 + $0x1c0] sm:$0xff] %v1017
  %1082 = vst [vmem:[%s4 + $0x1c8] sm:$0xff] %v1018
  %1083 = vst [vmem:[%s4 + $0x1d0] sm:$0xff] %v1019
  %1084 = vst [vmem:[%s4 + $0x1d8] sm:$0xff] %v1020
  %1085 = vst [vmem:[%s4 + $0x1e0] sm:$0xff] %v1021
  %1086 = vst [vmem:[%s4 + $0x1e8] sm:$0xff] %v1022
  %1087 = vst [vmem:[%s4 + $0x1f0] sm:$0xff] %v1023
  %1088 = vst [vmem:[%s4 + $0x1f8] sm:$0xff] %v1024
  // Predicated region
  $region18: #{captcha_solver_forward.2} parent=0 // pred_check
    _
  $region19: #{captcha_solver_forward.2} parent=0 // pred_check_branch
    %1090 = sbr.rel (0) target = $region21
  $region20: #{captcha_solver_forward.2} parent=0 // pred_region
    _
  $region21: #{captcha_solver_forward.2} parent=0 // pred_fallthru
    _
  // Predicated region
  $region22: #{captcha_solver_forward.2} parent=0 // pred_check
    _
  $region23: #{captcha_solver_forward.2} parent=0 // pred_check_branch
    %1092 = sbr.rel (0) target = $region25
  $region24: #{captcha_solver_forward.2} parent=0 // pred_region
    _
  $region25: #{captcha_solver_forward.2} parent=0 // pred_fallthru
    _

// kernel: captcha_solver_forward.3
$region0: #{captcha_solver_forward.3}
  #allocation0 [shape = 'u32[]', space=smem, size = 0x4, offset = 0x4, fixed_abs, tag = 'smem constant byte address 0x4 - core index']
  #allocation1 [shape = 'u32[144,128]{1,0:T(1,128)}', space=vmem, size = 0x12000, scoped, tag = 'internal scratch']
  #allocation2 [shape = 'f32[8,2,1024]{2,1,0:T(2,128)}', space=vmem, size = 0x10000, scoped, tag = 'scratch operand']
  #allocation3 [shape = 'f32[8,2,128]{2,1,0:T(2,128)}', space=vmem, size = 0x2000, scoped, tag = 'scratch operand']
  #allocation4 [shape = 'f32[8,2,128]{2,1,0:T(2,128)}', space=vmem, size = 0x2000, scoped, tag = 'scratch operand']
  %s0 = inlined_call_operand.vmem [shape: f32[8,2,512], index: 0, kind: input, shape index: {}]
  %s1 = inlined_call_operand.vmem [shape: bf16[512,1024], index: 1, kind: input, shape index: {}]
  %s2 = inlined_call_operand.vmem [shape: f32[1,1024], index: 2, kind: input, shape index: {}]
  %s3 = inlined_call_operand.vmem [shape: bf16[256,512], index: 3, kind: input, shape index: {}]
  %s4 = inlined_call_operand.vmem [shape: bf16[256,1024], index: 4, kind: input, shape index: {}]
  %s5 = inlined_call_operand.vmem [shape: f32[1,1024], index: 5, kind: input, shape index: {}]
  %s6 = inlined_call_operand.vmem [shape: bf16[256,512], index: 6, kind: input, shape index: {}]
  %s7 = inlined_call_operand.vmem [shape: bf16[256,128], index: 7, kind: input, shape index: {}]
  %s8 = inlined_call_operand.vmem [shape: f32[1,128], index: 8, kind: input, shape index: {}]
  %s9 = inlined_call_operand.hbm [shape: f32[8,2,128], index: 9, kind: output, shape index: {}]
  %s10 = sld [smem:[#allocation0]]
  $region46: #{captcha_solver_forward.3} parent=0
    _
  %s12 = ssub.s32 1, %s10
  %s13 = scalar_select 0, %s12, %s10
  $region1: #{captcha_solver_forward.3} parent=0
    #allocation5 [shape = 'u8[8192]{0}', space=vmem, size = 0x2000, scoped, tag = 'output window, operand 0, single buffered']
    #allocation6 [shape = 's32[1]{0}', space=sflag, size = 0x4, scoped, tag = 'scoped memory for captcha_solver_forward.3']
    %14 = vsyncpa [#allocation6], 0
    // Predicated region
    $region2: #{captcha_solver_forward.3} parent=1 // pred_check
      _
    $region3: #{captcha_solver_forward.3} parent=1 // pred_check_branch
      %16 = sbr.rel (0) target = $region5
    $region4: #{captcha_solver_forward.3} parent=1 // pred_region
      _
    $region5: #{captcha_solver_forward.3} parent=1 // pred_fallthru
      _
    // Predicated region
    $region6: #{captcha_solver_forward.3} parent=1 // pred_check
      _
    $region7: #{captcha_solver_forward.3} parent=1 // pred_check_branch
      %18 = sbr.rel (0) target = $region9
    $region8: #{captcha_solver_forward.3} parent=1 // pred_region
      _
    $region9: #{captcha_solver_forward.3} parent=1 // pred_fallthru
      _
    // Predicated region
    $region10: #{captcha_solver_forward.3} parent=1 // pred_check
      _
    $region11: #{captcha_solver_forward.3} parent=1 // pred_check_branch
      %20 = sbr.rel (0) target = $region13
    $region12: #{captcha_solver_forward.3} parent=1 // pred_region
      _
    $region13: #{captcha_solver_forward.3} parent=1 // pred_fallthru
      _
    // Predicated region
    $region14: #{captcha_solver_forward.3} parent=1 // pred_check
      _
    $region15: #{captcha_solver_forward.3} parent=1 // pred_check_branch
      %22 = sbr.rel (0) target = $region17
    $region16: #{captcha_solver_forward.3} parent=1 // pred_region
      _
    $region17: #{captcha_solver_forward.3} parent=1 // pred_fallthru
      _
    // Predicated region
    $region18: #{captcha_solver_forward.3} parent=1 // pred_check
      _
    $region19: #{captcha_solver_forward.3} parent=1 // pred_check_branch
      %24 = sbr.rel (0) target = $region21
    $region20: #{captcha_solver_forward.3} parent=1 // pred_region
      _
    $region21: #{captcha_solver_forward.3} parent=1 // pred_fallthru
      _
    // Predicated region
    $region22: #{captcha_solver_forward.3} parent=1 // pred_check
      _
    $region23: #{captcha_solver_forward.3} parent=1 // pred_check_branch
      %26 = sbr.rel (0) target = $region25
    $region24: #{captcha_solver_forward.3} parent=1 // pred_region
      _
    $region25: #{captcha_solver_forward.3} parent=1 // pred_fallthru
      _
    // Predicated region
    $region26: #{captcha_solver_forward.3} parent=1 // pred_check
      _
    $region27: #{captcha_solver_forward.3} parent=1 // pred_check_branch
      %28 = sbr.rel (0) target = $region29
    $region28: #{captcha_solver_forward.3} parent=1 // pred_region
      _
    $region29: #{captcha_solver_forward.3} parent=1 // pred_fallthru
      _
    // Predicated region
    $region30: #{captcha_solver_forward.3} parent=1 // pred_check
      _
    $region31: #{captcha_solver_forward.3} parent=1 // pred_check_branch
      %30 = sbr.rel (0) target = $region33
    $region32: #{captcha_solver_forward.3} parent=1 // pred_region
      _
    $region33: #{captcha_solver_forward.3} parent=1 // pred_fallthru
      _
    // Predicated region
    $region34: #{captcha_solver_forward.3} parent=1 // pred_check
      _
    $region35: #{captcha_solver_forward.3} parent=1 // pred_check_branch
      %32 = sbr.rel (0) target = $region37
    $region36: #{captcha_solver_forward.3} parent=1 // pred_region
      _
    $region37: #{captcha_solver_forward.3} parent=1 // pred_fallthru
      _
    %v34 = vld [vmem:[%s0] sm:$0xff]
    %v35 = vld [vmem:[%s0 + $0x8] sm:$0xff]
    %v36 = vld [vmem:[%s0 + $0x10] sm:$0xff]
    %v37 = vld [vmem:[%s0 + $0x18] sm:$0xff]
    %v38 = vld [vmem:[%s0 + $0x20] sm:$0xff]
    %v39 = vld [vmem:[%s0 + $0x28] sm:$0xff]
    %v40 = vld [vmem:[%s0 + $0x30] sm:$0xff]
    %v41 = vld [vmem:[%s0 + $0x38] sm:$0xff]
    %v50 = vcombine.high %v34, %v34
    %v52 = vunpack.c.l.s4 1983009808
    %v53 = vunpack.c.0.s8 %v52
    %v54 = vlaneseq
    %v55 = vshrl.u32 %v54, 7
    %v56 = vsub.s32 %v53, %v55
    %v57 = vrot.slane %v34, %v56
    %v59 = vunpack.c.l.s4 1983009808
    %v60 = vunpack.c.0.s8 %v59
    %v61 = vlaneseq
    %v62 = vshrl.u32 %v61, 7
    %v63 = vsub.s32 %v60, %v62
    %v64 = vrot.slane %v50, %v63
    %v65 = vcombine.high %v57, %v57
    %v66 = vcombine.high %v64, %v64
    %v67 = vcombine.high %v35, %v35
    %v69 = vunpack.c.l.s4 1983009808
    %v70 = vunpack.c.0.s8 %v69
    %v71 = vlaneseq
    %v72 = vshrl.u32 %v71, 7
    %v73 = vsub.s32 %v70, %v72
    %v74 = vrot.slane %v35, %v73
    %v76 = vunpack.c.l.s4 1983009808
    %v77 = vunpack.c.0.s8 %v76
    %v78 = vlaneseq
    %v79 = vshrl.u32 %v78, 7
    %v80 = vsub.s32 %v77, %v79
    %v81 = vrot.slane %v67, %v80
    %v82 = vcombine.high %v74, %v74
    %v83 = vcombine.high %v81, %v81
    %v84 = vcombine.high %v36, %v36
    %v86 = vunpack.c.l.s4 1983009808
    %v87 = vunpack.c.0.s8 %v86
    %v88 = vlaneseq
    %v89 = vshrl.u32 %v88, 7
    %v90 = vsub.s32 %v87, %v89
    %v91 = vrot.slane %v36, %v90
    %v93 = vunpack.c.l.s4 1983009808
    %v94 = vunpack.c.0.s8 %v93
    %v95 = vlaneseq
    %v96 = vshrl.u32 %v95, 7
    %v97 = vsub.s32 %v94, %v96
    %v98 = vrot.slane %v84, %v97
    %v99 = vcombine.high %v91, %v91
    %v100 = vcombine.high %v98, %v98
    %v101 = vcombine.high %v37, %v37
    %v103 = vunpack.c.l.s4 1983009808
    %v104 = vunpack.c.0.s8 %v103
    %v105 = vlaneseq
    %v106 = vshrl.u32 %v105, 7
    %v107 = vsub.s32 %v104, %v106
    %v108 = vrot.slane %v37, %v107
    %v110 = vunpack.c.l.s4 1983009808
    %v111 = vunpack.c.0.s8 %v110
    %v112 = vlaneseq
    %v113 = vshrl.u32 %v112, 7
    %v114 = vsub.s32 %v111, %v113
    %v115 = vrot.slane %v101, %v114
    %v116 = vcombine.high %v108, %v108
    %v117 = vcombine.high %v115, %v115
    %v118 = vcombine.high %v38, %v38
    %v120 = vunpack.c.l.s4 1983009808
    %v121 = vunpack.c.0.s8 %v120
    %v122 = vlaneseq
    %v123 = vshrl.u32 %v122, 7
    %v124 = vsub.s32 %v121, %v123
    %v125 = vrot.slane %v38, %v124
    %v127 = vunpack.c.l.s4 1983009808
    %v128 = vunpack.c.0.s8 %v127
    %v129 = vlaneseq
    %v130 = vshrl.u32 %v129, 7
    %v131 = vsub.s32 %v128, %v130
    %v132 = vrot.slane %v118, %v131
    %v133 = vcombine.high %v125, %v125
    %v134 = vcombine.high %v132, %v132
    %v135 = vcombine.high %v39, %v39
    %v137 = vunpack.c.l.s4 1983009808
    %v138 = vunpack.c.0.s8 %v137
    %v139 = vlaneseq
    %v140 = vshrl.u32 %v139, 7
    %v141 = vsub.s32 %v138, %v140
    %v142 = vrot.slane %v39, %v141
    %v144 = vunpack.c.l.s4 1983009808
    %v145 = vunpack.c.0.s8 %v144
    %v146 = vlaneseq
    %v147 = vshrl.u32 %v146, 7
    %v148 = vsub.s32 %v145, %v147
    %v149 = vrot.slane %v135, %v148
    %v150 = vcombine.high %v142, %v142
    %v151 = vcombine.high %v149, %v149
    %v152 = vcombine.high %v40, %v40
    %v154 = vunpack.c.l.s4 1983009808
    %v155 = vunpack.c.0.s8 %v154
    %v156 = vlaneseq
    %v157 = vshrl.u32 %v156, 7
    %v158 = vsub.s32 %v155, %v157
    %v159 = vrot.slane %v40, %v158
    %v161 = vunpack.c.l.s4 1983009808
    %v162 = vunpack.c.0.s8 %v161
    %v163 = vlaneseq
    %v164 = vshrl.u32 %v163, 7
    %v165 = vsub.s32 %v162, %v164
    %v166 = vrot.slane %v152, %v165
    %v167 = vcombine.high %v159, %v159
    %v168 = vcombine.high %v166, %v166
    %v169 = vcombine.high %v41, %v41
    %v171 = vunpack.c.l.s4 1983009808
    %v172 = vunpack.c.0.s8 %v171
    %v173 = vlaneseq
    %v174 = vshrl.u32 %v173, 7
    %v175 = vsub.s32 %v172, %v174
    %v176 = vrot.slane %v41, %v175
    %v178 = vunpack.c.l.s4 1983009808
    %v179 = vunpack.c.0.s8 %v178
    %v180 = vlaneseq
    %v181 = vshrl.u32 %v180, 7
    %v182 = vsub.s32 %v179, %v181
    %v183 = vrot.slane %v169, %v182
    %v184 = vcombine.high %v176, %v176
    %v185 = vcombine.high %v183, %v183
    %v218 = vpack.c.bf16 %v57, %v57
    %v219 = vpack.c.bf16 %v65, %v65
    %v220 = vpack.c.bf16 %v64, %v64
    %v221 = vpack.c.bf16 %v66, %v66
    %v222 = vpack.c.bf16 %v74, %v74
    %v223 = vpack.c.bf16 %v82, %v82
    %v224 = vpack.c.bf16 %v81, %v81
    %v225 = vpack.c.bf16 %v83, %v83
    %v226 = vpack.c.bf16 %v91, %v91
    %v227 = vpack.c.bf16 %v99, %v99
    %v228 = vpack.c.bf16 %v98, %v98
    %v229 = vpack.c.bf16 %v100, %v100
    %v230 = vpack.c.bf16 %v108, %v108
    %v231 = vpack.c.bf16 %v116, %v116
    %v232 = vpack.c.bf16 %v115, %v115
    %v233 = vpack.c.bf16 %v117, %v117
    %v234 = vpack.c.bf16 %v125, %v125
    %v235 = vpack.c.bf16 %v133, %v133
    %v236 = vpack.c.bf16 %v132, %v132
    %v237 = vpack.c.bf16 %v134, %v134
    %v238 = vpack.c.bf16 %v142, %v142
    %v239 = vpack.c.bf16 %v150, %v150
    %v240 = vpack.c.bf16 %v149, %v149
    %v241 = vpack.c.bf16 %v151, %v151
    %v242 = vpack.c.bf16 %v159, %v159
    %v243 = vpack.c.bf16 %v167, %v167
    %v244 = vpack.c.bf16 %v166, %v166
    %v245 = vpack.c.bf16 %v168, %v168
    %v246 = vpack.c.bf16 %v176, %v176
    %v247 = vpack.c.bf16 %v184, %v184
    %v248 = vpack.c.bf16 %v183, %v183
    %v249 = vpack.c.bf16 %v185, %v185
    %v282 = vcombine.low %v218, %v219
    %v283 = vcombine.low %v220, %v221
    %v285 = vunpack.c.l.s4 1966171168
    %v286 = vunpack.c.0.s8 %v285
    %v287 = vlaneseq
    %v288 = vshrl.u32 %v287, 7
    %v289 = vsub.s32 %v286, %v288
    %v290 = vrot.slane %v282, %v289
    %v292 = vunpack.c.l.s4 1966171168
    %v293 = vunpack.c.0.s8 %v292
    %v294 = vlaneseq
    %v295 = vshrl.u32 %v294, 7
    %v296 = vsub.s32 %v293, %v295
    %v297 = vrot.slane %v283, %v296
    %v298 = vcombine.low %v290, %v297
    %v300 = vunpack.c.l.s4 1966171168
    %v301 = vunpack.c.0.s8 %v300
    %v302 = vlaneseq
    %v303 = vshrl.u32 %v302, 7
    %v304 = vsub.s32 %v301, %v303
    %v305 = vrot.slane %v298, %v304
    %v306 = vcombine.low %v222, %v223
    %v307 = vcombine.low %v224, %v225
    %v309 = vunpack.c.l.s4 1966171168
    %v310 = vunpack.c.0.s8 %v309
    %v311 = vlaneseq
    %v312 = vshrl.u32 %v311, 7
    %v313 = vsub.s32 %v310, %v312
    %v314 = vrot.slane %v306, %v313
    %v316 = vunpack.c.l.s4 1966171168
    %v317 = vunpack.c.0.s8 %v316
    %v318 = vlaneseq
    %v319 = vshrl.u32 %v318, 7
    %v320 = vsub.s32 %v317, %v319
    %v321 = vrot.slane %v307, %v320
    %v322 = vcombine.low %v314, %v321
    %v324 = vunpack.c.l.s4 1966171168
    %v325 = vunpack.c.0.s8 %v324
    %v326 = vlaneseq
    %v327 = vshrl.u32 %v326, 7
    %v328 = vsub.s32 %v325, %v327
    %v329 = vrot.slane %v322, %v328
    %v330 = vcombine.low %v226, %v227
    %v331 = vcombine.low %v228, %v229
    %v333 = vunpack.c.l.s4 1966171168
    %v334 = vunpack.c.0.s8 %v333
    %v335 = vlaneseq
    %v336 = vshrl.u32 %v335, 7
    %v337 = vsub.s32 %v334, %v336
    %v338 = vrot.slane %v330, %v337
    %v340 = vunpack.c.l.s4 1966171168
    %v341 = vunpack.c.0.s8 %v340
    %v342 = vlaneseq
    %v343 = vshrl.u32 %v342, 7
    %v344 = vsub.s32 %v341, %v343
    %v345 = vrot.slane %v331, %v344
    %v346 = vcombine.low %v338, %v345
    %v348 = vunpack.c.l.s4 1966171168
    %v349 = vunpack.c.0.s8 %v348
    %v350 = vlaneseq
    %v351 = vshrl.u32 %v350, 7
    %v352 = vsub.s32 %v349, %v351
    %v353 = vrot.slane %v346, %v352
    %v354 = vcombine.low %v230, %v231
    %v355 = vcombine.low %v232, %v233
    %v357 = vunpack.c.l.s4 1966171168
    %v358 = vunpack.c.0.s8 %v357
    %v359 = vlaneseq
    %v360 = vshrl.u32 %v359, 7
    %v361 = vsub.s32 %v358, %v360
    %v362 = vrot.slane %v354, %v361
    %v364 = vunpack.c.l.s4 1966171168
    %v365 = vunpack.c.0.s8 %v364
    %v366 = vlaneseq
    %v367 = vshrl.u32 %v366, 7
    %v368 = vsub.s32 %v365, %v367
    %v369 = vrot.slane %v355, %v368
    %v370 = vcombine.low %v362, %v369
    %v372 = vunpack.c.l.s4 1966171168
    %v373 = vunpack.c.0.s8 %v372
    %v374 = vlaneseq
    %v375 = vshrl.u32 %v374, 7
    %v376 = vsub.s32 %v373, %v375
    %v377 = vrot.slane %v370, %v376
    %v378 = vcombine.low %v234, %v235
    %v379 = vcombine.low %v236, %v237
    %v381 = vunpack.c.l.s4 1966171168
    %v382 = vunpack.c.0.s8 %v381
    %v383 = vlaneseq
    %v384 = vshrl.u32 %v383, 7
    %v385 = vsub.s32 %v382, %v384
    %v386 = vrot.slane %v378, %v385
    %v388 = vunpack.c.l.s4 1966171168
    %v389 = vunpack.c.0.s8 %v388
    %v390 = vlaneseq
    %v391 = vshrl.u32 %v390, 7
    %v392 = vsub.s32 %v389, %v391
    %v393 = vrot.slane %v379, %v392
    %v394 = vcombine.low %v386, %v393
    %v396 = vunpack.c.l.s4 1966171168
    %v397 = vunpack.c.0.s8 %v396
    %v398 = vlaneseq
    %v399 = vshrl.u32 %v398, 7
    %v400 = vsub.s32 %v397, %v399
    %v401 = vrot.slane %v394, %v400
    %v402 = vcombine.low %v238, %v239
    %v403 = vcombine.low %v240, %v241
    %v405 = vunpack.c.l.s4 1966171168
    %v406 = vunpack.c.0.s8 %v405
    %v407 = vlaneseq
    %v408 = vshrl.u32 %v407, 7
    %v409 = vsub.s32 %v406, %v408
    %v410 = vrot.slane %v402, %v409
    %v412 = vunpack.c.l.s4 1966171168
    %v413 = vunpack.c.0.s8 %v412
    %v414 = vlaneseq
    %v415 = vshrl.u32 %v414, 7
    %v416 = vsub.s32 %v413, %v415
    %v417 = vrot.slane %v403, %v416
    %v418 = vcombine.low %v410, %v417
    %v420 = vunpack.c.l.s4 1966171168
    %v421 = vunpack.c.0.s8 %v420
    %v422 = vlaneseq
    %v423 = vshrl.u32 %v422, 7
    %v424 = vsub.s32 %v421, %v423
    %v425 = vrot.slane %v418, %v424
    %v426 = vcombine.low %v242, %v243
    %v427 = vcombine.low %v244, %v245
    %v429 = vunpack.c.l.s4 1966171168
    %v430 = vunpack.c.0.s8 %v429
    %v431 = vlaneseq
    %v432 = vshrl.u32 %v431, 7
    %v433 = vsub.s32 %v430, %v432
    %v434 = vrot.slane %v426, %v433
    %v436 = vunpack.c.l.s4 1966171168
    %v437 = vunpack.c.0.s8 %v436
    %v438 = vlaneseq
    %v439 = vshrl.u32 %v438, 7
    %v440 = vsub.s32 %v437, %v439
    %v441 = vrot.slane %v427, %v440
    %v442 = vcombine.low %v434, %v441
    %v444 = vunpack.c.l.s4 1966171168
    %v445 = vunpack.c.0.s8 %v444
    %v446 = vlaneseq
    %v447 = vshrl.u32 %v446, 7
    %v448 = vsub.s32 %v445, %v447
    %v449 = vrot.slane %v442, %v448
    %v450 = vcombine.low %v246, %v247
    %v451 = vcombine.low %v248, %v249
    %v453 = vunpack.c.l.s4 1966171168
    %v454 = vunpack.c.0.s8 %v453
    %v455 = vlaneseq
    %v456 = vshrl.u32 %v455, 7
    %v457 = vsub.s32 %v454, %v456
    %v458 = vrot.slane %v450, %v457
    %v460 = vunpack.c.l.s4 1966171168
    %v461 = vunpack.c.0.s8 %v460
    %v462 = vlaneseq
    %v463 = vshrl.u32 %v462, 7
    %v464 = vsub.s32 %v461, %v463
    %v465 = vrot.slane %v451, %v464
    %v466 = vcombine.low %v458, %v465
    %v468 = vunpack.c.l.s4 1966171168
    %v469 = vunpack.c.0.s8 %v468
    %v470 = vlaneseq
    %v471 = vshrl.u32 %v470, 7
    %v472 = vsub.s32 %v469, %v471
    %v473 = vrot.slane %v466, %v472
    %v474 = vld [vmem:[%s1] sm:$0xff]
    %v475 = vld [vmem:[%s1 + $0x8] sm:$0xff]
    %v476 = vld [vmem:[%s1 + $0x10] sm:$0xff]
    %v477 = vld [vmem:[%s1 + $0x18] sm:$0xff]
    %v478 = vld [vmem:[%s1 + $0x20] sm:$0xff]
    %v479 = vld [vmem:[%s1 + $0x28] sm:$0xff]
    %v480 = vld [vmem:[%s1 + $0x30] sm:$0xff]
    %v481 = vld [vmem:[%s1 + $0x38] sm:$0xff]
    %v482 = vld [vmem:[%s1 + $0x40] sm:$0xff]
    %v483 = vld [vmem:[%s1 + $0x48] sm:$0xff]
    %v484 = vld [vmem:[%s1 + $0x50] sm:$0xff]
    %v485 = vld [vmem:[%s1 + $0x58] sm:$0xff]
    %v486 = vld [vmem:[%s1 + $0x60] sm:$0xff]
    %v487 = vld [vmem:[%s1 + $0x68] sm:$0xff]
    %v488 = vld [vmem:[%s1 + $0x70] sm:$0xff]
    %v489 = vld [vmem:[%s1 + $0x78] sm:$0xff]
    %v490 = vld [vmem:[%s1 + $0x80] sm:$0xff]
    %v491 = vld [vmem:[%s1 + $0x88] sm:$0xff]
    %v492 = vld [vmem:[%s1 + $0x90] sm:$0xff]
    %v493 = vld [vmem:[%s1 + $0x98] sm:$0xff]
    %v494 = vld [vmem:[%s1 + $0xa0] sm:$0xff]
    %v495 = vld [vmem:[%s1 + $0xa8] sm:$0xff]
    %v496 = vld [vmem:[%s1 + $0xb0] sm:$0xff]
    %v497 = vld [vmem:[%s1 + $0xb8] sm:$0xff]
    %v498 = vld [vmem:[%s1 + $0xc0] sm:$0xff]
    %v499 = vld [vmem:[%s1 + $0xc8] sm:$0xff]
    %v500 = vld [vmem:[%s1 + $0xd0] sm:$0xff]
    %v501 = vld [vmem:[%s1 + $0xd8] sm:$0xff]
    %v502 = vld [vmem:[%s1 + $0xe0] sm:$0xff]
    %v503 = vld [vmem:[%s1 + $0xe8] sm:$0xff]
    %v504 = vld [vmem:[%s1 + $0xf0] sm:$0xff]
    %v505 = vld [vmem:[%s1 + $0xf8] sm:$0xff]
    %v506 = vld [vmem:[%s1 + $0x100] sm:$0xff]
    %v507 = vld [vmem:[%s1 + $0x108] sm:$0xff]
    %v508 = vld [vmem:[%s1 + $0x110] sm:$0xff]
    %v509 = vld [vmem:[%s1 + $0x118] sm:$0xff]
    %v510 = vld [vmem:[%s1 + $0x120] sm:$0xff]
    %v511 = vld [vmem:[%s1 + $0x128] sm:$0xff]
    %v512 = vld [vmem:[%s1 + $0x130] sm:$0xff]
    %v513 = vld [vmem:[%s1 + $0x138] sm:$0xff]
    %v514 = vld [vmem:[%s1 + $0x140] sm:$0xff]
    %v515 = vld [vmem:[%s1 + $0x148] sm:$0xff]
    %v516 = vld [vmem:[%s1 + $0x150] sm:$0xff]
    %v517 = vld [vmem:[%s1 + $0x158] sm:$0xff]
    %v518 = vld [vmem:[%s1 + $0x160] sm:$0xff]
    %v519 = vld [vmem:[%s1 + $0x168] sm:$0xff]
    %v520 = vld [vmem:[%s1 + $0x170] sm:$0xff]
    %v521 = vld [vmem:[%s1 + $0x178] sm:$0xff]
    %v522 = vld [vmem:[%s1 + $0x180] sm:$0xff]
    %v523 = vld [vmem:[%s1 + $0x188] sm:$0xff]
    %v524 = vld [vmem:[%s1 + $0x190] sm:$0xff]
    %v525 = vld [vmem:[%s1 + $0x198] sm:$0xff]
    %v526 = vld [vmem:[%s1 + $0x1a0] sm:$0xff]
    %v527 = vld [vmem:[%s1 + $0x1a8] sm:$0xff]
    %v528 = vld [vmem:[%s1 + $0x1b0] sm:$0xff]
    %v529 = vld [vmem:[%s1 + $0x1b8] sm:$0xff]
    %v530 = vld [vmem:[%s1 + $0x1c0] sm:$0xff]
    %v531 = vld [vmem:[%s1 + $0x1c8] sm:$0xff]
    %v532 = vld [vmem:[%s1 + $0x1d0] sm:$0xff]
    %v533 = vld [vmem:[%s1 + $0x1d8] sm:$0xff]
    %v534 = vld [vmem:[%s1 + $0x1e0] sm:$0xff]
    %v535 = vld [vmem:[%s1 + $0x1e8] sm:$0xff]
    %v536 = vld [vmem:[%s1 + $0x1f0] sm:$0xff]
    %v537 = vld [vmem:[%s1 + $0x1f8] sm:$0xff]
    %v538 = vld [vmem:[%s1 + $0x200] sm:$0xff]
    %v539 = vld [vmem:[%s1 + $0x208] sm:$0xff]
    %v540 = vld [vmem:[%s1 + $0x210] sm:$0xff]
    %v541 = vld [vmem:[%s1 + $0x218] sm:$0xff]
    %v542 = vld [vmem:[%s1 + $0x220] sm:$0xff]
    %v543 = vld [vmem:[%s1 + $0x228] sm:$0xff]
    %v544 = vld [vmem:[%s1 + $0x230] sm:$0xff]
    %v545 = vld [vmem:[%s1 + $0x238] sm:$0xff]
    %v546 = vld [vmem:[%s1 + $0x240] sm:$0xff]
    %v547 = vld [vmem:[%s1 + $0x248] sm:$0xff]
    %v548 = vld [vmem:[%s1 + $0x250] sm:$0xff]
    %v549 = vld [vmem:[%s1 + $0x258] sm:$0xff]
    %v550 = vld [vmem:[%s1 + $0x260] sm:$0xff]
    %v551 = vld [vmem:[%s1 + $0x268] sm:$0xff]
    %v552 = vld [vmem:[%s1 + $0x270] sm:$0xff]
    %v553 = vld [vmem:[%s1 + $0x278] sm:$0xff]
    %v554 = vld [vmem:[%s1 + $0x280] sm:$0xff]
    %v555 = vld [vmem:[%s1 + $0x288] sm:$0xff]
    %v556 = vld [vmem:[%s1 + $0x290] sm:$0xff]
    %v557 = vld [vmem:[%s1 + $0x298] sm:$0xff]
    %v558 = vld [vmem:[%s1 + $0x2a0] sm:$0xff]
    %v559 = vld [vmem:[%s1 + $0x2a8] sm:$0xff]
    %v560 = vld [vmem:[%s1 + $0x2b0] sm:$0xff]
    %v561 = vld [vmem:[%s1 + $0x2b8] sm:$0xff]
    %v562 = vld [vmem:[%s1 + $0x2c0] sm:$0xff]
    %v563 = vld [vmem:[%s1 + $0x2c8] sm:$0xff]
    %v564 = vld [vmem:[%s1 + $0x2d0] sm:$0xff]
    %v565 = vld [vmem:[%s1 + $0x2d8] sm:$0xff]
    %v566 = vld [vmem:[%s1 + $0x2e0] sm:$0xff]
    %v567 = vld [vmem:[%s1 + $0x2e8] sm:$0xff]
    %v568 = vld [vmem:[%s1 + $0x2f0] sm:$0xff]
    %v569 = vld [vmem:[%s1 + $0x2f8] sm:$0xff]
    %v570 = vld [vmem:[%s1 + $0x300] sm:$0xff]
    %v571 = vld [vmem:[%s1 + $0x308] sm:$0xff]
    %v572 = vld [vmem:[%s1 + $0x310] sm:$0xff]
    %v573 = vld [vmem:[%s1 + $0x318] sm:$0xff]
    %v574 = vld [vmem:[%s1 + $0x320] sm:$0xff]
    %v575 = vld [vmem:[%s1 + $0x328] sm:$0xff]
    %v576 = vld [vmem:[%s1 + $0x330] sm:$0xff]
    %v577 = vld [vmem:[%s1 + $0x338] sm:$0xff]
    %v578 = vld [vmem:[%s1 + $0x340] sm:$0xff]
    %v579 = vld [vmem:[%s1 + $0x348] sm:$0xff]
    %v580 = vld [vmem:[%s1 + $0x350] sm:$0xff]
    %v581 = vld [vmem:[%s1 + $0x358] sm:$0xff]
    %v582 = vld [vmem:[%s1 + $0x360] sm:$0xff]
    %v583 = vld [vmem:[%s1 + $0x368] sm:$0xff]
    %v584 = vld [vmem:[%s1 + $0x370] sm:$0xff]
    %v585 = vld [vmem:[%s1 + $0x378] sm:$0xff]
    %v586 = vld [vmem:[%s1 + $0x380] sm:$0xff]
    %v587 = vld [vmem:[%s1 + $0x388] sm:$0xff]
    %v588 = vld [vmem:[%s1 + $0x390] sm:$0xff]
    %v589 = vld [vmem:[%s1 + $0x398] sm:$0xff]
    %v590 = vld [vmem:[%s1 + $0x3a0] sm:$0xff]
    %v591 = vld [vmem:[%s1 + $0x3a8] sm:$0xff]
    %v592 = vld [vmem:[%s1 + $0x3b0] sm:$0xff]
    %v593 = vld [vmem:[%s1 + $0x3b8] sm:$0xff]
    %v594 = vld [vmem:[%s1 + $0x3c0] sm:$0xff]
    %v595 = vld [vmem:[%s1 + $0x3c8] sm:$0xff]
    %v596 = vld [vmem:[%s1 + $0x3d0] sm:$0xff]
    %v597 = vld [vmem:[%s1 + $0x3d8] sm:$0xff]
    %v598 = vld [vmem:[%s1 + $0x3e0] sm:$0xff]
    %v599 = vld [vmem:[%s1 + $0x3e8] sm:$0xff]
    %v600 = vld [vmem:[%s1 + $0x3f0] sm:$0xff]
    %v601 = vld [vmem:[%s1 + $0x3f8] sm:$0xff]
    %v602 = vld [vmem:[%s1 + $0x400] sm:$0xff]
    %v603 = vld [vmem:[%s1 + $0x408] sm:$0xff]
    %v604 = vld [vmem:[%s1 + $0x410] sm:$0xff]
    %v605 = vld [vmem:[%s1 + $0x418] sm:$0xff]
    %v606 = vld [vmem:[%s1 + $0x420] sm:$0xff]
    %v607 = vld [vmem:[%s1 + $0x428] sm:$0xff]
    %v608 = vld [vmem:[%s1 + $0x430] sm:$0xff]
    %v609 = vld [vmem:[%s1 + $0x438] sm:$0xff]
    %v610 = vld [vmem:[%s1 + $0x440] sm:$0xff]
    %v611 = vld [vmem:[%s1 + $0x448] sm:$0xff]
    %v612 = vld [vmem:[%s1 + $0x450] sm:$0xff]
    %v613 = vld [vmem:[%s1 + $0x458] sm:$0xff]
    %v614 = vld [vmem:[%s1 + $0x460] sm:$0xff]
    %v615 = vld [vmem:[%s1 + $0x468] sm:$0xff]
    %v616 = vld [vmem:[%s1 + $0x470] sm:$0xff]
    %v617 = vld [vmem:[%s1 + $0x478] sm:$0xff]
    %v618 = vld [vmem:[%s1 + $0x480] sm:$0xff]
    %v619 = vld [vmem:[%s1 + $0x488] sm:$0xff]
    %v620 = vld [vmem:[%s1 + $0x490] sm:$0xff]
    %v621 = vld [vmem:[%s1 + $0x498] sm:$0xff]
    %v622 = vld [vmem:[%s1 + $0x4a0] sm:$0xff]
    %v623 = vld [vmem:[%s1 + $0x4a8] sm:$0xff]
    %v624 = vld [vmem:[%s1 + $0x4b0] sm:$0xff]
    %v625 = vld [vmem:[%s1 + $0x4b8] sm:$0xff]
    %v626 = vld [vmem:[%s1 + $0x4c0] sm:$0xff]
    %v627 = vld [vmem:[%s1 + $0x4c8] sm:$0xff]
    %v628 = vld [vmem:[%s1 + $0x4d0] sm:$0xff]
    %v629 = vld [vmem:[%s1 + $0x4d8] sm:$0xff]
    %v630 = vld [vmem:[%s1 + $0x4e0] sm:$0xff]
    %v631 = vld [vmem:[%s1 + $0x4e8] sm:$0xff]
    %v632 = vld [vmem:[%s1 + $0x4f0] sm:$0xff]
    %v633 = vld [vmem:[%s1 + $0x4f8] sm:$0xff]
    %v634 = vld [vmem:[%s1 + $0x500] sm:$0xff]
    %v635 = vld [vmem:[%s1 + $0x508] sm:$0xff]
    %v636 = vld [vmem:[%s1 + $0x510] sm:$0xff]
    %v637 = vld [vmem:[%s1 + $0x518] sm:$0xff]
    %v638 = vld [vmem:[%s1 + $0x520] sm:$0xff]
    %v639 = vld [vmem:[%s1 + $0x528] sm:$0xff]
    %v640 = vld [vmem:[%s1 + $0x530] sm:$0xff]
    %v641 = vld [vmem:[%s1 + $0x538] sm:$0xff]
    %v642 = vld [vmem:[%s1 + $0x540] sm:$0xff]
    %v643 = vld [vmem:[%s1 + $0x548] sm:$0xff]
    %v644 = vld [vmem:[%s1 + $0x550] sm:$0xff]
    %v645 = vld [vmem:[%s1 + $0x558] sm:$0xff]
    %v646 = vld [vmem:[%s1 + $0x560] sm:$0xff]
    %v647 = vld [vmem:[%s1 + $0x568] sm:$0xff]
    %v648 = vld [vmem:[%s1 + $0x570] sm:$0xff]
    %v649 = vld [vmem:[%s1 + $0x578] sm:$0xff]
    %v650 = vld [vmem:[%s1 + $0x580] sm:$0xff]
    %v651 = vld [vmem:[%s1 + $0x588] sm:$0xff]
    %v652 = vld [vmem:[%s1 + $0x590] sm:$0xff]
    %v653 = vld [vmem:[%s1 + $0x598] sm:$0xff]
    %v654 = vld [vmem:[%s1 + $0x5a0] sm:$0xff]
    %v655 = vld [vmem:[%s1 + $0x5a8] sm:$0xff]
    %v656 = vld [vmem:[%s1 + $0x5b0] sm:$0xff]
    %v657 = vld [vmem:[%s1 + $0x5b8] sm:$0xff]
    %v658 = vld [vmem:[%s1 + $0x5c0] sm:$0xff]
    %v659 = vld [vmem:[%s1 + $0x5c8] sm:$0xff]
    %v660 = vld [vmem:[%s1 + $0x5d0] sm:$0xff]
    %v661 = vld [vmem:[%s1 + $0x5d8] sm:$0xff]
    %v662 = vld [vmem:[%s1 + $0x5e0] sm:$0xff]
    %v663 = vld [vmem:[%s1 + $0x5e8] sm:$0xff]
    %v664 = vld [vmem:[%s1 + $0x5f0] sm:$0xff]
    %v665 = vld [vmem:[%s1 + $0x5f8] sm:$0xff]
    %v666 = vld [vmem:[%s1 + $0x600] sm:$0xff]
    %v667 = vld [vmem:[%s1 + $0x608] sm:$0xff]
    %v668 = vld [vmem:[%s1 + $0x610] sm:$0xff]
    %v669 = vld [vmem:[%s1 + $0x618] sm:$0xff]
    %v670 = vld [vmem:[%s1 + $0x620] sm:$0xff]
    %v671 = vld [vmem:[%s1 + $0x628] sm:$0xff]
    %v672 = vld [vmem:[%s1 + $0x630] sm:$0xff]
    %v673 = vld [vmem:[%s1 + $0x638] sm:$0xff]
    %v674 = vld [vmem:[%s1 + $0x640] sm:$0xff]
    %v675 = vld [vmem:[%s1 + $0x648] sm:$0xff]
    %v676 = vld [vmem:[%s1 + $0x650] sm:$0xff]
    %v677 = vld [vmem:[%s1 + $0x658] sm:$0xff]
    %v678 = vld [vmem:[%s1 + $0x660] sm:$0xff]
    %v679 = vld [vmem:[%s1 + $0x668] sm:$0xff]
    %v680 = vld [vmem:[%s1 + $0x670] sm:$0xff]
    %v681 = vld [vmem:[%s1 + $0x678] sm:$0xff]
    %v682 = vld [vmem:[%s1 + $0x680] sm:$0xff]
    %v683 = vld [vmem:[%s1 + $0x688] sm:$0xff]
    %v684 = vld [vmem:[%s1 + $0x690] sm:$0xff]
    %v685 = vld [vmem:[%s1 + $0x698] sm:$0xff]
    %v686 = vld [vmem:[%s1 + $0x6a0] sm:$0xff]
    %v687 = vld [vmem:[%s1 + $0x6a8] sm:$0xff]
    %v688 = vld [vmem:[%s1 + $0x6b0] sm:$0xff]
    %v689 = vld [vmem:[%s1 + $0x6b8] sm:$0xff]
    %v690 = vld [vmem:[%s1 + $0x6c0] sm:$0xff]
    %v691 = vld [vmem:[%s1 + $0x6c8] sm:$0xff]
    %v692 = vld [vmem:[%s1 + $0x6d0] sm:$0xff]
    %v693 = vld [vmem:[%s1 + $0x6d8] sm:$0xff]
    %v694 = vld [vmem:[%s1 + $0x6e0] sm:$0xff]
    %v695 = vld [vmem:[%s1 + $0x6e8] sm:$0xff]
    %v696 = vld [vmem:[%s1 + $0x6f0] sm:$0xff]
    %v697 = vld [vmem:[%s1 + $0x6f8] sm:$0xff]
    %v698 = vld [vmem:[%s1 + $0x700] sm:$0xff]
    %v699 = vld [vmem:[%s1 + $0x708] sm:$0xff]
    %v700 = vld [vmem:[%s1 + $0x710] sm:$0xff]
    %v701 = vld [vmem:[%s1 + $0x718] sm:$0xff]
    %v702 = vld [vmem:[%s1 + $0x720] sm:$0xff]
    %v703 = vld [vmem:[%s1 + $0x728] sm:$0xff]
    %v704 = vld [vmem:[%s1 + $0x730] sm:$0xff]
    %v705 = vld [vmem:[%s1 + $0x738] sm:$0xff]
    %v706 = vld [vmem:[%s1 + $0x740] sm:$0xff]
    %v707 = vld [vmem:[%s1 + $0x748] sm:$0xff]
    %v708 = vld [vmem:[%s1 + $0x750] sm:$0xff]
    %v709 = vld [vmem:[%s1 + $0x758] sm:$0xff]
    %v710 = vld [vmem:[%s1 + $0x760] sm:$0xff]
    %v711 = vld [vmem:[%s1 + $0x768] sm:$0xff]
    %v712 = vld [vmem:[%s1 + $0x770] sm:$0xff]
    %v713 = vld [vmem:[%s1 + $0x778] sm:$0xff]
    %v714 = vld [vmem:[%s1 + $0x780] sm:$0xff]
    %v715 = vld [vmem:[%s1 + $0x788] sm:$0xff]
    %v716 = vld [vmem:[%s1 + $0x790] sm:$0xff]
    %v717 = vld [vmem:[%s1 + $0x798] sm:$0xff]
    %v718 = vld [vmem:[%s1 + $0x7a0] sm:$0xff]
    %v719 = vld [vmem:[%s1 + $0x7a8] sm:$0xff]
    %v720 = vld [vmem:[%s1 + $0x7b0] sm:$0xff]
    %v721 = vld [vmem:[%s1 + $0x7b8] sm:$0xff]
    %v722 = vld [vmem:[%s1 + $0x7c0] sm:$0xff]
    %v723 = vld [vmem:[%s1 + $0x7c8] sm:$0xff]
    %v724 = vld [vmem:[%s1 + $0x7d0] sm:$0xff]
    %v725 = vld [vmem:[%s1 + $0x7d8] sm:$0xff]
    %v726 = vld [vmem:[%s1 + $0x7e0] sm:$0xff]
    %v727 = vld [vmem:[%s1 + $0x7e8] sm:$0xff]
    %v728 = vld [vmem:[%s1 + $0x7f0] sm:$0xff]
    %v729 = vld [vmem:[%s1 + $0x7f8] sm:$0xff]
    %v730 = vld [vmem:[%s2] sm:$0xff]
    %v732 = vlaneseq
    %v733 = vshrl.u32 %v732, 7
    %v734 = vsub.s32 0, %v733
    %v735 = vrot.slane %v730, %v734
    %v736 = vlaneseq
    %v737 = vshrl.u32 %v736, 7
    %v738 = vsub.s32 1, %v737
    %v739 = vrot.slane %v730, %v738
    %v740 = vlaneseq
    %v741 = vshrl.u32 %v740, 7
    %v742 = vsub.s32 2, %v741
    %v743 = vrot.slane %v730, %v742
    %v744 = vlaneseq
    %v745 = vshrl.u32 %v744, 7
    %v746 = vsub.s32 3, %v745
    %v747 = vrot.slane %v730, %v746
    %v748 = vlaneseq
    %v749 = vshrl.u32 %v748, 7
    %v750 = vsub.s32 4, %v749
    %v751 = vrot.slane %v730, %v750
    %v752 = vlaneseq
    %v753 = vshrl.u32 %v752, 7
    %v754 = vsub.s32 5, %v753
    %v755 = vrot.slane %v730, %v754
    %v756 = vlaneseq
    %v757 = vshrl.u32 %v756, 7
    %v758 = vsub.s32 6, %v757
    %v759 = vrot.slane %v730, %v758
    %v760 = vlaneseq
    %v761 = vshrl.u32 %v760, 7
    %v762 = vsub.s32 7, %v761
    %v763 = vrot.slane %v730, %v762
    %v772 = vcombine.low %v305, %v329
    %v773 = vcombine.low %v353, %v377
    %v774 = vcombine.low %v401, %v425
    %v775 = vcombine.low %v449, %v473
    %v777 = vunpack.c.l.s4 1966171168
    %v778 = vunpack.c.0.s8 %v777
    %v779 = vlaneseq
    %v780 = vshrl.u32 %v779, 7
    %v781 = vsub.s32 %v778, %v780
    %v782 = vrot.slane %v772, %v781
    %v784 = vunpack.c.l.s4 1966171168
    %v785 = vunpack.c.0.s8 %v784
    %v786 = vlaneseq
    %v787 = vshrl.u32 %v786, 7
    %v788 = vsub.s32 %v785, %v787
    %v789 = vrot.slane %v773, %v788
    %v791 = vunpack.c.l.s4 1966171168
    %v792 = vunpack.c.0.s8 %v791
    %v793 = vlaneseq
    %v794 = vshrl.u32 %v793, 7
    %v795 = vsub.s32 %v792, %v794
    %v796 = vrot.slane %v774, %v795
    %v798 = vunpack.c.l.s4 1966171168
    %v799 = vunpack.c.0.s8 %v798
    %v800 = vlaneseq
    %v801 = vshrl.u32 %v800, 7
    %v802 = vsub.s32 %v799, %v801
    %v803 = vrot.slane %v775, %v802
    %v804 = vcombine.low %v782, %v789
    %v805 = vcombine.high %v782, %v789
    %v806 = vcombine.low %v796, %v803
    %v807 = vcombine.high %v796, %v803
    %v809 = vunpack.c.l.s4 1966171168
    %v810 = vunpack.c.0.s8 %v809
    %v811 = vlaneseq
    %v812 = vshrl.u32 %v811, 7
    %v813 = vsub.s32 %v810, %v812
    %v814 = vrot.slane %v804, %v813
    %v816 = vunpack.c.l.s4 1966171168
    %v817 = vunpack.c.0.s8 %v816
    %v818 = vlaneseq
    %v819 = vshrl.u32 %v818, 7
    %v820 = vsub.s32 %v817, %v819
    %v821 = vrot.slane %v805, %v820
    %v823 = vunpack.c.l.s4 1966171168
    %v824 = vunpack.c.0.s8 %v823
    %v825 = vlaneseq
    %v826 = vshrl.u32 %v825, 7
    %v827 = vsub.s32 %v824, %v826
    %v828 = vrot.slane %v806, %v827
    %v830 = vunpack.c.l.s4 1966171168
    %v831 = vunpack.c.0.s8 %v830
    %v832 = vlaneseq
    %v833 = vshrl.u32 %v832, 7
    %v834 = vsub.s32 %v831, %v833
    %v835 = vrot.slane %v807, %v834
    %v836 = vcombine.low %v814, %v828
    %v837 = vcombine.high %v814, %v828
    %v838 = vcombine.low %v821, %v835
    %v839 = vcombine.high %v821, %v835
    %v1100 = vunpack.c.l.b16 %v474
    %v1101 = vunpack.c.h.b16 %v474
    %v1102 = vunpack.c.l.b16 %v475
    %v1103 = vunpack.c.h.b16 %v475
    %v1104 = vunpack.c.l.b16 %v476
    %v1105 = vunpack.c.h.b16 %v476
    %v1106 = vunpack.c.l.b16 %v477
    %v1107 = vunpack.c.h.b16 %v477
    %v1108 = vunpack.c.l.b16 %v478
    %v1109 = vunpack.c.h.b16 %v478
    %v1110 = vunpack.c.l.b16 %v479
    %v1111 = vunpack.c.h.b16 %v479
    %v1112 = vunpack.c.l.b16 %v480
    %v1113 = vunpack.c.h.b16 %v480
    %v1114 = vunpack.c.l.b16 %v481
    %v1115 = vunpack.c.h.b16 %v481
    %v1116 = vunpack.c.l.b16 %v482
    %v1117 = vunpack.c.h.b16 %v482
    %v1118 = vunpack.c.l.b16 %v483
    %v1119 = vunpack.c.h.b16 %v483
    %v1120 = vunpack.c.l.b16 %v484
    %v1121 = vunpack.c.h.b16 %v484
    %v1122 = vunpack.c.l.b16 %v485
    %v1123 = vunpack.c.h.b16 %v485
    %v1124 = vunpack.c.l.b16 %v486
    %v1125 = vunpack.c.h.b16 %v486
    %v1126 = vunpack.c.l.b16 %v487
    %v1127 = vunpack.c.h.b16 %v487
    %v1128 = vunpack.c.l.b16 %v488
    %v1129 = vunpack.c.h.b16 %v488
    %v1130 = vunpack.c.l.b16 %v489
    %v1131 = vunpack.c.h.b16 %v489
    %v1132 = vunpack.c.l.b16 %v490
    %v1133 = vunpack.c.h.b16 %v490
    %v1134 = vunpack.c.l.b16 %v491
    %v1135 = vunpack.c.h.b16 %v491
    %v1136 = vunpack.c.l.b16 %v492
    %v1137 = vunpack.c.h.b16 %v492
    %v1138 = vunpack.c.l.b16 %v493
    %v1139 = vunpack.c.h.b16 %v493
    %v1140 = vunpack.c.l.b16 %v494
    %v1141 = vunpack.c.h.b16 %v494
    %v1142 = vunpack.c.l.b16 %v495
    %v1143 = vunpack.c.h.b16 %v495
    %v1144 = vunpack.c.l.b16 %v496
    %v1145 = vunpack.c.h.b16 %v496
    %v1146 = vunpack.c.l.b16 %v497
    %v1147 = vunpack.c.h.b16 %v497
    %v1148 = vunpack.c.l.b16 %v498
    %v1149 = vunpack.c.h.b16 %v498
    %v1150 = vunpack.c.l.b16 %v499
    %v1151 = vunpack.c.h.b16 %v499
    %v1152 = vunpack.c.l.b16 %v500
    %v1153 = vunpack.c.h.b16 %v500
    %v1154 = vunpack.c.l.b16 %v501
    %v1155 = vunpack.c.h.b16 %v501
    %v1156 = vunpack.c.l.b16 %v502
    %v1157 = vunpack.c.h.b16 %v502
    %v1158 = vunpack.c.l.b16 %v503
    %v1159 = vunpack.c.h.b16 %v503
    %v1160 = vunpack.c.l.b16 %v504
    %v1161 = vunpack.c.h.b16 %v504
    %v1162 = vunpack.c.l.b16 %v505
    %v1163 = vunpack.c.h.b16 %v505
    %v1164 = vunpack.c.l.b16 %v506
    %v1165 = vunpack.c.h.b16 %v506
    %v1166 = vunpack.c.l.b16 %v507
    %v1167 = vunpack.c.h.b16 %v507
    %v1168 = vunpack.c.l.b16 %v508
    %v1169 = vunpack.c.h.b16 %v508
    %v1170 = vunpack.c.l.b16 %v509
    %v1171 = vunpack.c.h.b16 %v509
    %v1172 = vunpack.c.l.b16 %v510
    %v1173 = vunpack.c.h.b16 %v510
    %v1174 = vunpack.c.l.b16 %v511
    %v1175 = vunpack.c.h.b16 %v511
    %v1176 = vunpack.c.l.b16 %v512
    %v1177 = vunpack.c.h.b16 %v512
    %v1178 = vunpack.c.l.b16 %v513
    %v1179 = vunpack.c.h.b16 %v513
    %v1180 = vunpack.c.l.b16 %v514
    %v1181 = vunpack.c.h.b16 %v514
    %v1182 = vunpack.c.l.b16 %v515
    %v1183 = vunpack.c.h.b16 %v515
    %v1184 = vunpack.c.l.b16 %v516
    %v1185 = vunpack.c.h.b16 %v516
    %v1186 = vunpack.c.l.b16 %v517
    %v1187 = vunpack.c.h.b16 %v517
    %v1188 = vunpack.c.l.b16 %v518
    %v1189 = vunpack.c.h.b16 %v518
    %v1190 = vunpack.c.l.b16 %v519
    %v1191 = vunpack.c.h.b16 %v519
    %v1192 = vunpack.c.l.b16 %v520
    %v1193 = vunpack.c.h.b16 %v520
    %v1194 = vunpack.c.l.b16 %v521
    %v1195 = vunpack.c.h.b16 %v521
    %v1196 = vunpack.c.l.b16 %v522
    %v1197 = vunpack.c.h.b16 %v522
    %v1198 = vunpack.c.l.b16 %v523
    %v1199 = vunpack.c.h.b16 %v523
    %v1200 = vunpack.c.l.b16 %v524
    %v1201 = vunpack.c.h.b16 %v524
    %v1202 = vunpack.c.l.b16 %v525
    %v1203 = vunpack.c.h.b16 %v525
    %v1204 = vunpack.c.l.b16 %v526
    %v1205 = vunpack.c.h.b16 %v526
    %v1206 = vunpack.c.l.b16 %v527
    %v1207 = vunpack.c.h.b16 %v527
    %v1208 = vunpack.c.l.b16 %v528
    %v1209 = vunpack.c.h.b16 %v528
    %v1210 = vunpack.c.l.b16 %v529
    %v1211 = vunpack.c.h.b16 %v529
    %v1212 = vunpack.c.l.b16 %v530
    %v1213 = vunpack.c.h.b16 %v530
    %v1214 = vunpack.c.l.b16 %v531
    %v1215 = vunpack.c.h.b16 %v531
    %v1216 = vunpack.c.l.b16 %v532
    %v1217 = vunpack.c.h.b16 %v532
    %v1218 = vunpack.c.l.b16 %v533
    %v1219 = vunpack.c.h.b16 %v533
    %v1220 = vunpack.c.l.b16 %v534
    %v1221 = vunpack.c.h.b16 %v534
    %v1222 = vunpack.c.l.b16 %v535
    %v1223 = vunpack.c.h.b16 %v535
    %v1224 = vunpack.c.l.b16 %v536
    %v1225 = vunpack.c.h.b16 %v536
    %v1226 = vunpack.c.l.b16 %v537
    %v1227 = vunpack.c.h.b16 %v537
    %v1228 = vunpack.c.l.b16 %v538
    %v1229 = vunpack.c.h.b16 %v538
    %v1230 = vunpack.c.l.b16 %v539
    %v1231 = vunpack.c.h.b16 %v539
    %v1232 = vunpack.c.l.b16 %v540
    %v1233 = vunpack.c.h.b16 %v540
    %v1234 = vunpack.c.l.b16 %v541
    %v1235 = vunpack.c.h.b16 %v541
    %v1236 = vunpack.c.l.b16 %v542
    %v1237 = vunpack.c.h.b16 %v542
    %v1238 = vunpack.c.l.b16 %v543
    %v1239 = vunpack.c.h.b16 %v543
    %v1240 = vunpack.c.l.b16 %v544
    %v1241 = vunpack.c.h.b16 %v544
    %v1242 = vunpack.c.l.b16 %v545
    %v1243 = vunpack.c.h.b16 %v545
    %v1244 = vunpack.c.l.b16 %v546
    %v1245 = vunpack.c.h.b16 %v546
    %v1246 = vunpack.c.l.b16 %v547
    %v1247 = vunpack.c.h.b16 %v547
    %v1248 = vunpack.c.l.b16 %v548
    %v1249 = vunpack.c.h.b16 %v548
    %v1250 = vunpack.c.l.b16 %v549
    %v1251 = vunpack.c.h.b16 %v549
    %v1252 = vunpack.c.l.b16 %v550
    %v1253 = vunpack.c.h.b16 %v550
    %v1254 = vunpack.c.l.b16 %v551
    %v1255 = vunpack.c.h.b16 %v551
    %v1256 = vunpack.c.l.b16 %v552
    %v1257 = vunpack.c.h.b16 %v552
    %v1258 = vunpack.c.l.b16 %v553
    %v1259 = vunpack.c.h.b16 %v553
    %v1260 = vunpack.c.l.b16 %v554
    %v1261 = vunpack.c.h.b16 %v554
    %v1262 = vunpack.c.l.b16 %v555
    %v1263 = vunpack.c.h.b16 %v555
    %v1264 = vunpack.c.l.b16 %v556
    %v1265 = vunpack.c.h.b16 %v556
    %v1266 = vunpack.c.l.b16 %v557
    %v1267 = vunpack.c.h.b16 %v557
    %v1268 = vunpack.c.l.b16 %v558
    %v1269 = vunpack.c.h.b16 %v558
    %v1270 = vunpack.c.l.b16 %v559
    %v1271 = vunpack.c.h.b16 %v559
    %v1272 = vunpack.c.l.b16 %v560
    %v1273 = vunpack.c.h.b16 %v560
    %v1274 = vunpack.c.l.b16 %v561
    %v1275 = vunpack.c.h.b16 %v561
    %v1276 = vunpack.c.l.b16 %v562
    %v1277 = vunpack.c.h.b16 %v562
    %v1278 = vunpack.c.l.b16 %v563
    %v1279 = vunpack.c.h.b16 %v563
    %v1280 = vunpack.c.l.b16 %v564
    %v1281 = vunpack.c.h.b16 %v564
    %v1282 = vunpack.c.l.b16 %v565
    %v1283 = vunpack.c.h.b16 %v565
    %v1284 = vunpack.c.l.b16 %v566
    %v1285 = vunpack.c.h.b16 %v566
    %v1286 = vunpack.c.l.b16 %v567
    %v1287 = vunpack.c.h.b16 %v567
    %v1288 = vunpack.c.l.b16 %v568
    %v1289 = vunpack.c.h.b16 %v568
    %v1290 = vunpack.c.l.b16 %v569
    %v1291 = vunpack.c.h.b16 %v569
    %v1292 = vunpack.c.l.b16 %v570
    %v1293 = vunpack.c.h.b16 %v570
    %v1294 = vunpack.c.l.b16 %v571
    %v1295 = vunpack.c.h.b16 %v571
    %v1296 = vunpack.c.l.b16 %v572
    %v1297 = vunpack.c.h.b16 %v572
    %v1298 = vunpack.c.l.b16 %v573
    %v1299 = vunpack.c.h.b16 %v573
    %v1300 = vunpack.c.l.b16 %v574
    %v1301 = vunpack.c.h.b16 %v574
    %v1302 = vunpack.c.l.b16 %v575
    %v1303 = vunpack.c.h.b16 %v575
    %v1304 = vunpack.c.l.b16 %v576
    %v1305 = vunpack.c.h.b16 %v576
    %v1306 = vunpack.c.l.b16 %v577
    %v1307 = vunpack.c.h.b16 %v577
    %v1308 = vunpack.c.l.b16 %v578
    %v1309 = vunpack.c.h.b16 %v578
    %v1310 = vunpack.c.l.b16 %v579
    %v1311 = vunpack.c.h.b16 %v579
    %v1312 = vunpack.c.l.b16 %v580
    %v1313 = vunpack.c.h.b16 %v580
    %v1314 = vunpack.c.l.b16 %v581
    %v1315 = vunpack.c.h.b16 %v581
    %v1316 = vunpack.c.l.b16 %v582
    %v1317 = vunpack.c.h.b16 %v582
    %v1318 = vunpack.c.l.b16 %v583
    %v1319 = vunpack.c.h.b16 %v583
    %v1320 = vunpack.c.l.b16 %v584
    %v1321 = vunpack.c.h.b16 %v584
    %v1322 = vunpack.c.l.b16 %v585
    %v1323 = vunpack.c.h.b16 %v585
    %v1324 = vunpack.c.l.b16 %v586
    %v1325 = vunpack.c.h.b16 %v586
    %v1326 = vunpack.c.l.b16 %v587
    %v1327 = vunpack.c.h.b16 %v587
    %v1328 = vunpack.c.l.b16 %v588
    %v1329 = vunpack.c.h.b16 %v588
    %v1330 = vunpack.c.l.b16 %v589
    %v1331 = vunpack.c.h.b16 %v589
    %v1332 = vunpack.c.l.b16 %v590
    %v1333 = vunpack.c.h.b16 %v590
    %v1334 = vunpack.c.l.b16 %v591
    %v1335 = vunpack.c.h.b16 %v591
    %v1336 = vunpack.c.l.b16 %v592
    %v1337 = vunpack.c.h.b16 %v592
    %v1338 = vunpack.c.l.b16 %v593
    %v1339 = vunpack.c.h.b16 %v593
    %v1340 = vunpack.c.l.b16 %v594
    %v1341 = vunpack.c.h.b16 %v594
    %v1342 = vunpack.c.l.b16 %v595
    %v1343 = vunpack.c.h.b16 %v595
    %v1344 = vunpack.c.l.b16 %v596
    %v1345 = vunpack.c.h.b16 %v596
    %v1346 = vunpack.c.l.b16 %v597
    %v1347 = vunpack.c.h.b16 %v597
    %v1348 = vunpack.c.l.b16 %v598
    %v1349 = vunpack.c.h.b16 %v598
    %v1350 = vunpack.c.l.b16 %v599
    %v1351 = vunpack.c.h.b16 %v599
    %v1352 = vunpack.c.l.b16 %v600
    %v1353 = vunpack.c.h.b16 %v600
    %v1354 = vunpack.c.l.b16 %v601
    %v1355 = vunpack.c.h.b16 %v601
    %v1356 = vunpack.c.l.b16 %v602
    %v1357 = vunpack.c.h.b16 %v602
    %v1358 = vunpack.c.l.b16 %v603
    %v1359 = vunpack.c.h.b16 %v603
    %v1360 = vunpack.c.l.b16 %v604
    %v1361 = vunpack.c.h.b16 %v604
    %v1362 = vunpack.c.l.b16 %v605
    %v1363 = vunpack.c.h.b16 %v605
    %v1364 = vunpack.c.l.b16 %v606
    %v1365 = vunpack.c.h.b16 %v606
    %v1366 = vunpack.c.l.b16 %v607
    %v1367 = vunpack.c.h.b16 %v607
    %v1368 = vunpack.c.l.b16 %v608
    %v1369 = vunpack.c.h.b16 %v608
    %v1370 = vunpack.c.l.b16 %v609
    %v1371 = vunpack.c.h.b16 %v609
    %v1372 = vunpack.c.l.b16 %v610
    %v1373 = vunpack.c.h.b16 %v610
    %v1374 = vunpack.c.l.b16 %v611
    %v1375 = vunpack.c.h.b16 %v611
    %v1376 = vunpack.c.l.b16 %v612
    %v1377 = vunpack.c.h.b16 %v612
    %v1378 = vunpack.c.l.b16 %v613
    %v1379 = vunpack.c.h.b16 %v613
    %v1380 = vunpack.c.l.b16 %v614
    %v1381 = vunpack.c.h.b16 %v614
    %v1382 = vunpack.c.l.b16 %v615
    %v1383 = vunpack.c.h.b16 %v615
    %v1384 = vunpack.c.l.b16 %v616
    %v1385 = vunpack.c.h.b16 %v616
    %v1386 = vunpack.c.l.b16 %v617
    %v1387 = vunpack.c.h.b16 %v617
    %v1388 = vunpack.c.l.b16 %v618
    %v1389 = vunpack.c.h.b16 %v618
    %v1390 = vunpack.c.l.b16 %v619
    %v1391 = vunpack.c.h.b16 %v619
    %v1392 = vunpack.c.l.b16 %v620
    %v1393 = vunpack.c.h.b16 %v620
    %v1394 = vunpack.c.l.b16 %v621
    %v1395 = vunpack.c.h.b16 %v621
    %v1396 = vunpack.c.l.b16 %v622
    %v1397 = vunpack.c.h.b16 %v622
    %v1398 = vunpack.c.l.b16 %v623
    %v1399 = vunpack.c.h.b16 %v623
    %v1400 = vunpack.c.l.b16 %v624
    %v1401 = vunpack.c.h.b16 %v624
    %v1402 = vunpack.c.l.b16 %v625
    %v1403 = vunpack.c.h.b16 %v625
    %v1404 = vunpack.c.l.b16 %v626
    %v1405 = vunpack.c.h.b16 %v626
    %v1406 = vunpack.c.l.b16 %v627
    %v1407 = vunpack.c.h.b16 %v627
    %v1408 = vunpack.c.l.b16 %v628
    %v1409 = vunpack.c.h.b16 %v628
    %v1410 = vunpack.c.l.b16 %v629
    %v1411 = vunpack.c.h.b16 %v629
    %v1412 = vunpack.c.l.b16 %v630
    %v1413 = vunpack.c.h.b16 %v630
    %v1414 = vunpack.c.l.b16 %v631
    %v1415 = vunpack.c.h.b16 %v631
    %v1416 = vunpack.c.l.b16 %v632
    %v1417 = vunpack.c.h.b16 %v632
    %v1418 = vunpack.c.l.b16 %v633
    %v1419 = vunpack.c.h.b16 %v633
    %v1420 = vunpack.c.l.b16 %v634
    %v1421 = vunpack.c.h.b16 %v634
    %v1422 = vunpack.c.l.b16 %v635
    %v1423 = vunpack.c.h.b16 %v635
    %v1424 = vunpack.c.l.b16 %v636
    %v1425 = vunpack.c.h.b16 %v636
    %v1426 = vunpack.c.l.b16 %v637
    %v1427 = vunpack.c.h.b16 %v637
    %v1428 = vunpack.c.l.b16 %v638
    %v1429 = vunpack.c.h.b16 %v638
    %v1430 = vunpack.c.l.b16 %v639
    %v1431 = vunpack.c.h.b16 %v639
    %v1432 = vunpack.c.l.b16 %v640
    %v1433 = vunpack.c.h.b16 %v640
    %v1434 = vunpack.c.l.b16 %v641
    %v1435 = vunpack.c.h.b16 %v641
    %v1436 = vunpack.c.l.b16 %v642
    %v1437 = vunpack.c.h.b16 %v642
    %v1438 = vunpack.c.l.b16 %v643
    %v1439 = vunpack.c.h.b16 %v643
    %v1440 = vunpack.c.l.b16 %v644
    %v1441 = vunpack.c.h.b16 %v644
    %v1442 = vunpack.c.l.b16 %v645
    %v1443 = vunpack.c.h.b16 %v645
    %v1444 = vunpack.c.l.b16 %v646
    %v1445 = vunpack.c.h.b16 %v646
    %v1446 = vunpack.c.l.b16 %v647
    %v1447 = vunpack.c.h.b16 %v647
    %v1448 = vunpack.c.l.b16 %v648
    %v1449 = vunpack.c.h.b16 %v648
    %v1450 = vunpack.c.l.b16 %v649
    %v1451 = vunpack.c.h.b16 %v649
    %v1452 = vunpack.c.l.b16 %v650
    %v1453 = vunpack.c.h.b16 %v650
    %v1454 = vunpack.c.l.b16 %v651
    %v1455 = vunpack.c.h.b16 %v651
    %v1456 = vunpack.c.l.b16 %v652
    %v1457 = vunpack.c.h.b16 %v652
    %v1458 = vunpack.c.l.b16 %v653
    %v1459 = vunpack.c.h.b16 %v653
    %v1460 = vunpack.c.l.b16 %v654
    %v1461 = vunpack.c.h.b16 %v654
    %v1462 = vunpack.c.l.b16 %v655
    %v1463 = vunpack.c.h.b16 %v655
    %v1464 = vunpack.c.l.b16 %v656
    %v1465 = vunpack.c.h.b16 %v656
    %v1466 = vunpack.c.l.b16 %v657
    %v1467 = vunpack.c.h.b16 %v657
    %v1468 = vunpack.c.l.b16 %v658
    %v1469 = vunpack.c.h.b16 %v658
    %v1470 = vunpack.c.l.b16 %v659
    %v1471 = vunpack.c.h.b16 %v659
    %v1472 = vunpack.c.l.b16 %v660
    %v1473 = vunpack.c.h.b16 %v660
    %v1474 = vunpack.c.l.b16 %v661
    %v1475 = vunpack.c.h.b16 %v661
    %v1476 = vunpack.c.l.b16 %v662
    %v1477 = vunpack.c.h.b16 %v662
    %v1478 = vunpack.c.l.b16 %v663
    %v1479 = vunpack.c.h.b16 %v663
    %v1480 = vunpack.c.l.b16 %v664
    %v1481 = vunpack.c.h.b16 %v664
    %v1482 = vunpack.c.l.b16 %v665
    %v1483 = vunpack.c.h.b16 %v665
    %v1484 = vunpack.c.l.b16 %v666
    %v1485 = vunpack.c.h.b16 %v666
    %v1486 = vunpack.c.l.b16 %v667
    %v1487 = vunpack.c.h.b16 %v667
    %v1488 = vunpack.c.l.b16 %v668
    %v1489 = vunpack.c.h.b16 %v668
    %v1490 = vunpack.c.l.b16 %v669
    %v1491 = vunpack.c.h.b16 %v669
    %v1492 = vunpack.c.l.b16 %v670
    %v1493 = vunpack.c.h.b16 %v670
    %v1494 = vunpack.c.l.b16 %v671
    %v1495 = vunpack.c.h.b16 %v671
    %v1496 = vunpack.c.l.b16 %v672
    %v1497 = vunpack.c.h.b16 %v672
    %v1498 = vunpack.c.l.b16 %v673
    %v1499 = vunpack.c.h.b16 %v673
    %v1500 = vunpack.c.l.b16 %v674
    %v1501 = vunpack.c.h.b16 %v674
    %v1502 = vunpack.c.l.b16 %v675
    %v1503 = vunpack.c.h.b16 %v675
    %v1504 = vunpack.c.l.b16 %v676
    %v1505 = vunpack.c.h.b16 %v676
    %v1506 = vunpack.c.l.b16 %v677
    %v1507 = vunpack.c.h.b16 %v677
    %v1508 = vunpack.c.l.b16 %v678
    %v1509 = vunpack.c.h.b16 %v678
    %v1510 = vunpack.c.l.b16 %v679
    %v1511 = vunpack.c.h.b16 %v679
    %v1512 = vunpack.c.l.b16 %v680
    %v1513 = vunpack.c.h.b16 %v680
    %v1514 = vunpack.c.l.b16 %v681
    %v1515 = vunpack.c.h.b16 %v681
    %v1516 = vunpack.c.l.b16 %v682
    %v1517 = vunpack.c.h.b16 %v682
    %v1518 = vunpack.c.l.b16 %v683
    %v1519 = vunpack.c.h.b16 %v683
    %v1520 = vunpack.c.l.b16 %v684
    %v1521 = vunpack.c.h.b16 %v684
    %v1522 = vunpack.c.l.b16 %v685
    %v1523 = vunpack.c.h.b16 %v685
    %v1524 = vunpack.c.l.b16 %v686
    %v1525 = vunpack.c.h.b16 %v686
    %v1526 = vunpack.c.l.b16 %v687
    %v1527 = vunpack.c.h.b16 %v687
    %v1528 = vunpack.c.l.b16 %v688
    %v1529 = vunpack.c.h.b16 %v688
    %v1530 = vunpack.c.l.b16 %v689
    %v1531 = vunpack.c.h.b16 %v689
    %v1532 = vunpack.c.l.b16 %v690
    %v1533 = vunpack.c.h.b16 %v690
    %v1534 = vunpack.c.l.b16 %v691
    %v1535 = vunpack.c.h.b16 %v691
    %v1536 = vunpack.c.l.b16 %v692
    %v1537 = vunpack.c.h.b16 %v692
    %v1538 = vunpack.c.l.b16 %v693
    %v1539 = vunpack.c.h.b16 %v693
    %v1540 = vunpack.c.l.b16 %v694
    %v1541 = vunpack.c.h.b16 %v694
    %v1542 = vunpack.c.l.b16 %v695
    %v1543 = vunpack.c.h.b16 %v695
    %v1544 = vunpack.c.l.b16 %v696
    %v1545 = vunpack.c.h.b16 %v696
    %v1546 = vunpack.c.l.b16 %v697
    %v1547 = vunpack.c.h.b16 %v697
    %v1548 = vunpack.c.l.b16 %v698
    %v1549 = vunpack.c.h.b16 %v698
    %v1550 = vunpack.c.l.b16 %v699
    %v1551 = vunpack.c.h.b16 %v699
    %v1552 = vunpack.c.l.b16 %v700
    %v1553 = vunpack.c.h.b16 %v700
    %v1554 = vunpack.c.l.b16 %v701
    %v1555 = vunpack.c.h.b16 %v701
    %v1556 = vunpack.c.l.b16 %v702
    %v1557 = vunpack.c.h.b16 %v702
    %v1558 = vunpack.c.l.b16 %v703
    %v1559 = vunpack.c.h.b16 %v703
    %v1560 = vunpack.c.l.b16 %v704
    %v1561 = vunpack.c.h.b16 %v704
    %v1562 = vunpack.c.l.b16 %v705
    %v1563 = vunpack.c.h.b16 %v705
    %v1564 = vunpack.c.l.b16 %v706
    %v1565 = vunpack.c.h.b16 %v706
    %v1566 = vunpack.c.l.b16 %v707
    %v1567 = vunpack.c.h.b16 %v707
    %v1568 = vunpack.c.l.b16 %v708
    %v1569 = vunpack.c.h.b16 %v708
    %v1570 = vunpack.c.l.b16 %v709
    %v1571 = vunpack.c.h.b16 %v709
    %v1572 = vunpack.c.l.b16 %v710
    %v1573 = vunpack.c.h.b16 %v710
    %v1574 = vunpack.c.l.b16 %v711
    %v1575 = vunpack.c.h.b16 %v711
    %v1576 = vunpack.c.l.b16 %v712
    %v1577 = vunpack.c.h.b16 %v712
    %v1578 = vunpack.c.l.b16 %v713
    %v1579 = vunpack.c.h.b16 %v713
    %v1580 = vunpack.c.l.b16 %v714
    %v1581 = vunpack.c.h.b16 %v714
    %v1582 = vunpack.c.l.b16 %v715
    %v1583 = vunpack.c.h.b16 %v715
    %v1584 = vunpack.c.l.b16 %v716
    %v1585 = vunpack.c.h.b16 %v716
    %v1586 = vunpack.c.l.b16 %v717
    %v1587 = vunpack.c.h.b16 %v717
    %v1588 = vunpack.c.l.b16 %v718
    %v1589 = vunpack.c.h.b16 %v718
    %v1590 = vunpack.c.l.b16 %v719
    %v1591 = vunpack.c.h.b16 %v719
    %v1592 = vunpack.c.l.b16 %v720
    %v1593 = vunpack.c.h.b16 %v720
    %v1594 = vunpack.c.l.b16 %v721
    %v1595 = vunpack.c.h.b16 %v721
    %v1596 = vunpack.c.l.b16 %v722
    %v1597 = vunpack.c.h.b16 %v722
    %v1598 = vunpack.c.l.b16 %v723
    %v1599 = vunpack.c.h.b16 %v723
    %v1600 = vunpack.c.l.b16 %v724
    %v1601 = vunpack.c.h.b16 %v724
    %v1602 = vunpack.c.l.b16 %v725
    %v1603 = vunpack.c.h.b16 %v725
    %v1604 = vunpack.c.l.b16 %v726
    %v1605 = vunpack.c.h.b16 %v726
    %v1606 = vunpack.c.l.b16 %v727
    %v1607 = vunpack.c.h.b16 %v727
    %v1608 = vunpack.c.l.b16 %v728
    %v1609 = vunpack.c.h.b16 %v728
    %v1610 = vunpack.c.l.b16 %v729
    %v1611 = vunpack.c.h.b16 %v729
    %v1612 = vpack.c.b16 %v1108, %v1100
    %v1613 = vpack.c.b16 %v1109, %v1101
    %v1614 = vpack.c.b16 %v1110, %v1102
    %v1615 = vpack.c.b16 %v1111, %v1103
    %v1616 = vpack.c.b16 %v1112, %v1104
    %v1617 = vpack.c.b16 %v1113, %v1105
    %v1618 = vpack.c.b16 %v1114, %v1106
    %v1619 = vpack.c.b16 %v1115, %v1107
    %v1620 = vpack.c.b16 %v1124, %v1116
    %v1621 = vpack.c.b16 %v1125, %v1117
    %v1622 = vpack.c.b16 %v1126, %v1118
    %v1623 = vpack.c.b16 %v1127, %v1119
    %v1624 = vpack.c.b16 %v1128, %v1120
    %v1625 = vpack.c.b16 %v1129, %v1121
    %v1626 = vpack.c.b16 %v1130, %v1122
    %v1627 = vpack.c.b16 %v1131, %v1123
    %v1628 = vpack.c.b16 %v1140, %v1132
    %v1629 = vpack.c.b16 %v1141, %v1133
    %v1630 = vpack.c.b16 %v1142, %v1134
    %v1631 = vpack.c.b16 %v1143, %v1135
    %v1632 = vpack.c.b16 %v1144, %v1136
    %v1633 = vpack.c.b16 %v1145, %v1137
    %v1634 = vpack.c.b16 %v1146, %v1138
    %v1635 = vpack.c.b16 %v1147, %v1139
    %v1636 = vpack.c.b16 %v1156, %v1148
    %v1637 = vpack.c.b16 %v1157, %v1149
    %v1638 = vpack.c.b16 %v1158, %v1150
    %v1639 = vpack.c.b16 %v1159, %v1151
    %v1640 = vpack.c.b16 %v1160, %v1152
    %v1641 = vpack.c.b16 %v1161, %v1153
    %v1642 = vpack.c.b16 %v1162, %v1154
    %v1643 = vpack.c.b16 %v1163, %v1155
    %v1644 = vpack.c.b16 %v1172, %v1164
    %v1645 = vpack.c.b16 %v1173, %v1165
    %v1646 = vpack.c.b16 %v1174, %v1166
    %v1647 = vpack.c.b16 %v1175, %v1167
    %v1648 = vpack.c.b16 %v1176, %v1168
    %v1649 = vpack.c.b16 %v1177, %v1169
    %v1650 = vpack.c.b16 %v1178, %v1170
    %v1651 = vpack.c.b16 %v1179, %v1171
    %v1652 = vpack.c.b16 %v1188, %v1180
    %v1653 = vpack.c.b16 %v1189, %v1181
    %v1654 = vpack.c.b16 %v1190, %v1182
    %v1655 = vpack.c.b16 %v1191, %v1183
    %v1656 = vpack.c.b16 %v1192, %v1184
    %v1657 = vpack.c.b16 %v1193, %v1185
    %v1658 = vpack.c.b16 %v1194, %v1186
    %v1659 = vpack.c.b16 %v1195, %v1187
    %v1660 = vpack.c.b16 %v1204, %v1196
    %v1661 = vpack.c.b16 %v1205, %v1197
    %v1662 = vpack.c.b16 %v1206, %v1198
    %v1663 = vpack.c.b16 %v1207, %v1199
    %v1664 = vpack.c.b16 %v1208, %v1200
    %v1665 = vpack.c.b16 %v1209, %v1201
    %v1666 = vpack.c.b16 %v1210, %v1202
    %v1667 = vpack.c.b16 %v1211, %v1203
    %v1668 = vpack.c.b16 %v1220, %v1212
    %v1669 = vpack.c.b16 %v1221, %v1213
    %v1670 = vpack.c.b16 %v1222, %v1214
    %v1671 = vpack.c.b16 %v1223, %v1215
    %v1672 = vpack.c.b16 %v1224, %v1216
    %v1673 = vpack.c.b16 %v1225, %v1217
    %v1674 = vpack.c.b16 %v1226, %v1218
    %v1675 = vpack.c.b16 %v1227, %v1219
    %v1676 = vpack.c.b16 %v1236, %v1228
    %v1677 = vpack.c.b16 %v1237, %v1229
    %v1678 = vpack.c.b16 %v1238, %v1230
    %v1679 = vpack.c.b16 %v1239, %v1231
    %v1680 = vpack.c.b16 %v1240, %v1232
    %v1681 = vpack.c.b16 %v1241, %v1233
    %v1682 = vpack.c.b16 %v1242, %v1234
    %v1683 = vpack.c.b16 %v1243, %v1235
    %v1684 = vpack.c.b16 %v1252, %v1244
    %v1685 = vpack.c.b16 %v1253, %v1245
    %v1686 = vpack.c.b16 %v1254, %v1246
    %v1687 = vpack.c.b16 %v1255, %v1247
    %v1688 = vpack.c.b16 %v1256, %v1248
    %v1689 = vpack.c.b16 %v1257, %v1249
    %v1690 = vpack.c.b16 %v1258, %v1250
    %v1691 = vpack.c.b16 %v1259, %v1251
    %v1692 = vpack.c.b16 %v1268, %v1260
    %v1693 = vpack.c.b16 %v1269, %v1261
    %v1694 = vpack.c.b16 %v1270, %v1262
    %v1695 = vpack.c.b16 %v1271, %v1263
    %v1696 = vpack.c.b16 %v1272, %v1264
    %v1697 = vpack.c.b16 %v1273, %v1265
    %v1698 = vpack.c.b16 %v1274, %v1266
    %v1699 = vpack.c.b16 %v1275, %v1267
    %v1700 = vpack.c.b16 %v1284, %v1276
    %v1701 = vpack.c.b16 %v1285, %v1277
    %v1702 = vpack.c.b16 %v1286, %v1278
    %v1703 = vpack.c.b16 %v1287, %v1279
    %v1704 = vpack.c.b16 %v1288, %v1280
    %v1705 = vpack.c.b16 %v1289, %v1281
    %v1706 = vpack.c.b16 %v1290, %v1282
    %v1707 = vpack.c.b16 %v1291, %v1283
    %v1708 = vpack.c.b16 %v1300, %v1292
    %v1709 = vpack.c.b16 %v1301, %v1293
    %v1710 = vpack.c.b16 %v1302, %v1294
    %v1711 = vpack.c.b16 %v1303, %v1295
    %v1712 = vpack.c.b16 %v1304, %v1296
    %v1713 = vpack.c.b16 %v1305, %v1297
    %v1714 = vpack.c.b16 %v1306, %v1298
    %v1715 = vpack.c.b16 %v1307, %v1299
    %v1716 = vpack.c.b16 %v1316, %v1308
    %v1717 = vpack.c.b16 %v1317, %v1309
    %v1718 = vpack.c.b16 %v1318, %v1310
    %v1719 = vpack.c.b16 %v1319, %v1311
    %v1720 = vpack.c.b16 %v1320, %v1312
    %v1721 = vpack.c.b16 %v1321, %v1313
    %v1722 = vpack.c.b16 %v1322, %v1314
    %v1723 = vpack.c.b16 %v1323, %v1315
    %v1724 = vpack.c.b16 %v1332, %v1324
    %v1725 = vpack.c.b16 %v1333, %v1325
    %v1726 = vpack.c.b16 %v1334, %v1326
    %v1727 = vpack.c.b16 %v1335, %v1327
    %v1728 = vpack.c.b16 %v1336, %v1328
    %v1729 = vpack.c.b16 %v1337, %v1329
    %v1730 = vpack.c.b16 %v1338, %v1330
    %v1731 = vpack.c.b16 %v1339, %v1331
    %v1732 = vpack.c.b16 %v1348, %v1340
    %v1733 = vpack.c.b16 %v1349, %v1341
    %v1734 = vpack.c.b16 %v1350, %v1342
    %v1735 = vpack.c.b16 %v1351, %v1343
    %v1736 = vpack.c.b16 %v1352, %v1344
    %v1737 = vpack.c.b16 %v1353, %v1345
    %v1738 = vpack.c.b16 %v1354, %v1346
    %v1739 = vpack.c.b16 %v1355, %v1347
    %v1740 = vpack.c.b16 %v1364, %v1356
    %v1741 = vpack.c.b16 %v1365, %v1357
    %v1742 = vpack.c.b16 %v1366, %v1358
    %v1743 = vpack.c.b16 %v1367, %v1359
    %v1744 = vpack.c.b16 %v1368, %v1360
    %v1745 = vpack.c.b16 %v1369, %v1361
    %v1746 = vpack.c.b16 %v1370, %v1362
    %v1747 = vpack.c.b16 %v1371, %v1363
    %v1748 = vpack.c.b16 %v1380, %v1372
    %v1749 = vpack.c.b16 %v1381, %v1373
    %v1750 = vpack.c.b16 %v1382, %v1374
    %v1751 = vpack.c.b16 %v1383, %v1375
    %v1752 = vpack.c.b16 %v1384, %v1376
    %v1753 = vpack.c.b16 %v1385, %v1377
    %v1754 = vpack.c.b16 %v1386, %v1378
    %v1755 = vpack.c.b16 %v1387, %v1379
    %v1756 = vpack.c.b16 %v1396, %v1388
    %v1757 = vpack.c.b16 %v1397, %v1389
    %v1758 = vpack.c.b16 %v1398, %v1390
    %v1759 = vpack.c.b16 %v1399, %v1391
    %v1760 = vpack.c.b16 %v1400, %v1392
    %v1761 = vpack.c.b16 %v1401, %v1393
    %v1762 = vpack.c.b16 %v1402, %v1394
    %v1763 = vpack.c.b16 %v1403, %v1395
    %v1764 = vpack.c.b16 %v1412, %v1404
    %v1765 = vpack.c.b16 %v1413, %v1405
    %v1766 = vpack.c.b16 %v1414, %v1406
    %v1767 = vpack.c.b16 %v1415, %v1407
    %v1768 = vpack.c.b16 %v1416, %v1408
    %v1769 = vpack.c.b16 %v1417, %v1409
    %v1770 = vpack.c.b16 %v1418, %v1410
    %v1771 = vpack.c.b16 %v1419, %v1411
    %v1772 = vpack.c.b16 %v1428, %v1420
    %v1773 = vpack.c.b16 %v1429, %v1421
    %v1774 = vpack.c.b16 %v1430, %v1422
    %v1775 = vpack.c.b16 %v1431, %v1423
    %v1776 = vpack.c.b16 %v1432, %v1424
    %v1777 = vpack.c.b16 %v1433, %v1425
    %v1778 = vpack.c.b16 %v1434, %v1426
    %v1779 = vpack.c.b16 %v1435, %v1427
    %v1780 = vpack.c.b16 %v1444, %v1436
    %v1781 = vpack.c.b16 %v1445, %v1437
    %v1782 = vpack.c.b16 %v1446, %v1438
    %v1783 = vpack.c.b16 %v1447, %v1439
    %v1784 = vpack.c.b16 %v1448, %v1440
    %v1785 = vpack.c.b16 %v1449, %v1441
    %v1786 = vpack.c.b16 %v1450, %v1442
    %v1787 = vpack.c.b16 %v1451, %v1443
    %v1788 = vpack.c.b16 %v1460, %v1452
    %v1789 = vpack.c.b16 %v1461, %v1453
    %v1790 = vpack.c.b16 %v1462, %v1454
    %v1791 = vpack.c.b16 %v1463, %v1455
    %v1792 = vpack.c.b16 %v1464, %v1456
    %v1793 = vpack.c.b16 %v1465, %v1457
    %v1794 = vpack.c.b16 %v1466, %v1458
    %v1795 = vpack.c.b16 %v1467, %v1459
    %v1796 = vpack.c.b16 %v1476, %v1468
    %v1797 = vpack.c.b16 %v1477, %v1469
    %v1798 = vpack.c.b16 %v1478, %v1470
    %v1799 = vpack.c.b16 %v1479, %v1471
    %v1800 = vpack.c.b16 %v1480, %v1472
    %v1801 = vpack.c.b16 %v1481, %v1473
    %v1802 = vpack.c.b16 %v1482, %v1474
    %v1803 = vpack.c.b16 %v1483, %v1475
    %v1804 = vpack.c.b16 %v1492, %v1484
    %v1805 = vpack.c.b16 %v1493, %v1485
    %v1806 = vpack.c.b16 %v1494, %v1486
    %v1807 = vpack.c.b16 %v1495, %v1487
    %v1808 = vpack.c.b16 %v1496, %v1488
    %v1809 = vpack.c.b16 %v1497, %v1489
    %v1810 = vpack.c.b16 %v1498, %v1490
    %v1811 = vpack.c.b16 %v1499, %v1491
    %v1812 = vpack.c.b16 %v1508, %v1500
    %v1813 = vpack.c.b16 %v1509, %v1501
    %v1814 = vpack.c.b16 %v1510, %v1502
    %v1815 = vpack.c.b16 %v1511, %v1503
    %v1816 = vpack.c.b16 %v1512, %v1504
    %v1817 = vpack.c.b16 %v1513, %v1505
    %v1818 = vpack.c.b16 %v1514, %v1506
    %v1819 = vpack.c.b16 %v1515, %v1507
    %v1820 = vpack.c.b16 %v1524, %v1516
    %v1821 = vpack.c.b16 %v1525, %v1517
    %v1822 = vpack.c.b16 %v1526, %v1518
    %v1823 = vpack.c.b16 %v1527, %v1519
    %v1824 = vpack.c.b16 %v1528, %v1520
    %v1825 = vpack.c.b16 %v1529, %v1521
    %v1826 = vpack.c.b16 %v1530, %v1522
    %v1827 = vpack.c.b16 %v1531, %v1523
    %v1828 = vpack.c.b16 %v1540, %v1532
    %v1829 = vpack.c.b16 %v1541, %v1533
    %v1830 = vpack.c.b16 %v1542, %v1534
    %v1831 = vpack.c.b16 %v1543, %v1535
    %v1832 = vpack.c.b16 %v1544, %v1536
    %v1833 = vpack.c.b16 %v1545, %v1537
    %v1834 = vpack.c.b16 %v1546, %v1538
    %v1835 = vpack.c.b16 %v1547, %v1539
    %v1836 = vpack.c.b16 %v1556, %v1548
    %v1837 = vpack.c.b16 %v1557, %v1549
    %v1838 = vpack.c.b16 %v1558, %v1550
    %v1839 = vpack.c.b16 %v1559, %v1551
    %v1840 = vpack.c.b16 %v1560, %v1552
    %v1841 = vpack.c.b16 %v1561, %v1553
    %v1842 = vpack.c.b16 %v1562, %v1554
    %v1843 = vpack.c.b16 %v1563, %v1555
    %v1844 = vpack.c.b16 %v1572, %v1564
    %v1845 = vpack.c.b16 %v1573, %v1565
    %v1846 = vpack.c.b16 %v1574, %v1566
    %v1847 = vpack.c.b16 %v1575, %v1567
    %v1848 = vpack.c.b16 %v1576, %v1568
    %v1849 = vpack.c.b16 %v1577, %v1569
    %v1850 = vpack.c.b16 %v1578, %v1570
    %v1851 = vpack.c.b16 %v1579, %v1571
    %v1852 = vpack.c.b16 %v1588, %v1580
    %v1853 = vpack.c.b16 %v1589, %v1581
    %v1854 = vpack.c.b16 %v1590, %v1582
    %v1855 = vpack.c.b16 %v1591, %v1583
    %v1856 = vpack.c.b16 %v1592, %v1584
    %v1857 = vpack.c.b16 %v1593, %v1585
    %v1858 = vpack.c.b16 %v1594, %v1586
    %v1859 = vpack.c.b16 %v1595, %v1587
    %v1860 = vpack.c.b16 %v1604, %v1596
    %v1861 = vpack.c.b16 %v1605, %v1597
    %v1862 = vpack.c.b16 %v1606, %v1598
    %v1863 = vpack.c.b16 %v1607, %v1599
    %v1864 = vpack.c.b16 %v1608, %v1600
    %v1865 = vpack.c.b16 %v1609, %v1601
    %v1866 = vpack.c.b16 %v1610, %v1602
    %v1867 = vpack.c.b16 %v1611, %v1603
    %2124 = vmatprep.subr.bf16.mxu0 %v1613
    %2125 = vmatpush1.bf16.msra.mxu0 %v1612
    %2126 = vmatprep.subr.bf16.mxu0 %v1621
    %2127 = vmatpush1.bf16.msra.mxu0 %v1620
    %2128 = vmatprep.subr.bf16.mxu0 %v1629
    %2129 = vmatpush1.bf16.msra.mxu0 %v1628
    %2130 = vmatprep.subr.bf16.mxu0 %v1637
    %2131 = vmatpush1.bf16.msra.mxu0 %v1636
    %2132 = vmatprep.subr.bf16.mxu0 %v1645
    %2133 = vmatpush1.bf16.msra.mxu0 %v1644
    %2134 = vmatprep.subr.bf16.mxu0 %v1653
    %2135 = vmatpush1.bf16.msra.mxu0 %v1652
    %2136 = vmatprep.subr.bf16.mxu0 %v1661
    %2137 = vmatpush1.bf16.msra.mxu0 %v1660
    %2138 = vmatprep.subr.bf16.mxu0 %v1669
    %2139 = vmatpush1.bf16.msra.mxu0 %v1668
    %2140 = vmatprep.subr.bf16.mxu0 %v1677
    %2141 = vmatpush1.bf16.msra.mxu0 %v1676
    %2142 = vmatprep.subr.bf16.mxu0 %v1685
    %2143 = vmatpush1.bf16.msra.mxu0 %v1684
    %2144 = vmatprep.subr.bf16.mxu0 %v1693
    %2145 = vmatpush1.bf16.msra.mxu0 %v1692
    %2146 = vmatprep.subr.bf16.mxu0 %v1701
    %2147 = vmatpush1.bf16.msra.mxu0 %v1700
    %2148 = vmatprep.subr.bf16.mxu0 %v1709
    %2149 = vmatpush1.bf16.msra.mxu0 %v1708
    %2150 = vmatprep.subr.bf16.mxu0 %v1717
    %2151 = vmatpush1.bf16.msra.mxu0 %v1716
    %2152 = vmatprep.subr.bf16.mxu0 %v1725
    %2153 = vmatpush1.bf16.msra.mxu0 %v1724
    %2154 = vmatprep.subr.bf16.mxu0 %v1733
    %2155 = vmatpush1.bf16.msra.mxu0 %v1732
    %2156 = vmatprep.mubr.bf16.mxu0 %v838
    %2157 = vmatmul.mubr.bf16.gmra.mrb[0].mxu0 %v836
    %v2158 = vpop.f32.mrb[0].mxu0
    %v2159 = vadd.f32 %v735, %v2158
    %v2160 = vpop.f32.mrb[0].mxu0
    %v2161 = vadd.f32 %v739, %v2160
    %v2162 = vpop.f32.mrb[0].mxu0
    %v2163 = vadd.f32 %v735, %v2162
    %v2164 = vpop.f32.mrb[0].mxu0
    %v2165 = vadd.f32 %v739, %v2164
    %2166 = vdwg.mxu0
    %2167 = vmatprep.subr.bf16.mxu0 %v1741
    %2168 = vmatpush1.bf16.msra.mxu0 %v1740
    %2169 = vmatprep.subr.bf16.mxu0 %v1749
    %2170 = vmatpush1.bf16.msra.mxu0 %v1748
    %2171 = vmatprep.subr.bf16.mxu0 %v1757
    %2172 = vmatpush1.bf16.msra.mxu0 %v1756
    %2173 = vmatprep.subr.bf16.mxu0 %v1765
    %2174 = vmatpush1.bf16.msra.mxu0 %v1764
    %2175 = vmatprep.subr.bf16.mxu0 %v1773
    %2176 = vmatpush1.bf16.msra.mxu0 %v1772
    %2177 = vmatprep.subr.bf16.mxu0 %v1781
    %2178 = vmatpush1.bf16.msra.mxu0 %v1780
    %2179 = vmatprep.subr.bf16.mxu0 %v1789
    %2180 = vmatpush1.bf16.msra.mxu0 %v1788
    %2181 = vmatprep.subr.bf16.mxu0 %v1797
    %2182 = vmatpush1.bf16.msra.mxu0 %v1796
    %2183 = vmatprep.subr.bf16.mxu0 %v1805
    %2184 = vmatpush1.bf16.msra.mxu0 %v1804
    %2185 = vmatprep.subr.bf16.mxu0 %v1813
    %2186 = vmatpush1.bf16.msra.mxu0 %v1812
    %2187 = vmatprep.subr.bf16.mxu0 %v1821
    %2188 = vmatpush1.bf16.msra.mxu0 %v1820
    %2189 = vmatprep.subr.bf16.mxu0 %v1829
    %2190 = vmatpush1.bf16.msra.mxu0 %v1828
    %2191 = vmatprep.subr.bf16.mxu0 %v1837
    %2192 = vmatpush1.bf16.msra.mxu0 %v1836
    %2193 = vmatprep.subr.bf16.mxu0 %v1845
    %2194 = vmatpush1.bf16.msra.mxu0 %v1844
    %2195 = vmatprep.subr.bf16.mxu0 %v1853
    %2196 = vmatpush1.bf16.msra.mxu0 %v1852
    %2197 = vmatprep.subr.bf16.mxu0 %v1861
    %2198 = vmatpush1.bf16.msra.mxu0 %v1860
    %2199 = vmatprep.mubr.bf16.mxu0 %v839
    %2200 = vmatmul.mubr.bf16.gmra.mrb[0].mxu0 %v837
    %v2201 = vpop.f32.mrb[0].mxu0
    %v2202 = vadd.f32 %v2159, %v2201
    %v2203 = vpop.f32.mrb[0].mxu0
    %v2204 = vadd.f32 %v2161, %v2203
    %v2205 = vpop.f32.mrb[0].mxu0
    %v2206 = vadd.f32 %v2163, %v2205
    %v2207 = vpop.f32.mrb[0].mxu0
    %v2208 = vadd.f32 %v2165, %v2207
    %2209 = vdwg.mxu0
    %2210 = vmatprep.subr.bf16.mxu0 %v1615
    %2211 = vmatpush1.bf16.msra.mxu0 %v1614
    %2212 = vmatprep.subr.bf16.mxu0 %v1623
    %2213 = vmatpush1.bf16.msra.mxu0 %v1622
    %2214 = vmatprep.subr.bf16.mxu0 %v1631
    %2215 = vmatpush1.bf16.msra.mxu0 %v1630
    %2216 = vmatprep.subr.bf16.mxu0 %v1639
    %2217 = vmatpush1.bf16.msra.mxu0 %v1638
    %2218 = vmatprep.subr.bf16.mxu0 %v1647
    %2219 = vmatpush1.bf16.msra.mxu0 %v1646
    %2220 = vmatprep.subr.bf16.mxu0 %v1655
    %2221 = vmatpush1.bf16.msra.mxu0 %v1654
    %2222 = vmatprep.subr.bf16.mxu0 %v1663
    %2223 = vmatpush1.bf16.msra.mxu0 %v1662
    %2224 = vmatprep.subr.bf16.mxu0 %v1671
    %2225 = vmatpush1.bf16.msra.mxu0 %v1670
    %2226 = vmatprep.subr.bf16.mxu0 %v1679
    %2227 = vmatpush1.bf16.msra.mxu0 %v1678
    %2228 = vmatprep.subr.bf16.mxu0 %v1687
    %2229 = vmatpush1.bf16.msra.mxu0 %v1686
    %2230 = vmatprep.subr.bf16.mxu0 %v1695
    %2231 = vmatpush1.bf16.msra.mxu0 %v1694
    %2232 = vmatprep.subr.bf16.mxu0 %v1703
    %2233 = vmatpush1.bf16.msra.mxu0 %v1702
    %2234 = vmatprep.subr.bf16.mxu0 %v1711
    %2235 = vmatpush1.bf16.msra.mxu0 %v1710
    %2236 = vmatprep.subr.bf16.mxu0 %v1719
    %2237 = vmatpush1.bf16.msra.mxu0 %v1718
    %2238 = vmatprep.subr.bf16.mxu0 %v1727
    %2239 = vmatpush1.bf16.msra.mxu0 %v1726
    %2240 = vmatprep.subr.bf16.mxu0 %v1735
    %2241 = vmatpush1.bf16.msra.mxu0 %v1734
    %2242 = vmatprep.mubr.bf16.mxu0 %v838
    %2243 = vmatmul.mubr.bf16.gmra.mrb[0].mxu0 %v836
    %v2244 = vpop.f32.mrb[0].mxu0
    %v2245 = vadd.f32 %v743, %v2244
    %v2246 = vpop.f32.mrb[0].mxu0
    %v2247 = vadd.f32 %v747, %v2246
    %v2248 = vpop.f32.mrb[0].mxu0
    %v2249 = vadd.f32 %v743, %v2248
    %v2250 = vpop.f32.mrb[0].mxu0
    %v2251 = vadd.f32 %v747, %v2250
    %2252 = vdwg.mxu0
    %2253 = vmatprep.subr.bf16.mxu0 %v1743
    %2254 = vmatpush1.bf16.msra.mxu0 %v1742
    %2255 = vmatprep.subr.bf16.mxu0 %v1751
    %2256 = vmatpush1.bf16.msra.mxu0 %v1750
    %2257 = vmatprep.subr.bf16.mxu0 %v1759
    %2258 = vmatpush1.bf16.msra.mxu0 %v1758
    %2259 = vmatprep.subr.bf16.mxu0 %v1767
    %2260 = vmatpush1.bf16.msra.mxu0 %v1766
    %2261 = vmatprep.subr.bf16.mxu0 %v1775
    %2262 = vmatpush1.bf16.msra.mxu0 %v1774
    %2263 = vmatprep.subr.bf16.mxu0 %v1783
    %2264 = vmatpush1.bf16.msra.mxu0 %v1782
    %2265 = vmatprep.subr.bf16.mxu0 %v1791
    %2266 = vmatpush1.bf16.msra.mxu0 %v1790
    %2267 = vmatprep.subr.bf16.mxu0 %v1799
    %2268 = vmatpush1.bf16.msra.mxu0 %v1798
    %2269 = vmatprep.subr.bf16.mxu0 %v1807
    %2270 = vmatpush1.bf16.msra.mxu0 %v1806
    %2271 = vmatprep.subr.bf16.mxu0 %v1815
    %2272 = vmatpush1.bf16.msra.mxu0 %v1814
    %2273 = vmatprep.subr.bf16.mxu0 %v1823
    %2274 = vmatpush1.bf16.msra.mxu0 %v1822
    %2275 = vmatprep.subr.bf16.mxu0 %v1831
    %2276 = vmatpush1.bf16.msra.mxu0 %v1830
    %2277 = vmatprep.subr.bf16.mxu0 %v1839
    %2278 = vmatpush1.bf16.msra.mxu0 %v1838
    %2279 = vmatprep.subr.bf16.mxu0 %v1847
    %2280 = vmatpush1.bf16.msra.mxu0 %v1846
    %2281 = vmatprep.subr.bf16.mxu0 %v1855
    %2282 = vmatpush1.bf16.msra.mxu0 %v1854
    %2283 = vmatprep.subr.bf16.mxu0 %v1863
    %2284 = vmatpush1.bf16.msra.mxu0 %v1862
    %2285 = vmatprep.mubr.bf16.mxu0 %v839
    %2286 = vmatmul.mubr.bf16.gmra.mrb[0].mxu0 %v837
    %v2287 = vpop.f32.mrb[0].mxu0
    %v2288 = vadd.f32 %v2245, %v2287
    %v2289 = vpop.f32.mrb[0].mxu0
    %v2290 = vadd.f32 %v2247, %v2289
    %v2291 = vpop.f32.mrb[0].mxu0
    %v2292 = vadd.f32 %v2249, %v2291
    %v2293 = vpop.f32.mrb[0].mxu0
    %v2294 = vadd.f32 %v2251, %v2293
    %2295 = vdwg.mxu0
    %2296 = vmatprep.subr.bf16.mxu0 %v1617
    %2297 = vmatpush1.bf16.msra.mxu0 %v1616
    %2298 = vmatprep.subr.bf16.mxu0 %v1625
    %2299 = vmatpush1.bf16.msra.mxu0 %v1624
    %2300 = vmatprep.subr.bf16.mxu0 %v1633
    %2301 = vmatpush1.bf16.msra.mxu0 %v1632
    %2302 = vmatprep.subr.bf16.mxu0 %v1641
    %2303 = vmatpush1.bf16.msra.mxu0 %v1640
    %2304 = vmatprep.subr.bf16.mxu0 %v1649
    %2305 = vmatpush1.bf16.msra.mxu0 %v1648
    %2306 = vmatprep.subr.bf16.mxu0 %v1657
    %2307 = vmatpush1.bf16.msra.mxu0 %v1656
    %2308 = vmatprep.subr.bf16.mxu0 %v1665
    %2309 = vmatpush1.bf16.msra.mxu0 %v1664
    %2310 = vmatprep.subr.bf16.mxu0 %v1673
    %2311 = vmatpush1.bf16.msra.mxu0 %v1672
    %2312 = vmatprep.subr.bf16.mxu0 %v1681
    %2313 = vmatpush1.bf16.msra.mxu0 %v1680
    %2314 = vmatprep.subr.bf16.mxu0 %v1689
    %2315 = vmatpush1.bf16.msra.mxu0 %v1688
    %2316 = vmatprep.subr.bf16.mxu0 %v1697
    %2317 = vmatpush1.bf16.msra.mxu0 %v1696
    %2318 = vmatprep.subr.bf16.mxu0 %v1705
    %2319 = vmatpush1.bf16.msra.mxu0 %v1704
    %2320 = vmatprep.subr.bf16.mxu0 %v1713
    %2321 = vmatpush1.bf16.msra.mxu0 %v1712
    %2322 = vmatprep.subr.bf16.mxu0 %v1721
    %2323 = vmatpush1.bf16.msra.mxu0 %v1720
    %2324 = vmatprep.subr.bf16.mxu0 %v1729
    %2325 = vmatpush1.bf16.msra.mxu0 %v1728
    %2326 = vmatprep.subr.bf16.mxu0 %v1737
    %2327 = vmatpush1.bf16.msra.mxu0 %v1736
    %2328 = vmatprep.mubr.bf16.mxu0 %v838
    %2329 = vmatmul.mubr.bf16.gmra.mrb[0].mxu0 %v836
    %v2330 = vpop.f32.mrb[0].mxu0
    %v2331 = vadd.f32 %v751, %v2330
    %v2332 = vpop.f32.mrb[0].mxu0
    %v2333 = vadd.f32 %v755, %v2332
    %v2334 = vpop.f32.mrb[0].mxu0
    %v2335 = vadd.f32 %v751, %v2334
    %v2336 = vpop.f32.mrb[0].mxu0
    %v2337 = vadd.f32 %v755, %v2336
    %2338 = vdwg.mxu0
    %2339 = vmatprep.subr.bf16.mxu0 %v1745
    %2340 = vmatpush1.bf16.msra.mxu0 %v1744
    %2341 = vmatprep.subr.bf16.mxu0 %v1753
    %2342 = vmatpush1.bf16.msra.mxu0 %v1752
    %2343 = vmatprep.subr.bf16.mxu0 %v1761
    %2344 = vmatpush1.bf16.msra.mxu0 %v1760
    %2345 = vmatprep.subr.bf16.mxu0 %v1769
    %2346 = vmatpush1.bf16.msra.mxu0 %v1768
    %2347 = vmatprep.subr.bf16.mxu0 %v1777
    %2348 = vmatpush1.bf16.msra.mxu0 %v1776
    %2349 = vmatprep.subr.bf16.mxu0 %v1785
    %2350 = vmatpush1.bf16.msra.mxu0 %v1784
    %2351 = vmatprep.subr.bf16.mxu0 %v1793
    %2352 = vmatpush1.bf16.msra.mxu0 %v1792
    %2353 = vmatprep.subr.bf16.mxu0 %v1801
    %2354 = vmatpush1.bf16.msra.mxu0 %v1800
    %2355 = vmatprep.subr.bf16.mxu0 %v1809
    %2356 = vmatpush1.bf16.msra.mxu0 %v1808
    %2357 = vmatprep.subr.bf16.mxu0 %v1817
    %2358 = vmatpush1.bf16.msra.mxu0 %v1816
    %2359 = vmatprep.subr.bf16.mxu0 %v1825
    %2360 = vmatpush1.bf16.msra.mxu0 %v1824
    %2361 = vmatprep.subr.bf16.mxu0 %v1833
    %2362 = vmatpush1.bf16.msra.mxu0 %v1832
    %2363 = vmatprep.subr.bf16.mxu0 %v1841
    %2364 = vmatpush1.bf16.msra.mxu0 %v1840
    %2365 = vmatprep.subr.bf16.mxu0 %v1849
    %2366 = vmatpush1.bf16.msra.mxu0 %v1848
    %2367 = vmatprep.subr.bf16.mxu0 %v1857
    %2368 = vmatpush1.bf16.msra.mxu0 %v1856
    %2369 = vmatprep.subr.bf16.mxu0 %v1865
    %2370 = vmatpush1.bf16.msra.mxu0 %v1864
    %2371 = vmatprep.mubr.bf16.mxu0 %v839
    %2372 = vmatmul.mubr.bf16.gmra.mrb[0].mxu0 %v837
    %v2373 = vpop.f32.mrb[0].mxu0
    %v2374 = vadd.f32 %v2331, %v2373
    %v2375 = vpop.f32.mrb[0].mxu0
    %v2376 = vadd.f32 %v2333, %v2375
    %v2377 = vpop.f32.mrb[0].mxu0
    %v2378 = vadd.f32 %v2335, %v2377
    %v2379 = vpop.f32.mrb[0].mxu0
    %v2380 = vadd.f32 %v2337, %v2379
    %2381 = vdwg.mxu0
    %2382 = vmatprep.subr.bf16.mxu0 %v1619
    %2383 = vmatpush1.bf16.msra.mxu0 %v1618
    %2384 = vmatprep.subr.bf16.mxu0 %v1627
    %2385 = vmatpush1.bf16.msra.mxu0 %v1626
    %2386 = vmatprep.subr.bf16.mxu0 %v1635
    %2387 = vmatpush1.bf16.msra.mxu0 %v1634
    %2388 = vmatprep.subr.bf16.mxu0 %v1643
    %2389 = vmatpush1.bf16.msra.mxu0 %v1642
    %2390 = vmatprep.subr.bf16.mxu0 %v1651
    %2391 = vmatpush1.bf16.msra.mxu0 %v1650
    %2392 = vmatprep.subr.bf16.mxu0 %v1659
    %2393 = vmatpush1.bf16.msra.mxu0 %v1658
    %2394 = vmatprep.subr.bf16.mxu0 %v1667
    %2395 = vmatpush1.bf16.msra.mxu0 %v1666
    %2396 = vmatprep.subr.bf16.mxu0 %v1675
    %2397 = vmatpush1.bf16.msra.mxu0 %v1674
    %2398 = vmatprep.subr.bf16.mxu0 %v1683
    %2399 = vmatpush1.bf16.msra.mxu0 %v1682
    %2400 = vmatprep.subr.bf16.mxu0 %v1691
    %2401 = vmatpush1.bf16.msra.mxu0 %v1690
    %2402 = vmatprep.subr.bf16.mxu0 %v1699
    %2403 = vmatpush1.bf16.msra.mxu0 %v1698
    %2404 = vmatprep.subr.bf16.mxu0 %v1707
    %2405 = vmatpush1.bf16.msra.mxu0 %v1706
    %2406 = vmatprep.subr.bf16.mxu0 %v1715
    %2407 = vmatpush1.bf16.msra.mxu0 %v1714
    %2408 = vmatprep.subr.bf16.mxu0 %v1723
    %2409 = vmatpush1.bf16.msra.mxu0 %v1722
    %2410 = vmatprep.subr.bf16.mxu0 %v1731
    %2411 = vmatpush1.bf16.msra.mxu0 %v1730
    %2412 = vmatprep.subr.bf16.mxu0 %v1739
    %2413 = vmatpush1.bf16.msra.mxu0 %v1738
    %2414 = vmatprep.mubr.bf16.mxu0 %v838
    %2415 = vmatmul.mubr.bf16.gmra.mrb[0].mxu0 %v836
    %v2416 = vpop.f32.mrb[0].mxu0
    %v2417 = vadd.f32 %v759, %v2416
    %v2418 = vpop.f32.mrb[0].mxu0
    %v2419 = vadd.f32 %v763, %v2418
    %v2420 = vpop.f32.mrb[0].mxu0
    %v2421 = vadd.f32 %v759, %v2420
    %v2422 = vpop.f32.mrb[0].mxu0
    %v2423 = vadd.f32 %v763, %v2422
    %2424 = vdwg.mxu0
    %2425 = vmatprep.subr.bf16.mxu0 %v1747
    %2426 = vmatpush1.bf16.msra.mxu0 %v1746
    %2427 = vmatprep.subr.bf16.mxu0 %v1755
    %2428 = vmatpush1.bf16.msra.mxu0 %v1754
    %2429 = vmatprep.subr.bf16.mxu0 %v1763
    %2430 = vmatpush1.bf16.msra.mxu0 %v1762
    %2431 = vmatprep.subr.bf16.mxu0 %v1771
    %2432 = vmatpush1.bf16.msra.mxu0 %v1770
    %2433 = vmatprep.subr.bf16.mxu0 %v1779
    %2434 = vmatpush1.bf16.msra.mxu0 %v1778
    %2435 = vmatprep.subr.bf16.mxu0 %v1787
    %2436 = vmatpush1.bf16.msra.mxu0 %v1786
    %2437 = vmatprep.subr.bf16.mxu0 %v1795
    %2438 = vmatpush1.bf16.msra.mxu0 %v1794
    %2439 = vmatprep.subr.bf16.mxu0 %v1803
    %2440 = vmatpush1.bf16.msra.mxu0 %v1802
    %2441 = vmatprep.subr.bf16.mxu0 %v1811
    %2442 = vmatpush1.bf16.msra.mxu0 %v1810
    %2443 = vmatprep.subr.bf16.mxu0 %v1819
    %2444 = vmatpush1.bf16.msra.mxu0 %v1818
    %2445 = vmatprep.subr.bf16.mxu0 %v1827
    %2446 = vmatpush1.bf16.msra.mxu0 %v1826
    %2447 = vmatprep.subr.bf16.mxu0 %v1835
    %2448 = vmatpush1.bf16.msra.mxu0 %v1834
    %2449 = vmatprep.subr.bf16.mxu0 %v1843
    %2450 = vmatpush1.bf16.msra.mxu0 %v1842
    %2451 = vmatprep.subr.bf16.mxu0 %v1851
    %2452 = vmatpush1.bf16.msra.mxu0 %v1850
    %2453 = vmatprep.subr.bf16.mxu0 %v1859
    %2454 = vmatpush1.bf16.msra.mxu0 %v1858
    %2455 = vmatprep.subr.bf16.mxu0 %v1867
    %2456 = vmatpush1.bf16.msra.mxu0 %v1866
    %2457 = vmatprep.mubr.bf16.mxu0 %v839
    %2458 = vmatmul.mubr.bf16.gmra.mrb[0].mxu0 %v837
    %v2459 = vpop.f32.mrb[0].mxu0
    %v2460 = vadd.f32 %v2417, %v2459
    %v2461 = vpop.f32.mrb[0].mxu0
    %v2462 = vadd.f32 %v2419, %v2461
    %v2463 = vpop.f32.mrb[0].mxu0
    %v2464 = vadd.f32 %v2421, %v2463
    %v2465 = vpop.f32.mrb[0].mxu0
    %v2466 = vadd.f32 %v2423, %v2465
    %2467 = vdwg.mxu0
    %v2484 = vcombine.low %v2202, %v2204
    %v2485 = vcombine.high %v2202, %v2204
    %v2486 = vcombine.low %v2288, %v2290
    %v2487 = vcombine.high %v2288, %v2290
    %v2489 = vunpack.c.l.s4 1983009808
    %v2490 = vunpack.c.0.s8 %v2489
    %v2491 = vlaneseq
    %v2492 = vshrl.u32 %v2491, 7
    %v2493 = vsub.s32 %v2490, %v2492
    %v2494 = vrot.slane %v2484, %v2493
    %v2496 = vunpack.c.l.s4 1983009808
    %v2497 = vunpack.c.0.s8 %v2496
    %v2498 = vlaneseq
    %v2499 = vshrl.u32 %v2498, 7
    %v2500 = vsub.s32 %v2497, %v2499
    %v2501 = vrot.slane %v2485, %v2500
    %v2503 = vunpack.c.l.s4 1983009808
    %v2504 = vunpack.c.0.s8 %v2503
    %v2505 = vlaneseq
    %v2506 = vshrl.u32 %v2505, 7
    %v2507 = vsub.s32 %v2504, %v2506
    %v2508 = vrot.slane %v2486, %v2507
    %v2510 = vunpack.c.l.s4 1983009808
    %v2511 = vunpack.c.0.s8 %v2510
    %v2512 = vlaneseq
    %v2513 = vshrl.u32 %v2512, 7
    %v2514 = vsub.s32 %v2511, %v2513
    %v2515 = vrot.slane %v2487, %v2514
    %v2516 = vcombine.low %v2494, %v2508
    %v2517 = vcombine.high %v2494, %v2508
    %v2518 = vcombine.low %v2501, %v2515
    %v2519 = vcombine.high %v2501, %v2515
    %v2520 = vcombine.low %v2374, %v2376
    %v2521 = vcombine.high %v2374, %v2376
    %v2522 = vcombine.low %v2460, %v2462
    %v2523 = vcombine.high %v2460, %v2462
    %v2525 = vunpack.c.l.s4 1983009808
    %v2526 = vunpack.c.0.s8 %v2525
    %v2527 = vlaneseq
    %v2528 = vshrl.u32 %v2527, 7
    %v2529 = vsub.s32 %v2526, %v2528
    %v2530 = vrot.slane %v2520, %v2529
    %v2532 = vunpack.c.l.s4 1983009808
    %v2533 = vunpack.c.0.s8 %v2532
    %v2534 = vlaneseq
    %v2535 = vshrl.u32 %v2534, 7
    %v2536 = vsub.s32 %v2533, %v2535
    %v2537 = vrot.slane %v2521, %v2536
    %v2539 = vunpack.c.l.s4 1983009808
    %v2540 = vunpack.c.0.s8 %v2539
    %v2541 = vlaneseq
    %v2542 = vshrl.u32 %v2541, 7
    %v2543 = vsub.s32 %v2540, %v2542
    %v2544 = vrot.slane %v2522, %v2543
    %v2546 = vunpack.c.l.s4 1983009808
    %v2547 = vunpack.c.0.s8 %v2546
    %v2548 = vlaneseq
    %v2549 = vshrl.u32 %v2548, 7
    %v2550 = vsub.s32 %v2547, %v2549
    %v2551 = vrot.slane %v2523, %v2550
    %v2552 = vcombine.low %v2530, %v2544
    %v2553 = vcombine.high %v2530, %v2544
    %v2554 = vcombine.low %v2537, %v2551
    %v2555 = vcombine.high %v2537, %v2551
    %v2556 = vcombine.low %v2206, %v2208
    %v2557 = vcombine.high %v2206, %v2208
    %v2558 = vcombine.low %v2292, %v2294
    %v2559 = vcombine.high %v2292, %v2294
    %v2561 = vunpack.c.l.s4 1983009808
    %v2562 = vunpack.c.0.s8 %v2561
    %v2563 = vlaneseq
    %v2564 = vshrl.u32 %v2563, 7
    %v2565 = vsub.s32 %v2562, %v2564
    %v2566 = vrot.slane %v2556, %v2565
    %v2568 = vunpack.c.l.s4 1983009808
    %v2569 = vunpack.c.0.s8 %v2568
    %v2570 = vlaneseq
    %v2571 = vshrl.u32 %v2570, 7
    %v2572 = vsub.s32 %v2569, %v2571
    %v2573 = vrot.slane %v2557, %v2572
    %v2575 = vunpack.c.l.s4 1983009808
    %v2576 = vunpack.c.0.s8 %v2575
    %v2577 = vlaneseq
    %v2578 = vshrl.u32 %v2577, 7
    %v2579 = vsub.s32 %v2576, %v2578
    %v2580 = vrot.slane %v2558, %v2579
    %v2582 = vunpack.c.l.s4 1983009808
    %v2583 = vunpack.c.0.s8 %v2582
    %v2584 = vlaneseq
    %v2585 = vshrl.u32 %v2584, 7
    %v2586 = vsub.s32 %v2583, %v2585
    %v2587 = vrot.slane %v2559, %v2586
    %v2588 = vcombine.low %v2566, %v2580
    %v2589 = vcombine.high %v2566, %v2580
    %v2590 = vcombine.low %v2573, %v2587
    %v2591 = vcombine.high %v2573, %v2587
    %v2592 = vcombine.low %v2378, %v2380
    %v2593 = vcombine.high %v2378, %v2380
    %v2594 = vcombine.low %v2464, %v2466
    %v2595 = vcombine.high %v2464, %v2466
    %v2597 = vunpack.c.l.s4 1983009808
    %v2598 = vunpack.c.0.s8 %v2597
    %v2599 = vlaneseq
    %v2600 = vshrl.u32 %v2599, 7
    %v2601 = vsub.s32 %v2598, %v2600
    %v2602 = vrot.slane %v2592, %v2601
    %v2604 = vunpack.c.l.s4 1983009808
    %v2605 = vunpack.c.0.s8 %v2604
    %v2606 = vlaneseq
    %v2607 = vshrl.u32 %v2606, 7
    %v2608 = vsub.s32 %v2605, %v2607
    %v2609 = vrot.slane %v2593, %v2608
    %v2611 = vunpack.c.l.s4 1983009808
    %v2612 = vunpack.c.0.s8 %v2611
    %v2613 = vlaneseq
    %v2614 = vshrl.u32 %v2613, 7
    %v2615 = vsub.s32 %v2612, %v2614
    %v2616 = vrot.slane %v2594, %v2615
    %v2618 = vunpack.c.l.s4 1983009808
    %v2619 = vunpack.c.0.s8 %v2618
    %v2620 = vlaneseq
    %v2621 = vshrl.u32 %v2620, 7
    %v2622 = vsub.s32 %v2619, %v2621
    %v2623 = vrot.slane %v2595, %v2622
    %v2624 = vcombine.low %v2602, %v2616
    %v2625 = vcombine.high %v2602, %v2616
    %v2626 = vcombine.low %v2609, %v2623
    %v2627 = vcombine.high %v2609, %v2623
    %2644 = vst [vmem:[#allocation2] sm:$0xff] %v2516
    %2645 = vst [vmem:[#allocation2 + $0x8] sm:$0xff] %v2552
    %2646 = vst [vmem:[#allocation2 + $0x10] sm:$0xff] %v2517
    %2647 = vst [vmem:[#allocation2 + $0x18] sm:$0xff] %v2553
    %2648 = vst [vmem:[#allocation2 + $0x20] sm:$0xff] %v2518
    %2649 = vst [vmem:[#allocation2 + $0x28] sm:$0xff] %v2554
    %2650 = vst [vmem:[#allocation2 + $0x30] sm:$0xff] %v2519
    %2651 = vst [vmem:[#allocation2 + $0x38] sm:$0xff] %v2555
    %2652 = vst [vmem:[#allocation2 + $0x40] sm:$0xff] %v2588
    %2653 = vst [vmem:[#allocation2 + $0x48] sm:$0xff] %v2624
    %2654 = vst [vmem:[#allocation2 + $0x50] sm:$0xff] %v2589
    %2655 = vst [vmem:[#allocation2 + $0x58] sm:$0xff] %v2625
    %2656 = vst [vmem:[#allocation2 + $0x60] sm:$0xff] %v2590
    %2657 = vst [vmem:[#allocation2 + $0x68] sm:$0xff] %v2626
    %2658 = vst [vmem:[#allocation2 + $0x70] sm:$0xff] %v2591
    %2659 = vst [vmem:[#allocation2 + $0x78] sm:$0xff] %v2627
    %v2660 = vld [vmem:[%s3] sm:$0xff]
    %v2661 = vld [vmem:[%s3 + $0x8] sm:$0xff]
    %v2662 = vld [vmem:[%s3 + $0x10] sm:$0xff]
    %v2663 = vld [vmem:[%s3 + $0x18] sm:$0xff]
    %v2664 = vld [vmem:[%s3 + $0x20] sm:$0xff]
    %v2665 = vld [vmem:[%s3 + $0x28] sm:$0xff]
    %v2666 = vld [vmem:[%s3 + $0x30] sm:$0xff]
    %v2667 = vld [vmem:[%s3 + $0x38] sm:$0xff]
    %v2668 = vld [vmem:[%s3 + $0x40] sm:$0xff]
    %v2669 = vld [vmem:[%s3 + $0x48] sm:$0xff]
    %v2670 = vld [vmem:[%s3 + $0x50] sm:$0xff]
    %v2671 = vld [vmem:[%s3 + $0x58] sm:$0xff]
    %v2672 = vld [vmem:[%s3 + $0x60] sm:$0xff]
    %v2673 = vld [vmem:[%s3 + $0x68] sm:$0xff]
    %v2674 = vld [vmem:[%s3 + $0x70] sm:$0xff]
    %v2675 = vld [vmem:[%s3 + $0x78] sm:$0xff]
    %v2676 = vld [vmem:[%s3 + $0x80] sm:$0xff]
    %v2677 = vld [vmem:[%s3 + $0x88] sm:$0xff]
    %v2678 = vld [vmem:[%s3 + $0x90] sm:$0xff]
    %v2679 = vld [vmem:[%s3 + $0x98] sm:$0xff]
    %v2680 = vld [vmem:[%s3 + $0xa0] sm:$0xff]
    %v2681 = vld [vmem:[%s3 + $0xa8] sm:$0xff]
    %v2682 = vld [vmem:[%s3 + $0xb0] sm:$0xff]
    %v2683 = vld [vmem:[%s3 + $0xb8] sm:$0xff]
    %v2684 = vld [vmem:[%s3 + $0xc0] sm:$0xff]
    %v2685 = vld [vmem:[%s3 + $0xc8] sm:$0xff]
    %v2686 = vld [vmem:[%s3 + $0xd0] sm:$0xff]
    %v2687 = vld [vmem:[%s3 + $0xd8] sm:$0xff]
    %v2688 = vld [vmem:[%s3 + $0xe0] sm:$0xff]
    %v2689 = vld [vmem:[%s3 + $0xe8] sm:$0xff]
    %v2690 = vld [vmem:[%s3 + $0xf0] sm:$0xff]
    %v2691 = vld [vmem:[%s3 + $0xf8] sm:$0xff]
    %v2692 = vld [vmem:[%s3 + $0x100] sm:$0xff]
    %v2693 = vld [vmem:[%s3 + $0x108] sm:$0xff]
    %v2694 = vld [vmem:[%s3 + $0x110] sm:$0xff]
    %v2695 = vld [vmem:[%s3 + $0x118] sm:$0xff]
    %v2696 = vld [vmem:[%s3 + $0x120] sm:$0xff]
    %v2697 = vld [vmem:[%s3 + $0x128] sm:$0xff]
    %v2698 = vld [vmem:[%s3 + $0x130] sm:$0xff]
    %v2699 = vld [vmem:[%s3 + $0x138] sm:$0xff]
    %v2700 = vld [vmem:[%s3 + $0x140] sm:$0xff]
    %v2701 = vld [vmem:[%s3 + $0x148] sm:$0xff]
    %v2702 = vld [vmem:[%s3 + $0x150] sm:$0xff]
    %v2703 = vld [vmem:[%s3 + $0x158] sm:$0xff]
    %v2704 = vld [vmem:[%s3 + $0x160] sm:$0xff]
    %v2705 = vld [vmem:[%s3 + $0x168] sm:$0xff]
    %v2706 = vld [vmem:[%s3 + $0x170] sm:$0xff]
    %v2707 = vld [vmem:[%s3 + $0x178] sm:$0xff]
    %v2708 = vld [vmem:[%s3 + $0x180] sm:$0xff]
    %v2709 = vld [vmem:[%s3 + $0x188] sm:$0xff]
    %v2710 = vld [vmem:[%s3 + $0x190] sm:$0xff]
    %v2711 = vld [vmem:[%s3 + $0x198] sm:$0xff]
    %v2712 = vld [vmem:[%s3 + $0x1a0] sm:$0xff]
    %v2713 = vld [vmem:[%s3 + $0x1a8] sm:$0xff]
    %v2714 = vld [vmem:[%s3 + $0x1b0] sm:$0xff]
    %v2715 = vld [vmem:[%s3 + $0x1b8] sm:$0xff]
    %v2716 = vld [vmem:[%s3 + $0x1c0] sm:$0xff]
    %v2717 = vld [vmem:[%s3 + $0x1c8] sm:$0xff]
    %v2718 = vld [vmem:[%s3 + $0x1d0] sm:$0xff]
    %v2719 = vld [vmem:[%s3 + $0x1d8] sm:$0xff]
    %v2720 = vld [vmem:[%s3 + $0x1e0] sm:$0xff]
    %v2721 = vld [vmem:[%s3 + $0x1e8] sm:$0xff]
    %v2722 = vld [vmem:[%s3 + $0x1f0] sm:$0xff]
    %v2723 = vld [vmem:[%s3 + $0x1f8] sm:$0xff]
    %v2724 = vld [vmem:[#allocation2] sm:$0xff]
    %s2725 = scalar_lea.vmem [#allocation2], 112
    %v2726 = vld [vmem:[%s2725 + $0x8] sm:$0xff]
    %v2759 = vunpack.c.l.b16 %v2660
    %v2760 = vunpack.c.h.b16 %v2660
    %v2761 = vunpack.c.l.b16 %v2661
    %v2762 = vunpack.c.h.b16 %v2661
    %v2763 = vunpack.c.l.b16 %v2662
    %v2764 = vunpack.c.h.b16 %v2662
    %v2765 = vunpack.c.l.b16 %v2663
    %v2766 = vunpack.c.h.b16 %v2663
    %v2767 = vunpack.c.l.b16 %v2664
    %v2768 = vunpack.c.h.b16 %v2664
    %v2769 = vunpack.c.l.b16 %v2665
    %v2770 = vunpack.c.h.b16 %v2665
    %v2771 = vunpack.c.l.b16 %v2666
    %v2772 = vunpack.c.h.b16 %v2666
    %v2773 = vunpack.c.l.b16 %v2667
    %v2774 = vunpack.c.h.b16 %v2667
    %v2775 = vunpack.c.l.b16 %v2668
    %v2776 = vunpack.c.h.b16 %v2668
    %v2777 = vunpack.c.l.b16 %v2669
    %v2778 = vunpack.c.h.b16 %v2669
    %v2779 = vunpack.c.l.b16 %v2670
    %v2780 = vunpack.c.h.b16 %v2670
    %v2781 = vunpack.c.l.b16 %v2671
    %v2782 = vunpack.c.h.b16 %v2671
    %v2783 = vunpack.c.l.b16 %v2672
    %v2784 = vunpack.c.h.b16 %v2672
    %v2785 = vunpack.c.l.b16 %v2673
    %v2786 = vunpack.c.h.b16 %v2673
    %v2787 = vunpack.c.l.b16 %v2674
    %v2788 = vunpack.c.h.b16 %v2674
    %v2789 = vunpack.c.l.b16 %v2675
    %v2790 = vunpack.c.h.b16 %v2675
    %v2791 = vunpack.c.l.b16 %v2676
    %v2792 = vunpack.c.h.b16 %v2676
    %v2793 = vunpack.c.l.b16 %v2677
    %v2794 = vunpack.c.h.b16 %v2677
    %v2795 = vunpack.c.l.b16 %v2678
    %v2796 = vunpack.c.h.b16 %v2678
    %v2797 = vunpack.c.l.b16 %v2679
    %v2798 = vunpack.c.h.b16 %v2679
    %v2799 = vunpack.c.l.b16 %v2680
    %v2800 = vunpack.c.h.b16 %v2680
    %v2801 = vunpack.c.l.b16 %v2681
    %v2802 = vunpack.c.h.b16 %v2681
    %v2803 = vunpack.c.l.b16 %v2682
    %v2804 = vunpack.c.h.b16 %v2682
    %v2805 = vunpack.c.l.b16 %v2683
    %v2806 = vunpack.c.h.b16 %v2683
    %v2807 = vunpack.c.l.b16 %v2684
    %v2808 = vunpack.c.h.b16 %v2684
    %v2809 = vunpack.c.l.b16 %v2685
    %v2810 = vunpack.c.h.b16 %v2685
    %v2811 = vunpack.c.l.b16 %v2686
    %v2812 = vunpack.c.h.b16 %v2686
    %v2813 = vunpack.c.l.b16 %v2687
    %v2814 = vunpack.c.h.b16 %v2687
    %v2815 = vunpack.c.l.b16 %v2688
    %v2816 = vunpack.c.h.b16 %v2688
    %v2817 = vunpack.c.l.b16 %v2689
    %v2818 = vunpack.c.h.b16 %v2689
    %v2819 = vunpack.c.l.b16 %v2690
    %v2820 = vunpack.c.h.b16 %v2690
    %v2821 = vunpack.c.l.b16 %v2691
    %v2822 = vunpack.c.h.b16 %v2691
    %v2823 = vpack.c.b16 %v2763, %v2759
    %v2824 = vpack.c.b16 %v2764, %v2760
    %v2825 = vpack.c.b16 %v2765, %v2761
    %v2826 = vpack.c.b16 %v2766, %v2762
    %v2827 = vpack.c.b16 %v2771, %v2767
    %v2828 = vpack.c.b16 %v2772, %v2768
    %v2829 = vpack.c.b16 %v2773, %v2769
    %v2830 = vpack.c.b16 %v2774, %v2770
    %v2831 = vpack.c.b16 %v2779, %v2775
    %v2832 = vpack.c.b16 %v2780, %v2776
    %v2833 = vpack.c.b16 %v2781, %v2777
    %v2834 = vpack.c.b16 %v2782, %v2778
    %v2835 = vpack.c.b16 %v2787, %v2783
    %v2836 = vpack.c.b16 %v2788, %v2784
    %v2837 = vpack.c.b16 %v2789, %v2785
    %v2838 = vpack.c.b16 %v2790, %v2786
    %v2839 = vpack.c.b16 %v2795, %v2791
    %v2840 = vpack.c.b16 %v2796, %v2792
    %v2841 = vpack.c.b16 %v2797, %v2793
    %v2842 = vpack.c.b16 %v2798, %v2794
    %v2843 = vpack.c.b16 %v2803, %v2799
    %v2844 = vpack.c.b16 %v2804, %v2800
    %v2845 = vpack.c.b16 %v2805, %v2801
    %v2846 = vpack.c.b16 %v2806, %v2802
    %v2847 = vpack.c.b16 %v2811, %v2807
    %v2848 = vpack.c.b16 %v2812, %v2808
    %v2849 = vpack.c.b16 %v2813, %v2809
    %v2850 = vpack.c.b16 %v2814, %v2810
    %v2851 = vpack.c.b16 %v2819, %v2815
    %v2852 = vpack.c.b16 %v2820, %v2816
    %v2853 = vpack.c.b16 %v2821, %v2817
    %v2854 = vpack.c.b16 %v2822, %v2818
    %2887 = vmatprep.subr.bf16.mxu0 %v2824
    %2888 = vmatpush1.bf16.msra.mxu0 %v2823
    %2889 = vmatprep.subr.bf16.mxu0 %v2828
    %2890 = vmatpush1.bf16.msra.mxu0 %v2827
    %2891 = vmatprep.subr.bf16.mxu0 %v2832
    %2892 = vmatpush1.bf16.msra.mxu0 %v2831
    %2893 = vmatprep.subr.bf16.mxu0 %v2836
    %2894 = vmatpush1.bf16.msra.mxu0 %v2835
    %2895 = vmatprep.subr.bf16.mxu0 %v2840
    %2896 = vmatpush1.bf16.msra.mxu0 %v2839
    %2897 = vmatprep.subr.bf16.mxu0 %v2844
    %2898 = vmatpush1.bf16.msra.mxu0 %v2843
    %2899 = vmatprep.subr.bf16.mxu0 %v2848
    %2900 = vmatpush1.bf16.msra.mxu0 %v2847
    %2901 = vmatprep.subr.bf16.mxu0 %v2852
    %2902 = vmatpush1.bf16.msra.mxu0 %v2851
    %2903 = vmatprep.subr.bf16.mxu0 0
    %2904 = vmatpush1.bf16.msra.mxu0 0
    %2905 = vmatprep.subr.bf16.mxu0 0
    %2906 = vmatpush1.bf16.msra.mxu0 0
    %2907 = vmatprep.subr.bf16.mxu0 0
    %2908 = vmatpush1.bf16.msra.mxu0 0
    %2909 = vmatprep.subr.bf16.mxu0 0
    %2910 = vmatpush1.bf16.msra.mxu0 0
    %2911 = vmatprep.subr.bf16.mxu0 0
    %2912 = vmatpush1.bf16.msra.mxu0 0
    %2913 = vmatprep.subr.bf16.mxu0 0
    %2914 = vmatpush1.bf16.msra.mxu0 0
    %2915 = vmatprep.subr.bf16.mxu0 0
    %2916 = vmatpush1.bf16.msra.mxu0 0
    %2917 = vmatprep.subr.bf16.mxu0 0
    %2918 = vmatpush1.bf16.msra.mxu0 0
    %2919 = vmatprep.mubr.bf16.mxu0 0
    %2920 = vmatmul.mubr.bf16.gmra.mrb[0].mxu0 0
    %v2921 = vpop.f32.mrb[0].mxu0
    %v2922 = vadd.f32 0.0, %v2921
    %v2923 = vpop.f32.mrb[0].mxu0
    %v2924 = vadd.f32 0.0, %v2923
    %v2925 = vpop.f32.mrb[0].mxu0
    %v2926 = vpop.f32.mrb[0].mxu0
    %2927 = vdwg.mxu0
    %2928 = vmatprep.subr.bf16.mxu0 %v2826
    %2929 = vmatpush1.bf16.msra.mxu0 %v2825
    %2930 = vmatprep.subr.bf16.mxu0 %v2830
    %2931 = vmatpush1.bf16.msra.mxu0 %v2829
    %2932 = vmatprep.subr.bf16.mxu0 %v2834
    %2933 = vmatpush1.bf16.msra.mxu0 %v2833
    %2934 = vmatprep.subr.bf16.mxu0 %v2838
    %2935 = vmatpush1.bf16.msra.mxu0 %v2837
    %2936 = vmatprep.subr.bf16.mxu0 %v2842
    %2937 = vmatpush1.bf16.msra.mxu0 %v2841
    %2938 = vmatprep.subr.bf16.mxu0 %v2846
    %2939 = vmatpush1.bf16.msra.mxu0 %v2845
    %2940 = vmatprep.subr.bf16.mxu0 %v2850
    %2941 = vmatpush1.bf16.msra.mxu0 %v2849
    %2942 = vmatprep.subr.bf16.mxu0 %v2854
    %2943 = vmatpush1.bf16.msra.mxu0 %v2853
    %2944 = vmatprep.subr.bf16.mxu0 0
    %2945 = vmatpush1.bf16.msra.mxu0 0
    %2946 = vmatprep.subr.bf16.mxu0 0
    %2947 = vmatpush1.bf16.msra.mxu0 0
    %2948 = vmatprep.subr.bf16.mxu0 0
    %2949 = vmatpush1.bf16.msra.mxu0 0
    %2950 = vmatprep.subr.bf16.mxu0 0
    %2951 = vmatpush1.bf16.msra.mxu0 0
    %2952 = vmatprep.subr.bf16.mxu0 0
    %2953 = vmatpush1.bf16.msra.mxu0 0
    %2954 = vmatprep.subr.bf16.mxu0 0
    %2955 = vmatpush1.bf16.msra.mxu0 0
    %2956 = vmatprep.subr.bf16.mxu0 0
    %2957 = vmatpush1.bf16.msra.mxu0 0
    %2958 = vmatprep.subr.bf16.mxu0 0
    %2959 = vmatpush1.bf16.msra.mxu0 0
    %2960 = vmatprep.mubr.bf16.mxu0 0
    %2961 = vmatmul.mubr.bf16.gmra.mrb[0].mxu0 0
    %v2962 = vpop.f32.mrb[0].mxu0
    %v2963 = vadd.f32 0.0, %v2962
    %v2964 = vpop.f32.mrb[0].mxu0
    %v2965 = vadd.f32 0.0, %v2964
    %v2966 = vpop.f32.mrb[0].mxu0
    %v2967 = vpop.f32.mrb[0].mxu0
    %2968 = vdwg.mxu0
    %v2973 = vcombine.low %v2922, %v2924
    %v2974 = vcombine.low %v2963, %v2965
    %v2976 = vunpack.c.l.s4 1983009808
    %v2977 = vunpack.c.0.s8 %v2976
    %v2978 = vlaneseq
    %v2979 = vshrl.u32 %v2978, 7
    %v2980 = vsub.s32 %v2977, %v2979
    %v2981 = vrot.slane %v2973, %v2980
    %v2983 = vunpack.c.l.s4 1983009808
    %v2984 = vunpack.c.0.s8 %v2983
    %v2985 = vlaneseq
    %v2986 = vshrl.u32 %v2985, 7
    %v2987 = vsub.s32 %v2984, %v2986
    %v2988 = vrot.slane %v2974, %v2987
    %v2989 = vcombine.low %v2981, %v2988
    %v2991 = vadd.f32 %v2724, %v2989
    %v3024 = vunpack.c.l.b16 %v2692
    %v3025 = vunpack.c.h.b16 %v2692
    %v3026 = vunpack.c.l.b16 %v2693
    %v3027 = vunpack.c.h.b16 %v2693
    %v3028 = vunpack.c.l.b16 %v2694
    %v3029 = vunpack.c.h.b16 %v2694
    %v3030 = vunpack.c.l.b16 %v2695
    %v3031 = vunpack.c.h.b16 %v2695
    %v3032 = vunpack.c.l.b16 %v2696
    %v3033 = vunpack.c.h.b16 %v2696
    %v3034 = vunpack.c.l.b16 %v2697
    %v3035 = vunpack.c.h.b16 %v2697
    %v3036 = vunpack.c.l.b16 %v2698
    %v3037 = vunpack.c.h.b16 %v2698
    %v3038 = vunpack.c.l.b16 %v2699
    %v3039 = vunpack.c.h.b16 %v2699
    %v3040 = vunpack.c.l.b16 %v2700
    %v3041 = vunpack.c.h.b16 %v2700
    %v3042 = vunpack.c.l.b16 %v2701
    %v3043 = vunpack.c.h.b16 %v2701
    %v3044 = vunpack.c.l.b16 %v2702
    %v3045 = vunpack.c.h.b16 %v2702
    %v3046 = vunpack.c.l.b16 %v2703
    %v3047 = vunpack.c.h.b16 %v2703
    %v3048 = vunpack.c.l.b16 %v2704
    %v3049 = vunpack.c.h.b16 %v2704
    %v3050 = vunpack.c.l.b16 %v2705
    %v3051 = vunpack.c.h.b16 %v2705
    %v3052 = vunpack.c.l.b16 %v2706
    %v3053 = vunpack.c.h.b16 %v2706
    %v3054 = vunpack.c.l.b16 %v2707
    %v3055 = vunpack.c.h.b16 %v2707
    %v3056 = vunpack.c.l.b16 %v2708
    %v3057 = vunpack.c.h.b16 %v2708
    %v3058 = vunpack.c.l.b16 %v2709
    %v3059 = vunpack.c.h.b16 %v2709
    %v3060 = vunpack.c.l.b16 %v2710
    %v3061 = vunpack.c.h.b16 %v2710
    %v3062 = vunpack.c.l.b16 %v2711
    %v3063 = vunpack.c.h.b16 %v2711
    %v3064 = vunpack.c.l.b16 %v2712
    %v3065 = vunpack.c.h.b16 %v2712
    %v3066 = vunpack.c.l.b16 %v2713
    %v3067 = vunpack.c.h.b16 %v2713
    %v3068 = vunpack.c.l.b16 %v2714
    %v3069 = vunpack.c.h.b16 %v2714
    %v3070 = vunpack.c.l.b16 %v2715
    %v3071 = vunpack.c.h.b16 %v2715
    %v3072 = vunpack.c.l.b16 %v2716
    %v3073 = vunpack.c.h.b16 %v2716
    %v3074 = vunpack.c.l.b16 %v2717
    %v3075 = vunpack.c.h.b16 %v2717
    %v3076 = vunpack.c.l.b16 %v2718
    %v3077 = vunpack.c.h.b16 %v2718
    %v3078 = vunpack.c.l.b16 %v2719
    %v3079 = vunpack.c.h.b16 %v2719
    %v3080 = vunpack.c.l.b16 %v2720
    %v3081 = vunpack.c.h.b16 %v2720
    %v3082 = vunpack.c.l.b16 %v2721
    %v3083 = vunpack.c.h.b16 %v2721
    %v3084 = vunpack.c.l.b16 %v2722
    %v3085 = vunpack.c.h.b16 %v2722
    %v3086 = vunpack.c.l.b16 %v2723
    %v3087 = vunpack.c.h.b16 %v2723
    %v3088 = vpack.c.b16 %v3028, %v3024
    %v3089 = vpack.c.b16 %v3029, %v3025
    %v3090 = vpack.c.b16 %v3030, %v3026
    %v3091 = vpack.c.b16 %v3031, %v3027
    %v3092 = vpack.c.b16 %v3036, %v3032
    %v3093 = vpack.c.b16 %v3037, %v3033
    %v3094 = vpack.c.b16 %v3038, %v3034
    %v3095 = vpack.c.b16 %v3039, %v3035
    %v3096 = vpack.c.b16 %v3044, %v3040
    %v3097 = vpack.c.b16 %v3045, %v3041
    %v3098 = vpack.c.b16 %v3046, %v3042
    %v3099 = vpack.c.b16 %v3047, %v3043
    %v3100 = vpack.c.b16 %v3052, %v3048
    %v3101 = vpack.c.b16 %v3053, %v3049
    %v3102 = vpack.c.b16 %v3054, %v3050
    %v3103 = vpack.c.b16 %v3055, %v3051
    %v3104 = vpack.c.b16 %v3060, %v3056
    %v3105 = vpack.c.b16 %v3061, %v3057
    %v3106 = vpack.c.b16 %v3062, %v3058
    %v3107 = vpack.c.b16 %v3063, %v3059
    %v3108 = vpack.c.b16 %v3068, %v3064
    %v3109 = vpack.c.b16 %v3069, %v3065
    %v3110 = vpack.c.b16 %v3070, %v3066
    %v3111 = vpack.c.b16 %v3071, %v3067
    %v3112 = vpack.c.b16 %v3076, %v3072
    %v3113 = vpack.c.b16 %v3077, %v3073
    %v3114 = vpack.c.b16 %v3078, %v3074
    %v3115 = vpack.c.b16 %v3079, %v3075
    %v3116 = vpack.c.b16 %v3084, %v3080
    %v3117 = vpack.c.b16 %v3085, %v3081
    %v3118 = vpack.c.b16 %v3086, %v3082
    %v3119 = vpack.c.b16 %v3087, %v3083
    %3152 = vmatprep.subr.bf16.mxu0 %v3089
    %3153 = vmatpush1.bf16.msra.mxu0 %v3088
    %3154 = vmatprep.subr.bf16.mxu0 %v3093
    %3155 = vmatpush1.bf16.msra.mxu0 %v3092
    %3156 = vmatprep.subr.bf16.mxu0 %v3097
    %3157 = vmatpush1.bf16.msra.mxu0 %v3096
    %3158 = vmatprep.subr.bf16.mxu0 %v3101
    %3159 = vmatpush1.bf16.msra.mxu0 %v3100
    %3160 = vmatprep.subr.bf16.mxu0 %v3105
    %3161 = vmatpush1.bf16.msra.mxu0 %v3104
    %3162 = vmatprep.subr.bf16.mxu0 %v3109
    %3163 = vmatpush1.bf16.msra.mxu0 %v3108
    %3164 = vmatprep.subr.bf16.mxu0 %v3113
    %3165 = vmatpush1.bf16.msra.mxu0 %v3112
    %3166 = vmatprep.subr.bf16.mxu0 %v3117
    %3167 = vmatpush1.bf16.msra.mxu0 %v3116
    %3168 = vmatprep.subr.bf16.mxu0 0
    %3169 = vmatpush1.bf16.msra.mxu0 0
    %3170 = vmatprep.subr.bf16.mxu0 0
    %3171 = vmatpush1.bf16.msra.mxu0 0
    %3172 = vmatprep.subr.bf16.mxu0 0
    %3173 = vmatpush1.bf16.msra.mxu0 0
    %3174 = vmatprep.subr.bf16.mxu0 0
    %3175 = vmatpush1.bf16.msra.mxu0 0
    %3176 = vmatprep.subr.bf16.mxu0 0
    %3177 = vmatpush1.bf16.msra.mxu0 0
    %3178 = vmatprep.subr.bf16.mxu0 0
    %3179 = vmatpush1.bf16.msra.mxu0 0
    %3180 = vmatprep.subr.bf16.mxu0 0
    %3181 = vmatpush1.bf16.msra.mxu0 0
    %3182 = vmatprep.subr.bf16.mxu0 0
    %3183 = vmatpush1.bf16.msra.mxu0 0
    %3184 = vmatprep.mubr.bf16.mxu0 0
    %3185 = vmatmul.mubr.bf16.gmra.mrb[0].mxu0 0
    %v3186 = vpop.f32.mrb[0].mxu0
    %v3187 = vadd.f32 0.0, %v3186
    %v3188 = vpop.f32.mrb[0].mxu0
    %v3189 = vadd.f32 0.0, %v3188
    %v3190 = vpop.f32.mrb[0].mxu0
    %v3191 = vpop.f32.mrb[0].mxu0
    %3192 = vdwg.mxu0
    %3193 = vmatprep.subr.bf16.mxu0 %v3091
    %3194 = vmatpush1.bf16.msra.mxu0 %v3090
    %3195 = vmatprep.subr.bf16.mxu0 %v3095
    %3196 = vmatpush1.bf16.msra.mxu0 %v3094
    %3197 = vmatprep.subr.bf16.mxu0 %v3099
    %3198 = vmatpush1.bf16.msra.mxu0 %v3098
    %3199 = vmatprep.subr.bf16.mxu0 %v3103
    %3200 = vmatpush1.bf16.msra.mxu0 %v3102
    %3201 = vmatprep.subr.bf16.mxu0 %v3107
    %3202 = vmatpush1.bf16.msra.mxu0 %v3106
    %3203 = vmatprep.subr.bf16.mxu0 %v3111
    %3204 = vmatpush1.bf16.msra.mxu0 %v3110
    %3205 = vmatprep.subr.bf16.mxu0 %v3115
    %3206 = vmatpush1.bf16.msra.mxu0 %v3114
    %3207 = vmatprep.subr.bf16.mxu0 %v3119
    %3208 = vmatpush1.bf16.msra.mxu0 %v3118
    %3209 = vmatprep.subr.bf16.mxu0 0
    %3210 = vmatpush1.bf16.msra.mxu0 0
    %3211 = vmatprep.subr.bf16.mxu0 0
    %3212 = vmatpush1.bf16.msra.mxu0 0
    %3213 = vmatprep.subr.bf16.mxu0 0
    %3214 = vmatpush1.bf16.msra.mxu0 0
    %3215 = vmatprep.subr.bf16.mxu0 0
    %3216 = vmatpush1.bf16.msra.mxu0 0
    %3217 = vmatprep.subr.bf16.mxu0 0
    %3218 = vmatpush1.bf16.msra.mxu0 0
    %3219 = vmatprep.subr.bf16.mxu0 0
    %3220 = vmatpush1.bf16.msra.mxu0 0
    %3221 = vmatprep.subr.bf16.mxu0 0
    %3222 = vmatpush1.bf16.msra.mxu0 0
    %3223 = vmatprep.subr.bf16.mxu0 0
    %3224 = vmatpush1.bf16.msra.mxu0 0
    %3225 = vmatprep.mubr.bf16.mxu0 0
    %3226 = vmatmul.mubr.bf16.gmra.mrb[0].mxu0 0
    %v3227 = vpop.f32.mrb[0].mxu0
    %v3228 = vadd.f32 0.0, %v3227
    %v3229 = vpop.f32.mrb[0].mxu0
    %v3230 = vadd.f32 0.0, %v3229
    %v3231 = vpop.f32.mrb[0].mxu0
    %v3232 = vpop.f32.mrb[0].mxu0
    %3233 = vdwg.mxu0
    %v3238 = vcombine.low %v3187, %v3189
    %v3239 = vcombine.low %v3228, %v3230
    %v3241 = vunpack.c.l.s4 1983009808
    %v3242 = vunpack.c.0.s8 %v3241
    %v3243 = vlaneseq
    %v3244 = vshrl.u32 %v3243, 7
    %v3245 = vsub.s32 %v3242, %v3244
    %v3246 = vrot.slane %v3238, %v3245
    %v3248 = vunpack.c.l.s4 1983009808
    %v3249 = vunpack.c.0.s8 %v3248
    %v3250 = vlaneseq
    %v3251 = vshrl.u32 %v3250, 7
    %v3252 = vsub.s32 %v3249, %v3251
    %v3253 = vrot.slane %v3239, %v3252
    %v3254 = vcombine.low %v3246, %v3253
    %v3256 = vadd.f32 %v2726, %v3254
    %v3257 = vxor.u32 %v2991, 2147483648
    %v3258 = vmul.f32 %v3257, 1.442695
    %v3259 = vpow.pop %v3258
    %v3260 = vadd.f32 %v3259, 1.0
    %v3261 = vrcp.pop %v3260
    %v3262 = vmul.f32 1.0, %v3261
    %v3264 = vrot.slane %v2991, 2
    %v3266 = vxor.u32 %v3264, 2147483648
    %v3267 = vmul.f32 %v3266, 1.442695
    %v3268 = vpow.pop %v3267
    %v3269 = vadd.f32 %v3268, 1.0
    %v3270 = vrcp.pop %v3269
    %v3271 = vmul.f32 1.0, %v3270
    %v3272 = vrot.slane %v2991, 4
    %v3274 = vtanh.pop %v3272
    %v3275 = vrot.slane %v2991, 6
    %v3277 = vxor.u32 %v3275, 2147483648
    %v3278 = vmul.f32 %v3277, 1.442695
    %v3279 = vpow.pop %v3278
    %v3280 = vadd.f32 %v3279, 1.0
    %v3281 = vrcp.pop %v3280
    %v3282 = vmul.f32 1.0, %v3281
    %v3283 = vmul.f32 %v3271, 0.0
    %v3284 = vmul.f32 %v3262, %v3274
    %v3285 = vadd.f32 %v3283, %v3284
    %v3286 = vtanh.pop %v3285
    %v3287 = vmul.f32 %v3282, %v3286
    %v3288 = vxor.u32 %v3256, 2147483648
    %v3289 = vmul.f32 %v3288, 1.442695
    %v3290 = vpow.pop %v3289
    %v3291 = vadd.f32 %v3290, 1.0
    %v3292 = vrcp.pop %v3291
    %v3293 = vmul.f32 1.0, %v3292
    %v3295 = vrot.slane %v3256, 2
    %v3297 = vxor.u32 %v3295, 2147483648
    %v3298 = vmul.f32 %v3297, 1.442695
    %v3299 = vpow.pop %v3298
    %v3300 = vadd.f32 %v3299, 1.0
    %v3301 = vrcp.pop %v3300
    %v3302 = vmul.f32 1.0, %v3301
    %v3303 = vrot.slane %v3256, 4
    %v3305 = vtanh.pop %v3303
    %v3306 = vrot.slane %v3256, 6
    %v3308 = vxor.u32 %v3306, 2147483648
    %v3309 = vmul.f32 %v3308, 1.442695
    %v3310 = vpow.pop %v3309
    %v3311 = vadd.f32 %v3310, 1.0
    %v3312 = vrcp.pop %v3311
    %v3313 = vmul.f32 1.0, %v3312
    %v3314 = vmul.f32 %v3302, 0.0
    %v3315 = vmul.f32 %v3293, %v3305
    %v3316 = vadd.f32 %v3314, %v3315
    %v3317 = vtanh.pop %v3316
    %v3318 = vmul.f32 %v3313, %v3317
    %3319 = vst [vmem:[#allocation3] sm:$0x3] %v3287
    %s3320 = scalar_lea.vmem [#allocation4], 14
    %3321 = vst [vmem:[%s3320] sm:$0x3] %v3318
    %s3322 = scalar_lea.vmem [#allocation2], 16
    %v3323 = vld [vmem:[%s3322] sm:$0xff]
    %s3324 = scalar_lea.vmem [#allocation2], 96
    %v3325 = vld [vmem:[%s3324 + $0x8] sm:$0xff]
    %v3326 = vpack.c.bf16 %v3287, %v3287
    %3327 = vmatprep.subr.bf16.mxu0 %v2824
    %3328 = vmatpush1.bf16.msra.mxu0 %v2823
    %3329 = vmatprep.subr.bf16.mxu0 %v2828
    %3330 = vmatpush1.bf16.msra.mxu0 %v2827
    %3331 = vmatprep.subr.bf16.mxu0 %v2832
    %3332 = vmatpush1.bf16.msra.mxu0 %v2831
    %3333 = vmatprep.subr.bf16.mxu0 %v2836
    %3334 = vmatpush1.bf16.msra.mxu0 %v2835
    %3335 = vmatprep.subr.bf16.mxu0 %v2840
    %3336 = vmatpush1.bf16.msra.mxu0 %v2839
    %3337 = vmatprep.subr.bf16.mxu0 %v2844
    %3338 = vmatpush1.bf16.msra.mxu0 %v2843
    %3339 = vmatprep.subr.bf16.mxu0 %v2848
    %3340 = vmatpush1.bf16.msra.mxu0 %v2847
    %3341 = vmatprep.subr.bf16.mxu0 %v2852
    %3342 = vmatpush1.bf16.msra.mxu0 %v2851
    %3343 = vmatprep.subr.bf16.mxu0 0
    %3344 = vmatpush1.bf16.msra.mxu0 0
    %3345 = vmatprep.subr.bf16.mxu0 0
    %3346 = vmatpush1.bf16.msra.mxu0 0
    %3347 = vmatprep.subr.bf16.mxu0 0
    %3348 = vmatpush1.bf16.msra.mxu0 0
    %3349 = vmatprep.subr.bf16.mxu0 0
    %3350 = vmatpush1.bf16.msra.mxu0 0
    %3351 = vmatprep.subr.bf16.mxu0 0
    %3352 = vmatpush1.bf16.msra.mxu0 0
    %3353 = vmatprep.subr.bf16.mxu0 0
    %3354 = vmatpush1.bf16.msra.mxu0 0
    %3355 = vmatprep.subr.bf16.mxu0 0
    %3356 = vmatpush1.bf16.msra.mxu0 0
    %3357 = vmatprep.subr.bf16.mxu0 0
    %3358 = vmatpush1.bf16.msra.mxu0 0
    %3359 = vmatprep.mubr.bf16.mxu0 0
    %3360 = vmatmul.mubr.bf16.gmra.mrb[0].mxu0 %v3326
    %v3361 = vpop.f32.mrb[0].mxu0
    %v3362 = vadd.f32 0.0, %v3361
    %v3363 = vpop.f32.mrb[0].mxu0
    %v3364 = vadd.f32 0.0, %v3363
    %v3365 = vpop.f32.mrb[0].mxu0
    %v3366 = vpop.f32.mrb[0].mxu0
    %3367 = vdwg.mxu0
    %3368 = vmatprep.subr.bf16.mxu0 %v2826
    %3369 = vmatpush1.bf16.msra.mxu0 %v2825
    %3370 = vmatprep.subr.bf16.mxu0 %v2830
    %3371 = vmatpush1.bf16.msra.mxu0 %v2829
    %3372 = vmatprep.subr.bf16.mxu0 %v2834
    %3373 = vmatpush1.bf16.msra.mxu0 %v2833
    %3374 = vmatprep.subr.bf16.mxu0 %v2838
    %3375 = vmatpush1.bf16.msra.mxu0 %v2837
    %3376 = vmatprep.subr.bf16.mxu0 %v2842
    %3377 = vmatpush1.bf16.msra.mxu0 %v2841
    %3378 = vmatprep.subr.bf16.mxu0 %v2846
    %3379 = vmatpush1.bf16.msra.mxu0 %v2845
    %3380 = vmatprep.subr.bf16.mxu0 %v2850
    %3381 = vmatpush1.bf16.msra.mxu0 %v2849
    %3382 = vmatprep.subr.bf16.mxu0 %v2854
    %3383 = vmatpush1.bf16.msra.mxu0 %v2853
    %3384 = vmatprep.subr.bf16.mxu0 0
    %3385 = vmatpush1.bf16.msra.mxu0 0
    %3386 = vmatprep.subr.bf16.mxu0 0
    %3387 = vmatpush1.bf16.msra.mxu0 0
    %3388 = vmatprep.subr.bf16.mxu0 0
    %3389 = vmatpush1.bf16.msra.mxu0 0
    %3390 = vmatprep.subr.bf16.mxu0 0
    %3391 = vmatpush1.bf16.msra.mxu0 0
    %3392 = vmatprep.subr.bf16.mxu0 0
    %3393 = vmatpush1.bf16.msra.mxu0 0
    %3394 = vmatprep.subr.bf16.mxu0 0
    %3395 = vmatpush1.bf16.msra.mxu0 0
    %3396 = vmatprep.subr.bf16.mxu0 0
    %3397 = vmatpush1.bf16.msra.mxu0 0
    %3398 = vmatprep.subr.bf16.mxu0 0
    %3399 = vmatpush1.bf16.msra.mxu0 0
    %3400 = vmatprep.mubr.bf16.mxu0 0
    %3401 = vmatmul.mubr.bf16.gmra.mrb[0].mxu0 %v3326
    %v3402 = vpop.f32.mrb[0].mxu0
    %v3403 = vadd.f32 0.0, %v3402
    %v3404 = vpop.f32.mrb[0].mxu0
    %v3405 = vadd.f32 0.0, %v3404
    %v3406 = vpop.f32.mrb[0].mxu0
    %v3407 = vpop.f32.mrb[0].mxu0
    %3408 = vdwg.mxu0
    %v3413 = vcombine.low %v3362, %v3364
    %v3414 = vcombine.low %v3403, %v3405
    %v3416 = vunpack.c.l.s4 1983009808
    %v3417 = vunpack.c.0.s8 %v3416
    %v3418 = vlaneseq
    %v3419 = vshrl.u32 %v3418, 7
    %v3420 = vsub.s32 %v3417, %v3419
    %v3421 = vrot.slane %v3413, %v3420
    %v3423 = vunpack.c.l.s4 1983009808
    %v3424 = vunpack.c.0.s8 %v3423
    %v3425 = vlaneseq
    %v3426 = vshrl.u32 %v3425, 7
    %v3427 = vsub.s32 %v3424, %v3426
    %v3428 = vrot.slane %v3414, %v3427
    %v3429 = vcombine.low %v3421, %v3428
    %v3431 = vadd.f32 %v3323, %v3429
    %v3432 = vpack.c.bf16 %v3318, %v3318
    %3433 = vmatprep.subr.bf16.mxu0 %v3089
    %3434 = vmatpush1.bf16.msra.mxu0 %v3088
    %3435 = vmatprep.subr.bf16.mxu0 %v3093
    %3436 = vmatpush1.bf16.msra.mxu0 %v3092
    %3437 = vmatprep.subr.bf16.mxu0 %v3097
    %3438 = vmatpush1.bf16.msra.mxu0 %v3096
    %3439 = vmatprep.subr.bf16.mxu0 %v3101
    %3440 = vmatpush1.bf16.msra.mxu0 %v3100
    %3441 = vmatprep.subr.bf16.mxu0 %v3105
    %3442 = vmatpush1.bf16.msra.mxu0 %v3104
    %3443 = vmatprep.subr.bf16.mxu0 %v3109
    %3444 = vmatpush1.bf16.msra.mxu0 %v3108
    %3445 = vmatprep.subr.bf16.mxu0 %v3113
    %3446 = vmatpush1.bf16.msra.mxu0 %v3112
    %3447 = vmatprep.subr.bf16.mxu0 %v3117
    %3448 = vmatpush1.bf16.msra.mxu0 %v3116
    %3449 = vmatprep.subr.bf16.mxu0 0
    %3450 = vmatpush1.bf16.msra.mxu0 0
    %3451 = vmatprep.subr.bf16.mxu0 0
    %3452 = vmatpush1.bf16.msra.mxu0 0
    %3453 = vmatprep.subr.bf16.mxu0 0
    %3454 = vmatpush1.bf16.msra.mxu0 0
    %3455 = vmatprep.subr.bf16.mxu0 0
    %3456 = vmatpush1.bf16.msra.mxu0 0
    %3457 = vmatprep.subr.bf16.mxu0 0
    %3458 = vmatpush1.bf16.msra.mxu0 0
    %3459 = vmatprep.subr.bf16.mxu0 0
    %3460 = vmatpush1.bf16.msra.mxu0 0
    %3461 = vmatprep.subr.bf16.mxu0 0
    %3462 = vmatpush1.bf16.msra.mxu0 0
    %3463 = vmatprep.subr.bf16.mxu0 0
    %3464 = vmatpush1.bf16.msra.mxu0 0
    %3465 = vmatprep.mubr.bf16.mxu0 0
    %3466 = vmatmul.mubr.bf16.gmra.mrb[0].mxu0 %v3432
    %v3467 = vpop.f32.mrb[0].mxu0
    %v3468 = vadd.f32 0.0, %v3467
    %v3469 = vpop.f32.mrb[0].mxu0
    %v3470 = vadd.f32 0.0, %v3469
    %v3471 = vpop.f32.mrb[0].mxu0
    %v3472 = vpop.f32.mrb[0].mxu0
    %3473 = vdwg.mxu0
    %3474 = vmatprep.subr.bf16.mxu0 %v3091
    %3475 = vmatpush1.bf16.msra.mxu0 %v3090
    %3476 = vmatprep.subr.bf16.mxu0 %v3095
    %3477 = vmatpush1.bf16.msra.mxu0 %v3094
    %3478 = vmatprep.subr.bf16.mxu0 %v3099
    %3479 = vmatpush1.bf16.msra.mxu0 %v3098
    %3480 = vmatprep.subr.bf16.mxu0 %v3103
    %3481 = vmatpush1.bf16.msra.mxu0 %v3102
    %3482 = vmatprep.subr.bf16.mxu0 %v3107
    %3483 = vmatpush1.bf16.msra.mxu0 %v3106
    %3484 = vmatprep.subr.bf16.mxu0 %v3111
    %3485 = vmatpush1.bf16.msra.mxu0 %v3110
    %3486 = vmatprep.subr.bf16.mxu0 %v3115
    %3487 = vmatpush1.bf16.msra.mxu0 %v3114
    %3488 = vmatprep.subr.bf16.mxu0 %v3119
    %3489 = vmatpush1.bf16.msra.mxu0 %v3118
    %3490 = vmatprep.subr.bf16.mxu0 0
    %3491 = vmatpush1.bf16.msra.mxu0 0
    %3492 = vmatprep.subr.bf16.mxu0 0
    %3493 = vmatpush1.bf16.msra.mxu0 0
    %3494 = vmatprep.subr.bf16.mxu0 0
    %3495 = vmatpush1.bf16.msra.mxu0 0
    %3496 = vmatprep.subr.bf16.mxu0 0
    %3497 = vmatpush1.bf16.msra.mxu0 0
    %3498 = vmatprep.subr.bf16.mxu0 0
    %3499 = vmatpush1.bf16.msra.mxu0 0
    %3500 = vmatprep.subr.bf16.mxu0 0
    %3501 = vmatpush1.bf16.msra.mxu0 0
    %3502 = vmatprep.subr.bf16.mxu0 0
    %3503 = vmatpush1.bf16.msra.mxu0 0
    %3504 = vmatprep.subr.bf16.mxu0 0
    %3505 = vmatpush1.bf16.msra.mxu0 0
    %3506 = vmatprep.mubr.bf16.mxu0 0
    %3507 = vmatmul.mubr.bf16.gmra.mrb[0].mxu0 %v3432
    %v3508 = vpop.f32.mrb[0].mxu0
    %v3509 = vadd.f32 0.0, %v3508
    %v3510 = vpop.f32.mrb[0].mxu0
    %v3511 = vadd.f32 0.0, %v3510
    %v3512 = vpop.f32.mrb[0].mxu0
    %v3513 = vpop.f32.mrb[0].mxu0
    %3514 = vdwg.mxu0
    %v3519 = vcombine.low %v3468, %v3470
    %v3520 = vcombine.low %v3509, %v3511
    %v3522 = vunpack.c.l.s4 1983009808
    %v3523 = vunpack.c.0.s8 %v3522
    %v3524 = vlaneseq
    %v3525 = vshrl.u32 %v3524, 7
    %v3526 = vsub.s32 %v3523, %v3525
    %v3527 = vrot.slane %v3519, %v3526
    %v3529 = vunpack.c.l.s4 1983009808
    %v3530 = vunpack.c.0.s8 %v3529
    %v3531 = vlaneseq
    %v3532 = vshrl.u32 %v3531, 7
    %v3533 = vsub.s32 %v3530, %v3532
    %v3534 = vrot.slane %v3520, %v3533
    %v3535 = vcombine.low %v3527, %v3534
    %v3537 = vadd.f32 %v3325, %v3535
    %v3538 = vxor.u32 %v3431, 2147483648
    %v3539 = vmul.f32 %v3538, 1.442695
    %v3540 = vpow.pop %v3539
    %v3541 = vadd.f32 %v3540, 1.0
    %v3542 = vrcp.pop %v3541
    %v3543 = vmul.f32 1.0, %v3542
    %v3545 = vrot.slane %v3431, 2
    %v3547 = vxor.u32 %v3545, 2147483648
    %v3548 = vmul.f32 %v3547, 1.442695
    %v3549 = vpow.pop %v3548
    %v3550 = vadd.f32 %v3549, 1.0
    %v3551 = vrcp.pop %v3550
    %v3552 = vmul.f32 1.0, %v3551
    %v3553 = vrot.slane %v3431, 4
    %v3555 = vtanh.pop %v3553
    %v3556 = vrot.slane %v3431, 6
    %v3558 = vxor.u32 %v3556, 2147483648
    %v3559 = vmul.f32 %v3558, 1.442695
    %v3560 = vpow.pop %v3559
    %v3561 = vadd.f32 %v3560, 1.0
    %v3562 = vrcp.pop %v3561
    %v3563 = vmul.f32 1.0, %v3562
    %v3564 = vmul.f32 %v3552, %v3285
    %v3565 = vmul.f32 %v3543, %v3555
    %v3566 = vadd.f32 %v3564, %v3565
    %v3567 = vtanh.pop %v3566
    %v3568 = vmul.f32 %v3563, %v3567
    %v3569 = vxor.u32 %v3537, 2147483648
    %v3570 = vmul.f32 %v3569, 1.442695
    %v3571 = vpow.pop %v3570
    %v3572 = vadd.f32 %v3571, 1.0
    %v3573 = vrcp.pop %v3572
    %v3574 = vmul.f32 1.0, %v3573
    %v3576 = vrot.slane %v3537, 2
    %v3578 = vxor.u32 %v3576, 2147483648
    %v3579 = vmul.f32 %v3578, 1.442695
    %v3580 = vpow.pop %v3579
    %v3581 = vadd.f32 %v3580, 1.0
    %v3582 = vrcp.pop %v3581
    %v3583 = vmul.f32 1.0, %v3582
    %v3584 = vrot.slane %v3537, 4
    %v3586 = vtanh.pop %v3584
    %v3587 = vrot.slane %v3537, 6
    %v3589 = vxor.u32 %v3587, 2147483648
    %v3590 = vmul.f32 %v3589, 1.442695
    %v3591 = vpow.pop %v3590
    %v3592 = vadd.f32 %v3591, 1.0
    %v3593 = vrcp.pop %v3592
    %v3594 = vmul.f32 1.0, %v3593
    %v3595 = vmul.f32 %v3583, %v3316
    %v3596 = vmul.f32 %v3574, %v3586
    %v3597 = vadd.f32 %v3595, %v3596
    %v3598 = vtanh.pop %v3597
    %v3599 = vmul.f32 %v3594, %v3598
    %s3600 = scalar_lea.vmem [#allocation3], 2
    %3601 = vst [vmem:[%s3600] sm:$0x3] %v3568
    %s3602 = scalar_lea.vmem [#allocation4], 12
    %3603 = vst [vmem:[%s3602] sm:$0x3] %v3599
    %s3604 = scalar_lea.vmem [#allocation2], 32
    %v3605 = vld [vmem:[%s3604] sm:$0xff]
    %s3606 = scalar_lea.vmem [#allocation2], 80
    %v3607 = vld [vmem:[%s3606 + $0x8] sm:$0xff]
    %v3608 = vpack.c.bf16 %v3568, %v3568
    %3609 = vmatprep.subr.bf16.mxu0 %v2824
    %3610 = vmatpush1.bf16.msra.mxu0 %v2823
    %3611 = vmatprep.subr.bf16.mxu0 %v2828
    %3612 = vmatpush1.bf16.msra.mxu0 %v2827
    %3613 = vmatprep.subr.bf16.mxu0 %v2832
    %3614 = vmatpush1.bf16.msra.mxu0 %v2831
    %3615 = vmatprep.subr.bf16.mxu0 %v2836
    %3616 = vmatpush1.bf16.msra.mxu0 %v2835
    %3617 = vmatprep.subr.bf16.mxu0 %v2840
    %3618 = vmatpush1.bf16.msra.mxu0 %v2839
    %3619 = vmatprep.subr.bf16.mxu0 %v2844
    %3620 = vmatpush1.bf16.msra.mxu0 %v2843
    %3621 = vmatprep.subr.bf16.mxu0 %v2848
    %3622 = vmatpush1.bf16.msra.mxu0 %v2847
    %3623 = vmatprep.subr.bf16.mxu0 %v2852
    %3624 = vmatpush1.bf16.msra.mxu0 %v2851
    %3625 = vmatprep.subr.bf16.mxu0 0
    %3626 = vmatpush1.bf16.msra.mxu0 0
    %3627 = vmatprep.subr.bf16.mxu0 0
    %3628 = vmatpush1.bf16.msra.mxu0 0
    %3629 = vmatprep.subr.bf16.mxu0 0
    %3630 = vmatpush1.bf16.msra.mxu0 0
    %3631 = vmatprep.subr.bf16.mxu0 0
    %3632 = vmatpush1.bf16.msra.mxu0 0
    %3633 = vmatprep.subr.bf16.mxu0 0
    %3634 = vmatpush1.bf16.msra.mxu0 0
    %3635 = vmatprep.subr.bf16.mxu0 0
    %3636 = vmatpush1.bf16.msra.mxu0 0
    %3637 = vmatprep.subr.bf16.mxu0 0
    %3638 = vmatpush1.bf16.msra.mxu0 0
    %3639 = vmatprep.subr.bf16.mxu0 0
    %3640 = vmatpush1.bf16.msra.mxu0 0
    %3641 = vmatprep.mubr.bf16.mxu0 0
    %3642 = vmatmul.mubr.bf16.gmra.mrb[0].mxu0 %v3608
    %v3643 = vpop.f32.mrb[0].mxu0
    %v3644 = vadd.f32 0.0, %v3643
    %v3645 = vpop.f32.mrb[0].mxu0
    %v3646 = vadd.f32 0.0, %v3645
    %v3647 = vpop.f32.mrb[0].mxu0
    %v3648 = vpop.f32.mrb[0].mxu0
    %3649 = vdwg.mxu0
    %3650 = vmatprep.subr.bf16.mxu0 %v2826
    %3651 = vmatpush1.bf16.msra.mxu0 %v2825
    %3652 = vmatprep.subr.bf16.mxu0 %v2830
    %3653 = vmatpush1.bf16.msra.mxu0 %v2829
    %3654 = vmatprep.subr.bf16.mxu0 %v2834
    %3655 = vmatpush1.bf16.msra.mxu0 %v2833
    %3656 = vmatprep.subr.bf16.mxu0 %v2838
    %3657 = vmatpush1.bf16.msra.mxu0 %v2837
    %3658 = vmatprep.subr.bf16.mxu0 %v2842
    %3659 = vmatpush1.bf16.msra.mxu0 %v2841
    %3660 = vmatprep.subr.bf16.mxu0 %v2846
    %3661 = vmatpush1.bf16.msra.mxu0 %v2845
    %3662 = vmatprep.subr.bf16.mxu0 %v2850
    %3663 = vmatpush1.bf16.msra.mxu0 %v2849
    %3664 = vmatprep.subr.bf16.mxu0 %v2854
    %3665 = vmatpush1.bf16.msra.mxu0 %v2853
    %3666 = vmatprep.subr.bf16.mxu0 0
    %3667 = vmatpush1.bf16.msra.mxu0 0
    %3668 = vmatprep.subr.bf16.mxu0 0
    %3669 = vmatpush1.bf16.msra.mxu0 0
    %3670 = vmatprep.subr.bf16.mxu0 0
    %3671 = vmatpush1.bf16.msra.mxu0 0
    %3672 = vmatprep.subr.bf16.mxu0 0
    %3673 = vmatpush1.bf16.msra.mxu0 0
    %3674 = vmatprep.subr.bf16.mxu0 0
    %3675 = vmatpush1.bf16.msra.mxu0 0
    %3676 = vmatprep.subr.bf16.mxu0 0
    %3677 = vmatpush1.bf16.msra.mxu0 0
    %3678 = vmatprep.subr.bf16.mxu0 0
    %3679 = vmatpush1.bf16.msra.mxu0 0
    %3680 = vmatprep.subr.bf16.mxu0 0
    %3681 = vmatpush1.bf16.msra.mxu0 0
    %3682 = vmatprep.mubr.bf16.mxu0 0
    %3683 = vmatmul.mubr.bf16.gmra.mrb[0].mxu0 %v3608
    %v3684 = vpop.f32.mrb[0].mxu0
    %v3685 = vadd.f32 0.0, %v3684
    %v3686 = vpop.f32.mrb[0].mxu0
    %v3687 = vadd.f32 0.0, %v3686
    %v3688 = vpop.f32.mrb[0].mxu0
    %v3689 = vpop.f32.mrb[0].mxu0
    %3690 = vdwg.mxu0
    %v3695 = vcombine.low %v3644, %v3646
    %v3696 = vcombine.low %v3685, %v3687
    %v3698 = vunpack.c.l.s4 1983009808
    %v3699 = vunpack.c.0.s8 %v3698
    %v3700 = vlaneseq
    %v3701 = vshrl.u32 %v3700, 7
    %v3702 = vsub.s32 %v3699, %v3701
    %v3703 = vrot.slane %v3695, %v3702
    %v3705 = vunpack.c.l.s4 1983009808
    %v3706 = vunpack.c.0.s8 %v3705
    %v3707 = vlaneseq
    %v3708 = vshrl.u32 %v3707, 7
    %v3709 = vsub.s32 %v3706, %v3708
    %v3710 = vrot.slane %v3696, %v3709
    %v3711 = vcombine.low %v3703, %v3710
    %v3713 = vadd.f32 %v3605, %v3711
    %v3714 = vpack.c.bf16 %v3599, %v3599
    %3715 = vmatprep.subr.bf16.mxu0 %v3089
    %3716 = vmatpush1.bf16.msra.mxu0 %v3088
    %3717 = vmatprep.subr.bf16.mxu0 %v3093
    %3718 = vmatpush1.bf16.msra.mxu0 %v3092
    %3719 = vmatprep.subr.bf16.mxu0 %v3097
    %3720 = vmatpush1.bf16.msra.mxu0 %v3096
    %3721 = vmatprep.subr.bf16.mxu0 %v3101
    %3722 = vmatpush1.bf16.msra.mxu0 %v3100
    %3723 = vmatprep.subr.bf16.mxu0 %v3105
    %3724 = vmatpush1.bf16.msra.mxu0 %v3104
    %3725 = vmatprep.subr.bf16.mxu0 %v3109
    %3726 = vmatpush1.bf16.msra.mxu0 %v3108
    %3727 = vmatprep.subr.bf16.mxu0 %v3113
    %3728 = vmatpush1.bf16.msra.mxu0 %v3112
    %3729 = vmatprep.subr.bf16.mxu0 %v3117
    %3730 = vmatpush1.bf16.msra.mxu0 %v3116
    %3731 = vmatprep.subr.bf16.mxu0 0
    %3732 = vmatpush1.bf16.msra.mxu0 0
    %3733 = vmatprep.subr.bf16.mxu0 0
    %3734 = vmatpush1.bf16.msra.mxu0 0
    %3735 = vmatprep.subr.bf16.mxu0 0
    %3736 = vmatpush1.bf16.msra.mxu0 0
    %3737 = vmatprep.subr.bf16.mxu0 0
    %3738 = vmatpush1.bf16.msra.mxu0 0
    %3739 = vmatprep.subr.bf16.mxu0 0
    %3740 = vmatpush1.bf16.msra.mxu0 0
    %3741 = vmatprep.subr.bf16.mxu0 0
    %3742 = vmatpush1.bf16.msra.mxu0 0
    %3743 = vmatprep.subr.bf16.mxu0 0
    %3744 = vmatpush1.bf16.msra.mxu0 0
    %3745 = vmatprep.subr.bf16.mxu0 0
    %3746 = vmatpush1.bf16.msra.mxu0 0
    %3747 = vmatprep.mubr.bf16.mxu0 0
    %3748 = vmatmul.mubr.bf16.gmra.mrb[0].mxu0 %v3714
    %v3749 = vpop.f32.mrb[0].mxu0
    %v3750 = vadd.f32 0.0, %v3749
    %v3751 = vpop.f32.mrb[0].mxu0
    %v3752 = vadd.f32 0.0, %v3751
    %v3753 = vpop.f32.mrb[0].mxu0
    %v3754 = vpop.f32.mrb[0].mxu0
    %3755 = vdwg.mxu0
    %3756 = vmatprep.subr.bf16.mxu0 %v3091
    %3757 = vmatpush1.bf16.msra.mxu0 %v3090
    %3758 = vmatprep.subr.bf16.mxu0 %v3095
    %3759 = vmatpush1.bf16.msra.mxu0 %v3094
    %3760 = vmatprep.subr.bf16.mxu0 %v3099
    %3761 = vmatpush1.bf16.msra.mxu0 %v3098
    %3762 = vmatprep.subr.bf16.mxu0 %v3103
    %3763 = vmatpush1.bf16.msra.mxu0 %v3102
    %3764 = vmatprep.subr.bf16.mxu0 %v3107
    %3765 = vmatpush1.bf16.msra.mxu0 %v3106
    %3766 = vmatprep.subr.bf16.mxu0 %v3111
    %3767 = vmatpush1.bf16.msra.mxu0 %v3110
    %3768 = vmatprep.subr.bf16.mxu0 %v3115
    %3769 = vmatpush1.bf16.msra.mxu0 %v3114
    %3770 = vmatprep.subr.bf16.mxu0 %v3119
    %3771 = vmatpush1.bf16.msra.mxu0 %v3118
    %3772 = vmatprep.subr.bf16.mxu0 0
    %3773 = vmatpush1.bf16.msra.mxu0 0
    %3774 = vmatprep.subr.bf16.mxu0 0
    %3775 = vmatpush1.bf16.msra.mxu0 0
    %3776 = vmatprep.subr.bf16.mxu0 0
    %3777 = vmatpush1.bf16.msra.mxu0 0
    %3778 = vmatprep.subr.bf16.mxu0 0
    %3779 = vmatpush1.bf16.msra.mxu0 0
    %3780 = vmatprep.subr.bf16.mxu0 0
    %3781 = vmatpush1.bf16.msra.mxu0 0
    %3782 = vmatprep.subr.bf16.mxu0 0
    %3783 = vmatpush1.bf16.msra.mxu0 0
    %3784 = vmatprep.subr.bf16.mxu0 0
    %3785 = vmatpush1.bf16.msra.mxu0 0
    %3786 = vmatprep.subr.bf16.mxu0 0
    %3787 = vmatpush1.bf16.msra.mxu0 0
    %3788 = vmatprep.mubr.bf16.mxu0 0
    %3789 = vmatmul.mubr.bf16.gmra.mrb[0].mxu0 %v3714
    %v3790 = vpop.f32.mrb[0].mxu0
    %v3791 = vadd.f32 0.0, %v3790
    %v3792 = vpop.f32.mrb[0].mxu0
    %v3793 = vadd.f32 0.0, %v3792
    %v3794 = vpop.f32.mrb[0].mxu0
    %v3795 = vpop.f32.mrb[0].mxu0
    %3796 = vdwg.mxu0
    %v3801 = vcombine.low %v3750, %v3752
    %v3802 = vcombine.low %v3791, %v3793
    %v3804 = vunpack.c.l.s4 1983009808
    %v3805 = vunpack.c.0.s8 %v3804
    %v3806 = vlaneseq
    %v3807 = vshrl.u32 %v3806, 7
    %v3808 = vsub.s32 %v3805, %v3807
    %v3809 = vrot.slane %v3801, %v3808
    %v3811 = vunpack.c.l.s4 1983009808
    %v3812 = vunpack.c.0.s8 %v3811
    %v3813 = vlaneseq
    %v3814 = vshrl.u32 %v3813, 7
    %v3815 = vsub.s32 %v3812, %v3814
    %v3816 = vrot.slane %v3802, %v3815
    %v3817 = vcombine.low %v3809, %v3816
    %v3819 = vadd.f32 %v3607, %v3817
    %v3820 = vxor.u32 %v3713, 2147483648
    %v3821 = vmul.f32 %v3820, 1.442695
    %v3822 = vpow.pop %v3821
    %v3823 = vadd.f32 %v3822, 1.0
    %v3824 = vrcp.pop %v3823
    %v3825 = vmul.f32 1.0, %v3824
    %v3827 = vrot.slane %v3713, 2
    %v3829 = vxor.u32 %v3827, 2147483648
    %v3830 = vmul.f32 %v3829, 1.442695
    %v3831 = vpow.pop %v3830
    %v3832 = vadd.f32 %v3831, 1.0
    %v3833 = vrcp.pop %v3832
    %v3834 = vmul.f32 1.0, %v3833
    %v3835 = vrot.slane %v3713, 4
    %v3837 = vtanh.pop %v3835
    %v3838 = vrot.slane %v3713, 6
    %v3840 = vxor.u32 %v3838, 2147483648
    %v3841 = vmul.f32 %v3840, 1.442695
    %v3842 = vpow.pop %v3841
    %v3843 = vadd.f32 %v3842, 1.0
    %v3844 = vrcp.pop %v3843
    %v3845 = vmul.f32 1.0, %v3844
    %v3846 = vmul.f32 %v3834, %v3566
    %v3847 = vmul.f32 %v3825, %v3837
    %v3848 = vadd.f32 %v3846, %v3847
    %v3849 = vtanh.pop %v3848
    %v3850 = vmul.f32 %v3845, %v3849
    %v3851 = vxor.u32 %v3819, 2147483648
    %v3852 = vmul.f32 %v3851, 1.442695
    %v3853 = vpow.pop %v3852
    %v3854 = vadd.f32 %v3853, 1.0
    %v3855 = vrcp.pop %v3854
    %v3856 = vmul.f32 1.0, %v3855
    %v3858 = vrot.slane %v3819, 2
    %v3860 = vxor.u32 %v3858, 2147483648
    %v3861 = vmul.f32 %v3860, 1.442695
    %v3862 = vpow.pop %v3861
    %v3863 = vadd.f32 %v3862, 1.0
    %v3864 = vrcp.pop %v3863
    %v3865 = vmul.f32 1.0, %v3864
    %v3866 = vrot.slane %v3819, 4
    %v3868 = vtanh.pop %v3866
    %v3869 = vrot.slane %v3819, 6
    %v3871 = vxor.u32 %v3869, 2147483648
    %v3872 = vmul.f32 %v3871, 1.442695
    %v3873 = vpow.pop %v3872
    %v3874 = vadd.f32 %v3873, 1.0
    %v3875 = vrcp.pop %v3874
    %v3876 = vmul.f32 1.0, %v3875
    %v3877 = vmul.f32 %v3865, %v3597
    %v3878 = vmul.f32 %v3856, %v3868
    %v3879 = vadd.f32 %v3877, %v3878
    %v3880 = vtanh.pop %v3879
    %v3881 = vmul.f32 %v3876, %v3880
    %s3882 = scalar_lea.vmem [#allocation3], 4
    %3883 = vst [vmem:[%s3882] sm:$0x3] %v3850
    %s3884 = scalar_lea.vmem [#allocation4], 10
    %3885 = vst [vmem:[%s3884] sm:$0x3] %v3881
    %s3886 = scalar_lea.vmem [#allocation2], 48
    %v3887 = vld [vmem:[%s3886] sm:$0xff]
    %s3888 = scalar_lea.vmem [#allocation2], 64
    %v3889 = vld [vmem:[%s3888 + $0x8] sm:$0xff]
    %v3890 = vpack.c.bf16 %v3850, %v3850
    %3891 = vmatprep.subr.bf16.mxu0 %v2824
    %3892 = vmatpush1.bf16.msra.mxu0 %v2823
    %3893 = vmatprep.subr.bf16.mxu0 %v2828
    %3894 = vmatpush1.bf16.msra.mxu0 %v2827
    %3895 = vmatprep.subr.bf16.mxu0 %v2832
    %3896 = vmatpush1.bf16.msra.mxu0 %v2831
    %3897 = vmatprep.subr.bf16.mxu0 %v2836
    %3898 = vmatpush1.bf16.msra.mxu0 %v2835
    %3899 = vmatprep.subr.bf16.mxu0 %v2840
    %3900 = vmatpush1.bf16.msra.mxu0 %v2839
    %3901 = vmatprep.subr.bf16.mxu0 %v2844
    %3902 = vmatpush1.bf16.msra.mxu0 %v2843
    %3903 = vmatprep.subr.bf16.mxu0 %v2848
    %3904 = vmatpush1.bf16.msra.mxu0 %v2847
    %3905 = vmatprep.subr.bf16.mxu0 %v2852
    %3906 = vmatpush1.bf16.msra.mxu0 %v2851
    %3907 = vmatprep.subr.bf16.mxu0 0
    %3908 = vmatpush1.bf16.msra.mxu0 0
    %3909 = vmatprep.subr.bf16.mxu0 0
    %3910 = vmatpush1.bf16.msra.mxu0 0
    %3911 = vmatprep.subr.bf16.mxu0 0
    %3912 = vmatpush1.bf16.msra.mxu0 0
    %3913 = vmatprep.subr.bf16.mxu0 0
    %3914 = vmatpush1.bf16.msra.mxu0 0
    %3915 = vmatprep.subr.bf16.mxu0 0
    %3916 = vmatpush1.bf16.msra.mxu0 0
    %3917 = vmatprep.subr.bf16.mxu0 0
    %3918 = vmatpush1.bf16.msra.mxu0 0
    %3919 = vmatprep.subr.bf16.mxu0 0
    %3920 = vmatpush1.bf16.msra.mxu0 0
    %3921 = vmatprep.subr.bf16.mxu0 0
    %3922 = vmatpush1.bf16.msra.mxu0 0
    %3923 = vmatprep.mubr.bf16.mxu0 0
    %3924 = vmatmul.mubr.bf16.gmra.mrb[0].mxu0 %v3890
    %v3925 = vpop.f32.mrb[0].mxu0
    %v3926 = vadd.f32 0.0, %v3925
    %v3927 = vpop.f32.mrb[0].mxu0
    %v3928 = vadd.f32 0.0, %v3927
    %v3929 = vpop.f32.mrb[0].mxu0
    %v3930 = vpop.f32.mrb[0].mxu0
    %3931 = vdwg.mxu0
    %3932 = vmatprep.subr.bf16.mxu0 %v2826
    %3933 = vmatpush1.bf16.msra.mxu0 %v2825
    %3934 = vmatprep.subr.bf16.mxu0 %v2830
    %3935 = vmatpush1.bf16.msra.mxu0 %v2829
    %3936 = vmatprep.subr.bf16.mxu0 %v2834
    %3937 = vmatpush1.bf16.msra.mxu0 %v2833
    %3938 = vmatprep.subr.bf16.mxu0 %v2838
    %3939 = vmatpush1.bf16.msra.mxu0 %v2837
    %3940 = vmatprep.subr.bf16.mxu0 %v2842
    %3941 = vmatpush1.bf16.msra.mxu0 %v2841
    %3942 = vmatprep.subr.bf16.mxu0 %v2846
    %3943 = vmatpush1.bf16.msra.mxu0 %v2845
    %3944 = vmatprep.subr.bf16.mxu0 %v2850
    %3945 = vmatpush1.bf16.msra.mxu0 %v2849
    %3946 = vmatprep.subr.bf16.mxu0 %v2854
    %3947 = vmatpush1.bf16.msra.mxu0 %v2853
    %3948 = vmatprep.subr.bf16.mxu0 0
    %3949 = vmatpush1.bf16.msra.mxu0 0
    %3950 = vmatprep.subr.bf16.mxu0 0
    %3951 = vmatpush1.bf16.msra.mxu0 0
    %3952 = vmatprep.subr.bf16.mxu0 0
    %3953 = vmatpush1.bf16.msra.mxu0 0
    %3954 = vmatprep.subr.bf16.mxu0 0
    %3955 = vmatpush1.bf16.msra.mxu0 0
    %3956 = vmatprep.subr.bf16.mxu0 0
    %3957 = vmatpush1.bf16.msra.mxu0 0
    %3958 = vmatprep.subr.bf16.mxu0 0
    %3959 = vmatpush1.bf16.msra.mxu0 0
    %3960 = vmatprep.subr.bf16.mxu0 0
    %3961 = vmatpush1.bf16.msra.mxu0 0
    %3962 = vmatprep.subr.bf16.mxu0 0
    %3963 = vmatpush1.bf16.msra.mxu0 0
    %3964 = vmatprep.mubr.bf16.mxu0 0
    %3965 = vmatmul.mubr.bf16.gmra.mrb[0].mxu0 %v3890
    %v3966 = vpop.f32.mrb[0].mxu0
    %v3967 = vadd.f32 0.0, %v3966
    %v3968 = vpop.f32.mrb[0].mxu0
    %v3969 = vadd.f32 0.0, %v3968
    %v3970 = vpop.f32.mrb[0].mxu0
    %v3971 = vpop.f32.mrb[0].mxu0
    %3972 = vdwg.mxu0
    %v3977 = vcombine.low %v3926, %v3928
    %v3978 = vcombine.low %v3967, %v3969
    %v3980 = vunpack.c.l.s4 1983009808
    %v3981 = vunpack.c.0.s8 %v3980
    %v3982 = vlaneseq
    %v3983 = vshrl.u32 %v3982, 7
    %v3984 = vsub.s32 %v3981, %v3983
    %v3985 = vrot.slane %v3977, %v3984
    %v3987 = vunpack.c.l.s4 1983009808
    %v3988 = vunpack.c.0.s8 %v3987
    %v3989 = vlaneseq
    %v3990 = vshrl.u32 %v3989, 7
    %v3991 = vsub.s32 %v3988, %v3990
    %v3992 = vrot.slane %v3978, %v3991
    %v3993 = vcombine.low %v3985, %v3992
    %v3995 = vadd.f32 %v3887, %v3993
    %v3996 = vpack.c.bf16 %v3881, %v3881
    %3997 = vmatprep.subr.bf16.mxu0 %v3089
    %3998 = vmatpush1.bf16.msra.mxu0 %v3088
    %3999 = vmatprep.subr.bf16.mxu0 %v3093
    %4000 = vmatpush1.bf16.msra.mxu0 %v3092
    %4001 = vmatprep.subr.bf16.mxu0 %v3097
    %4002 = vmatpush1.bf16.msra.mxu0 %v3096
    %4003 = vmatprep.subr.bf16.mxu0 %v3101
    %4004 = vmatpush1.bf16.msra.mxu0 %v3100
    %4005 = vmatprep.subr.bf16.mxu0 %v3105
    %4006 = vmatpush1.bf16.msra.mxu0 %v3104
    %4007 = vmatprep.subr.bf16.mxu0 %v3109
    %4008 = vmatpush1.bf16.msra.mxu0 %v3108
    %4009 = vmatprep.subr.bf16.mxu0 %v3113
    %4010 = vmatpush1.bf16.msra.mxu0 %v3112
    %4011 = vmatprep.subr.bf16.mxu0 %v3117
    %4012 = vmatpush1.bf16.msra.mxu0 %v3116
    %4013 = vmatprep.subr.bf16.mxu0 0
    %4014 = vmatpush1.bf16.msra.mxu0 0
    %4015 = vmatprep.subr.bf16.mxu0 0
    %4016 = vmatpush1.bf16.msra.mxu0 0
    %4017 = vmatprep.subr.bf16.mxu0 0
    %4018 = vmatpush1.bf16.msra.mxu0 0
    %4019 = vmatprep.subr.bf16.mxu0 0
    %4020 = vmatpush1.bf16.msra.mxu0 0
    %4021 = vmatprep.subr.bf16.mxu0 0
    %4022 = vmatpush1.bf16.msra.mxu0 0
    %4023 = vmatprep.subr.bf16.mxu0 0
    %4024 = vmatpush1.bf16.msra.mxu0 0
    %4025 = vmatprep.subr.bf16.mxu0 0
    %4026 = vmatpush1.bf16.msra.mxu0 0
    %4027 = vmatprep.subr.bf16.mxu0 0
    %4028 = vmatpush1.bf16.msra.mxu0 0
    %4029 = vmatprep.mubr.bf16.mxu0 0
    %4030 = vmatmul.mubr.bf16.gmra.mrb[0].mxu0 %v3996
    %v4031 = vpop.f32.mrb[0].mxu0
    %v4032 = vadd.f32 0.0, %v4031
    %v4033 = vpop.f32.mrb[0].mxu0
    %v4034 = vadd.f32 0.0, %v4033
    %v4035 = vpop.f32.mrb[0].mxu0
    %v4036 = vpop.f32.mrb[0].mxu0
    %4037 = vdwg.mxu0
    %4038 = vmatprep.subr.bf16.mxu0 %v3091
    %4039 = vmatpush1.bf16.msra.mxu0 %v3090
    %4040 = vmatprep.subr.bf16.mxu0 %v3095
    %4041 = vmatpush1.bf16.msra.mxu0 %v3094
    %4042 = vmatprep.subr.bf16.mxu0 %v3099
    %4043 = vmatpush1.bf16.msra.mxu0 %v3098
    %4044 = vmatprep.subr.bf16.mxu0 %v3103
    %4045 = vmatpush1.bf16.msra.mxu0 %v3102
    %4046 = vmatprep.subr.bf16.mxu0 %v3107
    %4047 = vmatpush1.bf16.msra.mxu0 %v3106
    %4048 = vmatprep.subr.bf16.mxu0 %v3111
    %4049 = vmatpush1.bf16.msra.mxu0 %v3110
    %4050 = vmatprep.subr.bf16.mxu0 %v3115
    %4051 = vmatpush1.bf16.msra.mxu0 %v3114
    %4052 = vmatprep.subr.bf16.mxu0 %v3119
    %4053 = vmatpush1.bf16.msra.mxu0 %v3118
    %4054 = vmatprep.subr.bf16.mxu0 0
    %4055 = vmatpush1.bf16.msra.mxu0 0
    %4056 = vmatprep.subr.bf16.mxu0 0
    %4057 = vmatpush1.bf16.msra.mxu0 0
    %4058 = vmatprep.subr.bf16.mxu0 0
    %4059 = vmatpush1.bf16.msra.mxu0 0
    %4060 = vmatprep.subr.bf16.mxu0 0
    %4061 = vmatpush1.bf16.msra.mxu0 0
    %4062 = vmatprep.subr.bf16.mxu0 0
    %4063 = vmatpush1.bf16.msra.mxu0 0
    %4064 = vmatprep.subr.bf16.mxu0 0
    %4065 = vmatpush1.bf16.msra.mxu0 0
    %4066 = vmatprep.subr.bf16.mxu0 0
    %4067 = vmatpush1.bf16.msra.mxu0 0
    %4068 = vmatprep.subr.bf16.mxu0 0
    %4069 = vmatpush1.bf16.msra.mxu0 0
    %4070 = vmatprep.mubr.bf16.mxu0 0
    %4071 = vmatmul.mubr.bf16.gmra.mrb[0].mxu0 %v3996
    %v4072 = vpop.f32.mrb[0].mxu0
    %v4073 = vadd.f32 0.0, %v4072
    %v4074 = vpop.f32.mrb[0].mxu0
    %v4075 = vadd.f32 0.0, %v4074
    %v4076 = vpop.f32.mrb[0].mxu0
    %v4077 = vpop.f32.mrb[0].mxu0
    %4078 = vdwg.mxu0
    %v4083 = vcombine.low %v4032, %v4034
    %v4084 = vcombine.low %v4073, %v4075
    %v4086 = vunpack.c.l.s4 1983009808
    %v4087 = vunpack.c.0.s8 %v4086
    %v4088 = vlaneseq
    %v4089 = vshrl.u32 %v4088, 7
    %v4090 = vsub.s32 %v4087, %v4089
    %v4091 = vrot.slane %v4083, %v4090
    %v4093 = vunpack.c.l.s4 1983009808
    %v4094 = vunpack.c.0.s8 %v4093
    %v4095 = vlaneseq
    %v4096 = vshrl.u32 %v4095, 7
    %v4097 = vsub.s32 %v4094, %v4096
    %v4098 = vrot.slane %v4084, %v4097
    %v4099 = vcombine.low %v4091, %v4098
    %v4101 = vadd.f32 %v3889, %v4099
    %v4102 = vxor.u32 %v3995, 2147483648
    %v4103 = vmul.f32 %v4102, 1.442695
    %v4104 = vpow.pop %v4103
    %v4105 = vadd.f32 %v4104, 1.0
    %v4106 = vrcp.pop %v4105
    %v4107 = vmul.f32 1.0, %v4106
    %v4109 = vrot.slane %v3995, 2
    %v4111 = vxor.u32 %v4109, 2147483648
    %v4112 = vmul.f32 %v4111, 1.442695
    %v4113 = vpow.pop %v4112
    %v4114 = vadd.f32 %v4113, 1.0
    %v4115 = vrcp.pop %v4114
    %v4116 = vmul.f32 1.0, %v4115
    %v4117 = vrot.slane %v3995, 4
    %v4119 = vtanh.pop %v4117
    %v4120 = vrot.slane %v3995, 6
    %v4122 = vxor.u32 %v4120, 2147483648
    %v4123 = vmul.f32 %v4122, 1.442695
    %v4124 = vpow.pop %v4123
    %v4125 = vadd.f32 %v4124, 1.0
    %v4126 = vrcp.pop %v4125
    %v4127 = vmul.f32 1.0, %v4126
    %v4128 = vmul.f32 %v4116, %v3848
    %v4129 = vmul.f32 %v4107, %v4119
    %v4130 = vadd.f32 %v4128, %v4129
    %v4131 = vtanh.pop %v4130
    %v4132 = vmul.f32 %v4127, %v4131
    %v4133 = vxor.u32 %v4101, 2147483648
    %v4134 = vmul.f32 %v4133, 1.442695
    %v4135 = vpow.pop %v4134
    %v4136 = vadd.f32 %v4135, 1.0
    %v4137 = vrcp.pop %v4136
    %v4138 = vmul.f32 1.0, %v4137
    %v4140 = vrot.slane %v4101, 2
    %v4142 = vxor.u32 %v4140, 2147483648
    %v4143 = vmul.f32 %v4142, 1.442695
    %v4144 = vpow.pop %v4143
    %v4145 = vadd.f32 %v4144, 1.0
    %v4146 = vrcp.pop %v4145
    %v4147 = vmul.f32 1.0, %v4146
    %v4148 = vrot.slane %v4101, 4
    %v4150 = vtanh.pop %v4148
    %v4151 = vrot.slane %v4101, 6
    %v4153 = vxor.u32 %v4151, 2147483648
    %v4154 = vmul.f32 %v4153, 1.442695
    %v4155 = vpow.pop %v4154
    %v4156 = vadd.f32 %v4155, 1.0
    %v4157 = vrcp.pop %v4156
    %v4158 = vmul.f32 1.0, %v4157
    %v4159 = vmul.f32 %v4147, %v3879
    %v4160 = vmul.f32 %v4138, %v4150
    %v4161 = vadd.f32 %v4159, %v4160
    %v4162 = vtanh.pop %v4161
    %v4163 = vmul.f32 %v4158, %v4162
    %s4164 = scalar_lea.vmem [#allocation3], 6
    %4165 = vst [vmem:[%s4164] sm:$0x3] %v4132
    %s4166 = scalar_lea.vmem [#allocation4], 8
    %4167 = vst [vmem:[%s4166] sm:$0x3] %v4163
    %v4168 = vld [vmem:[%s3888] sm:$0xff]
    %v4169 = vld [vmem:[%s3886 + $0x8] sm:$0xff]
    %v4170 = vpack.c.bf16 %v4132, %v4132
    %4171 = vmatprep.subr.bf16.mxu0 %v2824
    %4172 = vmatpush1.bf16.msra.mxu0 %v2823
    %4173 = vmatprep.subr.bf16.mxu0 %v2828
    %4174 = vmatpush1.bf16.msra.mxu0 %v2827
    %4175 = vmatprep.subr.bf16.mxu0 %v2832
    %4176 = vmatpush1.bf16.msra.mxu0 %v2831
    %4177 = vmatprep.subr.bf16.mxu0 %v2836
    %4178 = vmatpush1.bf16.msra.mxu0 %v2835
    %4179 = vmatprep.subr.bf16.mxu0 %v2840
    %4180 = vmatpush1.bf16.msra.mxu0 %v2839
    %4181 = vmatprep.subr.bf16.mxu0 %v2844
    %4182 = vmatpush1.bf16.msra.mxu0 %v2843
    %4183 = vmatprep.subr.bf16.mxu0 %v2848
    %4184 = vmatpush1.bf16.msra.mxu0 %v2847
    %4185 = vmatprep.subr.bf16.mxu0 %v2852
    %4186 = vmatpush1.bf16.msra.mxu0 %v2851
    %4187 = vmatprep.subr.bf16.mxu0 0
    %4188 = vmatpush1.bf16.msra.mxu0 0
    %4189 = vmatprep.subr.bf16.mxu0 0
    %4190 = vmatpush1.bf16.msra.mxu0 0
    %4191 = vmatprep.subr.bf16.mxu0 0
    %4192 = vmatpush1.bf16.msra.mxu0 0
    %4193 = vmatprep.subr.bf16.mxu0 0
    %4194 = vmatpush1.bf16.msra.mxu0 0
    %4195 = vmatprep.subr.bf16.mxu0 0
    %4196 = vmatpush1.bf16.msra.mxu0 0
    %4197 = vmatprep.subr.bf16.mxu0 0
    %4198 = vmatpush1.bf16.msra.mxu0 0
    %4199 = vmatprep.subr.bf16.mxu0 0
    %4200 = vmatpush1.bf16.msra.mxu0 0
    %4201 = vmatprep.subr.bf16.mxu0 0
    %4202 = vmatpush1.bf16.msra.mxu0 0
    %4203 = vmatprep.mubr.bf16.mxu0 0
    %4204 = vmatmul.mubr.bf16.gmra.mrb[0].mxu0 %v4170
    %v4205 = vpop.f32.mrb[0].mxu0
    %v4206 = vadd.f32 0.0, %v4205
    %v4207 = vpop.f32.mrb[0].mxu0
    %v4208 = vadd.f32 0.0, %v4207
    %v4209 = vpop.f32.mrb[0].mxu0
    %v4210 = vpop.f32.mrb[0].mxu0
    %4211 = vdwg.mxu0
    %4212 = vmatprep.subr.bf16.mxu0 %v2826
    %4213 = vmatpush1.bf16.msra.mxu0 %v2825
    %4214 = vmatprep.subr.bf16.mxu0 %v2830
    %4215 = vmatpush1.bf16.msra.mxu0 %v2829
    %4216 = vmatprep.subr.bf16.mxu0 %v2834
    %4217 = vmatpush1.bf16.msra.mxu0 %v2833
    %4218 = vmatprep.subr.bf16.mxu0 %v2838
    %4219 = vmatpush1.bf16.msra.mxu0 %v2837
    %4220 = vmatprep.subr.bf16.mxu0 %v2842
    %4221 = vmatpush1.bf16.msra.mxu0 %v2841
    %4222 = vmatprep.subr.bf16.mxu0 %v2846
    %4223 = vmatpush1.bf16.msra.mxu0 %v2845
    %4224 = vmatprep.subr.bf16.mxu0 %v2850
    %4225 = vmatpush1.bf16.msra.mxu0 %v2849
    %4226 = vmatprep.subr.bf16.mxu0 %v2854
    %4227 = vmatpush1.bf16.msra.mxu0 %v2853
    %4228 = vmatprep.subr.bf16.mxu0 0
    %4229 = vmatpush1.bf16.msra.mxu0 0
    %4230 = vmatprep.subr.bf16.mxu0 0
    %4231 = vmatpush1.bf16.msra.mxu0 0
    %4232 = vmatprep.subr.bf16.mxu0 0
    %4233 = vmatpush1.bf16.msra.mxu0 0
    %4234 = vmatprep.subr.bf16.mxu0 0
    %4235 = vmatpush1.bf16.msra.mxu0 0
    %4236 = vmatprep.subr.bf16.mxu0 0
    %4237 = vmatpush1.bf16.msra.mxu0 0
    %4238 = vmatprep.subr.bf16.mxu0 0
    %4239 = vmatpush1.bf16.msra.mxu0 0
    %4240 = vmatprep.subr.bf16.mxu0 0
    %4241 = vmatpush1.bf16.msra.mxu0 0
    %4242 = vmatprep.subr.bf16.mxu0 0
    %4243 = vmatpush1.bf16.msra.mxu0 0
    %4244 = vmatprep.mubr.bf16.mxu0 0
    %4245 = vmatmul.mubr.bf16.gmra.mrb[0].mxu0 %v4170
    %v4246 = vpop.f32.mrb[0].mxu0
    %v4247 = vadd.f32 0.0, %v4246
    %v4248 = vpop.f32.mrb[0].mxu0
    %v4249 = vadd.f32 0.0, %v4248
    %v4250 = vpop.f32.mrb[0].mxu0
    %v4251 = vpop.f32.mrb[0].mxu0
    %4252 = vdwg.mxu0
    %v4257 = vcombine.low %v4206, %v4208
    %v4258 = vcombine.low %v4247, %v4249
    %v4260 = vunpack.c.l.s4 1983009808
    %v4261 = vunpack.c.0.s8 %v4260
    %v4262 = vlaneseq
    %v4263 = vshrl.u32 %v4262, 7
    %v4264 = vsub.s32 %v4261, %v4263
    %v4265 = vrot.slane %v4257, %v4264
    %v4267 = vunpack.c.l.s4 1983009808
    %v4268 = vunpack.c.0.s8 %v4267
    %v4269 = vlaneseq
    %v4270 = vshrl.u32 %v4269, 7
    %v4271 = vsub.s32 %v4268, %v4270
    %v4272 = vrot.slane %v4258, %v4271
    %v4273 = vcombine.low %v4265, %v4272
    %v4275 = vadd.f32 %v4168, %v4273
    %v4276 = vpack.c.bf16 %v4163, %v4163
    %4277 = vmatprep.subr.bf16.mxu0 %v3089
    %4278 = vmatpush1.bf16.msra.mxu0 %v3088
    %4279 = vmatprep.subr.bf16.mxu0 %v3093
    %4280 = vmatpush1.bf16.msra.mxu0 %v3092
    %4281 = vmatprep.subr.bf16.mxu0 %v3097
    %4282 = vmatpush1.bf16.msra.mxu0 %v3096
    %4283 = vmatprep.subr.bf16.mxu0 %v3101
    %4284 = vmatpush1.bf16.msra.mxu0 %v3100
    %4285 = vmatprep.subr.bf16.mxu0 %v3105
    %4286 = vmatpush1.bf16.msra.mxu0 %v3104
    %4287 = vmatprep.subr.bf16.mxu0 %v3109
    %4288 = vmatpush1.bf16.msra.mxu0 %v3108
    %4289 = vmatprep.subr.bf16.mxu0 %v3113
    %4290 = vmatpush1.bf16.msra.mxu0 %v3112
    %4291 = vmatprep.subr.bf16.mxu0 %v3117
    %4292 = vmatpush1.bf16.msra.mxu0 %v3116
    %4293 = vmatprep.subr.bf16.mxu0 0
    %4294 = vmatpush1.bf16.msra.mxu0 0
    %4295 = vmatprep.subr.bf16.mxu0 0
    %4296 = vmatpush1.bf16.msra.mxu0 0
    %4297 = vmatprep.subr.bf16.mxu0 0
    %4298 = vmatpush1.bf16.msra.mxu0 0
    %4299 = vmatprep.subr.bf16.mxu0 0
    %4300 = vmatpush1.bf16.msra.mxu0 0
    %4301 = vmatprep.subr.bf16.mxu0 0
    %4302 = vmatpush1.bf16.msra.mxu0 0
    %4303 = vmatprep.subr.bf16.mxu0 0
    %4304 = vmatpush1.bf16.msra.mxu0 0
    %4305 = vmatprep.subr.bf16.mxu0 0
    %4306 = vmatpush1.bf16.msra.mxu0 0
    %4307 = vmatprep.subr.bf16.mxu0 0
    %4308 = vmatpush1.bf16.msra.mxu0 0
    %4309 = vmatprep.mubr.bf16.mxu0 0
    %4310 = vmatmul.mubr.bf16.gmra.mrb[0].mxu0 %v4276
    %v4311 = vpop.f32.mrb[0].mxu0
    %v4312 = vadd.f32 0.0, %v4311
    %v4313 = vpop.f32.mrb[0].mxu0
    %v4314 = vadd.f32 0.0, %v4313
    %v4315 = vpop.f32.mrb[0].mxu0
    %v4316 = vpop.f32.mrb[0].mxu0
    %4317 = vdwg.mxu0
    %4318 = vmatprep.subr.bf16.mxu0 %v3091
    %4319 = vmatpush1.bf16.msra.mxu0 %v3090
    %4320 = vmatprep.subr.bf16.mxu0 %v3095
    %4321 = vmatpush1.bf16.msra.mxu0 %v3094
    %4322 = vmatprep.subr.bf16.mxu0 %v3099
    %4323 = vmatpush1.bf16.msra.mxu0 %v3098
    %4324 = vmatprep.subr.bf16.mxu0 %v3103
    %4325 = vmatpush1.bf16.msra.mxu0 %v3102
    %4326 = vmatprep.subr.bf16.mxu0 %v3107
    %4327 = vmatpush1.bf16.msra.mxu0 %v3106
    %4328 = vmatprep.subr.bf16.mxu0 %v3111
    %4329 = vmatpush1.bf16.msra.mxu0 %v3110
    %4330 = vmatprep.subr.bf16.mxu0 %v3115
    %4331 = vmatpush1.bf16.msra.mxu0 %v3114
    %4332 = vmatprep.subr.bf16.mxu0 %v3119
    %4333 = vmatpush1.bf16.msra.mxu0 %v3118
    %4334 = vmatprep.subr.bf16.mxu0 0
    %4335 = vmatpush1.bf16.msra.mxu0 0
    %4336 = vmatprep.subr.bf16.mxu0 0
    %4337 = vmatpush1.bf16.msra.mxu0 0
    %4338 = vmatprep.subr.bf16.mxu0 0
    %4339 = vmatpush1.bf16.msra.mxu0 0
    %4340 = vmatprep.subr.bf16.mxu0 0
    %4341 = vmatpush1.bf16.msra.mxu0 0
    %4342 = vmatprep.subr.bf16.mxu0 0
    %4343 = vmatpush1.bf16.msra.mxu0 0
    %4344 = vmatprep.subr.bf16.mxu0 0
    %4345 = vmatpush1.bf16.msra.mxu0 0
    %4346 = vmatprep.subr.bf16.mxu0 0
    %4347 = vmatpush1.bf16.msra.mxu0 0
    %4348 = vmatprep.subr.bf16.mxu0 0
    %4349 = vmatpush1.bf16.msra.mxu0 0
    %4350 = vmatprep.mubr.bf16.mxu0 0
    %4351 = vmatmul.mubr.bf16.gmra.mrb[0].mxu0 %v4276
    %v4352 = vpop.f32.mrb[0].mxu0
    %v4353 = vadd.f32 0.0, %v4352
    %v4354 = vpop.f32.mrb[0].mxu0
    %v4355 = vadd.f32 0.0, %v4354
    %v4356 = vpop.f32.mrb[0].mxu0
    %v4357 = vpop.f32.mrb[0].mxu0
    %4358 = vdwg.mxu0
    %v4363 = vcombine.low %v4312, %v4314
    %v4364 = vcombine.low %v4353, %v4355
    %v4366 = vunpack.c.l.s4 1983009808
    %v4367 = vunpack.c.0.s8 %v4366
    %v4368 = vlaneseq
    %v4369 = vshrl.u32 %v4368, 7
    %v4370 = vsub.s32 %v4367, %v4369
    %v4371 = vrot.slane %v4363, %v4370
    %v4373 = vunpack.c.l.s4 1983009808
    %v4374 = vunpack.c.0.s8 %v4373
    %v4375 = vlaneseq
    %v4376 = vshrl.u32 %v4375, 7
    %v4377 = vsub.s32 %v4374, %v4376
    %v4378 = vrot.slane %v4364, %v4377
    %v4379 = vcombine.low %v4371, %v4378
    %v4381 = vadd.f32 %v4169, %v4379
    %v4382 = vxor.u32 %v4275, 2147483648
    %v4383 = vmul.f32 %v4382, 1.442695
    %v4384 = vpow.pop %v4383
    %v4385 = vadd.f32 %v4384, 1.0
    %v4386 = vrcp.pop %v4385
    %v4387 = vmul.f32 1.0, %v4386
    %v4389 = vrot.slane %v4275, 2
    %v4391 = vxor.u32 %v4389, 2147483648
    %v4392 = vmul.f32 %v4391, 1.442695
    %v4393 = vpow.pop %v4392
    %v4394 = vadd.f32 %v4393, 1.0
    %v4395 = vrcp.pop %v4394
    %v4396 = vmul.f32 1.0, %v4395
    %v4397 = vrot.slane %v4275, 4
    %v4399 = vtanh.pop %v4397
    %v4400 = vrot.slane %v4275, 6
    %v4402 = vxor.u32 %v4400, 2147483648
    %v4403 = vmul.f32 %v4402, 1.442695
    %v4404 = vpow.pop %v4403
    %v4405 = vadd.f32 %v4404, 1.0
    %v4406 = vrcp.pop %v4405
    %v4407 = vmul.f32 1.0, %v4406
    %v4408 = vmul.f32 %v4396, %v4130
    %v4409 = vmul.f32 %v4387, %v4399
    %v4410 = vadd.f32 %v4408, %v4409
    %v4411 = vtanh.pop %v4410
    %v4412 = vmul.f32 %v4407, %v4411
    %v4413 = vxor.u32 %v4381, 2147483648
    %v4414 = vmul.f32 %v4413, 1.442695
    %v4415 = vpow.pop %v4414
    %v4416 = vadd.f32 %v4415, 1.0
    %v4417 = vrcp.pop %v4416
    %v4418 = vmul.f32 1.0, %v4417
    %v4420 = vrot.slane %v4381, 2
    %v4422 = vxor.u32 %v4420, 2147483648
    %v4423 = vmul.f32 %v4422, 1.442695
    %v4424 = vpow.pop %v4423
    %v4425 = vadd.f32 %v4424, 1.0
    %v4426 = vrcp.pop %v4425
    %v4427 = vmul.f32 1.0, %v4426
    %v4428 = vrot.slane %v4381, 4
    %v4430 = vtanh.pop %v4428
    %v4431 = vrot.slane %v4381, 6
    %v4433 = vxor.u32 %v4431, 2147483648
    %v4434 = vmul.f32 %v4433, 1.442695
    %v4435 = vpow.pop %v4434
    %v4436 = vadd.f32 %v4435, 1.0
    %v4437 = vrcp.pop %v4436
    %v4438 = vmul.f32 1.0, %v4437
    %v4439 = vmul.f32 %v4427, %v4161
    %v4440 = vmul.f32 %v4418, %v4430
    %v4441 = vadd.f32 %v4439, %v4440
    %v4442 = vtanh.pop %v4441
    %v4443 = vmul.f32 %v4438, %v4442
    %s4444 = scalar_lea.vmem [#allocation3], 8
    %4445 = vst [vmem:[%s4444] sm:$0x3] %v4412
    %s4446 = scalar_lea.vmem [#allocation4], 6
    %4447 = vst [vmem:[%s4446] sm:$0x3] %v4443
    %v4448 = vld [vmem:[%s3606] sm:$0xff]
    %v4449 = vld [vmem:[%s3604 + $0x8] sm:$0xff]
    %v4450 = vpack.c.bf16 %v4412, %v4412
    %4451 = vmatprep.subr.bf16.mxu0 %v2824
    %4452 = vmatpush1.bf16.msra.mxu0 %v2823
    %4453 = vmatprep.subr.bf16.mxu0 %v2828
    %4454 = vmatpush1.bf16.msra.mxu0 %v2827
    %4455 = vmatprep.subr.bf16.mxu0 %v2832
    %4456 = vmatpush1.bf16.msra.mxu0 %v2831
    %4457 = vmatprep.subr.bf16.mxu0 %v2836
    %4458 = vmatpush1.bf16.msra.mxu0 %v2835
    %4459 = vmatprep.subr.bf16.mxu0 %v2840
    %4460 = vmatpush1.bf16.msra.mxu0 %v2839
    %4461 = vmatprep.subr.bf16.mxu0 %v2844
    %4462 = vmatpush1.bf16.msra.mxu0 %v2843
    %4463 = vmatprep.subr.bf16.mxu0 %v2848
    %4464 = vmatpush1.bf16.msra.mxu0 %v2847
    %4465 = vmatprep.subr.bf16.mxu0 %v2852
    %4466 = vmatpush1.bf16.msra.mxu0 %v2851
    %4467 = vmatprep.subr.bf16.mxu0 0
    %4468 = vmatpush1.bf16.msra.mxu0 0
    %4469 = vmatprep.subr.bf16.mxu0 0
    %4470 = vmatpush1.bf16.msra.mxu0 0
    %4471 = vmatprep.subr.bf16.mxu0 0
    %4472 = vmatpush1.bf16.msra.mxu0 0
    %4473 = vmatprep.subr.bf16.mxu0 0
    %4474 = vmatpush1.bf16.msra.mxu0 0
    %4475 = vmatprep.subr.bf16.mxu0 0
    %4476 = vmatpush1.bf16.msra.mxu0 0
    %4477 = vmatprep.subr.bf16.mxu0 0
    %4478 = vmatpush1.bf16.msra.mxu0 0
    %4479 = vmatprep.subr.bf16.mxu0 0
    %4480 = vmatpush1.bf16.msra.mxu0 0
    %4481 = vmatprep.subr.bf16.mxu0 0
    %4482 = vmatpush1.bf16.msra.mxu0 0
    %4483 = vmatprep.mubr.bf16.mxu0 0
    %4484 = vmatmul.mubr.bf16.gmra.mrb[0].mxu0 %v4450
    %v4485 = vpop.f32.mrb[0].mxu0
    %v4486 = vadd.f32 0.0, %v4485
    %v4487 = vpop.f32.mrb[0].mxu0
    %v4488 = vadd.f32 0.0, %v4487
    %v4489 = vpop.f32.mrb[0].mxu0
    %v4490 = vpop.f32.mrb[0].mxu0
    %4491 = vdwg.mxu0
    %4492 = vmatprep.subr.bf16.mxu0 %v2826
    %4493 = vmatpush1.bf16.msra.mxu0 %v2825
    %4494 = vmatprep.subr.bf16.mxu0 %v2830
    %4495 = vmatpush1.bf16.msra.mxu0 %v2829
    %4496 = vmatprep.subr.bf16.mxu0 %v2834
    %4497 = vmatpush1.bf16.msra.mxu0 %v2833
    %4498 = vmatprep.subr.bf16.mxu0 %v2838
    %4499 = vmatpush1.bf16.msra.mxu0 %v2837
    %4500 = vmatprep.subr.bf16.mxu0 %v2842
    %4501 = vmatpush1.bf16.msra.mxu0 %v2841
    %4502 = vmatprep.subr.bf16.mxu0 %v2846
    %4503 = vmatpush1.bf16.msra.mxu0 %v2845
    %4504 = vmatprep.subr.bf16.mxu0 %v2850
    %4505 = vmatpush1.bf16.msra.mxu0 %v2849
    %4506 = vmatprep.subr.bf16.mxu0 %v2854
    %4507 = vmatpush1.bf16.msra.mxu0 %v2853
    %4508 = vmatprep.subr.bf16.mxu0 0
    %4509 = vmatpush1.bf16.msra.mxu0 0
    %4510 = vmatprep.subr.bf16.mxu0 0
    %4511 = vmatpush1.bf16.msra.mxu0 0
    %4512 = vmatprep.subr.bf16.mxu0 0
    %4513 = vmatpush1.bf16.msra.mxu0 0
    %4514 = vmatprep.subr.bf16.mxu0 0
    %4515 = vmatpush1.bf16.msra.mxu0 0
    %4516 = vmatprep.subr.bf16.mxu0 0
    %4517 = vmatpush1.bf16.msra.mxu0 0
    %4518 = vmatprep.subr.bf16.mxu0 0
    %4519 = vmatpush1.bf16.msra.mxu0 0
    %4520 = vmatprep.subr.bf16.mxu0 0
    %4521 = vmatpush1.bf16.msra.mxu0 0
    %4522 = vmatprep.subr.bf16.mxu0 0
    %4523 = vmatpush1.bf16.msra.mxu0 0
    %4524 = vmatprep.mubr.bf16.mxu0 0
    %4525 = vmatmul.mubr.bf16.gmra.mrb[0].mxu0 %v4450
    %v4526 = vpop.f32.mrb[0].mxu0
    %v4527 = vadd.f32 0.0, %v4526
    %v4528 = vpop.f32.mrb[0].mxu0
    %v4529 = vadd.f32 0.0, %v4528
    %v4530 = vpop.f32.mrb[0].mxu0
    %v4531 = vpop.f32.mrb[0].mxu0
    %4532 = vdwg.mxu0
    %v4537 = vcombine.low %v4486, %v4488
    %v4538 = vcombine.low %v4527, %v4529
    %v4540 = vunpack.c.l.s4 1983009808
    %v4541 = vunpack.c.0.s8 %v4540
    %v4542 = vlaneseq
    %v4543 = vshrl.u32 %v4542, 7
    %v4544 = vsub.s32 %v4541, %v4543
    %v4545 = vrot.slane %v4537, %v4544
    %v4547 = vunpack.c.l.s4 1983009808
    %v4548 = vunpack.c.0.s8 %v4547
    %v4549 = vlaneseq
    %v4550 = vshrl.u32 %v4549, 7
    %v4551 = vsub.s32 %v4548, %v4550
    %v4552 = vrot.slane %v4538, %v4551
    %v4553 = vcombine.low %v4545, %v4552
    %v4555 = vadd.f32 %v4448, %v4553
    %v4556 = vpack.c.bf16 %v4443, %v4443
    %4557 = vmatprep.subr.bf16.mxu0 %v3089
    %4558 = vmatpush1.bf16.msra.mxu0 %v3088
    %4559 = vmatprep.subr.bf16.mxu0 %v3093
    %4560 = vmatpush1.bf16.msra.mxu0 %v3092
    %4561 = vmatprep.subr.bf16.mxu0 %v3097
    %4562 = vmatpush1.bf16.msra.mxu0 %v3096
    %4563 = vmatprep.subr.bf16.mxu0 %v3101
    %4564 = vmatpush1.bf16.msra.mxu0 %v3100
    %4565 = vmatprep.subr.bf16.mxu0 %v3105
    %4566 = vmatpush1.bf16.msra.mxu0 %v3104
    %4567 = vmatprep.subr.bf16.mxu0 %v3109
    %4568 = vmatpush1.bf16.msra.mxu0 %v3108
    %4569 = vmatprep.subr.bf16.mxu0 %v3113
    %4570 = vmatpush1.bf16.msra.mxu0 %v3112
    %4571 = vmatprep.subr.bf16.mxu0 %v3117
    %4572 = vmatpush1.bf16.msra.mxu0 %v3116
    %4573 = vmatprep.subr.bf16.mxu0 0
    %4574 = vmatpush1.bf16.msra.mxu0 0
    %4575 = vmatprep.subr.bf16.mxu0 0
    %4576 = vmatpush1.bf16.msra.mxu0 0
    %4577 = vmatprep.subr.bf16.mxu0 0
    %4578 = vmatpush1.bf16.msra.mxu0 0
    %4579 = vmatprep.subr.bf16.mxu0 0
    %4580 = vmatpush1.bf16.msra.mxu0 0
    %4581 = vmatprep.subr.bf16.mxu0 0
    %4582 = vmatpush1.bf16.msra.mxu0 0
    %4583 = vmatprep.subr.bf16.mxu0 0
    %4584 = vmatpush1.bf16.msra.mxu0 0
    %4585 = vmatprep.subr.bf16.mxu0 0
    %4586 = vmatpush1.bf16.msra.mxu0 0
    %4587 = vmatprep.subr.bf16.mxu0 0
    %4588 = vmatpush1.bf16.msra.mxu0 0
    %4589 = vmatprep.mubr.bf16.mxu0 0
    %4590 = vmatmul.mubr.bf16.gmra.mrb[0].mxu0 %v4556
    %v4591 = vpop.f32.mrb[0].mxu0
    %v4592 = vadd.f32 0.0, %v4591
    %v4593 = vpop.f32.mrb[0].mxu0
    %v4594 = vadd.f32 0.0, %v4593
    %v4595 = vpop.f32.mrb[0].mxu0
    %v4596 = vpop.f32.mrb[0].mxu0
    %4597 = vdwg.mxu0
    %4598 = vmatprep.subr.bf16.mxu0 %v3091
    %4599 = vmatpush1.bf16.msra.mxu0 %v3090
    %4600 = vmatprep.subr.bf16.mxu0 %v3095
    %4601 = vmatpush1.bf16.msra.mxu0 %v3094
    %4602 = vmatprep.subr.bf16.mxu0 %v3099
    %4603 = vmatpush1.bf16.msra.mxu0 %v3098
    %4604 = vmatprep.subr.bf16.mxu0 %v3103
    %4605 = vmatpush1.bf16.msra.mxu0 %v3102
    %4606 = vmatprep.subr.bf16.mxu0 %v3107
    %4607 = vmatpush1.bf16.msra.mxu0 %v3106
    %4608 = vmatprep.subr.bf16.mxu0 %v3111
    %4609 = vmatpush1.bf16.msra.mxu0 %v3110
    %4610 = vmatprep.subr.bf16.mxu0 %v3115
    %4611 = vmatpush1.bf16.msra.mxu0 %v3114
    %4612 = vmatprep.subr.bf16.mxu0 %v3119
    %4613 = vmatpush1.bf16.msra.mxu0 %v3118
    %4614 = vmatprep.subr.bf16.mxu0 0
    %4615 = vmatpush1.bf16.msra.mxu0 0
    %4616 = vmatprep.subr.bf16.mxu0 0
    %4617 = vmatpush1.bf16.msra.mxu0 0
    %4618 = vmatprep.subr.bf16.mxu0 0
    %4619 = vmatpush1.bf16.msra.mxu0 0
    %4620 = vmatprep.subr.bf16.mxu0 0
    %4621 = vmatpush1.bf16.msra.mxu0 0
    %4622 = vmatprep.subr.bf16.mxu0 0
    %4623 = vmatpush1.bf16.msra.mxu0 0
    %4624 = vmatprep.subr.bf16.mxu0 0
    %4625 = vmatpush1.bf16.msra.mxu0 0
    %4626 = vmatprep.subr.bf16.mxu0 0
    %4627 = vmatpush1.bf16.msra.mxu0 0
    %4628 = vmatprep.subr.bf16.mxu0 0
    %4629 = vmatpush1.bf16.msra.mxu0 0
    %4630 = vmatprep.mubr.bf16.mxu0 0
    %4631 = vmatmul.mubr.bf16.gmra.mrb[0].mxu0 %v4556
    %v4632 = vpop.f32.mrb[0].mxu0
    %v4633 = vadd.f32 0.0, %v4632
    %v4634 = vpop.f32.mrb[0].mxu0
    %v4635 = vadd.f32 0.0, %v4634
    %v4636 = vpop.f32.mrb[0].mxu0
    %v4637 = vpop.f32.mrb[0].mxu0
    %4638 = vdwg.mxu0
    %v4643 = vcombine.low %v4592, %v4594
    %v4644 = vcombine.low %v4633, %v4635
    %v4646 = vunpack.c.l.s4 1983009808
    %v4647 = vunpack.c.0.s8 %v4646
    %v4648 = vlaneseq
    %v4649 = vshrl.u32 %v4648, 7
    %v4650 = vsub.s32 %v4647, %v4649
    %v4651 = vrot.slane %v4643, %v4650
    %v4653 = vunpack.c.l.s4 1983009808
    %v4654 = vunpack.c.0.s8 %v4653
    %v4655 = vlaneseq
    %v4656 = vshrl.u32 %v4655, 7
    %v4657 = vsub.s32 %v4654, %v4656
    %v4658 = vrot.slane %v4644, %v4657
    %v4659 = vcombine.low %v4651, %v4658
    %v4661 = vadd.f32 %v4449, %v4659
    %v4662 = vxor.u32 %v4555, 2147483648
    %v4663 = vmul.f32 %v4662, 1.442695
    %v4664 = vpow.pop %v4663
    %v4665 = vadd.f32 %v4664, 1.0
    %v4666 = vrcp.pop %v4665
    %v4667 = vmul.f32 1.0, %v4666
    %v4669 = vrot.slane %v4555, 2
    %v4671 = vxor.u32 %v4669, 2147483648
    %v4672 = vmul.f32 %v4671, 1.442695
    %v4673 = vpow.pop %v4672
    %v4674 = vadd.f32 %v4673, 1.0
    %v4675 = vrcp.pop %v4674
    %v4676 = vmul.f32 1.0, %v4675
    %v4677 = vrot.slane %v4555, 4
    %v4679 = vtanh.pop %v4677
    %v4680 = vrot.slane %v4555, 6
    %v4682 = vxor.u32 %v4680, 2147483648
    %v4683 = vmul.f32 %v4682, 1.442695
    %v4684 = vpow.pop %v4683
    %v4685 = vadd.f32 %v4684, 1.0
    %v4686 = vrcp.pop %v4685
    %v4687 = vmul.f32 1.0, %v4686
    %v4688 = vmul.f32 %v4676, %v4410
    %v4689 = vmul.f32 %v4667, %v4679
    %v4690 = vadd.f32 %v4688, %v4689
    %v4691 = vtanh.pop %v4690
    %v4692 = vmul.f32 %v4687, %v4691
    %v4693 = vxor.u32 %v4661, 2147483648
    %v4694 = vmul.f32 %v4693, 1.442695
    %v4695 = vpow.pop %v4694
    %v4696 = vadd.f32 %v4695, 1.0
    %v4697 = vrcp.pop %v4696
    %v4698 = vmul.f32 1.0, %v4697
    %v4700 = vrot.slane %v4661, 2
    %v4702 = vxor.u32 %v4700, 2147483648
    %v4703 = vmul.f32 %v4702, 1.442695
    %v4704 = vpow.pop %v4703
    %v4705 = vadd.f32 %v4704, 1.0
    %v4706 = vrcp.pop %v4705
    %v4707 = vmul.f32 1.0, %v4706
    %v4708 = vrot.slane %v4661, 4
    %v4710 = vtanh.pop %v4708
    %v4711 = vrot.slane %v4661, 6
    %v4713 = vxor.u32 %v4711, 2147483648
    %v4714 = vmul.f32 %v4713, 1.442695
    %v4715 = vpow.pop %v4714
    %v4716 = vadd.f32 %v4715, 1.0
    %v4717 = vrcp.pop %v4716
    %v4718 = vmul.f32 1.0, %v4717
    %v4719 = vmul.f32 %v4707, %v4441
    %v4720 = vmul.f32 %v4698, %v4710
    %v4721 = vadd.f32 %v4719, %v4720
    %v4722 = vtanh.pop %v4721
    %v4723 = vmul.f32 %v4718, %v4722
    %s4724 = scalar_lea.vmem [#allocation3], 10
    %4725 = vst [vmem:[%s4724] sm:$0x3] %v4692
    %s4726 = scalar_lea.vmem [#allocation4], 4
    %4727 = vst [vmem:[%s4726] sm:$0x3] %v4723
    %v4728 = vld [vmem:[%s3324] sm:$0xff]
    %v4729 = vld [vmem:[%s3322 + $0x8] sm:$0xff]
    %v4730 = vpack.c.bf16 %v4692, %v4692
    %4731 = vmatprep.subr.bf16.mxu0 %v2824
    %4732 = vmatpush1.bf16.msra.mxu0 %v2823
    %4733 = vmatprep.subr.bf16.mxu0 %v2828
    %4734 = vmatpush1.bf16.msra.mxu0 %v2827
    %4735 = vmatprep.subr.bf16.mxu0 %v2832
    %4736 = vmatpush1.bf16.msra.mxu0 %v2831
    %4737 = vmatprep.subr.bf16.mxu0 %v2836
    %4738 = vmatpush1.bf16.msra.mxu0 %v2835
    %4739 = vmatprep.subr.bf16.mxu0 %v2840
    %4740 = vmatpush1.bf16.msra.mxu0 %v2839
    %4741 = vmatprep.subr.bf16.mxu0 %v2844
    %4742 = vmatpush1.bf16.msra.mxu0 %v2843
    %4743 = vmatprep.subr.bf16.mxu0 %v2848
    %4744 = vmatpush1.bf16.msra.mxu0 %v2847
    %4745 = vmatprep.subr.bf16.mxu0 %v2852
    %4746 = vmatpush1.bf16.msra.mxu0 %v2851
    %4747 = vmatprep.subr.bf16.mxu0 0
    %4748 = vmatpush1.bf16.msra.mxu0 0
    %4749 = vmatprep.subr.bf16.mxu0 0
    %4750 = vmatpush1.bf16.msra.mxu0 0
    %4751 = vmatprep.subr.bf16.mxu0 0
    %4752 = vmatpush1.bf16.msra.mxu0 0
    %4753 = vmatprep.subr.bf16.mxu0 0
    %4754 = vmatpush1.bf16.msra.mxu0 0
    %4755 = vmatprep.subr.bf16.mxu0 0
    %4756 = vmatpush1.bf16.msra.mxu0 0
    %4757 = vmatprep.subr.bf16.mxu0 0
    %4758 = vmatpush1.bf16.msra.mxu0 0
    %4759 = vmatprep.subr.bf16.mxu0 0
    %4760 = vmatpush1.bf16.msra.mxu0 0
    %4761 = vmatprep.subr.bf16.mxu0 0
    %4762 = vmatpush1.bf16.msra.mxu0 0
    %4763 = vmatprep.mubr.bf16.mxu0 0
    %4764 = vmatmul.mubr.bf16.gmra.mrb[0].mxu0 %v4730
    %v4765 = vpop.f32.mrb[0].mxu0
    %v4766 = vadd.f32 0.0, %v4765
    %v4767 = vpop.f32.mrb[0].mxu0
    %v4768 = vadd.f32 0.0, %v4767
    %v4769 = vpop.f32.mrb[0].mxu0
    %v4770 = vpop.f32.mrb[0].mxu0
    %4771 = vdwg.mxu0
    %4772 = vmatprep.subr.bf16.mxu0 %v2826
    %4773 = vmatpush1.bf16.msra.mxu0 %v2825
    %4774 = vmatprep.subr.bf16.mxu0 %v2830
    %4775 = vmatpush1.bf16.msra.mxu0 %v2829
    %4776 = vmatprep.subr.bf16.mxu0 %v2834
    %4777 = vmatpush1.bf16.msra.mxu0 %v2833
    %4778 = vmatprep.subr.bf16.mxu0 %v2838
    %4779 = vmatpush1.bf16.msra.mxu0 %v2837
    %4780 = vmatprep.subr.bf16.mxu0 %v2842
    %4781 = vmatpush1.bf16.msra.mxu0 %v2841
    %4782 = vmatprep.subr.bf16.mxu0 %v2846
    %4783 = vmatpush1.bf16.msra.mxu0 %v2845
    %4784 = vmatprep.subr.bf16.mxu0 %v2850
    %4785 = vmatpush1.bf16.msra.mxu0 %v2849
    %4786 = vmatprep.subr.bf16.mxu0 %v2854
    %4787 = vmatpush1.bf16.msra.mxu0 %v2853
    %4788 = vmatprep.subr.bf16.mxu0 0
    %4789 = vmatpush1.bf16.msra.mxu0 0
    %4790 = vmatprep.subr.bf16.mxu0 0
    %4791 = vmatpush1.bf16.msra.mxu0 0
    %4792 = vmatprep.subr.bf16.mxu0 0
    %4793 = vmatpush1.bf16.msra.mxu0 0
    %4794 = vmatprep.subr.bf16.mxu0 0
    %4795 = vmatpush1.bf16.msra.mxu0 0
    %4796 = vmatprep.subr.bf16.mxu0 0
    %4797 = vmatpush1.bf16.msra.mxu0 0
    %4798 = vmatprep.subr.bf16.mxu0 0
    %4799 = vmatpush1.bf16.msra.mxu0 0
    %4800 = vmatprep.subr.bf16.mxu0 0
    %4801 = vmatpush1.bf16.msra.mxu0 0
    %4802 = vmatprep.subr.bf16.mxu0 0
    %4803 = vmatpush1.bf16.msra.mxu0 0
    %4804 = vmatprep.mubr.bf16.mxu0 0
    %4805 = vmatmul.mubr.bf16.gmra.mrb[0].mxu0 %v4730
    %v4806 = vpop.f32.mrb[0].mxu0
    %v4807 = vadd.f32 0.0, %v4806
    %v4808 = vpop.f32.mrb[0].mxu0
    %v4809 = vadd.f32 0.0, %v4808
    %v4810 = vpop.f32.mrb[0].mxu0
    %v4811 = vpop.f32.mrb[0].mxu0
    %4812 = vdwg.mxu0
    %v4817 = vcombine.low %v4766, %v4768
    %v4818 = vcombine.low %v4807, %v4809
    %v4820 = vunpack.c.l.s4 1983009808
    %v4821 = vunpack.c.0.s8 %v4820
    %v4822 = vlaneseq
    %v4823 = vshrl.u32 %v4822, 7
    %v4824 = vsub.s32 %v4821, %v4823
    %v4825 = vrot.slane %v4817, %v4824
    %v4827 = vunpack.c.l.s4 1983009808
    %v4828 = vunpack.c.0.s8 %v4827
    %v4829 = vlaneseq
    %v4830 = vshrl.u32 %v4829, 7
    %v4831 = vsub.s32 %v4828, %v4830
    %v4832 = vrot.slane %v4818, %v4831
    %v4833 = vcombine.low %v4825, %v4832
    %v4835 = vadd.f32 %v4728, %v4833
    %v4836 = vpack.c.bf16 %v4723, %v4723
    %4837 = vmatprep.subr.bf16.mxu0 %v3089
    %4838 = vmatpush1.bf16.msra.mxu0 %v3088
    %4839 = vmatprep.subr.bf16.mxu0 %v3093
    %4840 = vmatpush1.bf16.msra.mxu0 %v3092
    %4841 = vmatprep.subr.bf16.mxu0 %v3097
    %4842 = vmatpush1.bf16.msra.mxu0 %v3096
    %4843 = vmatprep.subr.bf16.mxu0 %v3101
    %4844 = vmatpush1.bf16.msra.mxu0 %v3100
    %4845 = vmatprep.subr.bf16.mxu0 %v3105
    %4846 = vmatpush1.bf16.msra.mxu0 %v3104
    %4847 = vmatprep.subr.bf16.mxu0 %v3109
    %4848 = vmatpush1.bf16.msra.mxu0 %v3108
    %4849 = vmatprep.subr.bf16.mxu0 %v3113
    %4850 = vmatpush1.bf16.msra.mxu0 %v3112
    %4851 = vmatprep.subr.bf16.mxu0 %v3117
    %4852 = vmatpush1.bf16.msra.mxu0 %v3116
    %4853 = vmatprep.subr.bf16.mxu0 0
    %4854 = vmatpush1.bf16.msra.mxu0 0
    %4855 = vmatprep.subr.bf16.mxu0 0
    %4856 = vmatpush1.bf16.msra.mxu0 0
    %4857 = vmatprep.subr.bf16.mxu0 0
    %4858 = vmatpush1.bf16.msra.mxu0 0
    %4859 = vmatprep.subr.bf16.mxu0 0
    %4860 = vmatpush1.bf16.msra.mxu0 0
    %4861 = vmatprep.subr.bf16.mxu0 0
    %4862 = vmatpush1.bf16.msra.mxu0 0
    %4863 = vmatprep.subr.bf16.mxu0 0
    %4864 = vmatpush1.bf16.msra.mxu0 0
    %4865 = vmatprep.subr.bf16.mxu0 0
    %4866 = vmatpush1.bf16.msra.mxu0 0
    %4867 = vmatprep.subr.bf16.mxu0 0
    %4868 = vmatpush1.bf16.msra.mxu0 0
    %4869 = vmatprep.mubr.bf16.mxu0 0
    %4870 = vmatmul.mubr.bf16.gmra.mrb[0].mxu0 %v4836
    %v4871 = vpop.f32.mrb[0].mxu0
    %v4872 = vadd.f32 0.0, %v4871
    %v4873 = vpop.f32.mrb[0].mxu0
    %v4874 = vadd.f32 0.0, %v4873
    %v4875 = vpop.f32.mrb[0].mxu0
    %v4876 = vpop.f32.mrb[0].mxu0
    %4877 = vdwg.mxu0
    %4878 = vmatprep.subr.bf16.mxu0 %v3091
    %4879 = vmatpush1.bf16.msra.mxu0 %v3090
    %4880 = vmatprep.subr.bf16.mxu0 %v3095
    %4881 = vmatpush1.bf16.msra.mxu0 %v3094
    %4882 = vmatprep.subr.bf16.mxu0 %v3099
    %4883 = vmatpush1.bf16.msra.mxu0 %v3098
    %4884 = vmatprep.subr.bf16.mxu0 %v3103
    %4885 = vmatpush1.bf16.msra.mxu0 %v3102
    %4886 = vmatprep.subr.bf16.mxu0 %v3107
    %4887 = vmatpush1.bf16.msra.mxu0 %v3106
    %4888 = vmatprep.subr.bf16.mxu0 %v3111
    %4889 = vmatpush1.bf16.msra.mxu0 %v3110
    %4890 = vmatprep.subr.bf16.mxu0 %v3115
    %4891 = vmatpush1.bf16.msra.mxu0 %v3114
    %4892 = vmatprep.subr.bf16.mxu0 %v3119
    %4893 = vmatpush1.bf16.msra.mxu0 %v3118
    %4894 = vmatprep.subr.bf16.mxu0 0
    %4895 = vmatpush1.bf16.msra.mxu0 0
    %4896 = vmatprep.subr.bf16.mxu0 0
    %4897 = vmatpush1.bf16.msra.mxu0 0
    %4898 = vmatprep.subr.bf16.mxu0 0
    %4899 = vmatpush1.bf16.msra.mxu0 0
    %4900 = vmatprep.subr.bf16.mxu0 0
    %4901 = vmatpush1.bf16.msra.mxu0 0
    %4902 = vmatprep.subr.bf16.mxu0 0
    %4903 = vmatpush1.bf16.msra.mxu0 0
    %4904 = vmatprep.subr.bf16.mxu0 0
    %4905 = vmatpush1.bf16.msra.mxu0 0
    %4906 = vmatprep.subr.bf16.mxu0 0
    %4907 = vmatpush1.bf16.msra.mxu0 0
    %4908 = vmatprep.subr.bf16.mxu0 0
    %4909 = vmatpush1.bf16.msra.mxu0 0
    %4910 = vmatprep.mubr.bf16.mxu0 0
    %4911 = vmatmul.mubr.bf16.gmra.mrb[0].mxu0 %v4836
    %v4912 = vpop.f32.mrb[0].mxu0
    %v4913 = vadd.f32 0.0, %v4912
    %v4914 = vpop.f32.mrb[0].mxu0
    %v4915 = vadd.f32 0.0, %v4914
    %v4916 = vpop.f32.mrb[0].mxu0
    %v4917 = vpop.f32.mrb[0].mxu0
    %4918 = vdwg.mxu0
    %v4923 = vcombine.low %v4872, %v4874
    %v4924 = vcombine.low %v4913, %v4915
    %v4926 = vunpack.c.l.s4 1983009808
    %v4927 = vunpack.c.0.s8 %v4926
    %v4928 = vlaneseq
    %v4929 = vshrl.u32 %v4928, 7
    %v4930 = vsub.s32 %v4927, %v4929
    %v4931 = vrot.slane %v4923, %v4930
    %v4933 = vunpack.c.l.s4 1983009808
    %v4934 = vunpack.c.0.s8 %v4933
    %v4935 = vlaneseq
    %v4936 = vshrl.u32 %v4935, 7
    %v4937 = vsub.s32 %v4934, %v4936
    %v4938 = vrot.slane %v4924, %v4937
    %v4939 = vcombine.low %v4931, %v4938
    %v4941 = vadd.f32 %v4729, %v4939
    %v4942 = vxor.u32 %v4835, 2147483648
    %v4943 = vmul.f32 %v4942, 1.442695
    %v4944 = vpow.pop %v4943
    %v4945 = vadd.f32 %v4944, 1.0
    %v4946 = vrcp.pop %v4945
    %v4947 = vmul.f32 1.0, %v4946
    %v4949 = vrot.slane %v4835, 2
    %v4951 = vxor.u32 %v4949, 2147483648
    %v4952 = vmul.f32 %v4951, 1.442695
    %v4953 = vpow.pop %v4952
    %v4954 = vadd.f32 %v4953, 1.0
    %v4955 = vrcp.pop %v4954
    %v4956 = vmul.f32 1.0, %v4955
    %v4957 = vrot.slane %v4835, 4
    %v4959 = vtanh.pop %v4957
    %v4960 = vrot.slane %v4835, 6
    %v4962 = vxor.u32 %v4960, 2147483648
    %v4963 = vmul.f32 %v4962, 1.442695
    %v4964 = vpow.pop %v4963
    %v4965 = vadd.f32 %v4964, 1.0
    %v4966 = vrcp.pop %v4965
    %v4967 = vmul.f32 1.0, %v4966
    %v4968 = vmul.f32 %v4956, %v4690
    %v4969 = vmul.f32 %v4947, %v4959
    %v4970 = vadd.f32 %v4968, %v4969
    %v4971 = vtanh.pop %v4970
    %v4972 = vmul.f32 %v4967, %v4971
    %v4973 = vxor.u32 %v4941, 2147483648
    %v4974 = vmul.f32 %v4973, 1.442695
    %v4975 = vpow.pop %v4974
    %v4976 = vadd.f32 %v4975, 1.0
    %v4977 = vrcp.pop %v4976
    %v4978 = vmul.f32 1.0, %v4977
    %v4980 = vrot.slane %v4941, 2
    %v4982 = vxor.u32 %v4980, 2147483648
    %v4983 = vmul.f32 %v4982, 1.442695
    %v4984 = vpow.pop %v4983
    %v4985 = vadd.f32 %v4984, 1.0
    %v4986 = vrcp.pop %v4985
    %v4987 = vmul.f32 1.0, %v4986
    %v4988 = vrot.slane %v4941, 4
    %v4990 = vtanh.pop %v4988
    %v4991 = vrot.slane %v4941, 6
    %v4993 = vxor.u32 %v4991, 2147483648
    %v4994 = vmul.f32 %v4993, 1.442695
    %v4995 = vpow.pop %v4994
    %v4996 = vadd.f32 %v4995, 1.0
    %v4997 = vrcp.pop %v4996
    %v4998 = vmul.f32 1.0, %v4997
    %v4999 = vmul.f32 %v4987, %v4721
    %v5000 = vmul.f32 %v4978, %v4990
    %v5001 = vadd.f32 %v4999, %v5000
    %v5002 = vtanh.pop %v5001
    %v5003 = vmul.f32 %v4998, %v5002
    %s5004 = scalar_lea.vmem [#allocation3], 12
    %5005 = vst [vmem:[%s5004] sm:$0x3] %v4972
    %s5006 = scalar_lea.vmem [#allocation4], 2
    %5007 = vst [vmem:[%s5006] sm:$0x3] %v5003
    %v5008 = vld [vmem:[%s2725] sm:$0xff]
    %v5009 = vld [vmem:[#allocation2 + $0x8] sm:$0xff]
    %v5010 = vpack.c.bf16 %v4972, %v4972
    %5011 = vmatprep.subr.bf16.mxu0 %v2824
    %5012 = vmatpush1.bf16.msra.mxu0 %v2823
    %5013 = vmatprep.subr.bf16.mxu0 %v2828
    %5014 = vmatpush1.bf16.msra.mxu0 %v2827
    %5015 = vmatprep.subr.bf16.mxu0 %v2832
    %5016 = vmatpush1.bf16.msra.mxu0 %v2831
    %5017 = vmatprep.subr.bf16.mxu0 %v2836
    %5018 = vmatpush1.bf16.msra.mxu0 %v2835
    %5019 = vmatprep.subr.bf16.mxu0 %v2840
    %5020 = vmatpush1.bf16.msra.mxu0 %v2839
    %5021 = vmatprep.subr.bf16.mxu0 %v2844
    %5022 = vmatpush1.bf16.msra.mxu0 %v2843
    %5023 = vmatprep.subr.bf16.mxu0 %v2848
    %5024 = vmatpush1.bf16.msra.mxu0 %v2847
    %5025 = vmatprep.subr.bf16.mxu0 %v2852
    %5026 = vmatpush1.bf16.msra.mxu0 %v2851
    %5027 = vmatprep.subr.bf16.mxu0 0
    %5028 = vmatpush1.bf16.msra.mxu0 0
    %5029 = vmatprep.subr.bf16.mxu0 0
    %5030 = vmatpush1.bf16.msra.mxu0 0
    %5031 = vmatprep.subr.bf16.mxu0 0
    %5032 = vmatpush1.bf16.msra.mxu0 0
    %5033 = vmatprep.subr.bf16.mxu0 0
    %5034 = vmatpush1.bf16.msra.mxu0 0
    %5035 = vmatprep.subr.bf16.mxu0 0
    %5036 = vmatpush1.bf16.msra.mxu0 0
    %5037 = vmatprep.subr.bf16.mxu0 0
    %5038 = vmatpush1.bf16.msra.mxu0 0
    %5039 = vmatprep.subr.bf16.mxu0 0
    %5040 = vmatpush1.bf16.msra.mxu0 0
    %5041 = vmatprep.subr.bf16.mxu0 0
    %5042 = vmatpush1.bf16.msra.mxu0 0
    %5043 = vmatprep.mubr.bf16.mxu0 0
    %5044 = vmatmul.mubr.bf16.gmra.mrb[0].mxu0 %v5010
    %v5045 = vpop.f32.mrb[0].mxu0
    %v5046 = vadd.f32 0.0, %v5045
    %v5047 = vpop.f32.mrb[0].mxu0
    %v5048 = vadd.f32 0.0, %v5047
    %v5049 = vpop.f32.mrb[0].mxu0
    %v5050 = vpop.f32.mrb[0].mxu0
    %5051 = vdwg.mxu0
    %5052 = vmatprep.subr.bf16.mxu0 %v2826
    %5053 = vmatpush1.bf16.msra.mxu0 %v2825
    %5054 = vmatprep.subr.bf16.mxu0 %v2830
    %5055 = vmatpush1.bf16.msra.mxu0 %v2829
    %5056 = vmatprep.subr.bf16.mxu0 %v2834
    %5057 = vmatpush1.bf16.msra.mxu0 %v2833
    %5058 = vmatprep.subr.bf16.mxu0 %v2838
    %5059 = vmatpush1.bf16.msra.mxu0 %v2837
    %5060 = vmatprep.subr.bf16.mxu0 %v2842
    %5061 = vmatpush1.bf16.msra.mxu0 %v2841
    %5062 = vmatprep.subr.bf16.mxu0 %v2846
    %5063 = vmatpush1.bf16.msra.mxu0 %v2845
    %5064 = vmatprep.subr.bf16.mxu0 %v2850
    %5065 = vmatpush1.bf16.msra.mxu0 %v2849
    %5066 = vmatprep.subr.bf16.mxu0 %v2854
    %5067 = vmatpush1.bf16.msra.mxu0 %v2853
    %5068 = vmatprep.subr.bf16.mxu0 0
    %5069 = vmatpush1.bf16.msra.mxu0 0
    %5070 = vmatprep.subr.bf16.mxu0 0
    %5071 = vmatpush1.bf16.msra.mxu0 0
    %5072 = vmatprep.subr.bf16.mxu0 0
    %5073 = vmatpush1.bf16.msra.mxu0 0
    %5074 = vmatprep.subr.bf16.mxu0 0
    %5075 = vmatpush1.bf16.msra.mxu0 0
    %5076 = vmatprep.subr.bf16.mxu0 0
    %5077 = vmatpush1.bf16.msra.mxu0 0
    %5078 = vmatprep.subr.bf16.mxu0 0
    %5079 = vmatpush1.bf16.msra.mxu0 0
    %5080 = vmatprep.subr.bf16.mxu0 0
    %5081 = vmatpush1.bf16.msra.mxu0 0
    %5082 = vmatprep.subr.bf16.mxu0 0
    %5083 = vmatpush1.bf16.msra.mxu0 0
    %5084 = vmatprep.mubr.bf16.mxu0 0
    %5085 = vmatmul.mubr.bf16.gmra.mrb[0].mxu0 %v5010
    %v5086 = vpop.f32.mrb[0].mxu0
    %v5087 = vadd.f32 0.0, %v5086
    %v5088 = vpop.f32.mrb[0].mxu0
    %v5089 = vadd.f32 0.0, %v5088
    %v5090 = vpop.f32.mrb[0].mxu0
    %v5091 = vpop.f32.mrb[0].mxu0
    %5092 = vdwg.mxu0
    %v5097 = vcombine.low %v5046, %v5048
    %v5098 = vcombine.low %v5087, %v5089
    %v5100 = vunpack.c.l.s4 1983009808
    %v5101 = vunpack.c.0.s8 %v5100
    %v5102 = vlaneseq
    %v5103 = vshrl.u32 %v5102, 7
    %v5104 = vsub.s32 %v5101, %v5103
    %v5105 = vrot.slane %v5097, %v5104
    %v5107 = vunpack.c.l.s4 1983009808
    %v5108 = vunpack.c.0.s8 %v5107
    %v5109 = vlaneseq
    %v5110 = vshrl.u32 %v5109, 7
    %v5111 = vsub.s32 %v5108, %v5110
    %v5112 = vrot.slane %v5098, %v5111
    %v5113 = vcombine.low %v5105, %v5112
    %v5115 = vadd.f32 %v5008, %v5113
    %v5116 = vpack.c.bf16 %v5003, %v5003
    %5117 = vmatprep.subr.bf16.mxu0 %v3089
    %5118 = vmatpush1.bf16.msra.mxu0 %v3088
    %5119 = vmatprep.subr.bf16.mxu0 %v3093
    %5120 = vmatpush1.bf16.msra.mxu0 %v3092
    %5121 = vmatprep.subr.bf16.mxu0 %v3097
    %5122 = vmatpush1.bf16.msra.mxu0 %v3096
    %5123 = vmatprep.subr.bf16.mxu0 %v3101
    %5124 = vmatpush1.bf16.msra.mxu0 %v3100
    %5125 = vmatprep.subr.bf16.mxu0 %v3105
    %5126 = vmatpush1.bf16.msra.mxu0 %v3104
    %5127 = vmatprep.subr.bf16.mxu0 %v3109
    %5128 = vmatpush1.bf16.msra.mxu0 %v3108
    %5129 = vmatprep.subr.bf16.mxu0 %v3113
    %5130 = vmatpush1.bf16.msra.mxu0 %v3112
    %5131 = vmatprep.subr.bf16.mxu0 %v3117
    %5132 = vmatpush1.bf16.msra.mxu0 %v3116
    %5133 = vmatprep.subr.bf16.mxu0 0
    %5134 = vmatpush1.bf16.msra.mxu0 0
    %5135 = vmatprep.subr.bf16.mxu0 0
    %5136 = vmatpush1.bf16.msra.mxu0 0
    %5137 = vmatprep.subr.bf16.mxu0 0
    %5138 = vmatpush1.bf16.msra.mxu0 0
    %5139 = vmatprep.subr.bf16.mxu0 0
    %5140 = vmatpush1.bf16.msra.mxu0 0
    %5141 = vmatprep.subr.bf16.mxu0 0
    %5142 = vmatpush1.bf16.msra.mxu0 0
    %5143 = vmatprep.subr.bf16.mxu0 0
    %5144 = vmatpush1.bf16.msra.mxu0 0
    %5145 = vmatprep.subr.bf16.mxu0 0
    %5146 = vmatpush1.bf16.msra.mxu0 0
    %5147 = vmatprep.subr.bf16.mxu0 0
    %5148 = vmatpush1.bf16.msra.mxu0 0
    %5149 = vmatprep.mubr.bf16.mxu0 0
    %5150 = vmatmul.mubr.bf16.gmra.mrb[0].mxu0 %v5116
    %v5151 = vpop.f32.mrb[0].mxu0
    %v5152 = vadd.f32 0.0, %v5151
    %v5153 = vpop.f32.mrb[0].mxu0
    %v5154 = vadd.f32 0.0, %v5153
    %v5155 = vpop.f32.mrb[0].mxu0
    %v5156 = vpop.f32.mrb[0].mxu0
    %5157 = vdwg.mxu0
    %5158 = vmatprep.subr.bf16.mxu0 %v3091
    %5159 = vmatpush1.bf16.msra.mxu0 %v3090
    %5160 = vmatprep.subr.bf16.mxu0 %v3095
    %5161 = vmatpush1.bf16.msra.mxu0 %v3094
    %5162 = vmatprep.subr.bf16.mxu0 %v3099
    %5163 = vmatpush1.bf16.msra.mxu0 %v3098
    %5164 = vmatprep.subr.bf16.mxu0 %v3103
    %5165 = vmatpush1.bf16.msra.mxu0 %v3102
    %5166 = vmatprep.subr.bf16.mxu0 %v3107
    %5167 = vmatpush1.bf16.msra.mxu0 %v3106
    %5168 = vmatprep.subr.bf16.mxu0 %v3111
    %5169 = vmatpush1.bf16.msra.mxu0 %v3110
    %5170 = vmatprep.subr.bf16.mxu0 %v3115
    %5171 = vmatpush1.bf16.msra.mxu0 %v3114
    %5172 = vmatprep.subr.bf16.mxu0 %v3119
    %5173 = vmatpush1.bf16.msra.mxu0 %v3118
    %5174 = vmatprep.subr.bf16.mxu0 0
    %5175 = vmatpush1.bf16.msra.mxu0 0
    %5176 = vmatprep.subr.bf16.mxu0 0
    %5177 = vmatpush1.bf16.msra.mxu0 0
    %5178 = vmatprep.subr.bf16.mxu0 0
    %5179 = vmatpush1.bf16.msra.mxu0 0
    %5180 = vmatprep.subr.bf16.mxu0 0
    %5181 = vmatpush1.bf16.msra.mxu0 0
    %5182 = vmatprep.subr.bf16.mxu0 0
    %5183 = vmatpush1.bf16.msra.mxu0 0
    %5184 = vmatprep.subr.bf16.mxu0 0
    %5185 = vmatpush1.bf16.msra.mxu0 0
    %5186 = vmatprep.subr.bf16.mxu0 0
    %5187 = vmatpush1.bf16.msra.mxu0 0
    %5188 = vmatprep.subr.bf16.mxu0 0
    %5189 = vmatpush1.bf16.msra.mxu0 0
    %5190 = vmatprep.mubr.bf16.mxu0 0
    %5191 = vmatmul.mubr.bf16.gmra.mrb[0].mxu0 %v5116
    %v5192 = vpop.f32.mrb[0].mxu0
    %v5193 = vadd.f32 0.0, %v5192
    %v5194 = vpop.f32.mrb[0].mxu0
    %v5195 = vadd.f32 0.0, %v5194
    %v5196 = vpop.f32.mrb[0].mxu0
    %v5197 = vpop.f32.mrb[0].mxu0
    %5198 = vdwg.mxu0
    %v5203 = vcombine.low %v5152, %v5154
    %v5204 = vcombine.low %v5193, %v5195
    %v5206 = vunpack.c.l.s4 1983009808
    %v5207 = vunpack.c.0.s8 %v5206
    %v5208 = vlaneseq
    %v5209 = vshrl.u32 %v5208, 7
    %v5210 = vsub.s32 %v5207, %v5209
    %v5211 = vrot.slane %v5203, %v5210
    %v5213 = vunpack.c.l.s4 1983009808
    %v5214 = vunpack.c.0.s8 %v5213
    %v5215 = vlaneseq
    %v5216 = vshrl.u32 %v5215, 7
    %v5217 = vsub.s32 %v5214, %v5216
    %v5218 = vrot.slane %v5204, %v5217
    %v5219 = vcombine.low %v5211, %v5218
    %v5221 = vadd.f32 %v5009, %v5219
    %v5222 = vxor.u32 %v5115, 2147483648
    %v5223 = vmul.f32 %v5222, 1.442695
    %v5224 = vpow.pop %v5223
    %v5225 = vadd.f32 %v5224, 1.0
    %v5226 = vrcp.pop %v5225
    %v5227 = vmul.f32 1.0, %v5226
    %v5229 = vrot.slane %v5115, 2
    %v5231 = vxor.u32 %v5229, 2147483648
    %v5232 = vmul.f32 %v5231, 1.442695
    %v5233 = vpow.pop %v5232
    %v5234 = vadd.f32 %v5233, 1.0
    %v5235 = vrcp.pop %v5234
    %v5236 = vmul.f32 1.0, %v5235
    %v5237 = vrot.slane %v5115, 4
    %v5239 = vtanh.pop %v5237
    %v5240 = vrot.slane %v5115, 6
    %v5242 = vxor.u32 %v5240, 2147483648
    %v5243 = vmul.f32 %v5242, 1.442695
    %v5244 = vpow.pop %v5243
    %v5245 = vadd.f32 %v5244, 1.0
    %v5246 = vrcp.pop %v5245
    %v5247 = vmul.f32 1.0, %v5246
    %v5248 = vmul.f32 %v5236, %v4970
    %v5249 = vmul.f32 %v5227, %v5239
    %v5250 = vadd.f32 %v5248, %v5249
    %v5251 = vtanh.pop %v5250
    %v5252 = vmul.f32 %v5247, %v5251
    %v5253 = vxor.u32 %v5221, 2147483648
    %v5254 = vmul.f32 %v5253, 1.442695
    %v5255 = vpow.pop %v5254
    %v5256 = vadd.f32 %v5255, 1.0
    %v5257 = vrcp.pop %v5256
    %v5258 = vmul.f32 1.0, %v5257
    %v5260 = vrot.slane %v5221, 2
    %v5262 = vxor.u32 %v5260, 2147483648
    %v5263 = vmul.f32 %v5262, 1.442695
    %v5264 = vpow.pop %v5263
    %v5265 = vadd.f32 %v5264, 1.0
    %v5266 = vrcp.pop %v5265
    %v5267 = vmul.f32 1.0, %v5266
    %v5268 = vrot.slane %v5221, 4
    %v5270 = vtanh.pop %v5268
    %v5271 = vrot.slane %v5221, 6
    %v5273 = vxor.u32 %v5271, 2147483648
    %v5274 = vmul.f32 %v5273, 1.442695
    %v5275 = vpow.pop %v5274
    %v5276 = vadd.f32 %v5275, 1.0
    %v5277 = vrcp.pop %v5276
    %v5278 = vmul.f32 1.0, %v5277
    %v5279 = vmul.f32 %v5267, %v5001
    %v5280 = vmul.f32 %v5258, %v5270
    %v5281 = vadd.f32 %v5279, %v5280
    %v5282 = vtanh.pop %v5281
    %v5283 = vmul.f32 %v5278, %v5282
    %s5284 = scalar_lea.vmem [#allocation3], 14
    %5285 = vst [vmem:[%s5284] sm:$0x3] %v5252
    %5286 = vst [vmem:[#allocation4] sm:$0x3] %v5283
    %v5287 = vld [vmem:[#allocation3] sm:$0x3]
    %v5288 = vld [vmem:[#allocation3 + $0x2] sm:$0x3]
    %v5289 = vld [vmem:[#allocation3 + $0x4] sm:$0x3]
    %v5290 = vld [vmem:[#allocation3 + $0x6] sm:$0x3]
    %v5291 = vld [vmem:[#allocation3 + $0x8] sm:$0x3]
    %v5292 = vld [vmem:[#allocation3 + $0xa] sm:$0x3]
    %v5293 = vld [vmem:[#allocation3 + $0xc] sm:$0x3]
    %v5294 = vld [vmem:[#allocation3 + $0xe] sm:$0x3]
    %v5295 = vld [vmem:[#allocation4] sm:$0x3]
    %v5296 = vld [vmem:[#allocation4 + $0x2] sm:$0x3]
    %v5297 = vld [vmem:[#allocation4 + $0x4] sm:$0x3]
    %v5298 = vld [vmem:[#allocation4 + $0x6] sm:$0x3]
    %v5299 = vld [vmem:[#allocation4 + $0x8] sm:$0x3]
    %v5300 = vld [vmem:[#allocation4 + $0xa] sm:$0x3]
    %v5301 = vld [vmem:[#allocation4 + $0xc] sm:$0x3]
    %v5302 = vld [vmem:[#allocation4 + $0xe] sm:$0x3]
    %v5303 = vpack.c.bf16 %v5287, %v5287
    %v5304 = vpack.c.bf16 %v5295, %v5295
    %v5305 = vpack.c.bf16 %v5288, %v5288
    %v5306 = vpack.c.bf16 %v5296, %v5296
    %v5307 = vpack.c.bf16 %v5289, %v5289
    %v5308 = vpack.c.bf16 %v5297, %v5297
    %v5309 = vpack.c.bf16 %v5290, %v5290
    %v5310 = vpack.c.bf16 %v5298, %v5298
    %v5311 = vpack.c.bf16 %v5291, %v5291
    %v5312 = vpack.c.bf16 %v5299, %v5299
    %v5313 = vpack.c.bf16 %v5292, %v5292
    %v5314 = vpack.c.bf16 %v5300, %v5300
    %v5315 = vpack.c.bf16 %v5293, %v5293
    %v5316 = vpack.c.bf16 %v5301, %v5301
    %v5317 = vpack.c.bf16 %v5294, %v5294
    %v5318 = vpack.c.bf16 %v5302, %v5302
    %v5335 = vcombine.low %v5303, %v5304
    %v5337 = vunpack.c.l.s4 1966171168
    %v5338 = vunpack.c.0.s8 %v5337
    %v5339 = vlaneseq
    %v5340 = vshrl.u32 %v5339, 7
    %v5341 = vsub.s32 %v5338, %v5340
    %v5342 = vrot.slane %v5335, %v5341
    %v5344 = vunpack.c.l.s4 1966171168
    %v5345 = vunpack.c.0.s8 %v5344
    %v5346 = vlaneseq
    %v5347 = vshrl.u32 %v5346, 7
    %v5348 = vsub.s32 %v5345, %v5347
    %v5349 = vrot.slane %v5342, %v5348
    %v5350 = vcombine.low %v5305, %v5306
    %v5352 = vunpack.c.l.s4 1966171168
    %v5353 = vunpack.c.0.s8 %v5352
    %v5354 = vlaneseq
    %v5355 = vshrl.u32 %v5354, 7
    %v5356 = vsub.s32 %v5353, %v5355
    %v5357 = vrot.slane %v5350, %v5356
    %v5359 = vunpack.c.l.s4 1966171168
    %v5360 = vunpack.c.0.s8 %v5359
    %v5361 = vlaneseq
    %v5362 = vshrl.u32 %v5361, 7
    %v5363 = vsub.s32 %v5360, %v5362
    %v5364 = vrot.slane %v5357, %v5363
    %v5365 = vcombine.low %v5307, %v5308
    %v5367 = vunpack.c.l.s4 1966171168
    %v5368 = vunpack.c.0.s8 %v5367
    %v5369 = vlaneseq
    %v5370 = vshrl.u32 %v5369, 7
    %v5371 = vsub.s32 %v5368, %v5370
    %v5372 = vrot.slane %v5365, %v5371
    %v5374 = vunpack.c.l.s4 1966171168
    %v5375 = vunpack.c.0.s8 %v5374
    %v5376 = vlaneseq
    %v5377 = vshrl.u32 %v5376, 7
    %v5378 = vsub.s32 %v5375, %v5377
    %v5379 = vrot.slane %v5372, %v5378
    %v5380 = vcombine.low %v5309, %v5310
    %v5382 = vunpack.c.l.s4 1966171168
    %v5383 = vunpack.c.0.s8 %v5382
    %v5384 = vlaneseq
    %v5385 = vshrl.u32 %v5384, 7
    %v5386 = vsub.s32 %v5383, %v5385
    %v5387 = vrot.slane %v5380, %v5386
    %v5389 = vunpack.c.l.s4 1966171168
    %v5390 = vunpack.c.0.s8 %v5389
    %v5391 = vlaneseq
    %v5392 = vshrl.u32 %v5391, 7
    %v5393 = vsub.s32 %v5390, %v5392
    %v5394 = vrot.slane %v5387, %v5393
    %v5395 = vcombine.low %v5311, %v5312
    %v5397 = vunpack.c.l.s4 1966171168
    %v5398 = vunpack.c.0.s8 %v5397
    %v5399 = vlaneseq
    %v5400 = vshrl.u32 %v5399, 7
    %v5401 = vsub.s32 %v5398, %v5400
    %v5402 = vrot.slane %v5395, %v5401
    %v5404 = vunpack.c.l.s4 1966171168
    %v5405 = vunpack.c.0.s8 %v5404
    %v5406 = vlaneseq
    %v5407 = vshrl.u32 %v5406, 7
    %v5408 = vsub.s32 %v5405, %v5407
    %v5409 = vrot.slane %v5402, %v5408
    %v5410 = vcombine.low %v5313, %v5314
    %v5412 = vunpack.c.l.s4 1966171168
    %v5413 = vunpack.c.0.s8 %v5412
    %v5414 = vlaneseq
    %v5415 = vshrl.u32 %v5414, 7
    %v5416 = vsub.s32 %v5413, %v5415
    %v5417 = vrot.slane %v5410, %v5416
    %v5419 = vunpack.c.l.s4 1966171168
    %v5420 = vunpack.c.0.s8 %v5419
    %v5421 = vlaneseq
    %v5422 = vshrl.u32 %v5421, 7
    %v5423 = vsub.s32 %v5420, %v5422
    %v5424 = vrot.slane %v5417, %v5423
    %v5425 = vcombine.low %v5315, %v5316
    %v5427 = vunpack.c.l.s4 1966171168
    %v5428 = vunpack.c.0.s8 %v5427
    %v5429 = vlaneseq
    %v5430 = vshrl.u32 %v5429, 7
    %v5431 = vsub.s32 %v5428, %v5430
    %v5432 = vrot.slane %v5425, %v5431
    %v5434 = vunpack.c.l.s4 1966171168
    %v5435 = vunpack.c.0.s8 %v5434
    %v5436 = vlaneseq
    %v5437 = vshrl.u32 %v5436, 7
    %v5438 = vsub.s32 %v5435, %v5437
    %v5439 = vrot.slane %v5432, %v5438
    %v5440 = vcombine.low %v5317, %v5318
    %v5442 = vunpack.c.l.s4 1966171168
    %v5443 = vunpack.c.0.s8 %v5442
    %v5444 = vlaneseq
    %v5445 = vshrl.u32 %v5444, 7
    %v5446 = vsub.s32 %v5443, %v5445
    %v5447 = vrot.slane %v5440, %v5446
    %v5449 = vunpack.c.l.s4 1966171168
    %v5450 = vunpack.c.0.s8 %v5449
    %v5451 = vlaneseq
    %v5452 = vshrl.u32 %v5451, 7
    %v5453 = vsub.s32 %v5450, %v5452
    %v5454 = vrot.slane %v5447, %v5453
    %v5455 = vld [vmem:[%s4] sm:$0xff]
    %v5456 = vld [vmem:[%s4 + $0x8] sm:$0xff]
    %v5457 = vld [vmem:[%s4 + $0x10] sm:$0xff]
    %v5458 = vld [vmem:[%s4 + $0x18] sm:$0xff]
    %v5459 = vld [vmem:[%s4 + $0x20] sm:$0xff]
    %v5460 = vld [vmem:[%s4 + $0x28] sm:$0xff]
    %v5461 = vld [vmem:[%s4 + $0x30] sm:$0xff]
    %v5462 = vld [vmem:[%s4 + $0x38] sm:$0xff]
    %v5463 = vld [vmem:[%s4 + $0x40] sm:$0xff]
    %v5464 = vld [vmem:[%s4 + $0x48] sm:$0xff]
    %v5465 = vld [vmem:[%s4 + $0x50] sm:$0xff]
    %v5466 = vld [vmem:[%s4 + $0x58] sm:$0xff]
    %v5467 = vld [vmem:[%s4 + $0x60] sm:$0xff]
    %v5468 = vld [vmem:[%s4 + $0x68] sm:$0xff]
    %v5469 = vld [vmem:[%s4 + $0x70] sm:$0xff]
    %v5470 = vld [vmem:[%s4 + $0x78] sm:$0xff]
    %v5471 = vld [vmem:[%s4 + $0x80] sm:$0xff]
    %v5472 = vld [vmem:[%s4 + $0x88] sm:$0xff]
    %v5473 = vld [vmem:[%s4 + $0x90] sm:$0xff]
    %v5474 = vld [vmem:[%s4 + $0x98] sm:$0xff]
    %v5475 = vld [vmem:[%s4 + $0xa0] sm:$0xff]
    %v5476 = vld [vmem:[%s4 + $0xa8] sm:$0xff]
    %v5477 = vld [vmem:[%s4 + $0xb0] sm:$0xff]
    %v5478 = vld [vmem:[%s4 + $0xb8] sm:$0xff]
    %v5479 = vld [vmem:[%s4 + $0xc0] sm:$0xff]
    %v5480 = vld [vmem:[%s4 + $0xc8] sm:$0xff]
    %v5481 = vld [vmem:[%s4 + $0xd0] sm:$0xff]
    %v5482 = vld [vmem:[%s4 + $0xd8] sm:$0xff]
    %v5483 = vld [vmem:[%s4 + $0xe0] sm:$0xff]
    %v5484 = vld [vmem:[%s4 + $0xe8] sm:$0xff]
    %v5485 = vld [vmem:[%s4 + $0xf0] sm:$0xff]
    %v5486 = vld [vmem:[%s4 + $0xf8] sm:$0xff]
    %v5487 = vld [vmem:[%s4 + $0x100] sm:$0xff]
    %v5488 = vld [vmem:[%s4 + $0x108] sm:$0xff]
    %v5489 = vld [vmem:[%s4 + $0x110] sm:$0xff]
    %v5490 = vld [vmem:[%s4 + $0x118] sm:$0xff]
    %v5491 = vld [vmem:[%s4 + $0x120] sm:$0xff]
    %v5492 = vld [vmem:[%s4 + $0x128] sm:$0xff]
    %v5493 = vld [vmem:[%s4 + $0x130] sm:$0xff]
    %v5494 = vld [vmem:[%s4 + $0x138] sm:$0xff]
    %v5495 = vld [vmem:[%s4 + $0x140] sm:$0xff]
    %v5496 = vld [vmem:[%s4 + $0x148] sm:$0xff]
    %v5497 = vld [vmem:[%s4 + $0x150] sm:$0xff]
    %v5498 = vld [vmem:[%s4 + $0x158] sm:$0xff]
    %v5499 = vld [vmem:[%s4 + $0x160] sm:$0xff]
    %v5500 = vld [vmem:[%s4 + $0x168] sm:$0xff]
    %v5501 = vld [vmem:[%s4 + $0x170] sm:$0xff]
    %v5502 = vld [vmem:[%s4 + $0x178] sm:$0xff]
    %v5503 = vld [vmem:[%s4 + $0x180] sm:$0xff]
    %v5504 = vld [vmem:[%s4 + $0x188] sm:$0xff]
    %v5505 = vld [vmem:[%s4 + $0x190] sm:$0xff]
    %v5506 = vld [vmem:[%s4 + $0x198] sm:$0xff]
    %v5507 = vld [vmem:[%s4 + $0x1a0] sm:$0xff]
    %v5508 = vld [vmem:[%s4 + $0x1a8] sm:$0xff]
    %v5509 = vld [vmem:[%s4 + $0x1b0] sm:$0xff]
    %v5510 = vld [vmem:[%s4 + $0x1b8] sm:$0xff]
    %v5511 = vld [vmem:[%s4 + $0x1c0] sm:$0xff]
    %v5512 = vld [vmem:[%s4 + $0x1c8] sm:$0xff]
    %v5513 = vld [vmem:[%s4 + $0x1d0] sm:$0xff]
    %v5514 = vld [vmem:[%s4 + $0x1d8] sm:$0xff]
    %v5515 = vld [vmem:[%s4 + $0x1e0] sm:$0xff]
    %v5516 = vld [vmem:[%s4 + $0x1e8] sm:$0xff]
    %v5517 = vld [vmem:[%s4 + $0x1f0] sm:$0xff]
    %v5518 = vld [vmem:[%s4 + $0x1f8] sm:$0xff]
    %v5519 = vld [vmem:[%s4 + $0x200] sm:$0xff]
    %v5520 = vld [vmem:[%s4 + $0x208] sm:$0xff]
    %v5521 = vld [vmem:[%s4 + $0x210] sm:$0xff]
    %v5522 = vld [vmem:[%s4 + $0x218] sm:$0xff]
    %v5523 = vld [vmem:[%s4 + $0x220] sm:$0xff]
    %v5524 = vld [vmem:[%s4 + $0x228] sm:$0xff]
    %v5525 = vld [vmem:[%s4 + $0x230] sm:$0xff]
    %v5526 = vld [vmem:[%s4 + $0x238] sm:$0xff]
    %v5527 = vld [vmem:[%s4 + $0x240] sm:$0xff]
    %v5528 = vld [vmem:[%s4 + $0x248] sm:$0xff]
    %v5529 = vld [vmem:[%s4 + $0x250] sm:$0xff]
    %v5530 = vld [vmem:[%s4 + $0x258] sm:$0xff]
    %v5531 = vld [vmem:[%s4 + $0x260] sm:$0xff]
    %v5532 = vld [vmem:[%s4 + $0x268] sm:$0xff]
    %v5533 = vld [vmem:[%s4 + $0x270] sm:$0xff]
    %v5534 = vld [vmem:[%s4 + $0x278] sm:$0xff]
    %v5535 = vld [vmem:[%s4 + $0x280] sm:$0xff]
    %v5536 = vld [vmem:[%s4 + $0x288] sm:$0xff]
    %v5537 = vld [vmem:[%s4 + $0x290] sm:$0xff]
    %v5538 = vld [vmem:[%s4 + $0x298] sm:$0xff]
    %v5539 = vld [vmem:[%s4 + $0x2a0] sm:$0xff]
    %v5540 = vld [vmem:[%s4 + $0x2a8] sm:$0xff]
    %v5541 = vld [vmem:[%s4 + $0x2b0] sm:$0xff]
    %v5542 = vld [vmem:[%s4 + $0x2b8] sm:$0xff]
    %v5543 = vld [vmem:[%s4 + $0x2c0] sm:$0xff]
    %v5544 = vld [vmem:[%s4 + $0x2c8] sm:$0xff]
    %v5545 = vld [vmem:[%s4 + $0x2d0] sm:$0xff]
    %v5546 = vld [vmem:[%s4 + $0x2d8] sm:$0xff]
    %v5547 = vld [vmem:[%s4 + $0x2e0] sm:$0xff]
    %v5548 = vld [vmem:[%s4 + $0x2e8] sm:$0xff]
    %v5549 = vld [vmem:[%s4 + $0x2f0] sm:$0xff]
    %v5550 = vld [vmem:[%s4 + $0x2f8] sm:$0xff]
    %v5551 = vld [vmem:[%s4 + $0x300] sm:$0xff]
    %v5552 = vld [vmem:[%s4 + $0x308] sm:$0xff]
    %v5553 = vld [vmem:[%s4 + $0x310] sm:$0xff]
    %v5554 = vld [vmem:[%s4 + $0x318] sm:$0xff]
    %v5555 = vld [vmem:[%s4 + $0x320] sm:$0xff]
    %v5556 = vld [vmem:[%s4 + $0x328] sm:$0xff]
    %v5557 = vld [vmem:[%s4 + $0x330] sm:$0xff]
    %v5558 = vld [vmem:[%s4 + $0x338] sm:$0xff]
    %v5559 = vld [vmem:[%s4 + $0x340] sm:$0xff]
    %v5560 = vld [vmem:[%s4 + $0x348] sm:$0xff]
    %v5561 = vld [vmem:[%s4 + $0x350] sm:$0xff]
    %v5562 = vld [vmem:[%s4 + $0x358] sm:$0xff]
    %v5563 = vld [vmem:[%s4 + $0x360] sm:$0xff]
    %v5564 = vld [vmem:[%s4 + $0x368] sm:$0xff]
    %v5565 = vld [vmem:[%s4 + $0x370] sm:$0xff]
    %v5566 = vld [vmem:[%s4 + $0x378] sm:$0xff]
    %v5567 = vld [vmem:[%s4 + $0x380] sm:$0xff]
    %v5568 = vld [vmem:[%s4 + $0x388] sm:$0xff]
    %v5569 = vld [vmem:[%s4 + $0x390] sm:$0xff]
    %v5570 = vld [vmem:[%s4 + $0x398] sm:$0xff]
    %v5571 = vld [vmem:[%s4 + $0x3a0] sm:$0xff]
    %v5572 = vld [vmem:[%s4 + $0x3a8] sm:$0xff]
    %v5573 = vld [vmem:[%s4 + $0x3b0] sm:$0xff]
    %v5574 = vld [vmem:[%s4 + $0x3b8] sm:$0xff]
    %v5575 = vld [vmem:[%s4 + $0x3c0] sm:$0xff]
    %v5576 = vld [vmem:[%s4 + $0x3c8] sm:$0xff]
    %v5577 = vld [vmem:[%s4 + $0x3d0] sm:$0xff]
    %v5578 = vld [vmem:[%s4 + $0x3d8] sm:$0xff]
    %v5579 = vld [vmem:[%s4 + $0x3e0] sm:$0xff]
    %v5580 = vld [vmem:[%s4 + $0x3e8] sm:$0xff]
    %v5581 = vld [vmem:[%s4 + $0x3f0] sm:$0xff]
    %v5582 = vld [vmem:[%s4 + $0x3f8] sm:$0xff]
    %v5583 = vld [vmem:[%s5] sm:$0xff]
    %v5585 = vlaneseq
    %v5586 = vshrl.u32 %v5585, 7
    %v5587 = vsub.s32 0, %v5586
    %v5588 = vrot.slane %v5583, %v5587
    %v5589 = vlaneseq
    %v5590 = vshrl.u32 %v5589, 7
    %v5591 = vsub.s32 1, %v5590
    %v5592 = vrot.slane %v5583, %v5591
    %v5593 = vlaneseq
    %v5594 = vshrl.u32 %v5593, 7
    %v5595 = vsub.s32 2, %v5594
    %v5596 = vrot.slane %v5583, %v5595
    %v5597 = vlaneseq
    %v5598 = vshrl.u32 %v5597, 7
    %v5599 = vsub.s32 3, %v5598
    %v5600 = vrot.slane %v5583, %v5599
    %v5601 = vlaneseq
    %v5602 = vshrl.u32 %v5601, 7
    %v5603 = vsub.s32 4, %v5602
    %v5604 = vrot.slane %v5583, %v5603
    %v5605 = vlaneseq
    %v5606 = vshrl.u32 %v5605, 7
    %v5607 = vsub.s32 5, %v5606
    %v5608 = vrot.slane %v5583, %v5607
    %v5609 = vlaneseq
    %v5610 = vshrl.u32 %v5609, 7
    %v5611 = vsub.s32 6, %v5610
    %v5612 = vrot.slane %v5583, %v5611
    %v5613 = vlaneseq
    %v5614 = vshrl.u32 %v5613, 7
    %v5615 = vsub.s32 7, %v5614
    %v5616 = vrot.slane %v5583, %v5615
    %v5625 = vcombine.low %v5349, %v5364
    %v5626 = vcombine.low %v5379, %v5394
    %v5627 = vcombine.low %v5409, %v5424
    %v5628 = vcombine.low %v5439, %v5454
    %v5630 = vunpack.c.l.s4 1966171168
    %v5631 = vunpack.c.0.s8 %v5630
    %v5632 = vlaneseq
    %v5633 = vshrl.u32 %v5632, 7
    %v5634 = vsub.s32 %v5631, %v5633
    %v5635 = vrot.slane %v5625, %v5634
    %v5637 = vunpack.c.l.s4 1966171168
    %v5638 = vunpack.c.0.s8 %v5637
    %v5639 = vlaneseq
    %v5640 = vshrl.u32 %v5639, 7
    %v5641 = vsub.s32 %v5638, %v5640
    %v5642 = vrot.slane %v5626, %v5641
    %v5644 = vunpack.c.l.s4 1966171168
    %v5645 = vunpack.c.0.s8 %v5644
    %v5646 = vlaneseq
    %v5647 = vshrl.u32 %v5646, 7
    %v5648 = vsub.s32 %v5645, %v5647
    %v5649 = vrot.slane %v5627, %v5648
    %v5651 = vunpack.c.l.s4 1966171168
    %v5652 = vunpack.c.0.s8 %v5651
    %v5653 = vlaneseq
    %v5654 = vshrl.u32 %v5653, 7
    %v5655 = vsub.s32 %v5652, %v5654
    %v5656 = vrot.slane %v5628, %v5655
    %v5657 = vcombine.low %v5635, %v5642
    %v5658 = vcombine.high %v5635, %v5642
    %v5659 = vcombine.low %v5649, %v5656
    %v5660 = vcombine.high %v5649, %v5656
    %v5662 = vunpack.c.l.s4 1966171168
    %v5663 = vunpack.c.0.s8 %v5662
    %v5664 = vlaneseq
    %v5665 = vshrl.u32 %v5664, 7
    %v5666 = vsub.s32 %v5663, %v5665
    %v5667 = vrot.slane %v5657, %v5666
    %v5669 = vunpack.c.l.s4 1966171168
    %v5670 = vunpack.c.0.s8 %v5669
    %v5671 = vlaneseq
    %v5672 = vshrl.u32 %v5671, 7
    %v5673 = vsub.s32 %v5670, %v5672
    %v5674 = vrot.slane %v5658, %v5673
    %v5676 = vunpack.c.l.s4 1966171168
    %v5677 = vunpack.c.0.s8 %v5676
    %v5678 = vlaneseq
    %v5679 = vshrl.u32 %v5678, 7
    %v5680 = vsub.s32 %v5677, %v5679
    %v5681 = vrot.slane %v5659, %v5680
    %v5683 = vunpack.c.l.s4 1966171168
    %v5684 = vunpack.c.0.s8 %v5683
    %v5685 = vlaneseq
    %v5686 = vshrl.u32 %v5685, 7
    %v5687 = vsub.s32 %v5684, %v5686
    %v5688 = vrot.slane %v5660, %v5687
    %v5689 = vcombine.low %v5667, %v5681
    %v5690 = vcombine.low %v5674, %v5688
    %v5821 = vunpack.c.l.b16 %v5455
    %v5822 = vunpack.c.h.b16 %v5455
    %v5823 = vunpack.c.l.b16 %v5456
    %v5824 = vunpack.c.h.b16 %v5456
    %v5825 = vunpack.c.l.b16 %v5457
    %v5826 = vunpack.c.h.b16 %v5457
    %v5827 = vunpack.c.l.b16 %v5458
    %v5828 = vunpack.c.h.b16 %v5458
    %v5829 = vunpack.c.l.b16 %v5459
    %v5830 = vunpack.c.h.b16 %v5459
    %v5831 = vunpack.c.l.b16 %v5460
    %v5832 = vunpack.c.h.b16 %v5460
    %v5833 = vunpack.c.l.b16 %v5461
    %v5834 = vunpack.c.h.b16 %v5461
    %v5835 = vunpack.c.l.b16 %v5462
    %v5836 = vunpack.c.h.b16 %v5462
    %v5837 = vunpack.c.l.b16 %v5463
    %v5838 = vunpack.c.h.b16 %v5463
    %v5839 = vunpack.c.l.b16 %v5464
    %v5840 = vunpack.c.h.b16 %v5464
    %v5841 = vunpack.c.l.b16 %v5465
    %v5842 = vunpack.c.h.b16 %v5465
    %v5843 = vunpack.c.l.b16 %v5466
    %v5844 = vunpack.c.h.b16 %v5466
    %v5845 = vunpack.c.l.b16 %v5467
    %v5846 = vunpack.c.h.b16 %v5467
    %v5847 = vunpack.c.l.b16 %v5468
    %v5848 = vunpack.c.h.b16 %v5468
    %v5849 = vunpack.c.l.b16 %v5469
    %v5850 = vunpack.c.h.b16 %v5469
    %v5851 = vunpack.c.l.b16 %v5470
    %v5852 = vunpack.c.h.b16 %v5470
    %v5853 = vunpack.c.l.b16 %v5471
    %v5854 = vunpack.c.h.b16 %v5471
    %v5855 = vunpack.c.l.b16 %v5472
    %v5856 = vunpack.c.h.b16 %v5472
    %v5857 = vunpack.c.l.b16 %v5473
    %v5858 = vunpack.c.h.b16 %v5473
    %v5859 = vunpack.c.l.b16 %v5474
    %v5860 = vunpack.c.h.b16 %v5474
    %v5861 = vunpack.c.l.b16 %v5475
    %v5862 = vunpack.c.h.b16 %v5475
    %v5863 = vunpack.c.l.b16 %v5476
    %v5864 = vunpack.c.h.b16 %v5476
    %v5865 = vunpack.c.l.b16 %v5477
    %v5866 = vunpack.c.h.b16 %v5477
    %v5867 = vunpack.c.l.b16 %v5478
    %v5868 = vunpack.c.h.b16 %v5478
    %v5869 = vunpack.c.l.b16 %v5479
    %v5870 = vunpack.c.h.b16 %v5479
    %v5871 = vunpack.c.l.b16 %v5480
    %v5872 = vunpack.c.h.b16 %v5480
    %v5873 = vunpack.c.l.b16 %v5481
    %v5874 = vunpack.c.h.b16 %v5481
    %v5875 = vunpack.c.l.b16 %v5482
    %v5876 = vunpack.c.h.b16 %v5482
    %v5877 = vunpack.c.l.b16 %v5483
    %v5878 = vunpack.c.h.b16 %v5483
    %v5879 = vunpack.c.l.b16 %v5484
    %v5880 = vunpack.c.h.b16 %v5484
    %v5881 = vunpack.c.l.b16 %v5485
    %v5882 = vunpack.c.h.b16 %v5485
    %v5883 = vunpack.c.l.b16 %v5486
    %v5884 = vunpack.c.h.b16 %v5486
    %v5885 = vunpack.c.l.b16 %v5487
    %v5886 = vunpack.c.h.b16 %v5487
    %v5887 = vunpack.c.l.b16 %v5488
    %v5888 = vunpack.c.h.b16 %v5488
    %v5889 = vunpack.c.l.b16 %v5489
    %v5890 = vunpack.c.h.b16 %v5489
    %v5891 = vunpack.c.l.b16 %v5490
    %v5892 = vunpack.c.h.b16 %v5490
    %v5893 = vunpack.c.l.b16 %v5491
    %v5894 = vunpack.c.h.b16 %v5491
    %v5895 = vunpack.c.l.b16 %v5492
    %v5896 = vunpack.c.h.b16 %v5492
    %v5897 = vunpack.c.l.b16 %v5493
    %v5898 = vunpack.c.h.b16 %v5493
    %v5899 = vunpack.c.l.b16 %v5494
    %v5900 = vunpack.c.h.b16 %v5494
    %v5901 = vunpack.c.l.b16 %v5495
    %v5902 = vunpack.c.h.b16 %v5495
    %v5903 = vunpack.c.l.b16 %v5496
    %v5904 = vunpack.c.h.b16 %v5496
    %v5905 = vunpack.c.l.b16 %v5497
    %v5906 = vunpack.c.h.b16 %v5497
    %v5907 = vunpack.c.l.b16 %v5498
    %v5908 = vunpack.c.h.b16 %v5498
    %v5909 = vunpack.c.l.b16 %v5499
    %v5910 = vunpack.c.h.b16 %v5499
    %v5911 = vunpack.c.l.b16 %v5500
    %v5912 = vunpack.c.h.b16 %v5500
    %v5913 = vunpack.c.l.b16 %v5501
    %v5914 = vunpack.c.h.b16 %v5501
    %v5915 = vunpack.c.l.b16 %v5502
    %v5916 = vunpack.c.h.b16 %v5502
    %v5917 = vunpack.c.l.b16 %v5503
    %v5918 = vunpack.c.h.b16 %v5503
    %v5919 = vunpack.c.l.b16 %v5504
    %v5920 = vunpack.c.h.b16 %v5504
    %v5921 = vunpack.c.l.b16 %v5505
    %v5922 = vunpack.c.h.b16 %v5505
    %v5923 = vunpack.c.l.b16 %v5506
    %v5924 = vunpack.c.h.b16 %v5506
    %v5925 = vunpack.c.l.b16 %v5507
    %v5926 = vunpack.c.h.b16 %v5507
    %v5927 = vunpack.c.l.b16 %v5508
    %v5928 = vunpack.c.h.b16 %v5508
    %v5929 = vunpack.c.l.b16 %v5509
    %v5930 = vunpack.c.h.b16 %v5509
    %v5931 = vunpack.c.l.b16 %v5510
    %v5932 = vunpack.c.h.b16 %v5510
    %v5933 = vunpack.c.l.b16 %v5511
    %v5934 = vunpack.c.h.b16 %v5511
    %v5935 = vunpack.c.l.b16 %v5512
    %v5936 = vunpack.c.h.b16 %v5512
    %v5937 = vunpack.c.l.b16 %v5513
    %v5938 = vunpack.c.h.b16 %v5513
    %v5939 = vunpack.c.l.b16 %v5514
    %v5940 = vunpack.c.h.b16 %v5514
    %v5941 = vunpack.c.l.b16 %v5515
    %v5942 = vunpack.c.h.b16 %v5515
    %v5943 = vunpack.c.l.b16 %v5516
    %v5944 = vunpack.c.h.b16 %v5516
    %v5945 = vunpack.c.l.b16 %v5517
    %v5946 = vunpack.c.h.b16 %v5517
    %v5947 = vunpack.c.l.b16 %v5518
    %v5948 = vunpack.c.h.b16 %v5518
    %v5949 = vunpack.c.l.b16 %v5519
    %v5950 = vunpack.c.h.b16 %v5519
    %v5951 = vunpack.c.l.b16 %v5520
    %v5952 = vunpack.c.h.b16 %v5520
    %v5953 = vunpack.c.l.b16 %v5521
    %v5954 = vunpack.c.h.b16 %v5521
    %v5955 = vunpack.c.l.b16 %v5522
    %v5956 = vunpack.c.h.b16 %v5522
    %v5957 = vunpack.c.l.b16 %v5523
    %v5958 = vunpack.c.h.b16 %v5523
    %v5959 = vunpack.c.l.b16 %v5524
    %v5960 = vunpack.c.h.b16 %v5524
    %v5961 = vunpack.c.l.b16 %v5525
    %v5962 = vunpack.c.h.b16 %v5525
    %v5963 = vunpack.c.l.b16 %v5526
    %v5964 = vunpack.c.h.b16 %v5526
    %v5965 = vunpack.c.l.b16 %v5527
    %v5966 = vunpack.c.h.b16 %v5527
    %v5967 = vunpack.c.l.b16 %v5528
    %v5968 = vunpack.c.h.b16 %v5528
    %v5969 = vunpack.c.l.b16 %v5529
    %v5970 = vunpack.c.h.b16 %v5529
    %v5971 = vunpack.c.l.b16 %v5530
    %v5972 = vunpack.c.h.b16 %v5530
    %v5973 = vunpack.c.l.b16 %v5531
    %v5974 = vunpack.c.h.b16 %v5531
    %v5975 = vunpack.c.l.b16 %v5532
    %v5976 = vunpack.c.h.b16 %v5532
    %v5977 = vunpack.c.l.b16 %v5533
    %v5978 = vunpack.c.h.b16 %v5533
    %v5979 = vunpack.c.l.b16 %v5534
    %v5980 = vunpack.c.h.b16 %v5534
    %v5981 = vunpack.c.l.b16 %v5535
    %v5982 = vunpack.c.h.b16 %v5535
    %v5983 = vunpack.c.l.b16 %v5536
    %v5984 = vunpack.c.h.b16 %v5536
    %v5985 = vunpack.c.l.b16 %v5537
    %v5986 = vunpack.c.h.b16 %v5537
    %v5987 = vunpack.c.l.b16 %v5538
    %v5988 = vunpack.c.h.b16 %v5538
    %v5989 = vunpack.c.l.b16 %v5539
    %v5990 = vunpack.c.h.b16 %v5539
    %v5991 = vunpack.c.l.b16 %v5540
    %v5992 = vunpack.c.h.b16 %v5540
    %v5993 = vunpack.c.l.b16 %v5541
    %v5994 = vunpack.c.h.b16 %v5541
    %v5995 = vunpack.c.l.b16 %v5542
    %v5996 = vunpack.c.h.b16 %v5542
    %v5997 = vunpack.c.l.b16 %v5543
    %v5998 = vunpack.c.h.b16 %v5543
    %v5999 = vunpack.c.l.b16 %v5544
    %v6000 = vunpack.c.h.b16 %v5544
    %v6001 = vunpack.c.l.b16 %v5545
    %v6002 = vunpack.c.h.b16 %v5545
    %v6003 = vunpack.c.l.b16 %v5546
    %v6004 = vunpack.c.h.b16 %v5546
    %v6005 = vunpack.c.l.b16 %v5547
    %v6006 = vunpack.c.h.b16 %v5547
    %v6007 = vunpack.c.l.b16 %v5548
    %v6008 = vunpack.c.h.b16 %v5548
    %v6009 = vunpack.c.l.b16 %v5549
    %v6010 = vunpack.c.h.b16 %v5549
    %v6011 = vunpack.c.l.b16 %v5550
    %v6012 = vunpack.c.h.b16 %v5550
    %v6013 = vunpack.c.l.b16 %v5551
    %v6014 = vunpack.c.h.b16 %v5551
    %v6015 = vunpack.c.l.b16 %v5552
    %v6016 = vunpack.c.h.b16 %v5552
    %v6017 = vunpack.c.l.b16 %v5553
    %v6018 = vunpack.c.h.b16 %v5553
    %v6019 = vunpack.c.l.b16 %v5554
    %v6020 = vunpack.c.h.b16 %v5554
    %v6021 = vunpack.c.l.b16 %v5555
    %v6022 = vunpack.c.h.b16 %v5555
    %v6023 = vunpack.c.l.b16 %v5556
    %v6024 = vunpack.c.h.b16 %v5556
    %v6025 = vunpack.c.l.b16 %v5557
    %v6026 = vunpack.c.h.b16 %v5557
    %v6027 = vunpack.c.l.b16 %v5558
    %v6028 = vunpack.c.h.b16 %v5558
    %v6029 = vunpack.c.l.b16 %v5559
    %v6030 = vunpack.c.h.b16 %v5559
    %v6031 = vunpack.c.l.b16 %v5560
    %v6032 = vunpack.c.h.b16 %v5560
    %v6033 = vunpack.c.l.b16 %v5561
    %v6034 = vunpack.c.h.b16 %v5561
    %v6035 = vunpack.c.l.b16 %v5562
    %v6036 = vunpack.c.h.b16 %v5562
    %v6037 = vunpack.c.l.b16 %v5563
    %v6038 = vunpack.c.h.b16 %v5563
    %v6039 = vunpack.c.l.b16 %v5564
    %v6040 = vunpack.c.h.b16 %v5564
    %v6041 = vunpack.c.l.b16 %v5565
    %v6042 = vunpack.c.h.b16 %v5565
    %v6043 = vunpack.c.l.b16 %v5566
    %v6044 = vunpack.c.h.b16 %v5566
    %v6045 = vunpack.c.l.b16 %v5567
    %v6046 = vunpack.c.h.b16 %v5567
    %v6047 = vunpack.c.l.b16 %v5568
    %v6048 = vunpack.c.h.b16 %v5568
    %v6049 = vunpack.c.l.b16 %v5569
    %v6050 = vunpack.c.h.b16 %v5569
    %v6051 = vunpack.c.l.b16 %v5570
    %v6052 = vunpack.c.h.b16 %v5570
    %v6053 = vunpack.c.l.b16 %v5571
    %v6054 = vunpack.c.h.b16 %v5571
    %v6055 = vunpack.c.l.b16 %v5572
    %v6056 = vunpack.c.h.b16 %v5572
    %v6057 = vunpack.c.l.b16 %v5573
    %v6058 = vunpack.c.h.b16 %v5573
    %v6059 = vunpack.c.l.b16 %v5574
    %v6060 = vunpack.c.h.b16 %v5574
    %v6061 = vunpack.c.l.b16 %v5575
    %v6062 = vunpack.c.h.b16 %v5575
    %v6063 = vunpack.c.l.b16 %v5576
    %v6064 = vunpack.c.h.b16 %v5576
    %v6065 = vunpack.c.l.b16 %v5577
    %v6066 = vunpack.c.h.b16 %v5577
    %v6067 = vunpack.c.l.b16 %v5578
    %v6068 = vunpack.c.h.b16 %v5578
    %v6069 = vunpack.c.l.b16 %v5579
    %v6070 = vunpack.c.h.b16 %v5579
    %v6071 = vunpack.c.l.b16 %v5580
    %v6072 = vunpack.c.h.b16 %v5580
    %v6073 = vunpack.c.l.b16 %v5581
    %v6074 = vunpack.c.h.b16 %v5581
    %v6075 = vunpack.c.l.b16 %v5582
    %v6076 = vunpack.c.h.b16 %v5582
    %v6077 = vpack.c.b16 %v5829, %v5821
    %v6078 = vpack.c.b16 %v5830, %v5822
    %v6079 = vpack.c.b16 %v5831, %v5823
    %v6080 = vpack.c.b16 %v5832, %v5824
    %v6081 = vpack.c.b16 %v5833, %v5825
    %v6082 = vpack.c.b16 %v5834, %v5826
    %v6083 = vpack.c.b16 %v5835, %v5827
    %v6084 = vpack.c.b16 %v5836, %v5828
    %v6085 = vpack.c.b16 %v5845, %v5837
    %v6086 = vpack.c.b16 %v5846, %v5838
    %v6087 = vpack.c.b16 %v5847, %v5839
    %v6088 = vpack.c.b16 %v5848, %v5840
    %v6089 = vpack.c.b16 %v5849, %v5841
    %v6090 = vpack.c.b16 %v5850, %v5842
    %v6091 = vpack.c.b16 %v5851, %v5843
    %v6092 = vpack.c.b16 %v5852, %v5844
    %v6093 = vpack.c.b16 %v5861, %v5853
    %v6094 = vpack.c.b16 %v5862, %v5854
    %v6095 = vpack.c.b16 %v5863, %v5855
    %v6096 = vpack.c.b16 %v5864, %v5856
    %v6097 = vpack.c.b16 %v5865, %v5857
    %v6098 = vpack.c.b16 %v5866, %v5858
    %v6099 = vpack.c.b16 %v5867, %v5859
    %v6100 = vpack.c.b16 %v5868, %v5860
    %v6101 = vpack.c.b16 %v5877, %v5869
    %v6102 = vpack.c.b16 %v5878, %v5870
    %v6103 = vpack.c.b16 %v5879, %v5871
    %v6104 = vpack.c.b16 %v5880, %v5872
    %v6105 = vpack.c.b16 %v5881, %v5873
    %v6106 = vpack.c.b16 %v5882, %v5874
    %v6107 = vpack.c.b16 %v5883, %v5875
    %v6108 = vpack.c.b16 %v5884, %v5876
    %v6109 = vpack.c.b16 %v5893, %v5885
    %v6110 = vpack.c.b16 %v5894, %v5886
    %v6111 = vpack.c.b16 %v5895, %v5887
    %v6112 = vpack.c.b16 %v5896, %v5888
    %v6113 = vpack.c.b16 %v5897, %v5889
    %v6114 = vpack.c.b16 %v5898, %v5890
    %v6115 = vpack.c.b16 %v5899, %v5891
    %v6116 = vpack.c.b16 %v5900, %v5892
    %v6117 = vpack.c.b16 %v5909, %v5901
    %v6118 = vpack.c.b16 %v5910, %v5902
    %v6119 = vpack.c.b16 %v5911, %v5903
    %v6120 = vpack.c.b16 %v5912, %v5904
    %v6121 = vpack.c.b16 %v5913, %v5905
    %v6122 = vpack.c.b16 %v5914, %v5906
    %v6123 = vpack.c.b16 %v5915, %v5907
    %v6124 = vpack.c.b16 %v5916, %v5908
    %v6125 = vpack.c.b16 %v5925, %v5917
    %v6126 = vpack.c.b16 %v5926, %v5918
    %v6127 = vpack.c.b16 %v5927, %v5919
    %v6128 = vpack.c.b16 %v5928, %v5920
    %v6129 = vpack.c.b16 %v5929, %v5921
    %v6130 = vpack.c.b16 %v5930, %v5922
    %v6131 = vpack.c.b16 %v5931, %v5923
    %v6132 = vpack.c.b16 %v5932, %v5924
    %v6133 = vpack.c.b16 %v5941, %v5933
    %v6134 = vpack.c.b16 %v5942, %v5934
    %v6135 = vpack.c.b16 %v5943, %v5935
    %v6136 = vpack.c.b16 %v5944, %v5936
    %v6137 = vpack.c.b16 %v5945, %v5937
    %v6138 = vpack.c.b16 %v5946, %v5938
    %v6139 = vpack.c.b16 %v5947, %v5939
    %v6140 = vpack.c.b16 %v5948, %v5940
    %v6141 = vpack.c.b16 %v5957, %v5949
    %v6142 = vpack.c.b16 %v5958, %v5950
    %v6143 = vpack.c.b16 %v5959, %v5951
    %v6144 = vpack.c.b16 %v5960, %v5952
    %v6145 = vpack.c.b16 %v5961, %v5953
    %v6146 = vpack.c.b16 %v5962, %v5954
    %v6147 = vpack.c.b16 %v5963, %v5955
    %v6148 = vpack.c.b16 %v5964, %v5956
    %v6149 = vpack.c.b16 %v5973, %v5965
    %v6150 = vpack.c.b16 %v5974, %v5966
    %v6151 = vpack.c.b16 %v5975, %v5967
    %v6152 = vpack.c.b16 %v5976, %v5968
    %v6153 = vpack.c.b16 %v5977, %v5969
    %v6154 = vpack.c.b16 %v5978, %v5970
    %v6155 = vpack.c.b16 %v5979, %v5971
    %v6156 = vpack.c.b16 %v5980, %v5972
    %v6157 = vpack.c.b16 %v5989, %v5981
    %v6158 = vpack.c.b16 %v5990, %v5982
    %v6159 = vpack.c.b16 %v5991, %v5983
    %v6160 = vpack.c.b16 %v5992, %v5984
    %v6161 = vpack.c.b16 %v5993, %v5985
    %v6162 = vpack.c.b16 %v5994, %v5986
    %v6163 = vpack.c.b16 %v5995, %v5987
    %v6164 = vpack.c.b16 %v5996, %v5988
    %v6165 = vpack.c.b16 %v6005, %v5997
    %v6166 = vpack.c.b16 %v6006, %v5998
    %v6167 = vpack.c.b16 %v6007, %v5999
    %v6168 = vpack.c.b16 %v6008, %v6000
    %v6169 = vpack.c.b16 %v6009, %v6001
    %v6170 = vpack.c.b16 %v6010, %v6002
    %v6171 = vpack.c.b16 %v6011, %v6003
    %v6172 = vpack.c.b16 %v6012, %v6004
    %v6173 = vpack.c.b16 %v6021, %v6013
    %v6174 = vpack.c.b16 %v6022, %v6014
    %v6175 = vpack.c.b16 %v6023, %v6015
    %v6176 = vpack.c.b16 %v6024, %v6016
    %v6177 = vpack.c.b16 %v6025, %v6017
    %v6178 = vpack.c.b16 %v6026, %v6018
    %v6179 = vpack.c.b16 %v6027, %v6019
    %v6180 = vpack.c.b16 %v6028, %v6020
    %v6181 = vpack.c.b16 %v6037, %v6029
    %v6182 = vpack.c.b16 %v6038, %v6030
    %v6183 = vpack.c.b16 %v6039, %v6031
    %v6184 = vpack.c.b16 %v6040, %v6032
    %v6185 = vpack.c.b16 %v6041, %v6033
    %v6186 = vpack.c.b16 %v6042, %v6034
    %v6187 = vpack.c.b16 %v6043, %v6035
    %v6188 = vpack.c.b16 %v6044, %v6036
    %v6189 = vpack.c.b16 %v6053, %v6045
    %v6190 = vpack.c.b16 %v6054, %v6046
    %v6191 = vpack.c.b16 %v6055, %v6047
    %v6192 = vpack.c.b16 %v6056, %v6048
    %v6193 = vpack.c.b16 %v6057, %v6049
    %v6194 = vpack.c.b16 %v6058, %v6050
    %v6195 = vpack.c.b16 %v6059, %v6051
    %v6196 = vpack.c.b16 %v6060, %v6052
    %v6197 = vpack.c.b16 %v6069, %v6061
    %v6198 = vpack.c.b16 %v6070, %v6062
    %v6199 = vpack.c.b16 %v6071, %v6063
    %v6200 = vpack.c.b16 %v6072, %v6064
    %v6201 = vpack.c.b16 %v6073, %v6065
    %v6202 = vpack.c.b16 %v6074, %v6066
    %v6203 = vpack.c.b16 %v6075, %v6067
    %v6204 = vpack.c.b16 %v6076, %v6068
    %6333 = vmatprep.subr.bf16.mxu0 %v6078
    %6334 = vmatpush1.bf16.msra.mxu0 %v6077
    %6335 = vmatprep.subr.bf16.mxu0 %v6086
    %6336 = vmatpush1.bf16.msra.mxu0 %v6085
    %6337 = vmatprep.subr.bf16.mxu0 %v6094
    %6338 = vmatpush1.bf16.msra.mxu0 %v6093
    %6339 = vmatprep.subr.bf16.mxu0 %v6102
    %6340 = vmatpush1.bf16.msra.mxu0 %v6101
    %6341 = vmatprep.subr.bf16.mxu0 %v6110
    %6342 = vmatpush1.bf16.msra.mxu0 %v6109
    %6343 = vmatprep.subr.bf16.mxu0 %v6118
    %6344 = vmatpush1.bf16.msra.mxu0 %v6117
    %6345 = vmatprep.subr.bf16.mxu0 %v6126
    %6346 = vmatpush1.bf16.msra.mxu0 %v6125
    %6347 = vmatprep.subr.bf16.mxu0 %v6134
    %6348 = vmatpush1.bf16.msra.mxu0 %v6133
    %6349 = vmatprep.subr.bf16.mxu0 %v6142
    %6350 = vmatpush1.bf16.msra.mxu0 %v6141
    %6351 = vmatprep.subr.bf16.mxu0 %v6150
    %6352 = vmatpush1.bf16.msra.mxu0 %v6149
    %6353 = vmatprep.subr.bf16.mxu0 %v6158
    %6354 = vmatpush1.bf16.msra.mxu0 %v6157
    %6355 = vmatprep.subr.bf16.mxu0 %v6166
    %6356 = vmatpush1.bf16.msra.mxu0 %v6165
    %6357 = vmatprep.subr.bf16.mxu0 %v6174
    %6358 = vmatpush1.bf16.msra.mxu0 %v6173
    %6359 = vmatprep.subr.bf16.mxu0 %v6182
    %6360 = vmatpush1.bf16.msra.mxu0 %v6181
    %6361 = vmatprep.subr.bf16.mxu0 %v6190
    %6362 = vmatpush1.bf16.msra.mxu0 %v6189
    %6363 = vmatprep.subr.bf16.mxu0 %v6198
    %6364 = vmatpush1.bf16.msra.mxu0 %v6197
    %6365 = vmatprep.mubr.bf16.mxu0 %v5690
    %6366 = vmatmul.mubr.bf16.gmra.mrb[0].mxu0 %v5689
    %v6367 = vpop.f32.mrb[0].mxu0
    %v6368 = vadd.f32 %v5588, %v6367
    %v6369 = vpop.f32.mrb[0].mxu0
    %v6370 = vadd.f32 %v5592, %v6369
    %v6371 = vpop.f32.mrb[0].mxu0
    %v6372 = vadd.f32 %v5588, %v6371
    %v6373 = vpop.f32.mrb[0].mxu0
    %v6374 = vadd.f32 %v5592, %v6373
    %6375 = vdwg.mxu0
    %6376 = vmatprep.subr.bf16.mxu0 %v6080
    %6377 = vmatpush1.bf16.msra.mxu0 %v6079
    %6378 = vmatprep.subr.bf16.mxu0 %v6088
    %6379 = vmatpush1.bf16.msra.mxu0 %v6087
    %6380 = vmatprep.subr.bf16.mxu0 %v6096
    %6381 = vmatpush1.bf16.msra.mxu0 %v6095
    %6382 = vmatprep.subr.bf16.mxu0 %v6104
    %6383 = vmatpush1.bf16.msra.mxu0 %v6103
    %6384 = vmatprep.subr.bf16.mxu0 %v6112
    %6385 = vmatpush1.bf16.msra.mxu0 %v6111
    %6386 = vmatprep.subr.bf16.mxu0 %v6120
    %6387 = vmatpush1.bf16.msra.mxu0 %v6119
    %6388 = vmatprep.subr.bf16.mxu0 %v6128
    %6389 = vmatpush1.bf16.msra.mxu0 %v6127
    %6390 = vmatprep.subr.bf16.mxu0 %v6136
    %6391 = vmatpush1.bf16.msra.mxu0 %v6135
    %6392 = vmatprep.subr.bf16.mxu0 %v6144
    %6393 = vmatpush1.bf16.msra.mxu0 %v6143
    %6394 = vmatprep.subr.bf16.mxu0 %v6152
    %6395 = vmatpush1.bf16.msra.mxu0 %v6151
    %6396 = vmatprep.subr.bf16.mxu0 %v6160
    %6397 = vmatpush1.bf16.msra.mxu0 %v6159
    %6398 = vmatprep.subr.bf16.mxu0 %v6168
    %6399 = vmatpush1.bf16.msra.mxu0 %v6167
    %6400 = vmatprep.subr.bf16.mxu0 %v6176
    %6401 = vmatpush1.bf16.msra.mxu0 %v6175
    %6402 = vmatprep.subr.bf16.mxu0 %v6184
    %6403 = vmatpush1.bf16.msra.mxu0 %v6183
    %6404 = vmatprep.subr.bf16.mxu0 %v6192
    %6405 = vmatpush1.bf16.msra.mxu0 %v6191
    %6406 = vmatprep.subr.bf16.mxu0 %v6200
    %6407 = vmatpush1.bf16.msra.mxu0 %v6199
    %6408 = vmatprep.mubr.bf16.mxu0 %v5690
    %6409 = vmatmul.mubr.bf16.gmra.mrb[0].mxu0 %v5689
    %v6410 = vpop.f32.mrb[0].mxu0
    %v6411 = vadd.f32 %v5596, %v6410
    %v6412 = vpop.f32.mrb[0].mxu0
    %v6413 = vadd.f32 %v5600, %v6412
    %v6414 = vpop.f32.mrb[0].mxu0
    %v6415 = vadd.f32 %v5596, %v6414
    %v6416 = vpop.f32.mrb[0].mxu0
    %v6417 = vadd.f32 %v5600, %v6416
    %6418 = vdwg.mxu0
    %6419 = vmatprep.subr.bf16.mxu0 %v6082
    %6420 = vmatpush1.bf16.msra.mxu0 %v6081
    %6421 = vmatprep.subr.bf16.mxu0 %v6090
    %6422 = vmatpush1.bf16.msra.mxu0 %v6089
    %6423 = vmatprep.subr.bf16.mxu0 %v6098
    %6424 = vmatpush1.bf16.msra.mxu0 %v6097
    %6425 = vmatprep.subr.bf16.mxu0 %v6106
    %6426 = vmatpush1.bf16.msra.mxu0 %v6105
    %6427 = vmatprep.subr.bf16.mxu0 %v6114
    %6428 = vmatpush1.bf16.msra.mxu0 %v6113
    %6429 = vmatprep.subr.bf16.mxu0 %v6122
    %6430 = vmatpush1.bf16.msra.mxu0 %v6121
    %6431 = vmatprep.subr.bf16.mxu0 %v6130
    %6432 = vmatpush1.bf16.msra.mxu0 %v6129
    %6433 = vmatprep.subr.bf16.mxu0 %v6138
    %6434 = vmatpush1.bf16.msra.mxu0 %v6137
    %6435 = vmatprep.subr.bf16.mxu0 %v6146
    %6436 = vmatpush1.bf16.msra.mxu0 %v6145
    %6437 = vmatprep.subr.bf16.mxu0 %v6154
    %6438 = vmatpush1.bf16.msra.mxu0 %v6153
    %6439 = vmatprep.subr.bf16.mxu0 %v6162
    %6440 = vmatpush1.bf16.msra.mxu0 %v6161
    %6441 = vmatprep.subr.bf16.mxu0 %v6170
    %6442 = vmatpush1.bf16.msra.mxu0 %v6169
    %6443 = vmatprep.subr.bf16.mxu0 %v6178
    %6444 = vmatpush1.bf16.msra.mxu0 %v6177
    %6445 = vmatprep.subr.bf16.mxu0 %v6186
    %6446 = vmatpush1.bf16.msra.mxu0 %v6185
    %6447 = vmatprep.subr.bf16.mxu0 %v6194
    %6448 = vmatpush1.bf16.msra.mxu0 %v6193
    %6449 = vmatprep.subr.bf16.mxu0 %v6202
    %6450 = vmatpush1.bf16.msra.mxu0 %v6201
    %6451 = vmatprep.mubr.bf16.mxu0 %v5690
    %6452 = vmatmul.mubr.bf16.gmra.mrb[0].mxu0 %v5689
    %v6453 = vpop.f32.mrb[0].mxu0
    %v6454 = vadd.f32 %v5604, %v6453
    %v6455 = vpop.f32.mrb[0].mxu0
    %v6456 = vadd.f32 %v5608, %v6455
    %v6457 = vpop.f32.mrb[0].mxu0
    %v6458 = vadd.f32 %v5604, %v6457
    %v6459 = vpop.f32.mrb[0].mxu0
    %v6460 = vadd.f32 %v5608, %v6459
    %6461 = vdwg.mxu0
    %6462 = vmatprep.subr.bf16.mxu0 %v6084
    %6463 = vmatpush1.bf16.msra.mxu0 %v6083
    %6464 = vmatprep.subr.bf16.mxu0 %v6092
    %6465 = vmatpush1.bf16.msra.mxu0 %v6091
    %6466 = vmatprep.subr.bf16.mxu0 %v6100
    %6467 = vmatpush1.bf16.msra.mxu0 %v6099
    %6468 = vmatprep.subr.bf16.mxu0 %v6108
    %6469 = vmatpush1.bf16.msra.mxu0 %v6107
    %6470 = vmatprep.subr.bf16.mxu0 %v6116
    %6471 = vmatpush1.bf16.msra.mxu0 %v6115
    %6472 = vmatprep.subr.bf16.mxu0 %v6124
    %6473 = vmatpush1.bf16.msra.mxu0 %v6123
    %6474 = vmatprep.subr.bf16.mxu0 %v6132
    %6475 = vmatpush1.bf16.msra.mxu0 %v6131
    %6476 = vmatprep.subr.bf16.mxu0 %v6140
    %6477 = vmatpush1.bf16.msra.mxu0 %v6139
    %6478 = vmatprep.subr.bf16.mxu0 %v6148
    %6479 = vmatpush1.bf16.msra.mxu0 %v6147
    %6480 = vmatprep.subr.bf16.mxu0 %v6156
    %6481 = vmatpush1.bf16.msra.mxu0 %v6155
    %6482 = vmatprep.subr.bf16.mxu0 %v6164
    %6483 = vmatpush1.bf16.msra.mxu0 %v6163
    %6484 = vmatprep.subr.bf16.mxu0 %v6172
    %6485 = vmatpush1.bf16.msra.mxu0 %v6171
    %6486 = vmatprep.subr.bf16.mxu0 %v6180
    %6487 = vmatpush1.bf16.msra.mxu0 %v6179
    %6488 = vmatprep.subr.bf16.mxu0 %v6188
    %6489 = vmatpush1.bf16.msra.mxu0 %v6187
    %6490 = vmatprep.subr.bf16.mxu0 %v6196
    %6491 = vmatpush1.bf16.msra.mxu0 %v6195
    %6492 = vmatprep.subr.bf16.mxu0 %v6204
    %6493 = vmatpush1.bf16.msra.mxu0 %v6203
    %6494 = vmatprep.mubr.bf16.mxu0 %v5690
    %6495 = vmatmul.mubr.bf16.gmra.mrb[0].mxu0 %v5689
    %v6496 = vpop.f32.mrb[0].mxu0
    %v6497 = vadd.f32 %v5612, %v6496
    %v6498 = vpop.f32.mrb[0].mxu0
    %v6499 = vadd.f32 %v5616, %v6498
    %v6500 = vpop.f32.mrb[0].mxu0
    %v6501 = vadd.f32 %v5612, %v6500
    %v6502 = vpop.f32.mrb[0].mxu0
    %v6503 = vadd.f32 %v5616, %v6502
    %6504 = vdwg.mxu0
    %v6521 = vcombine.low %v6368, %v6370
    %v6522 = vcombine.high %v6368, %v6370
    %v6523 = vcombine.low %v6411, %v6413
    %v6524 = vcombine.high %v6411, %v6413
    %v6526 = vunpack.c.l.s4 1983009808
    %v6527 = vunpack.c.0.s8 %v6526
    %v6528 = vlaneseq
    %v6529 = vshrl.u32 %v6528, 7
    %v6530 = vsub.s32 %v6527, %v6529
    %v6531 = vrot.slane %v6521, %v6530
    %v6533 = vunpack.c.l.s4 1983009808
    %v6534 = vunpack.c.0.s8 %v6533
    %v6535 = vlaneseq
    %v6536 = vshrl.u32 %v6535, 7
    %v6537 = vsub.s32 %v6534, %v6536
    %v6538 = vrot.slane %v6522, %v6537
    %v6540 = vunpack.c.l.s4 1983009808
    %v6541 = vunpack.c.0.s8 %v6540
    %v6542 = vlaneseq
    %v6543 = vshrl.u32 %v6542, 7
    %v6544 = vsub.s32 %v6541, %v6543
    %v6545 = vrot.slane %v6523, %v6544
    %v6547 = vunpack.c.l.s4 1983009808
    %v6548 = vunpack.c.0.s8 %v6547
    %v6549 = vlaneseq
    %v6550 = vshrl.u32 %v6549, 7
    %v6551 = vsub.s32 %v6548, %v6550
    %v6552 = vrot.slane %v6524, %v6551
    %v6553 = vcombine.low %v6531, %v6545
    %v6554 = vcombine.high %v6531, %v6545
    %v6555 = vcombine.low %v6538, %v6552
    %v6556 = vcombine.high %v6538, %v6552
    %v6557 = vcombine.low %v6454, %v6456
    %v6558 = vcombine.high %v6454, %v6456
    %v6559 = vcombine.low %v6497, %v6499
    %v6560 = vcombine.high %v6497, %v6499
    %v6562 = vunpack.c.l.s4 1983009808
    %v6563 = vunpack.c.0.s8 %v6562
    %v6564 = vlaneseq
    %v6565 = vshrl.u32 %v6564, 7
    %v6566 = vsub.s32 %v6563, %v6565
    %v6567 = vrot.slane %v6557, %v6566
    %v6569 = vunpack.c.l.s4 1983009808
    %v6570 = vunpack.c.0.s8 %v6569
    %v6571 = vlaneseq
    %v6572 = vshrl.u32 %v6571, 7
    %v6573 = vsub.s32 %v6570, %v6572
    %v6574 = vrot.slane %v6558, %v6573
    %v6576 = vunpack.c.l.s4 1983009808
    %v6577 = vunpack.c.0.s8 %v6576
    %v6578 = vlaneseq
    %v6579 = vshrl.u32 %v6578, 7
    %v6580 = vsub.s32 %v6577, %v6579
    %v6581 = vrot.slane %v6559, %v6580
    %v6583 = vunpack.c.l.s4 1983009808
    %v6584 = vunpack.c.0.s8 %v6583
    %v6585 = vlaneseq
    %v6586 = vshrl.u32 %v6585, 7
    %v6587 = vsub.s32 %v6584, %v6586
    %v6588 = vrot.slane %v6560, %v6587
    %v6589 = vcombine.low %v6567, %v6581
    %v6590 = vcombine.high %v6567, %v6581
    %v6591 = vcombine.low %v6574, %v6588
    %v6592 = vcombine.high %v6574, %v6588
    %v6593 = vcombine.low %v6372, %v6374
    %v6594 = vcombine.high %v6372, %v6374
    %v6595 = vcombine.low %v6415, %v6417
    %v6596 = vcombine.high %v6415, %v6417
    %v6598 = vunpack.c.l.s4 1983009808
    %v6599 = vunpack.c.0.s8 %v6598
    %v6600 = vlaneseq
    %v6601 = vshrl.u32 %v6600, 7
    %v6602 = vsub.s32 %v6599, %v6601
    %v6603 = vrot.slane %v6593, %v6602
    %v6605 = vunpack.c.l.s4 1983009808
    %v6606 = vunpack.c.0.s8 %v6605
    %v6607 = vlaneseq
    %v6608 = vshrl.u32 %v6607, 7
    %v6609 = vsub.s32 %v6606, %v6608
    %v6610 = vrot.slane %v6594, %v6609
    %v6612 = vunpack.c.l.s4 1983009808
    %v6613 = vunpack.c.0.s8 %v6612
    %v6614 = vlaneseq
    %v6615 = vshrl.u32 %v6614, 7
    %v6616 = vsub.s32 %v6613, %v6615
    %v6617 = vrot.slane %v6595, %v6616
    %v6619 = vunpack.c.l.s4 1983009808
    %v6620 = vunpack.c.0.s8 %v6619
    %v6621 = vlaneseq
    %v6622 = vshrl.u32 %v6621, 7
    %v6623 = vsub.s32 %v6620, %v6622
    %v6624 = vrot.slane %v6596, %v6623
    %v6625 = vcombine.low %v6603, %v6617
    %v6626 = vcombine.high %v6603, %v6617
    %v6627 = vcombine.low %v6610, %v6624
    %v6628 = vcombine.high %v6610, %v6624
    %v6629 = vcombine.low %v6458, %v6460
    %v6630 = vcombine.high %v6458, %v6460
    %v6631 = vcombine.low %v6501, %v6503
    %v6632 = vcombine.high %v6501, %v6503
    %v6634 = vunpack.c.l.s4 1983009808
    %v6635 = vunpack.c.0.s8 %v6634
    %v6636 = vlaneseq
    %v6637 = vshrl.u32 %v6636, 7
    %v6638 = vsub.s32 %v6635, %v6637
    %v6639 = vrot.slane %v6629, %v6638
    %v6641 = vunpack.c.l.s4 1983009808
    %v6642 = vunpack.c.0.s8 %v6641
    %v6643 = vlaneseq
    %v6644 = vshrl.u32 %v6643, 7
    %v6645 = vsub.s32 %v6642, %v6644
    %v6646 = vrot.slane %v6630, %v6645
    %v6648 = vunpack.c.l.s4 1983009808
    %v6649 = vunpack.c.0.s8 %v6648
    %v6650 = vlaneseq
    %v6651 = vshrl.u32 %v6650, 7
    %v6652 = vsub.s32 %v6649, %v6651
    %v6653 = vrot.slane %v6631, %v6652
    %v6655 = vunpack.c.l.s4 1983009808
    %v6656 = vunpack.c.0.s8 %v6655
    %v6657 = vlaneseq
    %v6658 = vshrl.u32 %v6657, 7
    %v6659 = vsub.s32 %v6656, %v6658
    %v6660 = vrot.slane %v6632, %v6659
    %v6661 = vcombine.low %v6639, %v6653
    %v6662 = vcombine.high %v6639, %v6653
    %v6663 = vcombine.low %v6646, %v6660
    %v6664 = vcombine.high %v6646, %v6660
    %6681 = vst [vmem:[#allocation2] sm:$0xff] %v6553
    %6682 = vst [vmem:[#allocation2 + $0x8] sm:$0xff] %v6589
    %6683 = vst [vmem:[#allocation2 + $0x10] sm:$0xff] %v6554
    %6684 = vst [vmem:[#allocation2 + $0x18] sm:$0xff] %v6590
    %6685 = vst [vmem:[#allocation2 + $0x20] sm:$0xff] %v6555
    %6686 = vst [vmem:[#allocation2 + $0x28] sm:$0xff] %v6591
    %6687 = vst [vmem:[#allocation2 + $0x30] sm:$0xff] %v6556
    %6688 = vst [vmem:[#allocation2 + $0x38] sm:$0xff] %v6592
    %6689 = vst [vmem:[#allocation2 + $0x40] sm:$0xff] %v6625
    %6690 = vst [vmem:[#allocation2 + $0x48] sm:$0xff] %v6661
    %6691 = vst [vmem:[#allocation2 + $0x50] sm:$0xff] %v6626
    %6692 = vst [vmem:[#allocation2 + $0x58] sm:$0xff] %v6662
    %6693 = vst [vmem:[#allocation2 + $0x60] sm:$0xff] %v6627
    %6694 = vst [vmem:[#allocation2 + $0x68] sm:$0xff] %v6663
    %6695 = vst [vmem:[#allocation2 + $0x70] sm:$0xff] %v6628
    %6696 = vst [vmem:[#allocation2 + $0x78] sm:$0xff] %v6664
    %v6697 = vld [vmem:[%s6] sm:$0xff]
    %v6698 = vld [vmem:[%s6 + $0x8] sm:$0xff]
    %v6699 = vld [vmem:[%s6 + $0x10] sm:$0xff]
    %v6700 = vld [vmem:[%s6 + $0x18] sm:$0xff]
    %v6701 = vld [vmem:[%s6 + $0x20] sm:$0xff]
    %v6702 = vld [vmem:[%s6 + $0x28] sm:$0xff]
    %v6703 = vld [vmem:[%s6 + $0x30] sm:$0xff]
    %v6704 = vld [vmem:[%s6 + $0x38] sm:$0xff]
    %v6705 = vld [vmem:[%s6 + $0x40] sm:$0xff]
    %v6706 = vld [vmem:[%s6 + $0x48] sm:$0xff]
    %v6707 = vld [vmem:[%s6 + $0x50] sm:$0xff]
    %v6708 = vld [vmem:[%s6 + $0x58] sm:$0xff]
    %v6709 = vld [vmem:[%s6 + $0x60] sm:$0xff]
    %v6710 = vld [vmem:[%s6 + $0x68] sm:$0xff]
    %v6711 = vld [vmem:[%s6 + $0x70] sm:$0xff]
    %v6712 = vld [vmem:[%s6 + $0x78] sm:$0xff]
    %v6713 = vld [vmem:[%s6 + $0x80] sm:$0xff]
    %v6714 = vld [vmem:[%s6 + $0x88] sm:$0xff]
    %v6715 = vld [vmem:[%s6 + $0x90] sm:$0xff]
    %v6716 = vld [vmem:[%s6 + $0x98] sm:$0xff]
    %v6717 = vld [vmem:[%s6 + $0xa0] sm:$0xff]
    %v6718 = vld [vmem:[%s6 + $0xa8] sm:$0xff]
    %v6719 = vld [vmem:[%s6 + $0xb0] sm:$0xff]
    %v6720 = vld [vmem:[%s6 + $0xb8] sm:$0xff]
    %v6721 = vld [vmem:[%s6 + $0xc0] sm:$0xff]
    %v6722 = vld [vmem:[%s6 + $0xc8] sm:$0xff]
    %v6723 = vld [vmem:[%s6 + $0xd0] sm:$0xff]
    %v6724 = vld [vmem:[%s6 + $0xd8] sm:$0xff]
    %v6725 = vld [vmem:[%s6 + $0xe0] sm:$0xff]
    %v6726 = vld [vmem:[%s6 + $0xe8] sm:$0xff]
    %v6727 = vld [vmem:[%s6 + $0xf0] sm:$0xff]
    %v6728 = vld [vmem:[%s6 + $0xf8] sm:$0xff]
    %v6729 = vld [vmem:[%s6 + $0x100] sm:$0xff]
    %v6730 = vld [vmem:[%s6 + $0x108] sm:$0xff]
    %v6731 = vld [vmem:[%s6 + $0x110] sm:$0xff]
    %v6732 = vld [vmem:[%s6 + $0x118] sm:$0xff]
    %v6733 = vld [vmem:[%s6 + $0x120] sm:$0xff]
    %v6734 = vld [vmem:[%s6 + $0x128] sm:$0xff]
    %v6735 = vld [vmem:[%s6 + $0x130] sm:$0xff]
    %v6736 = vld [vmem:[%s6 + $0x138] sm:$0xff]
    %v6737 = vld [vmem:[%s6 + $0x140] sm:$0xff]
    %v6738 = vld [vmem:[%s6 + $0x148] sm:$0xff]
    %v6739 = vld [vmem:[%s6 + $0x150] sm:$0xff]
    %v6740 = vld [vmem:[%s6 + $0x158] sm:$0xff]
    %v6741 = vld [vmem:[%s6 + $0x160] sm:$0xff]
    %v6742 = vld [vmem:[%s6 + $0x168] sm:$0xff]
    %v6743 = vld [vmem:[%s6 + $0x170] sm:$0xff]
    %v6744 = vld [vmem:[%s6 + $0x178] sm:$0xff]
    %v6745 = vld [vmem:[%s6 + $0x180] sm:$0xff]
    %v6746 = vld [vmem:[%s6 + $0x188] sm:$0xff]
    %v6747 = vld [vmem:[%s6 + $0x190] sm:$0xff]
    %v6748 = vld [vmem:[%s6 + $0x198] sm:$0xff]
    %v6749 = vld [vmem:[%s6 + $0x1a0] sm:$0xff]
    %v6750 = vld [vmem:[%s6 + $0x1a8] sm:$0xff]
    %v6751 = vld [vmem:[%s6 + $0x1b0] sm:$0xff]
    %v6752 = vld [vmem:[%s6 + $0x1b8] sm:$0xff]
    %v6753 = vld [vmem:[%s6 + $0x1c0] sm:$0xff]
    %v6754 = vld [vmem:[%s6 + $0x1c8] sm:$0xff]
    %v6755 = vld [vmem:[%s6 + $0x1d0] sm:$0xff]
    %v6756 = vld [vmem:[%s6 + $0x1d8] sm:$0xff]
    %v6757 = vld [vmem:[%s6 + $0x1e0] sm:$0xff]
    %v6758 = vld [vmem:[%s6 + $0x1e8] sm:$0xff]
    %v6759 = vld [vmem:[%s6 + $0x1f0] sm:$0xff]
    %v6760 = vld [vmem:[%s6 + $0x1f8] sm:$0xff]
    %v6761 = vld [vmem:[#allocation2] sm:$0xff]
    %v6762 = vld [vmem:[%s2725 + $0x8] sm:$0xff]
    %v6795 = vunpack.c.l.b16 %v6697
    %v6796 = vunpack.c.h.b16 %v6697
    %v6797 = vunpack.c.l.b16 %v6698
    %v6798 = vunpack.c.h.b16 %v6698
    %v6799 = vunpack.c.l.b16 %v6699
    %v6800 = vunpack.c.h.b16 %v6699
    %v6801 = vunpack.c.l.b16 %v6700
    %v6802 = vunpack.c.h.b16 %v6700
    %v6803 = vunpack.c.l.b16 %v6701
    %v6804 = vunpack.c.h.b16 %v6701
    %v6805 = vunpack.c.l.b16 %v6702
    %v6806 = vunpack.c.h.b16 %v6702
    %v6807 = vunpack.c.l.b16 %v6703
    %v6808 = vunpack.c.h.b16 %v6703
    %v6809 = vunpack.c.l.b16 %v6704
    %v6810 = vunpack.c.h.b16 %v6704
    %v6811 = vunpack.c.l.b16 %v6705
    %v6812 = vunpack.c.h.b16 %v6705
    %v6813 = vunpack.c.l.b16 %v6706
    %v6814 = vunpack.c.h.b16 %v6706
    %v6815 = vunpack.c.l.b16 %v6707
    %v6816 = vunpack.c.h.b16 %v6707
    %v6817 = vunpack.c.l.b16 %v6708
    %v6818 = vunpack.c.h.b16 %v6708
    %v6819 = vunpack.c.l.b16 %v6709
    %v6820 = vunpack.c.h.b16 %v6709
    %v6821 = vunpack.c.l.b16 %v6710
    %v6822 = vunpack.c.h.b16 %v6710
    %v6823 = vunpack.c.l.b16 %v6711
    %v6824 = vunpack.c.h.b16 %v6711
    %v6825 = vunpack.c.l.b16 %v6712
    %v6826 = vunpack.c.h.b16 %v6712
    %v6827 = vunpack.c.l.b16 %v6713
    %v6828 = vunpack.c.h.b16 %v6713
    %v6829 = vunpack.c.l.b16 %v6714
    %v6830 = vunpack.c.h.b16 %v6714
    %v6831 = vunpack.c.l.b16 %v6715
    %v6832 = vunpack.c.h.b16 %v6715
    %v6833 = vunpack.c.l.b16 %v6716
    %v6834 = vunpack.c.h.b16 %v6716
    %v6835 = vunpack.c.l.b16 %v6717
    %v6836 = vunpack.c.h.b16 %v6717
    %v6837 = vunpack.c.l.b16 %v6718
    %v6838 = vunpack.c.h.b16 %v6718
    %v6839 = vunpack.c.l.b16 %v6719
    %v6840 = vunpack.c.h.b16 %v6719
    %v6841 = vunpack.c.l.b16 %v6720
    %v6842 = vunpack.c.h.b16 %v6720
    %v6843 = vunpack.c.l.b16 %v6721
    %v6844 = vunpack.c.h.b16 %v6721
    %v6845 = vunpack.c.l.b16 %v6722
    %v6846 = vunpack.c.h.b16 %v6722
    %v6847 = vunpack.c.l.b16 %v6723
    %v6848 = vunpack.c.h.b16 %v6723
    %v6849 = vunpack.c.l.b16 %v6724
    %v6850 = vunpack.c.h.b16 %v6724
    %v6851 = vunpack.c.l.b16 %v6725
    %v6852 = vunpack.c.h.b16 %v6725
    %v6853 = vunpack.c.l.b16 %v6726
    %v6854 = vunpack.c.h.b16 %v6726
    %v6855 = vunpack.c.l.b16 %v6727
    %v6856 = vunpack.c.h.b16 %v6727
    %v6857 = vunpack.c.l.b16 %v6728
    %v6858 = vunpack.c.h.b16 %v6728
    %v6859 = vpack.c.b16 %v6799, %v6795
    %v6860 = vpack.c.b16 %v6800, %v6796
    %v6861 = vpack.c.b16 %v6801, %v6797
    %v6862 = vpack.c.b16 %v6802, %v6798
    %v6863 = vpack.c.b16 %v6807, %v6803
    %v6864 = vpack.c.b16 %v6808, %v6804
    %v6865 = vpack.c.b16 %v6809, %v6805
    %v6866 = vpack.c.b16 %v6810, %v6806
    %v6867 = vpack.c.b16 %v6815, %v6811
    %v6868 = vpack.c.b16 %v6816, %v6812
    %v6869 = vpack.c.b16 %v6817, %v6813
    %v6870 = vpack.c.b16 %v6818, %v6814
    %v6871 = vpack.c.b16 %v6823, %v6819
    %v6872 = vpack.c.b16 %v6824, %v6820
    %v6873 = vpack.c.b16 %v6825, %v6821
    %v6874 = vpack.c.b16 %v6826, %v6822
    %v6875 = vpack.c.b16 %v6831, %v6827
    %v6876 = vpack.c.b16 %v6832, %v6828
    %v6877 = vpack.c.b16 %v6833, %v6829
    %v6878 = vpack.c.b16 %v6834, %v6830
    %v6879 = vpack.c.b16 %v6839, %v6835
    %v6880 = vpack.c.b16 %v6840, %v6836
    %v6881 = vpack.c.b16 %v6841, %v6837
    %v6882 = vpack.c.b16 %v6842, %v6838
    %v6883 = vpack.c.b16 %v6847, %v6843
    %v6884 = vpack.c.b16 %v6848, %v6844
    %v6885 = vpack.c.b16 %v6849, %v6845
    %v6886 = vpack.c.b16 %v6850, %v6846
    %v6887 = vpack.c.b16 %v6855, %v6851
    %v6888 = vpack.c.b16 %v6856, %v6852
    %v6889 = vpack.c.b16 %v6857, %v6853
    %v6890 = vpack.c.b16 %v6858, %v6854
    %6923 = vmatprep.subr.bf16.mxu0 %v6860
    %6924 = vmatpush1.bf16.msra.mxu0 %v6859
    %6925 = vmatprep.subr.bf16.mxu0 %v6864
    %6926 = vmatpush1.bf16.msra.mxu0 %v6863
    %6927 = vmatprep.subr.bf16.mxu0 %v6868
    %6928 = vmatpush1.bf16.msra.mxu0 %v6867
    %6929 = vmatprep.subr.bf16.mxu0 %v6872
    %6930 = vmatpush1.bf16.msra.mxu0 %v6871
    %6931 = vmatprep.subr.bf16.mxu0 %v6876
    %6932 = vmatpush1.bf16.msra.mxu0 %v6875
    %6933 = vmatprep.subr.bf16.mxu0 %v6880
    %6934 = vmatpush1.bf16.msra.mxu0 %v6879
    %6935 = vmatprep.subr.bf16.mxu0 %v6884
    %6936 = vmatpush1.bf16.msra.mxu0 %v6883
    %6937 = vmatprep.subr.bf16.mxu0 %v6888
    %6938 = vmatpush1.bf16.msra.mxu0 %v6887
    %6939 = vmatprep.subr.bf16.mxu0 0
    %6940 = vmatpush1.bf16.msra.mxu0 0
    %6941 = vmatprep.subr.bf16.mxu0 0
    %6942 = vmatpush1.bf16.msra.mxu0 0
    %6943 = vmatprep.subr.bf16.mxu0 0
    %6944 = vmatpush1.bf16.msra.mxu0 0
    %6945 = vmatprep.subr.bf16.mxu0 0
    %6946 = vmatpush1.bf16.msra.mxu0 0
    %6947 = vmatprep.subr.bf16.mxu0 0
    %6948 = vmatpush1.bf16.msra.mxu0 0
    %6949 = vmatprep.subr.bf16.mxu0 0
    %6950 = vmatpush1.bf16.msra.mxu0 0
    %6951 = vmatprep.subr.bf16.mxu0 0
    %6952 = vmatpush1.bf16.msra.mxu0 0
    %6953 = vmatprep.subr.bf16.mxu0 0
    %6954 = vmatpush1.bf16.msra.mxu0 0
    %6955 = vmatprep.mubr.bf16.mxu0 0
    %6956 = vmatmul.mubr.bf16.gmra.mrb[0].mxu0 0
    %v6957 = vpop.f32.mrb[0].mxu0
    %v6958 = vadd.f32 0.0, %v6957
    %v6959 = vpop.f32.mrb[0].mxu0
    %v6960 = vadd.f32 0.0, %v6959
    %v6961 = vpop.f32.mrb[0].mxu0
    %v6962 = vpop.f32.mrb[0].mxu0
    %6963 = vdwg.mxu0
    %6964 = vmatprep.subr.bf16.mxu0 %v6862
    %6965 = vmatpush1.bf16.msra.mxu0 %v6861
    %6966 = vmatprep.subr.bf16.mxu0 %v6866
    %6967 = vmatpush1.bf16.msra.mxu0 %v6865
    %6968 = vmatprep.subr.bf16.mxu0 %v6870
    %6969 = vmatpush1.bf16.msra.mxu0 %v6869
    %6970 = vmatprep.subr.bf16.mxu0 %v6874
    %6971 = vmatpush1.bf16.msra.mxu0 %v6873
    %6972 = vmatprep.subr.bf16.mxu0 %v6878
    %6973 = vmatpush1.bf16.msra.mxu0 %v6877
    %6974 = vmatprep.subr.bf16.mxu0 %v6882
    %6975 = vmatpush1.bf16.msra.mxu0 %v6881
    %6976 = vmatprep.subr.bf16.mxu0 %v6886
    %6977 = vmatpush1.bf16.msra.mxu0 %v6885
    %6978 = vmatprep.subr.bf16.mxu0 %v6890
    %6979 = vmatpush1.bf16.msra.mxu0 %v6889
    %6980 = vmatprep.subr.bf16.mxu0 0
    %6981 = vmatpush1.bf16.msra.mxu0 0
    %6982 = vmatprep.subr.bf16.mxu0 0
    %6983 = vmatpush1.bf16.msra.mxu0 0
    %6984 = vmatprep.subr.bf16.mxu0 0
    %6985 = vmatpush1.bf16.msra.mxu0 0
    %6986 = vmatprep.subr.bf16.mxu0 0
    %6987 = vmatpush1.bf16.msra.mxu0 0
    %6988 = vmatprep.subr.bf16.mxu0 0
    %6989 = vmatpush1.bf16.msra.mxu0 0
    %6990 = vmatprep.subr.bf16.mxu0 0
    %6991 = vmatpush1.bf16.msra.mxu0 0
    %6992 = vmatprep.subr.bf16.mxu0 0
    %6993 = vmatpush1.bf16.msra.mxu0 0
    %6994 = vmatprep.subr.bf16.mxu0 0
    %6995 = vmatpush1.bf16.msra.mxu0 0
    %6996 = vmatprep.mubr.bf16.mxu0 0
    %6997 = vmatmul.mubr.bf16.gmra.mrb[0].mxu0 0
    %v6998 = vpop.f32.mrb[0].mxu0
    %v6999 = vadd.f32 0.0, %v6998
    %v7000 = vpop.f32.mrb[0].mxu0
    %v7001 = vadd.f32 0.0, %v7000
    %v7002 = vpop.f32.mrb[0].mxu0
    %v7003 = vpop.f32.mrb[0].mxu0
    %7004 = vdwg.mxu0
    %v7009 = vcombine.low %v6958, %v6960
    %v7010 = vcombine.low %v6999, %v7001
    %v7012 = vunpack.c.l.s4 1983009808
    %v7013 = vunpack.c.0.s8 %v7012
    %v7014 = vlaneseq
    %v7015 = vshrl.u32 %v7014, 7
    %v7016 = vsub.s32 %v7013, %v7015
    %v7017 = vrot.slane %v7009, %v7016
    %v7019 = vunpack.c.l.s4 1983009808
    %v7020 = vunpack.c.0.s8 %v7019
    %v7021 = vlaneseq
    %v7022 = vshrl.u32 %v7021, 7
    %v7023 = vsub.s32 %v7020, %v7022
    %v7024 = vrot.slane %v7010, %v7023
    %v7025 = vcombine.low %v7017, %v7024
    %v7027 = vadd.f32 %v6761, %v7025
    %v7060 = vunpack.c.l.b16 %v6729
    %v7061 = vunpack.c.h.b16 %v6729
    %v7062 = vunpack.c.l.b16 %v6730
    %v7063 = vunpack.c.h.b16 %v6730
    %v7064 = vunpack.c.l.b16 %v6731
    %v7065 = vunpack.c.h.b16 %v6731
    %v7066 = vunpack.c.l.b16 %v6732
    %v7067 = vunpack.c.h.b16 %v6732
    %v7068 = vunpack.c.l.b16 %v6733
    %v7069 = vunpack.c.h.b16 %v6733
    %v7070 = vunpack.c.l.b16 %v6734
    %v7071 = vunpack.c.h.b16 %v6734
    %v7072 = vunpack.c.l.b16 %v6735
    %v7073 = vunpack.c.h.b16 %v6735
    %v7074 = vunpack.c.l.b16 %v6736
    %v7075 = vunpack.c.h.b16 %v6736
    %v7076 = vunpack.c.l.b16 %v6737
    %v7077 = vunpack.c.h.b16 %v6737
    %v7078 = vunpack.c.l.b16 %v6738
    %v7079 = vunpack.c.h.b16 %v6738
    %v7080 = vunpack.c.l.b16 %v6739
    %v7081 = vunpack.c.h.b16 %v6739
    %v7082 = vunpack.c.l.b16 %v6740
    %v7083 = vunpack.c.h.b16 %v6740
    %v7084 = vunpack.c.l.b16 %v6741
    %v7085 = vunpack.c.h.b16 %v6741
    %v7086 = vunpack.c.l.b16 %v6742
    %v7087 = vunpack.c.h.b16 %v6742
    %v7088 = vunpack.c.l.b16 %v6743
    %v7089 = vunpack.c.h.b16 %v6743
    %v7090 = vunpack.c.l.b16 %v6744
    %v7091 = vunpack.c.h.b16 %v6744
    %v7092 = vunpack.c.l.b16 %v6745
    %v7093 = vunpack.c.h.b16 %v6745
    %v7094 = vunpack.c.l.b16 %v6746
    %v7095 = vunpack.c.h.b16 %v6746
    %v7096 = vunpack.c.l.b16 %v6747
    %v7097 = vunpack.c.h.b16 %v6747
    %v7098 = vunpack.c.l.b16 %v6748
    %v7099 = vunpack.c.h.b16 %v6748
    %v7100 = vunpack.c.l.b16 %v6749
    %v7101 = vunpack.c.h.b16 %v6749
    %v7102 = vunpack.c.l.b16 %v6750
    %v7103 = vunpack.c.h.b16 %v6750
    %v7104 = vunpack.c.l.b16 %v6751
    %v7105 = vunpack.c.h.b16 %v6751
    %v7106 = vunpack.c.l.b16 %v6752
    %v7107 = vunpack.c.h.b16 %v6752
    %v7108 = vunpack.c.l.b16 %v6753
    %v7109 = vunpack.c.h.b16 %v6753
    %v7110 = vunpack.c.l.b16 %v6754
    %v7111 = vunpack.c.h.b16 %v6754
    %v7112 = vunpack.c.l.b16 %v6755
    %v7113 = vunpack.c.h.b16 %v6755
    %v7114 = vunpack.c.l.b16 %v6756
    %v7115 = vunpack.c.h.b16 %v6756
    %v7116 = vunpack.c.l.b16 %v6757
    %v7117 = vunpack.c.h.b16 %v6757
    %v7118 = vunpack.c.l.b16 %v6758
    %v7119 = vunpack.c.h.b16 %v6758
    %v7120 = vunpack.c.l.b16 %v6759
    %v7121 = vunpack.c.h.b16 %v6759
    %v7122 = vunpack.c.l.b16 %v6760
    %v7123 = vunpack.c.h.b16 %v6760
    %v7124 = vpack.c.b16 %v7064, %v7060
    %v7125 = vpack.c.b16 %v7065, %v7061
    %v7126 = vpack.c.b16 %v7066, %v7062
    %v7127 = vpack.c.b16 %v7067, %v7063
    %v7128 = vpack.c.b16 %v7072, %v7068
    %v7129 = vpack.c.b16 %v7073, %v7069
    %v7130 = vpack.c.b16 %v7074, %v7070
    %v7131 = vpack.c.b16 %v7075, %v7071
    %v7132 = vpack.c.b16 %v7080, %v7076
    %v7133 = vpack.c.b16 %v7081, %v7077
    %v7134 = vpack.c.b16 %v7082, %v7078
    %v7135 = vpack.c.b16 %v7083, %v7079
    %v7136 = vpack.c.b16 %v7088, %v7084
    %v7137 = vpack.c.b16 %v7089, %v7085
    %v7138 = vpack.c.b16 %v7090, %v7086
    %v7139 = vpack.c.b16 %v7091, %v7087
    %v7140 = vpack.c.b16 %v7096, %v7092
    %v7141 = vpack.c.b16 %v7097, %v7093
    %v7142 = vpack.c.b16 %v7098, %v7094
    %v7143 = vpack.c.b16 %v7099, %v7095
    %v7144 = vpack.c.b16 %v7104, %v7100
    %v7145 = vpack.c.b16 %v7105, %v7101
    %v7146 = vpack.c.b16 %v7106, %v7102
    %v7147 = vpack.c.b16 %v7107, %v7103
    %v7148 = vpack.c.b16 %v7112, %v7108
    %v7149 = vpack.c.b16 %v7113, %v7109
    %v7150 = vpack.c.b16 %v7114, %v7110
    %v7151 = vpack.c.b16 %v7115, %v7111
    %v7152 = vpack.c.b16 %v7120, %v7116
    %v7153 = vpack.c.b16 %v7121, %v7117
    %v7154 = vpack.c.b16 %v7122, %v7118
    %v7155 = vpack.c.b16 %v7123, %v7119
    %7188 = vmatprep.subr.bf16.mxu0 %v7125
    %7189 = vmatpush1.bf16.msra.mxu0 %v7124
    %7190 = vmatprep.subr.bf16.mxu0 %v7129
    %7191 = vmatpush1.bf16.msra.mxu0 %v7128
    %7192 = vmatprep.subr.bf16.mxu0 %v7133
    %7193 = vmatpush1.bf16.msra.mxu0 %v7132
    %7194 = vmatprep.subr.bf16.mxu0 %v7137
    %7195 = vmatpush1.bf16.msra.mxu0 %v7136
    %7196 = vmatprep.subr.bf16.mxu0 %v7141
    %7197 = vmatpush1.bf16.msra.mxu0 %v7140
    %7198 = vmatprep.subr.bf16.mxu0 %v7145
    %7199 = vmatpush1.bf16.msra.mxu0 %v7144
    %7200 = vmatprep.subr.bf16.mxu0 %v7149
    %7201 = vmatpush1.bf16.msra.mxu0 %v7148
    %7202 = vmatprep.subr.bf16.mxu0 %v7153
    %7203 = vmatpush1.bf16.msra.mxu0 %v7152
    %7204 = vmatprep.subr.bf16.mxu0 0
    %7205 = vmatpush1.bf16.msra.mxu0 0
    %7206 = vmatprep.subr.bf16.mxu0 0
    %7207 = vmatpush1.bf16.msra.mxu0 0
    %7208 = vmatprep.subr.bf16.mxu0 0
    %7209 = vmatpush1.bf16.msra.mxu0 0
    %7210 = vmatprep.subr.bf16.mxu0 0
    %7211 = vmatpush1.bf16.msra.mxu0 0
    %7212 = vmatprep.subr.bf16.mxu0 0
    %7213 = vmatpush1.bf16.msra.mxu0 0
    %7214 = vmatprep.subr.bf16.mxu0 0
    %7215 = vmatpush1.bf16.msra.mxu0 0
    %7216 = vmatprep.subr.bf16.mxu0 0
    %7217 = vmatpush1.bf16.msra.mxu0 0
    %7218 = vmatprep.subr.bf16.mxu0 0
    %7219 = vmatpush1.bf16.msra.mxu0 0
    %7220 = vmatprep.mubr.bf16.mxu0 0
    %7221 = vmatmul.mubr.bf16.gmra.mrb[0].mxu0 0
    %v7222 = vpop.f32.mrb[0].mxu0
    %v7223 = vadd.f32 0.0, %v7222
    %v7224 = vpop.f32.mrb[0].mxu0
    %v7225 = vadd.f32 0.0, %v7224
    %v7226 = vpop.f32.mrb[0].mxu0
    %v7227 = vpop.f32.mrb[0].mxu0
    %7228 = vdwg.mxu0
    %7229 = vmatprep.subr.bf16.mxu0 %v7127
    %7230 = vmatpush1.bf16.msra.mxu0 %v7126
    %7231 = vmatprep.subr.bf16.mxu0 %v7131
    %7232 = vmatpush1.bf16.msra.mxu0 %v7130
    %7233 = vmatprep.subr.bf16.mxu0 %v7135
    %7234 = vmatpush1.bf16.msra.mxu0 %v7134
    %7235 = vmatprep.subr.bf16.mxu0 %v7139
    %7236 = vmatpush1.bf16.msra.mxu0 %v7138
    %7237 = vmatprep.subr.bf16.mxu0 %v7143
    %7238 = vmatpush1.bf16.msra.mxu0 %v7142
    %7239 = vmatprep.subr.bf16.mxu0 %v7147
    %7240 = vmatpush1.bf16.msra.mxu0 %v7146
    %7241 = vmatprep.subr.bf16.mxu0 %v7151
    %7242 = vmatpush1.bf16.msra.mxu0 %v7150
    %7243 = vmatprep.subr.bf16.mxu0 %v7155
    %7244 = vmatpush1.bf16.msra.mxu0 %v7154
    %7245 = vmatprep.subr.bf16.mxu0 0
    %7246 = vmatpush1.bf16.msra.mxu0 0
    %7247 = vmatprep.subr.bf16.mxu0 0
    %7248 = vmatpush1.bf16.msra.mxu0 0
    %7249 = vmatprep.subr.bf16.mxu0 0
    %7250 = vmatpush1.bf16.msra.mxu0 0
    %7251 = vmatprep.subr.bf16.mxu0 0
    %7252 = vmatpush1.bf16.msra.mxu0 0
    %7253 = vmatprep.subr.bf16.mxu0 0
    %7254 = vmatpush1.bf16.msra.mxu0 0
    %7255 = vmatprep.subr.bf16.mxu0 0
    %7256 = vmatpush1.bf16.msra.mxu0 0
    %7257 = vmatprep.subr.bf16.mxu0 0
    %7258 = vmatpush1.bf16.msra.mxu0 0
    %7259 = vmatprep.subr.bf16.mxu0 0
    %7260 = vmatpush1.bf16.msra.mxu0 0
    %7261 = vmatprep.mubr.bf16.mxu0 0
    %7262 = vmatmul.mubr.bf16.gmra.mrb[0].mxu0 0
    %v7263 = vpop.f32.mrb[0].mxu0
    %v7264 = vadd.f32 0.0, %v7263
    %v7265 = vpop.f32.mrb[0].mxu0
    %v7266 = vadd.f32 0.0, %v7265
    %v7267 = vpop.f32.mrb[0].mxu0
    %v7268 = vpop.f32.mrb[0].mxu0
    %7269 = vdwg.mxu0
    %v7274 = vcombine.low %v7223, %v7225
    %v7275 = vcombine.low %v7264, %v7266
    %v7277 = vunpack.c.l.s4 1983009808
    %v7278 = vunpack.c.0.s8 %v7277
    %v7279 = vlaneseq
    %v7280 = vshrl.u32 %v7279, 7
    %v7281 = vsub.s32 %v7278, %v7280
    %v7282 = vrot.slane %v7274, %v7281
    %v7284 = vunpack.c.l.s4 1983009808
    %v7285 = vunpack.c.0.s8 %v7284
    %v7286 = vlaneseq
    %v7287 = vshrl.u32 %v7286, 7
    %v7288 = vsub.s32 %v7285, %v7287
    %v7289 = vrot.slane %v7275, %v7288
    %v7290 = vcombine.low %v7282, %v7289
    %v7292 = vadd.f32 %v6762, %v7290
    %v7293 = vxor.u32 %v7027, 2147483648
    %v7294 = vmul.f32 %v7293, 1.442695
    %v7295 = vpow.pop %v7294
    %v7296 = vadd.f32 %v7295, 1.0
    %v7297 = vrcp.pop %v7296
    %v7298 = vmul.f32 1.0, %v7297
    %v7300 = vrot.slane %v7027, 2
    %v7302 = vxor.u32 %v7300, 2147483648
    %v7303 = vmul.f32 %v7302, 1.442695
    %v7304 = vpow.pop %v7303
    %v7305 = vadd.f32 %v7304, 1.0
    %v7306 = vrcp.pop %v7305
    %v7307 = vmul.f32 1.0, %v7306
    %v7308 = vrot.slane %v7027, 4
    %v7310 = vtanh.pop %v7308
    %v7311 = vrot.slane %v7027, 6
    %v7313 = vxor.u32 %v7311, 2147483648
    %v7314 = vmul.f32 %v7313, 1.442695
    %v7315 = vpow.pop %v7314
    %v7316 = vadd.f32 %v7315, 1.0
    %v7317 = vrcp.pop %v7316
    %v7318 = vmul.f32 1.0, %v7317
    %v7319 = vmul.f32 %v7307, 0.0
    %v7320 = vmul.f32 %v7298, %v7310
    %v7321 = vadd.f32 %v7319, %v7320
    %v7322 = vtanh.pop %v7321
    %v7323 = vmul.f32 %v7318, %v7322
    %v7324 = vxor.u32 %v7292, 2147483648
    %v7325 = vmul.f32 %v7324, 1.442695
    %v7326 = vpow.pop %v7325
    %v7327 = vadd.f32 %v7326, 1.0
    %v7328 = vrcp.pop %v7327
    %v7329 = vmul.f32 1.0, %v7328
    %v7331 = vrot.slane %v7292, 2
    %v7333 = vxor.u32 %v7331, 2147483648
    %v7334 = vmul.f32 %v7333, 1.442695
    %v7335 = vpow.pop %v7334
    %v7336 = vadd.f32 %v7335, 1.0
    %v7337 = vrcp.pop %v7336
    %v7338 = vmul.f32 1.0, %v7337
    %v7339 = vrot.slane %v7292, 4
    %v7341 = vtanh.pop %v7339
    %v7342 = vrot.slane %v7292, 6
    %v7344 = vxor.u32 %v7342, 2147483648
    %v7345 = vmul.f32 %v7344, 1.442695
    %v7346 = vpow.pop %v7345
    %v7347 = vadd.f32 %v7346, 1.0
    %v7348 = vrcp.pop %v7347
    %v7349 = vmul.f32 1.0, %v7348
    %v7350 = vmul.f32 %v7338, 0.0
    %v7351 = vmul.f32 %v7329, %v7341
    %v7352 = vadd.f32 %v7350, %v7351
    %v7353 = vtanh.pop %v7352
    %v7354 = vmul.f32 %v7349, %v7353
    %7355 = vst [vmem:[#allocation3] sm:$0x3] %v7323
    %7356 = vst [vmem:[%s3320] sm:$0x3] %v7354
    %v7357 = vld [vmem:[%s3322] sm:$0xff]
    %v7358 = vld [vmem:[%s3324 + $0x8] sm:$0xff]
    %v7359 = vpack.c.bf16 %v7323, %v7323
    %7360 = vmatprep.subr.bf16.mxu0 %v6860
    %7361 = vmatpush1.bf16.msra.mxu0 %v6859
    %7362 = vmatprep.subr.bf16.mxu0 %v6864
    %7363 = vmatpush1.bf16.msra.mxu0 %v6863
    %7364 = vmatprep.subr.bf16.mxu0 %v6868
    %7365 = vmatpush1.bf16.msra.mxu0 %v6867
    %7366 = vmatprep.subr.bf16.mxu0 %v6872
    %7367 = vmatpush1.bf16.msra.mxu0 %v6871
    %7368 = vmatprep.subr.bf16.mxu0 %v6876
    %7369 = vmatpush1.bf16.msra.mxu0 %v6875
    %7370 = vmatprep.subr.bf16.mxu0 %v6880
    %7371 = vmatpush1.bf16.msra.mxu0 %v6879
    %7372 = vmatprep.subr.bf16.mxu0 %v6884
    %7373 = vmatpush1.bf16.msra.mxu0 %v6883
    %7374 = vmatprep.subr.bf16.mxu0 %v6888
    %7375 = vmatpush1.bf16.msra.mxu0 %v6887
    %7376 = vmatprep.subr.bf16.mxu0 0
    %7377 = vmatpush1.bf16.msra.mxu0 0
    %7378 = vmatprep.subr.bf16.mxu0 0
    %7379 = vmatpush1.bf16.msra.mxu0 0
    %7380 = vmatprep.subr.bf16.mxu0 0
    %7381 = vmatpush1.bf16.msra.mxu0 0
    %7382 = vmatprep.subr.bf16.mxu0 0
    %7383 = vmatpush1.bf16.msra.mxu0 0
    %7384 = vmatprep.subr.bf16.mxu0 0
    %7385 = vmatpush1.bf16.msra.mxu0 0
    %7386 = vmatprep.subr.bf16.mxu0 0
    %7387 = vmatpush1.bf16.msra.mxu0 0
    %7388 = vmatprep.subr.bf16.mxu0 0
    %7389 = vmatpush1.bf16.msra.mxu0 0
    %7390 = vmatprep.subr.bf16.mxu0 0
    %7391 = vmatpush1.bf16.msra.mxu0 0
    %7392 = vmatprep.mubr.bf16.mxu0 0
    %7393 = vmatmul.mubr.bf16.gmra.mrb[0].mxu0 %v7359
    %v7394 = vpop.f32.mrb[0].mxu0
    %v7395 = vadd.f32 0.0, %v7394
    %v7396 = vpop.f32.mrb[0].mxu0
    %v7397 = vadd.f32 0.0, %v7396
    %v7398 = vpop.f32.mrb[0].mxu0
    %v7399 = vpop.f32.mrb[0].mxu0
    %7400 = vdwg.mxu0
    %7401 = vmatprep.subr.bf16.mxu0 %v6862
    %7402 = vmatpush1.bf16.msra.mxu0 %v6861
    %7403 = vmatprep.subr.bf16.mxu0 %v6866
    %7404 = vmatpush1.bf16.msra.mxu0 %v6865
    %7405 = vmatprep.subr.bf16.mxu0 %v6870
    %7406 = vmatpush1.bf16.msra.mxu0 %v6869
    %7407 = vmatprep.subr.bf16.mxu0 %v6874
    %7408 = vmatpush1.bf16.msra.mxu0 %v6873
    %7409 = vmatprep.subr.bf16.mxu0 %v6878
    %7410 = vmatpush1.bf16.msra.mxu0 %v6877
    %7411 = vmatprep.subr.bf16.mxu0 %v6882
    %7412 = vmatpush1.bf16.msra.mxu0 %v6881
    %7413 = vmatprep.subr.bf16.mxu0 %v6886
    %7414 = vmatpush1.bf16.msra.mxu0 %v6885
    %7415 = vmatprep.subr.bf16.mxu0 %v6890
    %7416 = vmatpush1.bf16.msra.mxu0 %v6889
    %7417 = vmatprep.subr.bf16.mxu0 0
    %7418 = vmatpush1.bf16.msra.mxu0 0
    %7419 = vmatprep.subr.bf16.mxu0 0
    %7420 = vmatpush1.bf16.msra.mxu0 0
    %7421 = vmatprep.subr.bf16.mxu0 0
    %7422 = vmatpush1.bf16.msra.mxu0 0
    %7423 = vmatprep.subr.bf16.mxu0 0
    %7424 = vmatpush1.bf16.msra.mxu0 0
    %7425 = vmatprep.subr.bf16.mxu0 0
    %7426 = vmatpush1.bf16.msra.mxu0 0
    %7427 = vmatprep.subr.bf16.mxu0 0
    %7428 = vmatpush1.bf16.msra.mxu0 0
    %7429 = vmatprep.subr.bf16.mxu0 0
    %7430 = vmatpush1.bf16.msra.mxu0 0
    %7431 = vmatprep.subr.bf16.mxu0 0
    %7432 = vmatpush1.bf16.msra.mxu0 0
    %7433 = vmatprep.mubr.bf16.mxu0 0
    %7434 = vmatmul.mubr.bf16.gmra.mrb[0].mxu0 %v7359
    %v7435 = vpop.f32.mrb[0].mxu0
    %v7436 = vadd.f32 0.0, %v7435
    %v7437 = vpop.f32.mrb[0].mxu0
    %v7438 = vadd.f32 0.0, %v7437
    %v7439 = vpop.f32.mrb[0].mxu0
    %v7440 = vpop.f32.mrb[0].mxu0
    %7441 = vdwg.mxu0
    %v7446 = vcombine.low %v7395, %v7397
    %v7447 = vcombine.low %v7436, %v7438
    %v7449 = vunpack.c.l.s4 1983009808
    %v7450 = vunpack.c.0.s8 %v7449
    %v7451 = vlaneseq
    %v7452 = vshrl.u32 %v7451, 7
    %v7453 = vsub.s32 %v7450, %v7452
    %v7454 = vrot.slane %v7446, %v7453
    %v7456 = vunpack.c.l.s4 1983009808
    %v7457 = vunpack.c.0.s8 %v7456
    %v7458 = vlaneseq
    %v7459 = vshrl.u32 %v7458, 7
    %v7460 = vsub.s32 %v7457, %v7459
    %v7461 = vrot.slane %v7447, %v7460
    %v7462 = vcombine.low %v7454, %v7461
    %v7464 = vadd.f32 %v7357, %v7462
    %v7465 = vpack.c.bf16 %v7354, %v7354
    %7466 = vmatprep.subr.bf16.mxu0 %v7125
    %7467 = vmatpush1.bf16.msra.mxu0 %v7124
    %7468 = vmatprep.subr.bf16.mxu0 %v7129
    %7469 = vmatpush1.bf16.msra.mxu0 %v7128
    %7470 = vmatprep.subr.bf16.mxu0 %v7133
    %7471 = vmatpush1.bf16.msra.mxu0 %v7132
    %7472 = vmatprep.subr.bf16.mxu0 %v7137
    %7473 = vmatpush1.bf16.msra.mxu0 %v7136
    %7474 = vmatprep.subr.bf16.mxu0 %v7141
    %7475 = vmatpush1.bf16.msra.mxu0 %v7140
    %7476 = vmatprep.subr.bf16.mxu0 %v7145
    %7477 = vmatpush1.bf16.msra.mxu0 %v7144
    %7478 = vmatprep.subr.bf16.mxu0 %v7149
    %7479 = vmatpush1.bf16.msra.mxu0 %v7148
    %7480 = vmatprep.subr.bf16.mxu0 %v7153
    %7481 = vmatpush1.bf16.msra.mxu0 %v7152
    %7482 = vmatprep.subr.bf16.mxu0 0
    %7483 = vmatpush1.bf16.msra.mxu0 0
    %7484 = vmatprep.subr.bf16.mxu0 0
    %7485 = vmatpush1.bf16.msra.mxu0 0
    %7486 = vmatprep.subr.bf16.mxu0 0
    %7487 = vmatpush1.bf16.msra.mxu0 0
    %7488 = vmatprep.subr.bf16.mxu0 0
    %7489 = vmatpush1.bf16.msra.mxu0 0
    %7490 = vmatprep.subr.bf16.mxu0 0
    %7491 = vmatpush1.bf16.msra.mxu0 0
    %7492 = vmatprep.subr.bf16.mxu0 0
    %7493 = vmatpush1.bf16.msra.mxu0 0
    %7494 = vmatprep.subr.bf16.mxu0 0
    %7495 = vmatpush1.bf16.msra.mxu0 0
    %7496 = vmatprep.subr.bf16.mxu0 0
    %7497 = vmatpush1.bf16.msra.mxu0 0
    %7498 = vmatprep.mubr.bf16.mxu0 0
    %7499 = vmatmul.mubr.bf16.gmra.mrb[0].mxu0 %v7465
    %v7500 = vpop.f32.mrb[0].mxu0
    %v7501 = vadd.f32 0.0, %v7500
    %v7502 = vpop.f32.mrb[0].mxu0
    %v7503 = vadd.f32 0.0, %v7502
    %v7504 = vpop.f32.mrb[0].mxu0
    %v7505 = vpop.f32.mrb[0].mxu0
    %7506 = vdwg.mxu0
    %7507 = vmatprep.subr.bf16.mxu0 %v7127
    %7508 = vmatpush1.bf16.msra.mxu0 %v7126
    %7509 = vmatprep.subr.bf16.mxu0 %v7131
    %7510 = vmatpush1.bf16.msra.mxu0 %v7130
    %7511 = vmatprep.subr.bf16.mxu0 %v7135
    %7512 = vmatpush1.bf16.msra.mxu0 %v7134
    %7513 = vmatprep.subr.bf16.mxu0 %v7139
    %7514 = vmatpush1.bf16.msra.mxu0 %v7138
    %7515 = vmatprep.subr.bf16.mxu0 %v7143
    %7516 = vmatpush1.bf16.msra.mxu0 %v7142
    %7517 = vmatprep.subr.bf16.mxu0 %v7147
    %7518 = vmatpush1.bf16.msra.mxu0 %v7146
    %7519 = vmatprep.subr.bf16.mxu0 %v7151
    %7520 = vmatpush1.bf16.msra.mxu0 %v7150
    %7521 = vmatprep.subr.bf16.mxu0 %v7155
    %7522 = vmatpush1.bf16.msra.mxu0 %v7154
    %7523 = vmatprep.subr.bf16.mxu0 0
    %7524 = vmatpush1.bf16.msra.mxu0 0
    %7525 = vmatprep.subr.bf16.mxu0 0
    %7526 = vmatpush1.bf16.msra.mxu0 0
    %7527 = vmatprep.subr.bf16.mxu0 0
    %7528 = vmatpush1.bf16.msra.mxu0 0
    %7529 = vmatprep.subr.bf16.mxu0 0
    %7530 = vmatpush1.bf16.msra.mxu0 0
    %7531 = vmatprep.subr.bf16.mxu0 0
    %7532 = vmatpush1.bf16.msra.mxu0 0
    %7533 = vmatprep.subr.bf16.mxu0 0
    %7534 = vmatpush1.bf16.msra.mxu0 0
    %7535 = vmatprep.subr.bf16.mxu0 0
    %7536 = vmatpush1.bf16.msra.mxu0 0
    %7537 = vmatprep.subr.bf16.mxu0 0
    %7538 = vmatpush1.bf16.msra.mxu0 0
    %7539 = vmatprep.mubr.bf16.mxu0 0
    %7540 = vmatmul.mubr.bf16.gmra.mrb[0].mxu0 %v7465
    %v7541 = vpop.f32.mrb[0].mxu0
    %v7542 = vadd.f32 0.0, %v7541
    %v7543 = vpop.f32.mrb[0].mxu0
    %v7544 = vadd.f32 0.0, %v7543
    %v7545 = vpop.f32.mrb[0].mxu0
    %v7546 = vpop.f32.mrb[0].mxu0
    %7547 = vdwg.mxu0
    %v7552 = vcombine.low %v7501, %v7503
    %v7553 = vcombine.low %v7542, %v7544
    %v7555 = vunpack.c.l.s4 1983009808
    %v7556 = vunpack.c.0.s8 %v7555
    %v7557 = vlaneseq
    %v7558 = vshrl.u32 %v7557, 7
    %v7559 = vsub.s32 %v7556, %v7558
    %v7560 = vrot.slane %v7552, %v7559
    %v7562 = vunpack.c.l.s4 1983009808
    %v7563 = vunpack.c.0.s8 %v7562
    %v7564 = vlaneseq
    %v7565 = vshrl.u32 %v7564, 7
    %v7566 = vsub.s32 %v7563, %v7565
    %v7567 = vrot.slane %v7553, %v7566
    %v7568 = vcombine.low %v7560, %v7567
    %v7570 = vadd.f32 %v7358, %v7568
    %v7571 = vxor.u32 %v7464, 2147483648
    %v7572 = vmul.f32 %v7571, 1.442695
    %v7573 = vpow.pop %v7572
    %v7574 = vadd.f32 %v7573, 1.0
    %v7575 = vrcp.pop %v7574
    %v7576 = vmul.f32 1.0, %v7575
    %v7578 = vrot.slane %v7464, 2
    %v7580 = vxor.u32 %v7578, 2147483648
    %v7581 = vmul.f32 %v7580, 1.442695
    %v7582 = vpow.pop %v7581
    %v7583 = vadd.f32 %v7582, 1.0
    %v7584 = vrcp.pop %v7583
    %v7585 = vmul.f32 1.0, %v7584
    %v7586 = vrot.slane %v7464, 4
    %v7588 = vtanh.pop %v7586
    %v7589 = vrot.slane %v7464, 6
    %v7591 = vxor.u32 %v7589, 2147483648
    %v7592 = vmul.f32 %v7591, 1.442695
    %v7593 = vpow.pop %v7592
    %v7594 = vadd.f32 %v7593, 1.0
    %v7595 = vrcp.pop %v7594
    %v7596 = vmul.f32 1.0, %v7595
    %v7597 = vmul.f32 %v7585, %v7321
    %v7598 = vmul.f32 %v7576, %v7588
    %v7599 = vadd.f32 %v7597, %v7598
    %v7600 = vtanh.pop %v7599
    %v7601 = vmul.f32 %v7596, %v7600
    %v7602 = vxor.u32 %v7570, 2147483648
    %v7603 = vmul.f32 %v7602, 1.442695
    %v7604 = vpow.pop %v7603
    %v7605 = vadd.f32 %v7604, 1.0
    %v7606 = vrcp.pop %v7605
    %v7607 = vmul.f32 1.0, %v7606
    %v7609 = vrot.slane %v7570, 2
    %v7611 = vxor.u32 %v7609, 2147483648
    %v7612 = vmul.f32 %v7611, 1.442695
    %v7613 = vpow.pop %v7612
    %v7614 = vadd.f32 %v7613, 1.0
    %v7615 = vrcp.pop %v7614
    %v7616 = vmul.f32 1.0, %v7615
    %v7617 = vrot.slane %v7570, 4
    %v7619 = vtanh.pop %v7617
    %v7620 = vrot.slane %v7570, 6
    %v7622 = vxor.u32 %v7620, 2147483648
    %v7623 = vmul.f32 %v7622, 1.442695
    %v7624 = vpow.pop %v7623
    %v7625 = vadd.f32 %v7624, 1.0
    %v7626 = vrcp.pop %v7625
    %v7627 = vmul.f32 1.0, %v7626
    %v7628 = vmul.f32 %v7616, %v7352
    %v7629 = vmul.f32 %v7607, %v7619
    %v7630 = vadd.f32 %v7628, %v7629
    %v7631 = vtanh.pop %v7630
    %v7632 = vmul.f32 %v7627, %v7631
    %7633 = vst [vmem:[%s3600] sm:$0x3] %v7601
    %7634 = vst [vmem:[%s3602] sm:$0x3] %v7632
    %v7635 = vld [vmem:[%s3604] sm:$0xff]
    %v7636 = vld [vmem:[%s3606 + $0x8] sm:$0xff]
    %v7637 = vpack.c.bf16 %v7601, %v7601
    %7638 = vmatprep.subr.bf16.mxu0 %v6860
    %7639 = vmatpush1.bf16.msra.mxu0 %v6859
    %7640 = vmatprep.subr.bf16.mxu0 %v6864
    %7641 = vmatpush1.bf16.msra.mxu0 %v6863
    %7642 = vmatprep.subr.bf16.mxu0 %v6868
    %7643 = vmatpush1.bf16.msra.mxu0 %v6867
    %7644 = vmatprep.subr.bf16.mxu0 %v6872
    %7645 = vmatpush1.bf16.msra.mxu0 %v6871
    %7646 = vmatprep.subr.bf16.mxu0 %v6876
    %7647 = vmatpush1.bf16.msra.mxu0 %v6875
    %7648 = vmatprep.subr.bf16.mxu0 %v6880
    %7649 = vmatpush1.bf16.msra.mxu0 %v6879
    %7650 = vmatprep.subr.bf16.mxu0 %v6884
    %7651 = vmatpush1.bf16.msra.mxu0 %v6883
    %7652 = vmatprep.subr.bf16.mxu0 %v6888
    %7653 = vmatpush1.bf16.msra.mxu0 %v6887
    %7654 = vmatprep.subr.bf16.mxu0 0
    %7655 = vmatpush1.bf16.msra.mxu0 0
    %7656 = vmatprep.subr.bf16.mxu0 0
    %7657 = vmatpush1.bf16.msra.mxu0 0
    %7658 = vmatprep.subr.bf16.mxu0 0
    %7659 = vmatpush1.bf16.msra.mxu0 0
    %7660 = vmatprep.subr.bf16.mxu0 0
    %7661 = vmatpush1.bf16.msra.mxu0 0
    %7662 = vmatprep.subr.bf16.mxu0 0
    %7663 = vmatpush1.bf16.msra.mxu0 0
    %7664 = vmatprep.subr.bf16.mxu0 0
    %7665 = vmatpush1.bf16.msra.mxu0 0
    %7666 = vmatprep.subr.bf16.mxu0 0
    %7667 = vmatpush1.bf16.msra.mxu0 0
    %7668 = vmatprep.subr.bf16.mxu0 0
    %7669 = vmatpush1.bf16.msra.mxu0 0
    %7670 = vmatprep.mubr.bf16.mxu0 0
    %7671 = vmatmul.mubr.bf16.gmra.mrb[0].mxu0 %v7637
    %v7672 = vpop.f32.mrb[0].mxu0
    %v7673 = vadd.f32 0.0, %v7672
    %v7674 = vpop.f32.mrb[0].mxu0
    %v7675 = vadd.f32 0.0, %v7674
    %v7676 = vpop.f32.mrb[0].mxu0
    %v7677 = vpop.f32.mrb[0].mxu0
    %7678 = vdwg.mxu0
    %7679 = vmatprep.subr.bf16.mxu0 %v6862
    %7680 = vmatpush1.bf16.msra.mxu0 %v6861
    %7681 = vmatprep.subr.bf16.mxu0 %v6866
    %7682 = vmatpush1.bf16.msra.mxu0 %v6865
    %7683 = vmatprep.subr.bf16.mxu0 %v6870
    %7684 = vmatpush1.bf16.msra.mxu0 %v6869
    %7685 = vmatprep.subr.bf16.mxu0 %v6874
    %7686 = vmatpush1.bf16.msra.mxu0 %v6873
    %7687 = vmatprep.subr.bf16.mxu0 %v6878
    %7688 = vmatpush1.bf16.msra.mxu0 %v6877
    %7689 = vmatprep.subr.bf16.mxu0 %v6882
    %7690 = vmatpush1.bf16.msra.mxu0 %v6881
    %7691 = vmatprep.subr.bf16.mxu0 %v6886
    %7692 = vmatpush1.bf16.msra.mxu0 %v6885
    %7693 = vmatprep.subr.bf16.mxu0 %v6890
    %7694 = vmatpush1.bf16.msra.mxu0 %v6889
    %7695 = vmatprep.subr.bf16.mxu0 0
    %7696 = vmatpush1.bf16.msra.mxu0 0
    %7697 = vmatprep.subr.bf16.mxu0 0
    %7698 = vmatpush1.bf16.msra.mxu0 0
    %7699 = vmatprep.subr.bf16.mxu0 0
    %7700 = vmatpush1.bf16.msra.mxu0 0
    %7701 = vmatprep.subr.bf16.mxu0 0
    %7702 = vmatpush1.bf16.msra.mxu0 0
    %7703 = vmatprep.subr.bf16.mxu0 0
    %7704 = vmatpush1.bf16.msra.mxu0 0
    %7705 = vmatprep.subr.bf16.mxu0 0
    %7706 = vmatpush1.bf16.msra.mxu0 0
    %7707 = vmatprep.subr.bf16.mxu0 0
    %7708 = vmatpush1.bf16.msra.mxu0 0
    %7709 = vmatprep.subr.bf16.mxu0 0
    %7710 = vmatpush1.bf16.msra.mxu0 0
    %7711 = vmatprep.mubr.bf16.mxu0 0
    %7712 = vmatmul.mubr.bf16.gmra.mrb[0].mxu0 %v7637
    %v7713 = vpop.f32.mrb[0].mxu0
    %v7714 = vadd.f32 0.0, %v7713
    %v7715 = vpop.f32.mrb[0].mxu0
    %v7716 = vadd.f32 0.0, %v7715
    %v7717 = vpop.f32.mrb[0].mxu0
    %v7718 = vpop.f32.mrb[0].mxu0
    %7719 = vdwg.mxu0
    %v7724 = vcombine.low %v7673, %v7675
    %v7725 = vcombine.low %v7714, %v7716
    %v7727 = vunpack.c.l.s4 1983009808
    %v7728 = vunpack.c.0.s8 %v7727
    %v7729 = vlaneseq
    %v7730 = vshrl.u32 %v7729, 7
    %v7731 = vsub.s32 %v7728, %v7730
    %v7732 = vrot.slane %v7724, %v7731
    %v7734 = vunpack.c.l.s4 1983009808
    %v7735 = vunpack.c.0.s8 %v7734
    %v7736 = vlaneseq
    %v7737 = vshrl.u32 %v7736, 7
    %v7738 = vsub.s32 %v7735, %v7737
    %v7739 = vrot.slane %v7725, %v7738
    %v7740 = vcombine.low %v7732, %v7739
    %v7742 = vadd.f32 %v7635, %v7740
    %v7743 = vpack.c.bf16 %v7632, %v7632
    %7744 = vmatprep.subr.bf16.mxu0 %v7125
    %7745 = vmatpush1.bf16.msra.mxu0 %v7124
    %7746 = vmatprep.subr.bf16.mxu0 %v7129
    %7747 = vmatpush1.bf16.msra.mxu0 %v7128
    %7748 = vmatprep.subr.bf16.mxu0 %v7133
    %7749 = vmatpush1.bf16.msra.mxu0 %v7132
    %7750 = vmatprep.subr.bf16.mxu0 %v7137
    %7751 = vmatpush1.bf16.msra.mxu0 %v7136
    %7752 = vmatprep.subr.bf16.mxu0 %v7141
    %7753 = vmatpush1.bf16.msra.mxu0 %v7140
    %7754 = vmatprep.subr.bf16.mxu0 %v7145
    %7755 = vmatpush1.bf16.msra.mxu0 %v7144
    %7756 = vmatprep.subr.bf16.mxu0 %v7149
    %7757 = vmatpush1.bf16.msra.mxu0 %v7148
    %7758 = vmatprep.subr.bf16.mxu0 %v7153
    %7759 = vmatpush1.bf16.msra.mxu0 %v7152
    %7760 = vmatprep.subr.bf16.mxu0 0
    %7761 = vmatpush1.bf16.msra.mxu0 0
    %7762 = vmatprep.subr.bf16.mxu0 0
    %7763 = vmatpush1.bf16.msra.mxu0 0
    %7764 = vmatprep.subr.bf16.mxu0 0
    %7765 = vmatpush1.bf16.msra.mxu0 0
    %7766 = vmatprep.subr.bf16.mxu0 0
    %7767 = vmatpush1.bf16.msra.mxu0 0
    %7768 = vmatprep.subr.bf16.mxu0 0
    %7769 = vmatpush1.bf16.msra.mxu0 0
    %7770 = vmatprep.subr.bf16.mxu0 0
    %7771 = vmatpush1.bf16.msra.mxu0 0
    %7772 = vmatprep.subr.bf16.mxu0 0
    %7773 = vmatpush1.bf16.msra.mxu0 0
    %7774 = vmatprep.subr.bf16.mxu0 0
    %7775 = vmatpush1.bf16.msra.mxu0 0
    %7776 = vmatprep.mubr.bf16.mxu0 0
    %7777 = vmatmul.mubr.bf16.gmra.mrb[0].mxu0 %v7743
    %v7778 = vpop.f32.mrb[0].mxu0
    %v7779 = vadd.f32 0.0, %v7778
    %v7780 = vpop.f32.mrb[0].mxu0
    %v7781 = vadd.f32 0.0, %v7780
    %v7782 = vpop.f32.mrb[0].mxu0
    %v7783 = vpop.f32.mrb[0].mxu0
    %7784 = vdwg.mxu0
    %7785 = vmatprep.subr.bf16.mxu0 %v7127
    %7786 = vmatpush1.bf16.msra.mxu0 %v7126
    %7787 = vmatprep.subr.bf16.mxu0 %v7131
    %7788 = vmatpush1.bf16.msra.mxu0 %v7130
    %7789 = vmatprep.subr.bf16.mxu0 %v7135
    %7790 = vmatpush1.bf16.msra.mxu0 %v7134
    %7791 = vmatprep.subr.bf16.mxu0 %v7139
    %7792 = vmatpush1.bf16.msra.mxu0 %v7138
    %7793 = vmatprep.subr.bf16.mxu0 %v7143
    %7794 = vmatpush1.bf16.msra.mxu0 %v7142
    %7795 = vmatprep.subr.bf16.mxu0 %v7147
    %7796 = vmatpush1.bf16.msra.mxu0 %v7146
    %7797 = vmatprep.subr.bf16.mxu0 %v7151
    %7798 = vmatpush1.bf16.msra.mxu0 %v7150
    %7799 = vmatprep.subr.bf16.mxu0 %v7155
    %7800 = vmatpush1.bf16.msra.mxu0 %v7154
    %7801 = vmatprep.subr.bf16.mxu0 0
    %7802 = vmatpush1.bf16.msra.mxu0 0
    %7803 = vmatprep.subr.bf16.mxu0 0
    %7804 = vmatpush1.bf16.msra.mxu0 0
    %7805 = vmatprep.subr.bf16.mxu0 0
    %7806 = vmatpush1.bf16.msra.mxu0 0
    %7807 = vmatprep.subr.bf16.mxu0 0
    %7808 = vmatpush1.bf16.msra.mxu0 0
    %7809 = vmatprep.subr.bf16.mxu0 0
    %7810 = vmatpush1.bf16.msra.mxu0 0
    %7811 = vmatprep.subr.bf16.mxu0 0
    %7812 = vmatpush1.bf16.msra.mxu0 0
    %7813 = vmatprep.subr.bf16.mxu0 0
    %7814 = vmatpush1.bf16.msra.mxu0 0
    %7815 = vmatprep.subr.bf16.mxu0 0
    %7816 = vmatpush1.bf16.msra.mxu0 0
    %7817 = vmatprep.mubr.bf16.mxu0 0
    %7818 = vmatmul.mubr.bf16.gmra.mrb[0].mxu0 %v7743
    %v7819 = vpop.f32.mrb[0].mxu0
    %v7820 = vadd.f32 0.0, %v7819
    %v7821 = vpop.f32.mrb[0].mxu0
    %v7822 = vadd.f32 0.0, %v7821
    %v7823 = vpop.f32.mrb[0].mxu0
    %v7824 = vpop.f32.mrb[0].mxu0
    %7825 = vdwg.mxu0
    %v7830 = vcombine.low %v7779, %v7781
    %v7831 = vcombine.low %v7820, %v7822
    %v7833 = vunpack.c.l.s4 1983009808
    %v7834 = vunpack.c.0.s8 %v7833
    %v7835 = vlaneseq
    %v7836 = vshrl.u32 %v7835, 7
    %v7837 = vsub.s32 %v7834, %v7836
    %v7838 = vrot.slane %v7830, %v7837
    %v7840 = vunpack.c.l.s4 1983009808
    %v7841 = vunpack.c.0.s8 %v7840
    %v7842 = vlaneseq
    %v7843 = vshrl.u32 %v7842, 7
    %v7844 = vsub.s32 %v7841, %v7843
    %v7845 = vrot.slane %v7831, %v7844
    %v7846 = vcombine.low %v7838, %v7845
    %v7848 = vadd.f32 %v7636, %v7846
    %v7849 = vxor.u32 %v7742, 2147483648
    %v7850 = vmul.f32 %v7849, 1.442695
    %v7851 = vpow.pop %v7850
    %v7852 = vadd.f32 %v7851, 1.0
    %v7853 = vrcp.pop %v7852
    %v7854 = vmul.f32 1.0, %v7853
    %v7856 = vrot.slane %v7742, 2
    %v7858 = vxor.u32 %v7856, 2147483648
    %v7859 = vmul.f32 %v7858, 1.442695
    %v7860 = vpow.pop %v7859
    %v7861 = vadd.f32 %v7860, 1.0
    %v7862 = vrcp.pop %v7861
    %v7863 = vmul.f32 1.0, %v7862
    %v7864 = vrot.slane %v7742, 4
    %v7866 = vtanh.pop %v7864
    %v7867 = vrot.slane %v7742, 6
    %v7869 = vxor.u32 %v7867, 2147483648
    %v7870 = vmul.f32 %v7869, 1.442695
    %v7871 = vpow.pop %v7870
    %v7872 = vadd.f32 %v7871, 1.0
    %v7873 = vrcp.pop %v7872
    %v7874 = vmul.f32 1.0, %v7873
    %v7875 = vmul.f32 %v7863, %v7599
    %v7876 = vmul.f32 %v7854, %v7866
    %v7877 = vadd.f32 %v7875, %v7876
    %v7878 = vtanh.pop %v7877
    %v7879 = vmul.f32 %v7874, %v7878
    %v7880 = vxor.u32 %v7848, 2147483648
    %v7881 = vmul.f32 %v7880, 1.442695
    %v7882 = vpow.pop %v7881
    %v7883 = vadd.f32 %v7882, 1.0
    %v7884 = vrcp.pop %v7883
    %v7885 = vmul.f32 1.0, %v7884
    %v7887 = vrot.slane %v7848, 2
    %v7889 = vxor.u32 %v7887, 2147483648
    %v7890 = vmul.f32 %v7889, 1.442695
    %v7891 = vpow.pop %v7890
    %v7892 = vadd.f32 %v7891, 1.0
    %v7893 = vrcp.pop %v7892
    %v7894 = vmul.f32 1.0, %v7893
    %v7895 = vrot.slane %v7848, 4
    %v7897 = vtanh.pop %v7895
    %v7898 = vrot.slane %v7848, 6
    %v7900 = vxor.u32 %v7898, 2147483648
    %v7901 = vmul.f32 %v7900, 1.442695
    %v7902 = vpow.pop %v7901
    %v7903 = vadd.f32 %v7902, 1.0
    %v7904 = vrcp.pop %v7903
    %v7905 = vmul.f32 1.0, %v7904
    %v7906 = vmul.f32 %v7894, %v7630
    %v7907 = vmul.f32 %v7885, %v7897
    %v7908 = vadd.f32 %v7906, %v7907
    %v7909 = vtanh.pop %v7908
    %v7910 = vmul.f32 %v7905, %v7909
    %7911 = vst [vmem:[%s3882] sm:$0x3] %v7879
    %7912 = vst [vmem:[%s3884] sm:$0x3] %v7910
    %v7913 = vld [vmem:[%s3886] sm:$0xff]
    %v7914 = vld [vmem:[%s3888 + $0x8] sm:$0xff]
    %v7915 = vpack.c.bf16 %v7879, %v7879
    %7916 = vmatprep.subr.bf16.mxu0 %v6860
    %7917 = vmatpush1.bf16.msra.mxu0 %v6859
    %7918 = vmatprep.subr.bf16.mxu0 %v6864
    %7919 = vmatpush1.bf16.msra.mxu0 %v6863
    %7920 = vmatprep.subr.bf16.mxu0 %v6868
    %7921 = vmatpush1.bf16.msra.mxu0 %v6867
    %7922 = vmatprep.subr.bf16.mxu0 %v6872
    %7923 = vmatpush1.bf16.msra.mxu0 %v6871
    %7924 = vmatprep.subr.bf16.mxu0 %v6876
    %7925 = vmatpush1.bf16.msra.mxu0 %v6875
    %7926 = vmatprep.subr.bf16.mxu0 %v6880
    %7927 = vmatpush1.bf16.msra.mxu0 %v6879
    %7928 = vmatprep.subr.bf16.mxu0 %v6884
    %7929 = vmatpush1.bf16.msra.mxu0 %v6883
    %7930 = vmatprep.subr.bf16.mxu0 %v6888
    %7931 = vmatpush1.bf16.msra.mxu0 %v6887
    %7932 = vmatprep.subr.bf16.mxu0 0
    %7933 = vmatpush1.bf16.msra.mxu0 0
    %7934 = vmatprep.subr.bf16.mxu0 0
    %7935 = vmatpush1.bf16.msra.mxu0 0
    %7936 = vmatprep.subr.bf16.mxu0 0
    %7937 = vmatpush1.bf16.msra.mxu0 0
    %7938 = vmatprep.subr.bf16.mxu0 0
    %7939 = vmatpush1.bf16.msra.mxu0 0
    %7940 = vmatprep.subr.bf16.mxu0 0
    %7941 = vmatpush1.bf16.msra.mxu0 0
    %7942 = vmatprep.subr.bf16.mxu0 0
    %7943 = vmatpush1.bf16.msra.mxu0 0
    %7944 = vmatprep.subr.bf16.mxu0 0
    %7945 = vmatpush1.bf16.msra.mxu0 0
    %7946 = vmatprep.subr.bf16.mxu0 0
    %7947 = vmatpush1.bf16.msra.mxu0 0
    %7948 = vmatprep.mubr.bf16.mxu0 0
    %7949 = vmatmul.mubr.bf16.gmra.mrb[0].mxu0 %v7915
    %v7950 = vpop.f32.mrb[0].mxu0
    %v7951 = vadd.f32 0.0, %v7950
    %v7952 = vpop.f32.mrb[0].mxu0
    %v7953 = vadd.f32 0.0, %v7952
    %v7954 = vpop.f32.mrb[0].mxu0
    %v7955 = vpop.f32.mrb[0].mxu0
    %7956 = vdwg.mxu0
    %7957 = vmatprep.subr.bf16.mxu0 %v6862
    %7958 = vmatpush1.bf16.msra.mxu0 %v6861
    %7959 = vmatprep.subr.bf16.mxu0 %v6866
    %7960 = vmatpush1.bf16.msra.mxu0 %v6865
    %7961 = vmatprep.subr.bf16.mxu0 %v6870
    %7962 = vmatpush1.bf16.msra.mxu0 %v6869
    %7963 = vmatprep.subr.bf16.mxu0 %v6874
    %7964 = vmatpush1.bf16.msra.mxu0 %v6873
    %7965 = vmatprep.subr.bf16.mxu0 %v6878
    %7966 = vmatpush1.bf16.msra.mxu0 %v6877
    %7967 = vmatprep.subr.bf16.mxu0 %v6882
    %7968 = vmatpush1.bf16.msra.mxu0 %v6881
    %7969 = vmatprep.subr.bf16.mxu0 %v6886
    %7970 = vmatpush1.bf16.msra.mxu0 %v6885
    %7971 = vmatprep.subr.bf16.mxu0 %v6890
    %7972 = vmatpush1.bf16.msra.mxu0 %v6889
    %7973 = vmatprep.subr.bf16.mxu0 0
    %7974 = vmatpush1.bf16.msra.mxu0 0
    %7975 = vmatprep.subr.bf16.mxu0 0
    %7976 = vmatpush1.bf16.msra.mxu0 0
    %7977 = vmatprep.subr.bf16.mxu0 0
    %7978 = vmatpush1.bf16.msra.mxu0 0
    %7979 = vmatprep.subr.bf16.mxu0 0
    %7980 = vmatpush1.bf16.msra.mxu0 0
    %7981 = vmatprep.subr.bf16.mxu0 0
    %7982 = vmatpush1.bf16.msra.mxu0 0
    %7983 = vmatprep.subr.bf16.mxu0 0
    %7984 = vmatpush1.bf16.msra.mxu0 0
    %7985 = vmatprep.subr.bf16.mxu0 0
    %7986 = vmatpush1.bf16.msra.mxu0 0
    %7987 = vmatprep.subr.bf16.mxu0 0
    %7988 = vmatpush1.bf16.msra.mxu0 0
    %7989 = vmatprep.mubr.bf16.mxu0 0
    %7990 = vmatmul.mubr.bf16.gmra.mrb[0].mxu0 %v7915
    %v7991 = vpop.f32.mrb[0].mxu0
    %v7992 = vadd.f32 0.0, %v7991
    %v7993 = vpop.f32.mrb[0].mxu0
    %v7994 = vadd.f32 0.0, %v7993
    %v7995 = vpop.f32.mrb[0].mxu0
    %v7996 = vpop.f32.mrb[0].mxu0
    %7997 = vdwg.mxu0
    %v8002 = vcombine.low %v7951, %v7953
    %v8003 = vcombine.low %v7992, %v7994
    %v8005 = vunpack.c.l.s4 1983009808
    %v8006 = vunpack.c.0.s8 %v8005
    %v8007 = vlaneseq
    %v8008 = vshrl.u32 %v8007, 7
    %v8009 = vsub.s32 %v8006, %v8008
    %v8010 = vrot.slane %v8002, %v8009
    %v8012 = vunpack.c.l.s4 1983009808
    %v8013 = vunpack.c.0.s8 %v8012
    %v8014 = vlaneseq
    %v8015 = vshrl.u32 %v8014, 7
    %v8016 = vsub.s32 %v8013, %v8015
    %v8017 = vrot.slane %v8003, %v8016
    %v8018 = vcombine.low %v8010, %v8017
    %v8020 = vadd.f32 %v7913, %v8018
    %v8021 = vpack.c.bf16 %v7910, %v7910
    %8022 = vmatprep.subr.bf16.mxu0 %v7125
    %8023 = vmatpush1.bf16.msra.mxu0 %v7124
    %8024 = vmatprep.subr.bf16.mxu0 %v7129
    %8025 = vmatpush1.bf16.msra.mxu0 %v7128
    %8026 = vmatprep.subr.bf16.mxu0 %v7133
    %8027 = vmatpush1.bf16.msra.mxu0 %v7132
    %8028 = vmatprep.subr.bf16.mxu0 %v7137
    %8029 = vmatpush1.bf16.msra.mxu0 %v7136
    %8030 = vmatprep.subr.bf16.mxu0 %v7141
    %8031 = vmatpush1.bf16.msra.mxu0 %v7140
    %8032 = vmatprep.subr.bf16.mxu0 %v7145
    %8033 = vmatpush1.bf16.msra.mxu0 %v7144
    %8034 = vmatprep.subr.bf16.mxu0 %v7149
    %8035 = vmatpush1.bf16.msra.mxu0 %v7148
    %8036 = vmatprep.subr.bf16.mxu0 %v7153
    %8037 = vmatpush1.bf16.msra.mxu0 %v7152
    %8038 = vmatprep.subr.bf16.mxu0 0
    %8039 = vmatpush1.bf16.msra.mxu0 0
    %8040 = vmatprep.subr.bf16.mxu0 0
    %8041 = vmatpush1.bf16.msra.mxu0 0
    %8042 = vmatprep.subr.bf16.mxu0 0
    %8043 = vmatpush1.bf16.msra.mxu0 0
    %8044 = vmatprep.subr.bf16.mxu0 0
    %8045 = vmatpush1.bf16.msra.mxu0 0
    %8046 = vmatprep.subr.bf16.mxu0 0
    %8047 = vmatpush1.bf16.msra.mxu0 0
    %8048 = vmatprep.subr.bf16.mxu0 0
    %8049 = vmatpush1.bf16.msra.mxu0 0
    %8050 = vmatprep.subr.bf16.mxu0 0
    %8051 = vmatpush1.bf16.msra.mxu0 0
    %8052 = vmatprep.subr.bf16.mxu0 0
    %8053 = vmatpush1.bf16.msra.mxu0 0
    %8054 = vmatprep.mubr.bf16.mxu0 0
    %8055 = vmatmul.mubr.bf16.gmra.mrb[0].mxu0 %v8021
    %v8056 = vpop.f32.mrb[0].mxu0
    %v8057 = vadd.f32 0.0, %v8056
    %v8058 = vpop.f32.mrb[0].mxu0
    %v8059 = vadd.f32 0.0, %v8058
    %v8060 = vpop.f32.mrb[0].mxu0
    %v8061 = vpop.f32.mrb[0].mxu0
    %8062 = vdwg.mxu0
    %8063 = vmatprep.subr.bf16.mxu0 %v7127
    %8064 = vmatpush1.bf16.msra.mxu0 %v7126
    %8065 = vmatprep.subr.bf16.mxu0 %v7131
    %8066 = vmatpush1.bf16.msra.mxu0 %v7130
    %8067 = vmatprep.subr.bf16.mxu0 %v7135
    %8068 = vmatpush1.bf16.msra.mxu0 %v7134
    %8069 = vmatprep.subr.bf16.mxu0 %v7139
    %8070 = vmatpush1.bf16.msra.mxu0 %v7138
    %8071 = vmatprep.subr.bf16.mxu0 %v7143
    %8072 = vmatpush1.bf16.msra.mxu0 %v7142
    %8073 = vmatprep.subr.bf16.mxu0 %v7147
    %8074 = vmatpush1.bf16.msra.mxu0 %v7146
    %8075 = vmatprep.subr.bf16.mxu0 %v7151
    %8076 = vmatpush1.bf16.msra.mxu0 %v7150
    %8077 = vmatprep.subr.bf16.mxu0 %v7155
    %8078 = vmatpush1.bf16.msra.mxu0 %v7154
    %8079 = vmatprep.subr.bf16.mxu0 0
    %8080 = vmatpush1.bf16.msra.mxu0 0
    %8081 = vmatprep.subr.bf16.mxu0 0
    %8082 = vmatpush1.bf16.msra.mxu0 0
    %8083 = vmatprep.subr.bf16.mxu0 0
    %8084 = vmatpush1.bf16.msra.mxu0 0
    %8085 = vmatprep.subr.bf16.mxu0 0
    %8086 = vmatpush1.bf16.msra.mxu0 0
    %8087 = vmatprep.subr.bf16.mxu0 0
    %8088 = vmatpush1.bf16.msra.mxu0 0
    %8089 = vmatprep.subr.bf16.mxu0 0
    %8090 = vmatpush1.bf16.msra.mxu0 0
    %8091 = vmatprep.subr.bf16.mxu0 0
    %8092 = vmatpush1.bf16.msra.mxu0 0
    %8093 = vmatprep.subr.bf16.mxu0 0
    %8094 = vmatpush1.bf16.msra.mxu0 0
    %8095 = vmatprep.mubr.bf16.mxu0 0
    %8096 = vmatmul.mubr.bf16.gmra.mrb[0].mxu0 %v8021
    %v8097 = vpop.f32.mrb[0].mxu0
    %v8098 = vadd.f32 0.0, %v8097
    %v8099 = vpop.f32.mrb[0].mxu0
    %v8100 = vadd.f32 0.0, %v8099
    %v8101 = vpop.f32.mrb[0].mxu0
    %v8102 = vpop.f32.mrb[0].mxu0
    %8103 = vdwg.mxu0
    %v8108 = vcombine.low %v8057, %v8059
    %v8109 = vcombine.low %v8098, %v8100
    %v8111 = vunpack.c.l.s4 1983009808
    %v8112 = vunpack.c.0.s8 %v8111
    %v8113 = vlaneseq
    %v8114 = vshrl.u32 %v8113, 7
    %v8115 = vsub.s32 %v8112, %v8114
    %v8116 = vrot.slane %v8108, %v8115
    %v8118 = vunpack.c.l.s4 1983009808
    %v8119 = vunpack.c.0.s8 %v8118
    %v8120 = vlaneseq
    %v8121 = vshrl.u32 %v8120, 7
    %v8122 = vsub.s32 %v8119, %v8121
    %v8123 = vrot.slane %v8109, %v8122
    %v8124 = vcombine.low %v8116, %v8123
    %v8126 = vadd.f32 %v7914, %v8124
    %v8127 = vxor.u32 %v8020, 2147483648
    %v8128 = vmul.f32 %v8127, 1.442695
    %v8129 = vpow.pop %v8128
    %v8130 = vadd.f32 %v8129, 1.0
    %v8131 = vrcp.pop %v8130
    %v8132 = vmul.f32 1.0, %v8131
    %v8134 = vrot.slane %v8020, 2
    %v8136 = vxor.u32 %v8134, 2147483648
    %v8137 = vmul.f32 %v8136, 1.442695
    %v8138 = vpow.pop %v8137
    %v8139 = vadd.f32 %v8138, 1.0
    %v8140 = vrcp.pop %v8139
    %v8141 = vmul.f32 1.0, %v8140
    %v8142 = vrot.slane %v8020, 4
    %v8144 = vtanh.pop %v8142
    %v8145 = vrot.slane %v8020, 6
    %v8147 = vxor.u32 %v8145, 2147483648
    %v8148 = vmul.f32 %v8147, 1.442695
    %v8149 = vpow.pop %v8148
    %v8150 = vadd.f32 %v8149, 1.0
    %v8151 = vrcp.pop %v8150
    %v8152 = vmul.f32 1.0, %v8151
    %v8153 = vmul.f32 %v8141, %v7877
    %v8154 = vmul.f32 %v8132, %v8144
    %v8155 = vadd.f32 %v8153, %v8154
    %v8156 = vtanh.pop %v8155
    %v8157 = vmul.f32 %v8152, %v8156
    %v8158 = vxor.u32 %v8126, 2147483648
    %v8159 = vmul.f32 %v8158, 1.442695
    %v8160 = vpow.pop %v8159
    %v8161 = vadd.f32 %v8160, 1.0
    %v8162 = vrcp.pop %v8161
    %v8163 = vmul.f32 1.0, %v8162
    %v8165 = vrot.slane %v8126, 2
    %v8167 = vxor.u32 %v8165, 2147483648
    %v8168 = vmul.f32 %v8167, 1.442695
    %v8169 = vpow.pop %v8168
    %v8170 = vadd.f32 %v8169, 1.0
    %v8171 = vrcp.pop %v8170
    %v8172 = vmul.f32 1.0, %v8171
    %v8173 = vrot.slane %v8126, 4
    %v8175 = vtanh.pop %v8173
    %v8176 = vrot.slane %v8126, 6
    %v8178 = vxor.u32 %v8176, 2147483648
    %v8179 = vmul.f32 %v8178, 1.442695
    %v8180 = vpow.pop %v8179
    %v8181 = vadd.f32 %v8180, 1.0
    %v8182 = vrcp.pop %v8181
    %v8183 = vmul.f32 1.0, %v8182
    %v8184 = vmul.f32 %v8172, %v7908
    %v8185 = vmul.f32 %v8163, %v8175
    %v8186 = vadd.f32 %v8184, %v8185
    %v8187 = vtanh.pop %v8186
    %v8188 = vmul.f32 %v8183, %v8187
    %8189 = vst [vmem:[%s4164] sm:$0x3] %v8157
    %8190 = vst [vmem:[%s4166] sm:$0x3] %v8188
    %v8191 = vld [vmem:[%s3888] sm:$0xff]
    %v8192 = vld [vmem:[%s3886 + $0x8] sm:$0xff]
    %v8193 = vpack.c.bf16 %v8157, %v8157
    %8194 = vmatprep.subr.bf16.mxu0 %v6860
    %8195 = vmatpush1.bf16.msra.mxu0 %v6859
    %8196 = vmatprep.subr.bf16.mxu0 %v6864
    %8197 = vmatpush1.bf16.msra.mxu0 %v6863
    %8198 = vmatprep.subr.bf16.mxu0 %v6868
    %8199 = vmatpush1.bf16.msra.mxu0 %v6867
    %8200 = vmatprep.subr.bf16.mxu0 %v6872
    %8201 = vmatpush1.bf16.msra.mxu0 %v6871
    %8202 = vmatprep.subr.bf16.mxu0 %v6876
    %8203 = vmatpush1.bf16.msra.mxu0 %v6875
    %8204 = vmatprep.subr.bf16.mxu0 %v6880
    %8205 = vmatpush1.bf16.msra.mxu0 %v6879
    %8206 = vmatprep.subr.bf16.mxu0 %v6884
    %8207 = vmatpush1.bf16.msra.mxu0 %v6883
    %8208 = vmatprep.subr.bf16.mxu0 %v6888
    %8209 = vmatpush1.bf16.msra.mxu0 %v6887
    %8210 = vmatprep.subr.bf16.mxu0 0
    %8211 = vmatpush1.bf16.msra.mxu0 0
    %8212 = vmatprep.subr.bf16.mxu0 0
    %8213 = vmatpush1.bf16.msra.mxu0 0
    %8214 = vmatprep.subr.bf16.mxu0 0
    %8215 = vmatpush1.bf16.msra.mxu0 0
    %8216 = vmatprep.subr.bf16.mxu0 0
    %8217 = vmatpush1.bf16.msra.mxu0 0
    %8218 = vmatprep.subr.bf16.mxu0 0
    %8219 = vmatpush1.bf16.msra.mxu0 0
    %8220 = vmatprep.subr.bf16.mxu0 0
    %8221 = vmatpush1.bf16.msra.mxu0 0
    %8222 = vmatprep.subr.bf16.mxu0 0
    %8223 = vmatpush1.bf16.msra.mxu0 0
    %8224 = vmatprep.subr.bf16.mxu0 0
    %8225 = vmatpush1.bf16.msra.mxu0 0
    %8226 = vmatprep.mubr.bf16.mxu0 0
    %8227 = vmatmul.mubr.bf16.gmra.mrb[0].mxu0 %v8193
    %v8228 = vpop.f32.mrb[0].mxu0
    %v8229 = vadd.f32 0.0, %v8228
    %v8230 = vpop.f32.mrb[0].mxu0
    %v8231 = vadd.f32 0.0, %v8230
    %v8232 = vpop.f32.mrb[0].mxu0
    %v8233 = vpop.f32.mrb[0].mxu0
    %8234 = vdwg.mxu0
    %8235 = vmatprep.subr.bf16.mxu0 %v6862
    %8236 = vmatpush1.bf16.msra.mxu0 %v6861
    %8237 = vmatprep.subr.bf16.mxu0 %v6866
    %8238 = vmatpush1.bf16.msra.mxu0 %v6865
    %8239 = vmatprep.subr.bf16.mxu0 %v6870
    %8240 = vmatpush1.bf16.msra.mxu0 %v6869
    %8241 = vmatprep.subr.bf16.mxu0 %v6874
    %8242 = vmatpush1.bf16.msra.mxu0 %v6873
    %8243 = vmatprep.subr.bf16.mxu0 %v6878
    %8244 = vmatpush1.bf16.msra.mxu0 %v6877
    %8245 = vmatprep.subr.bf16.mxu0 %v6882
    %8246 = vmatpush1.bf16.msra.mxu0 %v6881
    %8247 = vmatprep.subr.bf16.mxu0 %v6886
    %8248 = vmatpush1.bf16.msra.mxu0 %v6885
    %8249 = vmatprep.subr.bf16.mxu0 %v6890
    %8250 = vmatpush1.bf16.msra.mxu0 %v6889
    %8251 = vmatprep.subr.bf16.mxu0 0
    %8252 = vmatpush1.bf16.msra.mxu0 0
    %8253 = vmatprep.subr.bf16.mxu0 0
    %8254 = vmatpush1.bf16.msra.mxu0 0
    %8255 = vmatprep.subr.bf16.mxu0 0
    %8256 = vmatpush1.bf16.msra.mxu0 0
    %8257 = vmatprep.subr.bf16.mxu0 0
    %8258 = vmatpush1.bf16.msra.mxu0 0
    %8259 = vmatprep.subr.bf16.mxu0 0
    %8260 = vmatpush1.bf16.msra.mxu0 0
    %8261 = vmatprep.subr.bf16.mxu0 0
    %8262 = vmatpush1.bf16.msra.mxu0 0
    %8263 = vmatprep.subr.bf16.mxu0 0
    %8264 = vmatpush1.bf16.msra.mxu0 0
    %8265 = vmatprep.subr.bf16.mxu0 0
    %8266 = vmatpush1.bf16.msra.mxu0 0
    %8267 = vmatprep.mubr.bf16.mxu0 0
    %8268 = vmatmul.mubr.bf16.gmra.mrb[0].mxu0 %v8193
    %v8269 = vpop.f32.mrb[0].mxu0
    %v8270 = vadd.f32 0.0, %v8269
    %v8271 = vpop.f32.mrb[0].mxu0
    %v8272 = vadd.f32 0.0, %v8271
    %v8273 = vpop.f32.mrb[0].mxu0
    %v8274 = vpop.f32.mrb[0].mxu0
    %8275 = vdwg.mxu0
    %v8280 = vcombine.low %v8229, %v8231
    %v8281 = vcombine.low %v8270, %v8272
    %v8283 = vunpack.c.l.s4 1983009808
    %v8284 = vunpack.c.0.s8 %v8283
    %v8285 = vlaneseq
    %v8286 = vshrl.u32 %v8285, 7
    %v8287 = vsub.s32 %v8284, %v8286
    %v8288 = vrot.slane %v8280, %v8287
    %v8290 = vunpack.c.l.s4 1983009808
    %v8291 = vunpack.c.0.s8 %v8290
    %v8292 = vlaneseq
    %v8293 = vshrl.u32 %v8292, 7
    %v8294 = vsub.s32 %v8291, %v8293
    %v8295 = vrot.slane %v8281, %v8294
    %v8296 = vcombine.low %v8288, %v8295
    %v8298 = vadd.f32 %v8191, %v8296
    %v8299 = vpack.c.bf16 %v8188, %v8188
    %8300 = vmatprep.subr.bf16.mxu0 %v7125
    %8301 = vmatpush1.bf16.msra.mxu0 %v7124
    %8302 = vmatprep.subr.bf16.mxu0 %v7129
    %8303 = vmatpush1.bf16.msra.mxu0 %v7128
    %8304 = vmatprep.subr.bf16.mxu0 %v7133
    %8305 = vmatpush1.bf16.msra.mxu0 %v7132
    %8306 = vmatprep.subr.bf16.mxu0 %v7137
    %8307 = vmatpush1.bf16.msra.mxu0 %v7136
    %8308 = vmatprep.subr.bf16.mxu0 %v7141
    %8309 = vmatpush1.bf16.msra.mxu0 %v7140
    %8310 = vmatprep.subr.bf16.mxu0 %v7145
    %8311 = vmatpush1.bf16.msra.mxu0 %v7144
    %8312 = vmatprep.subr.bf16.mxu0 %v7149
    %8313 = vmatpush1.bf16.msra.mxu0 %v7148
    %8314 = vmatprep.subr.bf16.mxu0 %v7153
    %8315 = vmatpush1.bf16.msra.mxu0 %v7152
    %8316 = vmatprep.subr.bf16.mxu0 0
    %8317 = vmatpush1.bf16.msra.mxu0 0
    %8318 = vmatprep.subr.bf16.mxu0 0
    %8319 = vmatpush1.bf16.msra.mxu0 0
    %8320 = vmatprep.subr.bf16.mxu0 0
    %8321 = vmatpush1.bf16.msra.mxu0 0
    %8322 = vmatprep.subr.bf16.mxu0 0
    %8323 = vmatpush1.bf16.msra.mxu0 0
    %8324 = vmatprep.subr.bf16.mxu0 0
    %8325 = vmatpush1.bf16.msra.mxu0 0
    %8326 = vmatprep.subr.bf16.mxu0 0
    %8327 = vmatpush1.bf16.msra.mxu0 0
    %8328 = vmatprep.subr.bf16.mxu0 0
    %8329 = vmatpush1.bf16.msra.mxu0 0
    %8330 = vmatprep.subr.bf16.mxu0 0
    %8331 = vmatpush1.bf16.msra.mxu0 0
    %8332 = vmatprep.mubr.bf16.mxu0 0
    %8333 = vmatmul.mubr.bf16.gmra.mrb[0].mxu0 %v8299
    %v8334 = vpop.f32.mrb[0].mxu0
    %v8335 = vadd.f32 0.0, %v8334
    %v8336 = vpop.f32.mrb[0].mxu0
    %v8337 = vadd.f32 0.0, %v8336
    %v8338 = vpop.f32.mrb[0].mxu0
    %v8339 = vpop.f32.mrb[0].mxu0
    %8340 = vdwg.mxu0
    %8341 = vmatprep.subr.bf16.mxu0 %v7127
    %8342 = vmatpush1.bf16.msra.mxu0 %v7126
    %8343 = vmatprep.subr.bf16.mxu0 %v7131
    %8344 = vmatpush1.bf16.msra.mxu0 %v7130
    %8345 = vmatprep.subr.bf16.mxu0 %v7135
    %8346 = vmatpush1.bf16.msra.mxu0 %v7134
    %8347 = vmatprep.subr.bf16.mxu0 %v7139
    %8348 = vmatpush1.bf16.msra.mxu0 %v7138
    %8349 = vmatprep.subr.bf16.mxu0 %v7143
    %8350 = vmatpush1.bf16.msra.mxu0 %v7142
    %8351 = vmatprep.subr.bf16.mxu0 %v7147
    %8352 = vmatpush1.bf16.msra.mxu0 %v7146
    %8353 = vmatprep.subr.bf16.mxu0 %v7151
    %8354 = vmatpush1.bf16.msra.mxu0 %v7150
    %8355 = vmatprep.subr.bf16.mxu0 %v7155
    %8356 = vmatpush1.bf16.msra.mxu0 %v7154
    %8357 = vmatprep.subr.bf16.mxu0 0
    %8358 = vmatpush1.bf16.msra.mxu0 0
    %8359 = vmatprep.subr.bf16.mxu0 0
    %8360 = vmatpush1.bf16.msra.mxu0 0
    %8361 = vmatprep.subr.bf16.mxu0 0
    %8362 = vmatpush1.bf16.msra.mxu0 0
    %8363 = vmatprep.subr.bf16.mxu0 0
    %8364 = vmatpush1.bf16.msra.mxu0 0
    %8365 = vmatprep.subr.bf16.mxu0 0
    %8366 = vmatpush1.bf16.msra.mxu0 0
    %8367 = vmatprep.subr.bf16.mxu0 0
    %8368 = vmatpush1.bf16.msra.mxu0 0
    %8369 = vmatprep.subr.bf16.mxu0 0
    %8370 = vmatpush1.bf16.msra.mxu0 0
    %8371 = vmatprep.subr.bf16.mxu0 0
    %8372 = vmatpush1.bf16.msra.mxu0 0
    %8373 = vmatprep.mubr.bf16.mxu0 0
    %8374 = vmatmul.mubr.bf16.gmra.mrb[0].mxu0 %v8299
    %v8375 = vpop.f32.mrb[0].mxu0
    %v8376 = vadd.f32 0.0, %v8375
    %v8377 = vpop.f32.mrb[0].mxu0
    %v8378 = vadd.f32 0.0, %v8377
    %v8379 = vpop.f32.mrb[0].mxu0
    %v8380 = vpop.f32.mrb[0].mxu0
    %8381 = vdwg.mxu0
    %v8386 = vcombine.low %v8335, %v8337
    %v8387 = vcombine.low %v8376, %v8378
    %v8389 = vunpack.c.l.s4 1983009808
    %v8390 = vunpack.c.0.s8 %v8389
    %v8391 = vlaneseq
    %v8392 = vshrl.u32 %v8391, 7
    %v8393 = vsub.s32 %v8390, %v8392
    %v8394 = vrot.slane %v8386, %v8393
    %v8396 = vunpack.c.l.s4 1983009808
    %v8397 = vunpack.c.0.s8 %v8396
    %v8398 = vlaneseq
    %v8399 = vshrl.u32 %v8398, 7
    %v8400 = vsub.s32 %v8397, %v8399
    %v8401 = vrot.slane %v8387, %v8400
    %v8402 = vcombine.low %v8394, %v8401
    %v8404 = vadd.f32 %v8192, %v8402
    %v8405 = vxor.u32 %v8298, 2147483648
    %v8406 = vmul.f32 %v8405, 1.442695
    %v8407 = vpow.pop %v8406
    %v8408 = vadd.f32 %v8407, 1.0
    %v8409 = vrcp.pop %v8408
    %v8410 = vmul.f32 1.0, %v8409
    %v8412 = vrot.slane %v8298, 2
    %v8414 = vxor.u32 %v8412, 2147483648
    %v8415 = vmul.f32 %v8414, 1.442695
    %v8416 = vpow.pop %v8415
    %v8417 = vadd.f32 %v8416, 1.0
    %v8418 = vrcp.pop %v8417
    %v8419 = vmul.f32 1.0, %v8418
    %v8420 = vrot.slane %v8298, 4
    %v8422 = vtanh.pop %v8420
    %v8423 = vrot.slane %v8298, 6
    %v8425 = vxor.u32 %v8423, 2147483648
    %v8426 = vmul.f32 %v8425, 1.442695
    %v8427 = vpow.pop %v8426
    %v8428 = vadd.f32 %v8427, 1.0
    %v8429 = vrcp.pop %v8428
    %v8430 = vmul.f32 1.0, %v8429
    %v8431 = vmul.f32 %v8419, %v8155
    %v8432 = vmul.f32 %v8410, %v8422
    %v8433 = vadd.f32 %v8431, %v8432
    %v8434 = vtanh.pop %v8433
    %v8435 = vmul.f32 %v8430, %v8434
    %v8436 = vxor.u32 %v8404, 2147483648
    %v8437 = vmul.f32 %v8436, 1.442695
    %v8438 = vpow.pop %v8437
    %v8439 = vadd.f32 %v8438, 1.0
    %v8440 = vrcp.pop %v8439
    %v8441 = vmul.f32 1.0, %v8440
    %v8443 = vrot.slane %v8404, 2
    %v8445 = vxor.u32 %v8443, 2147483648
    %v8446 = vmul.f32 %v8445, 1.442695
    %v8447 = vpow.pop %v8446
    %v8448 = vadd.f32 %v8447, 1.0
    %v8449 = vrcp.pop %v8448
    %v8450 = vmul.f32 1.0, %v8449
    %v8451 = vrot.slane %v8404, 4
    %v8453 = vtanh.pop %v8451
    %v8454 = vrot.slane %v8404, 6
    %v8456 = vxor.u32 %v8454, 2147483648
    %v8457 = vmul.f32 %v8456, 1.442695
    %v8458 = vpow.pop %v8457
    %v8459 = vadd.f32 %v8458, 1.0
    %v8460 = vrcp.pop %v8459
    %v8461 = vmul.f32 1.0, %v8460
    %v8462 = vmul.f32 %v8450, %v8186
    %v8463 = vmul.f32 %v8441, %v8453
    %v8464 = vadd.f32 %v8462, %v8463
    %v8465 = vtanh.pop %v8464
    %v8466 = vmul.f32 %v8461, %v8465
    %8467 = vst [vmem:[%s4444] sm:$0x3] %v8435
    %8468 = vst [vmem:[%s4446] sm:$0x3] %v8466
    %v8469 = vld [vmem:[%s3606] sm:$0xff]
    %v8470 = vld [vmem:[%s3604 + $0x8] sm:$0xff]
    %v8471 = vpack.c.bf16 %v8435, %v8435
    %8472 = vmatprep.subr.bf16.mxu0 %v6860
    %8473 = vmatpush1.bf16.msra.mxu0 %v6859
    %8474 = vmatprep.subr.bf16.mxu0 %v6864
    %8475 = vmatpush1.bf16.msra.mxu0 %v6863
    %8476 = vmatprep.subr.bf16.mxu0 %v6868
    %8477 = vmatpush1.bf16.msra.mxu0 %v6867
    %8478 = vmatprep.subr.bf16.mxu0 %v6872
    %8479 = vmatpush1.bf16.msra.mxu0 %v6871
    %8480 = vmatprep.subr.bf16.mxu0 %v6876
    %8481 = vmatpush1.bf16.msra.mxu0 %v6875
    %8482 = vmatprep.subr.bf16.mxu0 %v6880
    %8483 = vmatpush1.bf16.msra.mxu0 %v6879
    %8484 = vmatprep.subr.bf16.mxu0 %v6884
    %8485 = vmatpush1.bf16.msra.mxu0 %v6883
    %8486 = vmatprep.subr.bf16.mxu0 %v6888
    %8487 = vmatpush1.bf16.msra.mxu0 %v6887
    %8488 = vmatprep.subr.bf16.mxu0 0
    %8489 = vmatpush1.bf16.msra.mxu0 0
    %8490 = vmatprep.subr.bf16.mxu0 0
    %8491 = vmatpush1.bf16.msra.mxu0 0
    %8492 = vmatprep.subr.bf16.mxu0 0
    %8493 = vmatpush1.bf16.msra.mxu0 0
    %8494 = vmatprep.subr.bf16.mxu0 0
    %8495 = vmatpush1.bf16.msra.mxu0 0
    %8496 = vmatprep.subr.bf16.mxu0 0
    %8497 = vmatpush1.bf16.msra.mxu0 0
    %8498 = vmatprep.subr.bf16.mxu0 0
    %8499 = vmatpush1.bf16.msra.mxu0 0
    %8500 = vmatprep.subr.bf16.mxu0 0
    %8501 = vmatpush1.bf16.msra.mxu0 0
    %8502 = vmatprep.subr.bf16.mxu0 0
    %8503 = vmatpush1.bf16.msra.mxu0 0
    %8504 = vmatprep.mubr.bf16.mxu0 0
    %8505 = vmatmul.mubr.bf16.gmra.mrb[0].mxu0 %v8471
    %v8506 = vpop.f32.mrb[0].mxu0
    %v8507 = vadd.f32 0.0, %v8506
    %v8508 = vpop.f32.mrb[0].mxu0
    %v8509 = vadd.f32 0.0, %v8508
    %v8510 = vpop.f32.mrb[0].mxu0
    %v8511 = vpop.f32.mrb[0].mxu0
    %8512 = vdwg.mxu0
    %8513 = vmatprep.subr.bf16.mxu0 %v6862
    %8514 = vmatpush1.bf16.msra.mxu0 %v6861
    %8515 = vmatprep.subr.bf16.mxu0 %v6866
    %8516 = vmatpush1.bf16.msra.mxu0 %v6865
    %8517 = vmatprep.subr.bf16.mxu0 %v6870
    %8518 = vmatpush1.bf16.msra.mxu0 %v6869
    %8519 = vmatprep.subr.bf16.mxu0 %v6874
    %8520 = vmatpush1.bf16.msra.mxu0 %v6873
    %8521 = vmatprep.subr.bf16.mxu0 %v6878
    %8522 = vmatpush1.bf16.msra.mxu0 %v6877
    %8523 = vmatprep.subr.bf16.mxu0 %v6882
    %8524 = vmatpush1.bf16.msra.mxu0 %v6881
    %8525 = vmatprep.subr.bf16.mxu0 %v6886
    %8526 = vmatpush1.bf16.msra.mxu0 %v6885
    %8527 = vmatprep.subr.bf16.mxu0 %v6890
    %8528 = vmatpush1.bf16.msra.mxu0 %v6889
    %8529 = vmatprep.subr.bf16.mxu0 0
    %8530 = vmatpush1.bf16.msra.mxu0 0
    %8531 = vmatprep.subr.bf16.mxu0 0
    %8532 = vmatpush1.bf16.msra.mxu0 0
    %8533 = vmatprep.subr.bf16.mxu0 0
    %8534 = vmatpush1.bf16.msra.mxu0 0
    %8535 = vmatprep.subr.bf16.mxu0 0
    %8536 = vmatpush1.bf16.msra.mxu0 0
    %8537 = vmatprep.subr.bf16.mxu0 0
    %8538 = vmatpush1.bf16.msra.mxu0 0
    %8539 = vmatprep.subr.bf16.mxu0 0
    %8540 = vmatpush1.bf16.msra.mxu0 0
    %8541 = vmatprep.subr.bf16.mxu0 0
    %8542 = vmatpush1.bf16.msra.mxu0 0
    %8543 = vmatprep.subr.bf16.mxu0 0
    %8544 = vmatpush1.bf16.msra.mxu0 0
    %8545 = vmatprep.mubr.bf16.mxu0 0
    %8546 = vmatmul.mubr.bf16.gmra.mrb[0].mxu0 %v8471
    %v8547 = vpop.f32.mrb[0].mxu0
    %v8548 = vadd.f32 0.0, %v8547
    %v8549 = vpop.f32.mrb[0].mxu0
    %v8550 = vadd.f32 0.0, %v8549
    %v8551 = vpop.f32.mrb[0].mxu0
    %v8552 = vpop.f32.mrb[0].mxu0
    %8553 = vdwg.mxu0
    %v8558 = vcombine.low %v8507, %v8509
    %v8559 = vcombine.low %v8548, %v8550
    %v8561 = vunpack.c.l.s4 1983009808
    %v8562 = vunpack.c.0.s8 %v8561
    %v8563 = vlaneseq
    %v8564 = vshrl.u32 %v8563, 7
    %v8565 = vsub.s32 %v8562, %v8564
    %v8566 = vrot.slane %v8558, %v8565
    %v8568 = vunpack.c.l.s4 1983009808
    %v8569 = vunpack.c.0.s8 %v8568
    %v8570 = vlaneseq
    %v8571 = vshrl.u32 %v8570, 7
    %v8572 = vsub.s32 %v8569, %v8571
    %v8573 = vrot.slane %v8559, %v8572
    %v8574 = vcombine.low %v8566, %v8573
    %v8576 = vadd.f32 %v8469, %v8574
    %v8577 = vpack.c.bf16 %v8466, %v8466
    %8578 = vmatprep.subr.bf16.mxu0 %v7125
    %8579 = vmatpush1.bf16.msra.mxu0 %v7124
    %8580 = vmatprep.subr.bf16.mxu0 %v7129
    %8581 = vmatpush1.bf16.msra.mxu0 %v7128
    %8582 = vmatprep.subr.bf16.mxu0 %v7133
    %8583 = vmatpush1.bf16.msra.mxu0 %v7132
    %8584 = vmatprep.subr.bf16.mxu0 %v7137
    %8585 = vmatpush1.bf16.msra.mxu0 %v7136
    %8586 = vmatprep.subr.bf16.mxu0 %v7141
    %8587 = vmatpush1.bf16.msra.mxu0 %v7140
    %8588 = vmatprep.subr.bf16.mxu0 %v7145
    %8589 = vmatpush1.bf16.msra.mxu0 %v7144
    %8590 = vmatprep.subr.bf16.mxu0 %v7149
    %8591 = vmatpush1.bf16.msra.mxu0 %v7148
    %8592 = vmatprep.subr.bf16.mxu0 %v7153
    %8593 = vmatpush1.bf16.msra.mxu0 %v7152
    %8594 = vmatprep.subr.bf16.mxu0 0
    %8595 = vmatpush1.bf16.msra.mxu0 0
    %8596 = vmatprep.subr.bf16.mxu0 0
    %8597 = vmatpush1.bf16.msra.mxu0 0
    %8598 = vmatprep.subr.bf16.mxu0 0
    %8599 = vmatpush1.bf16.msra.mxu0 0
    %8600 = vmatprep.subr.bf16.mxu0 0
    %8601 = vmatpush1.bf16.msra.mxu0 0
    %8602 = vmatprep.subr.bf16.mxu0 0
    %8603 = vmatpush1.bf16.msra.mxu0 0
    %8604 = vmatprep.subr.bf16.mxu0 0
    %8605 = vmatpush1.bf16.msra.mxu0 0
    %8606 = vmatprep.subr.bf16.mxu0 0
    %8607 = vmatpush1.bf16.msra.mxu0 0
    %8608 = vmatprep.subr.bf16.mxu0 0
    %8609 = vmatpush1.bf16.msra.mxu0 0
    %8610 = vmatprep.mubr.bf16.mxu0 0
    %8611 = vmatmul.mubr.bf16.gmra.mrb[0].mxu0 %v8577
    %v8612 = vpop.f32.mrb[0].mxu0
    %v8613 = vadd.f32 0.0, %v8612
    %v8614 = vpop.f32.mrb[0].mxu0
    %v8615 = vadd.f32 0.0, %v8614
    %v8616 = vpop.f32.mrb[0].mxu0
    %v8617 = vpop.f32.mrb[0].mxu0
    %8618 = vdwg.mxu0
    %8619 = vmatprep.subr.bf16.mxu0 %v7127
    %8620 = vmatpush1.bf16.msra.mxu0 %v7126
    %8621 = vmatprep.subr.bf16.mxu0 %v7131
    %8622 = vmatpush1.bf16.msra.mxu0 %v7130
    %8623 = vmatprep.subr.bf16.mxu0 %v7135
    %8624 = vmatpush1.bf16.msra.mxu0 %v7134
    %8625 = vmatprep.subr.bf16.mxu0 %v7139
    %8626 = vmatpush1.bf16.msra.mxu0 %v7138
    %8627 = vmatprep.subr.bf16.mxu0 %v7143
    %8628 = vmatpush1.bf16.msra.mxu0 %v7142
    %8629 = vmatprep.subr.bf16.mxu0 %v7147
    %8630 = vmatpush1.bf16.msra.mxu0 %v7146
    %8631 = vmatprep.subr.bf16.mxu0 %v7151
    %8632 = vmatpush1.bf16.msra.mxu0 %v7150
    %8633 = vmatprep.subr.bf16.mxu0 %v7155
    %8634 = vmatpush1.bf16.msra.mxu0 %v7154
    %8635 = vmatprep.subr.bf16.mxu0 0
    %8636 = vmatpush1.bf16.msra.mxu0 0
    %8637 = vmatprep.subr.bf16.mxu0 0
    %8638 = vmatpush1.bf16.msra.mxu0 0
    %8639 = vmatprep.subr.bf16.mxu0 0
    %8640 = vmatpush1.bf16.msra.mxu0 0
    %8641 = vmatprep.subr.bf16.mxu0 0
    %8642 = vmatpush1.bf16.msra.mxu0 0
    %8643 = vmatprep.subr.bf16.mxu0 0
    %8644 = vmatpush1.bf16.msra.mxu0 0
    %8645 = vmatprep.subr.bf16.mxu0 0
    %8646 = vmatpush1.bf16.msra.mxu0 0
    %8647 = vmatprep.subr.bf16.mxu0 0
    %8648 = vmatpush1.bf16.msra.mxu0 0
    %8649 = vmatprep.subr.bf16.mxu0 0
    %8650 = vmatpush1.bf16.msra.mxu0 0
    %8651 = vmatprep.mubr.bf16.mxu0 0
    %8652 = vmatmul.mubr.bf16.gmra.mrb[0].mxu0 %v8577
    %v8653 = vpop.f32.mrb[0].mxu0
    %v8654 = vadd.f32 0.0, %v8653
    %v8655 = vpop.f32.mrb[0].mxu0
    %v8656 = vadd.f32 0.0, %v8655
    %v8657 = vpop.f32.mrb[0].mxu0
    %v8658 = vpop.f32.mrb[0].mxu0
    %8659 = vdwg.mxu0
    %v8664 = vcombine.low %v8613, %v8615
    %v8665 = vcombine.low %v8654, %v8656
    %v8667 = vunpack.c.l.s4 1983009808
    %v8668 = vunpack.c.0.s8 %v8667
    %v8669 = vlaneseq
    %v8670 = vshrl.u32 %v8669, 7
    %v8671 = vsub.s32 %v8668, %v8670
    %v8672 = vrot.slane %v8664, %v8671
    %v8674 = vunpack.c.l.s4 1983009808
    %v8675 = vunpack.c.0.s8 %v8674
    %v8676 = vlaneseq
    %v8677 = vshrl.u32 %v8676, 7
    %v8678 = vsub.s32 %v8675, %v8677
    %v8679 = vrot.slane %v8665, %v8678
    %v8680 = vcombine.low %v8672, %v8679
    %v8682 = vadd.f32 %v8470, %v8680
    %v8683 = vxor.u32 %v8576, 2147483648
    %v8684 = vmul.f32 %v8683, 1.442695
    %v8685 = vpow.pop %v8684
    %v8686 = vadd.f32 %v8685, 1.0
    %v8687 = vrcp.pop %v8686
    %v8688 = vmul.f32 1.0, %v8687
    %v8690 = vrot.slane %v8576, 2
    %v8692 = vxor.u32 %v8690, 2147483648
    %v8693 = vmul.f32 %v8692, 1.442695
    %v8694 = vpow.pop %v8693
    %v8695 = vadd.f32 %v8694, 1.0
    %v8696 = vrcp.pop %v8695
    %v8697 = vmul.f32 1.0, %v8696
    %v8698 = vrot.slane %v8576, 4
    %v8700 = vtanh.pop %v8698
    %v8701 = vrot.slane %v8576, 6
    %v8703 = vxor.u32 %v8701, 2147483648
    %v8704 = vmul.f32 %v8703, 1.442695
    %v8705 = vpow.pop %v8704
    %v8706 = vadd.f32 %v8705, 1.0
    %v8707 = vrcp.pop %v8706
    %v8708 = vmul.f32 1.0, %v8707
    %v8709 = vmul.f32 %v8697, %v8433
    %v8710 = vmul.f32 %v8688, %v8700
    %v8711 = vadd.f32 %v8709, %v8710
    %v8712 = vtanh.pop %v8711
    %v8713 = vmul.f32 %v8708, %v8712
    %v8714 = vxor.u32 %v8682, 2147483648
    %v8715 = vmul.f32 %v8714, 1.442695
    %v8716 = vpow.pop %v8715
    %v8717 = vadd.f32 %v8716, 1.0
    %v8718 = vrcp.pop %v8717
    %v8719 = vmul.f32 1.0, %v8718
    %v8721 = vrot.slane %v8682, 2
    %v8723 = vxor.u32 %v8721, 2147483648
    %v8724 = vmul.f32 %v8723, 1.442695
    %v8725 = vpow.pop %v8724
    %v8726 = vadd.f32 %v8725, 1.0
    %v8727 = vrcp.pop %v8726
    %v8728 = vmul.f32 1.0, %v8727
    %v8729 = vrot.slane %v8682, 4
    %v8731 = vtanh.pop %v8729
    %v8732 = vrot.slane %v8682, 6
    %v8734 = vxor.u32 %v8732, 2147483648
    %v8735 = vmul.f32 %v8734, 1.442695
    %v8736 = vpow.pop %v8735
    %v8737 = vadd.f32 %v8736, 1.0
    %v8738 = vrcp.pop %v8737
    %v8739 = vmul.f32 1.0, %v8738
    %v8740 = vmul.f32 %v8728, %v8464
    %v8741 = vmul.f32 %v8719, %v8731
    %v8742 = vadd.f32 %v8740, %v8741
    %v8743 = vtanh.pop %v8742
    %v8744 = vmul.f32 %v8739, %v8743
    %8745 = vst [vmem:[%s4724] sm:$0x3] %v8713
    %8746 = vst [vmem:[%s4726] sm:$0x3] %v8744
    %v8747 = vld [vmem:[%s3324] sm:$0xff]
    %v8748 = vld [vmem:[%s3322 + $0x8] sm:$0xff]
    %v8749 = vpack.c.bf16 %v8713, %v8713
    %8750 = vmatprep.subr.bf16.mxu0 %v6860
    %8751 = vmatpush1.bf16.msra.mxu0 %v6859
    %8752 = vmatprep.subr.bf16.mxu0 %v6864
    %8753 = vmatpush1.bf16.msra.mxu0 %v6863
    %8754 = vmatprep.subr.bf16.mxu0 %v6868
    %8755 = vmatpush1.bf16.msra.mxu0 %v6867
    %8756 = vmatprep.subr.bf16.mxu0 %v6872
    %8757 = vmatpush1.bf16.msra.mxu0 %v6871
    %8758 = vmatprep.subr.bf16.mxu0 %v6876
    %8759 = vmatpush1.bf16.msra.mxu0 %v6875
    %8760 = vmatprep.subr.bf16.mxu0 %v6880
    %8761 = vmatpush1.bf16.msra.mxu0 %v6879
    %8762 = vmatprep.subr.bf16.mxu0 %v6884
    %8763 = vmatpush1.bf16.msra.mxu0 %v6883
    %8764 = vmatprep.subr.bf16.mxu0 %v6888
    %8765 = vmatpush1.bf16.msra.mxu0 %v6887
    %8766 = vmatprep.subr.bf16.mxu0 0
    %8767 = vmatpush1.bf16.msra.mxu0 0
    %8768 = vmatprep.subr.bf16.mxu0 0
    %8769 = vmatpush1.bf16.msra.mxu0 0
    %8770 = vmatprep.subr.bf16.mxu0 0
    %8771 = vmatpush1.bf16.msra.mxu0 0
    %8772 = vmatprep.subr.bf16.mxu0 0
    %8773 = vmatpush1.bf16.msra.mxu0 0
    %8774 = vmatprep.subr.bf16.mxu0 0
    %8775 = vmatpush1.bf16.msra.mxu0 0
    %8776 = vmatprep.subr.bf16.mxu0 0
    %8777 = vmatpush1.bf16.msra.mxu0 0
    %8778 = vmatprep.subr.bf16.mxu0 0
    %8779 = vmatpush1.bf16.msra.mxu0 0
    %8780 = vmatprep.subr.bf16.mxu0 0
    %8781 = vmatpush1.bf16.msra.mxu0 0
    %8782 = vmatprep.mubr.bf16.mxu0 0
    %8783 = vmatmul.mubr.bf16.gmra.mrb[0].mxu0 %v8749
    %v8784 = vpop.f32.mrb[0].mxu0
    %v8785 = vadd.f32 0.0, %v8784
    %v8786 = vpop.f32.mrb[0].mxu0
    %v8787 = vadd.f32 0.0, %v8786
    %v8788 = vpop.f32.mrb[0].mxu0
    %v8789 = vpop.f32.mrb[0].mxu0
    %8790 = vdwg.mxu0
    %8791 = vmatprep.subr.bf16.mxu0 %v6862
    %8792 = vmatpush1.bf16.msra.mxu0 %v6861
    %8793 = vmatprep.subr.bf16.mxu0 %v6866
    %8794 = vmatpush1.bf16.msra.mxu0 %v6865
    %8795 = vmatprep.subr.bf16.mxu0 %v6870
    %8796 = vmatpush1.bf16.msra.mxu0 %v6869
    %8797 = vmatprep.subr.bf16.mxu0 %v6874
    %8798 = vmatpush1.bf16.msra.mxu0 %v6873
    %8799 = vmatprep.subr.bf16.mxu0 %v6878
    %8800 = vmatpush1.bf16.msra.mxu0 %v6877
    %8801 = vmatprep.subr.bf16.mxu0 %v6882
    %8802 = vmatpush1.bf16.msra.mxu0 %v6881
    %8803 = vmatprep.subr.bf16.mxu0 %v6886
    %8804 = vmatpush1.bf16.msra.mxu0 %v6885
    %8805 = vmatprep.subr.bf16.mxu0 %v6890
    %8806 = vmatpush1.bf16.msra.mxu0 %v6889
    %8807 = vmatprep.subr.bf16.mxu0 0
    %8808 = vmatpush1.bf16.msra.mxu0 0
    %8809 = vmatprep.subr.bf16.mxu0 0
    %8810 = vmatpush1.bf16.msra.mxu0 0
    %8811 = vmatprep.subr.bf16.mxu0 0
    %8812 = vmatpush1.bf16.msra.mxu0 0
    %8813 = vmatprep.subr.bf16.mxu0 0
    %8814 = vmatpush1.bf16.msra.mxu0 0
    %8815 = vmatprep.subr.bf16.mxu0 0
    %8816 = vmatpush1.bf16.msra.mxu0 0
    %8817 = vmatprep.subr.bf16.mxu0 0
    %8818 = vmatpush1.bf16.msra.mxu0 0
    %8819 = vmatprep.subr.bf16.mxu0 0
    %8820 = vmatpush1.bf16.msra.mxu0 0
    %8821 = vmatprep.subr.bf16.mxu0 0
    %8822 = vmatpush1.bf16.msra.mxu0 0
    %8823 = vmatprep.mubr.bf16.mxu0 0
    %8824 = vmatmul.mubr.bf16.gmra.mrb[0].mxu0 %v8749
    %v8825 = vpop.f32.mrb[0].mxu0
    %v8826 = vadd.f32 0.0, %v8825
    %v8827 = vpop.f32.mrb[0].mxu0
    %v8828 = vadd.f32 0.0, %v8827
    %v8829 = vpop.f32.mrb[0].mxu0
    %v8830 = vpop.f32.mrb[0].mxu0
    %8831 = vdwg.mxu0
    %v8836 = vcombine.low %v8785, %v8787
    %v8837 = vcombine.low %v8826, %v8828
    %v8839 = vunpack.c.l.s4 1983009808
    %v8840 = vunpack.c.0.s8 %v8839
    %v8841 = vlaneseq
    %v8842 = vshrl.u32 %v8841, 7
    %v8843 = vsub.s32 %v8840, %v8842
    %v8844 = vrot.slane %v8836, %v8843
    %v8846 = vunpack.c.l.s4 1983009808
    %v8847 = vunpack.c.0.s8 %v8846
    %v8848 = vlaneseq
    %v8849 = vshrl.u32 %v8848, 7
    %v8850 = vsub.s32 %v8847, %v8849
    %v8851 = vrot.slane %v8837, %v8850
    %v8852 = vcombine.low %v8844, %v8851
    %v8854 = vadd.f32 %v8747, %v8852
    %v8855 = vpack.c.bf16 %v8744, %v8744
    %8856 = vmatprep.subr.bf16.mxu0 %v7125
    %8857 = vmatpush1.bf16.msra.mxu0 %v7124
    %8858 = vmatprep.subr.bf16.mxu0 %v7129
    %8859 = vmatpush1.bf16.msra.mxu0 %v7128
    %8860 = vmatprep.subr.bf16.mxu0 %v7133
    %8861 = vmatpush1.bf16.msra.mxu0 %v7132
    %8862 = vmatprep.subr.bf16.mxu0 %v7137
    %8863 = vmatpush1.bf16.msra.mxu0 %v7136
    %8864 = vmatprep.subr.bf16.mxu0 %v7141
    %8865 = vmatpush1.bf16.msra.mxu0 %v7140
    %8866 = vmatprep.subr.bf16.mxu0 %v7145
    %8867 = vmatpush1.bf16.msra.mxu0 %v7144
    %8868 = vmatprep.subr.bf16.mxu0 %v7149
    %8869 = vmatpush1.bf16.msra.mxu0 %v7148
    %8870 = vmatprep.subr.bf16.mxu0 %v7153
    %8871 = vmatpush1.bf16.msra.mxu0 %v7152
    %8872 = vmatprep.subr.bf16.mxu0 0
    %8873 = vmatpush1.bf16.msra.mxu0 0
    %8874 = vmatprep.subr.bf16.mxu0 0
    %8875 = vmatpush1.bf16.msra.mxu0 0
    %8876 = vmatprep.subr.bf16.mxu0 0
    %8877 = vmatpush1.bf16.msra.mxu0 0
    %8878 = vmatprep.subr.bf16.mxu0 0
    %8879 = vmatpush1.bf16.msra.mxu0 0
    %8880 = vmatprep.subr.bf16.mxu0 0
    %8881 = vmatpush1.bf16.msra.mxu0 0
    %8882 = vmatprep.subr.bf16.mxu0 0
    %8883 = vmatpush1.bf16.msra.mxu0 0
    %8884 = vmatprep.subr.bf16.mxu0 0
    %8885 = vmatpush1.bf16.msra.mxu0 0
    %8886 = vmatprep.subr.bf16.mxu0 0
    %8887 = vmatpush1.bf16.msra.mxu0 0
    %8888 = vmatprep.mubr.bf16.mxu0 0
    %8889 = vmatmul.mubr.bf16.gmra.mrb[0].mxu0 %v8855
    %v8890 = vpop.f32.mrb[0].mxu0
    %v8891 = vadd.f32 0.0, %v8890
    %v8892 = vpop.f32.mrb[0].mxu0
    %v8893 = vadd.f32 0.0, %v8892
    %v8894 = vpop.f32.mrb[0].mxu0
    %v8895 = vpop.f32.mrb[0].mxu0
    %8896 = vdwg.mxu0
    %8897 = vmatprep.subr.bf16.mxu0 %v7127
    %8898 = vmatpush1.bf16.msra.mxu0 %v7126
    %8899 = vmatprep.subr.bf16.mxu0 %v7131
    %8900 = vmatpush1.bf16.msra.mxu0 %v7130
    %8901 = vmatprep.subr.bf16.mxu0 %v7135
    %8902 = vmatpush1.bf16.msra.mxu0 %v7134
    %8903 = vmatprep.subr.bf16.mxu0 %v7139
    %8904 = vmatpush1.bf16.msra.mxu0 %v7138
    %8905 = vmatprep.subr.bf16.mxu0 %v7143
    %8906 = vmatpush1.bf16.msra.mxu0 %v7142
    %8907 = vmatprep.subr.bf16.mxu0 %v7147
    %8908 = vmatpush1.bf16.msra.mxu0 %v7146
    %8909 = vmatprep.subr.bf16.mxu0 %v7151
    %8910 = vmatpush1.bf16.msra.mxu0 %v7150
    %8911 = vmatprep.subr.bf16.mxu0 %v7155
    %8912 = vmatpush1.bf16.msra.mxu0 %v7154
    %8913 = vmatprep.subr.bf16.mxu0 0
    %8914 = vmatpush1.bf16.msra.mxu0 0
    %8915 = vmatprep.subr.bf16.mxu0 0
    %8916 = vmatpush1.bf16.msra.mxu0 0
    %8917 = vmatprep.subr.bf16.mxu0 0
    %8918 = vmatpush1.bf16.msra.mxu0 0
    %8919 = vmatprep.subr.bf16.mxu0 0
    %8920 = vmatpush1.bf16.msra.mxu0 0
    %8921 = vmatprep.subr.bf16.mxu0 0
    %8922 = vmatpush1.bf16.msra.mxu0 0
    %8923 = vmatprep.subr.bf16.mxu0 0
    %8924 = vmatpush1.bf16.msra.mxu0 0
    %8925 = vmatprep.subr.bf16.mxu0 0
    %8926 = vmatpush1.bf16.msra.mxu0 0
    %8927 = vmatprep.subr.bf16.mxu0 0
    %8928 = vmatpush1.bf16.msra.mxu0 0
    %8929 = vmatprep.mubr.bf16.mxu0 0
    %8930 = vmatmul.mubr.bf16.gmra.mrb[0].mxu0 %v8855
    %v8931 = vpop.f32.mrb[0].mxu0
    %v8932 = vadd.f32 0.0, %v8931
    %v8933 = vpop.f32.mrb[0].mxu0
    %v8934 = vadd.f32 0.0, %v8933
    %v8935 = vpop.f32.mrb[0].mxu0
    %v8936 = vpop.f32.mrb[0].mxu0
    %8937 = vdwg.mxu0
    %v8942 = vcombine.low %v8891, %v8893
    %v8943 = vcombine.low %v8932, %v8934
    %v8945 = vunpack.c.l.s4 1983009808
    %v8946 = vunpack.c.0.s8 %v8945
    %v8947 = vlaneseq
    %v8948 = vshrl.u32 %v8947, 7
    %v8949 = vsub.s32 %v8946, %v8948
    %v8950 = vrot.slane %v8942, %v8949
    %v8952 = vunpack.c.l.s4 1983009808
    %v8953 = vunpack.c.0.s8 %v8952
    %v8954 = vlaneseq
    %v8955 = vshrl.u32 %v8954, 7
    %v8956 = vsub.s32 %v8953, %v8955
    %v8957 = vrot.slane %v8943, %v8956
    %v8958 = vcombine.low %v8950, %v8957
    %v8960 = vadd.f32 %v8748, %v8958
    %v8961 = vxor.u32 %v8854, 2147483648
    %v8962 = vmul.f32 %v8961, 1.442695
    %v8963 = vpow.pop %v8962
    %v8964 = vadd.f32 %v8963, 1.0
    %v8965 = vrcp.pop %v8964
    %v8966 = vmul.f32 1.0, %v8965
    %v8968 = vrot.slane %v8854, 2
    %v8970 = vxor.u32 %v8968, 2147483648
    %v8971 = vmul.f32 %v8970, 1.442695
    %v8972 = vpow.pop %v8971
    %v8973 = vadd.f32 %v8972, 1.0
    %v8974 = vrcp.pop %v8973
    %v8975 = vmul.f32 1.0, %v8974
    %v8976 = vrot.slane %v8854, 4
    %v8978 = vtanh.pop %v8976
    %v8979 = vrot.slane %v8854, 6
    %v8981 = vxor.u32 %v8979, 2147483648
    %v8982 = vmul.f32 %v8981, 1.442695
    %v8983 = vpow.pop %v8982
    %v8984 = vadd.f32 %v8983, 1.0
    %v8985 = vrcp.pop %v8984
    %v8986 = vmul.f32 1.0, %v8985
    %v8987 = vmul.f32 %v8975, %v8711
    %v8988 = vmul.f32 %v8966, %v8978
    %v8989 = vadd.f32 %v8987, %v8988
    %v8990 = vtanh.pop %v8989
    %v8991 = vmul.f32 %v8986, %v8990
    %v8992 = vxor.u32 %v8960, 2147483648
    %v8993 = vmul.f32 %v8992, 1.442695
    %v8994 = vpow.pop %v8993
    %v8995 = vadd.f32 %v8994, 1.0
    %v8996 = vrcp.pop %v8995
    %v8997 = vmul.f32 1.0, %v8996
    %v8999 = vrot.slane %v8960, 2
    %v9001 = vxor.u32 %v8999, 2147483648
    %v9002 = vmul.f32 %v9001, 1.442695
    %v9003 = vpow.pop %v9002
    %v9004 = vadd.f32 %v9003, 1.0
    %v9005 = vrcp.pop %v9004
    %v9006 = vmul.f32 1.0, %v9005
    %v9007 = vrot.slane %v8960, 4
    %v9009 = vtanh.pop %v9007
    %v9010 = vrot.slane %v8960, 6
    %v9012 = vxor.u32 %v9010, 2147483648
    %v9013 = vmul.f32 %v9012, 1.442695
    %v9014 = vpow.pop %v9013
    %v9015 = vadd.f32 %v9014, 1.0
    %v9016 = vrcp.pop %v9015
    %v9017 = vmul.f32 1.0, %v9016
    %v9018 = vmul.f32 %v9006, %v8742
    %v9019 = vmul.f32 %v8997, %v9009
    %v9020 = vadd.f32 %v9018, %v9019
    %v9021 = vtanh.pop %v9020
    %v9022 = vmul.f32 %v9017, %v9021
    %9023 = vst [vmem:[%s5004] sm:$0x3] %v8991
    %9024 = vst [vmem:[%s5006] sm:$0x3] %v9022
    %v9025 = vld [vmem:[%s2725] sm:$0xff]
    %v9026 = vld [vmem:[#allocation2 + $0x8] sm:$0xff]
    %v9027 = vpack.c.bf16 %v8991, %v8991
    %9028 = vmatprep.subr.bf16.mxu0 %v6860
    %9029 = vmatpush1.bf16.msra.mxu0 %v6859
    %9030 = vmatprep.subr.bf16.mxu0 %v6864
    %9031 = vmatpush1.bf16.msra.mxu0 %v6863
    %9032 = vmatprep.subr.bf16.mxu0 %v6868
    %9033 = vmatpush1.bf16.msra.mxu0 %v6867
    %9034 = vmatprep.subr.bf16.mxu0 %v6872
    %9035 = vmatpush1.bf16.msra.mxu0 %v6871
    %9036 = vmatprep.subr.bf16.mxu0 %v6876
    %9037 = vmatpush1.bf16.msra.mxu0 %v6875
    %9038 = vmatprep.subr.bf16.mxu0 %v6880
    %9039 = vmatpush1.bf16.msra.mxu0 %v6879
    %9040 = vmatprep.subr.bf16.mxu0 %v6884
    %9041 = vmatpush1.bf16.msra.mxu0 %v6883
    %9042 = vmatprep.subr.bf16.mxu0 %v6888
    %9043 = vmatpush1.bf16.msra.mxu0 %v6887
    %9044 = vmatprep.subr.bf16.mxu0 0
    %9045 = vmatpush1.bf16.msra.mxu0 0
    %9046 = vmatprep.subr.bf16.mxu0 0
    %9047 = vmatpush1.bf16.msra.mxu0 0
    %9048 = vmatprep.subr.bf16.mxu0 0
    %9049 = vmatpush1.bf16.msra.mxu0 0
    %9050 = vmatprep.subr.bf16.mxu0 0
    %9051 = vmatpush1.bf16.msra.mxu0 0
    %9052 = vmatprep.subr.bf16.mxu0 0
    %9053 = vmatpush1.bf16.msra.mxu0 0
    %9054 = vmatprep.subr.bf16.mxu0 0
    %9055 = vmatpush1.bf16.msra.mxu0 0
    %9056 = vmatprep.subr.bf16.mxu0 0
    %9057 = vmatpush1.bf16.msra.mxu0 0
    %9058 = vmatprep.subr.bf16.mxu0 0
    %9059 = vmatpush1.bf16.msra.mxu0 0
    %9060 = vmatprep.mubr.bf16.mxu0 0
    %9061 = vmatmul.mubr.bf16.gmra.mrb[0].mxu0 %v9027
    %v9062 = vpop.f32.mrb[0].mxu0
    %v9063 = vadd.f32 0.0, %v9062
    %v9064 = vpop.f32.mrb[0].mxu0
    %v9065 = vadd.f32 0.0, %v9064
    %v9066 = vpop.f32.mrb[0].mxu0
    %v9067 = vpop.f32.mrb[0].mxu0
    %9068 = vdwg.mxu0
    %9069 = vmatprep.subr.bf16.mxu0 %v6862
    %9070 = vmatpush1.bf16.msra.mxu0 %v6861
    %9071 = vmatprep.subr.bf16.mxu0 %v6866
    %9072 = vmatpush1.bf16.msra.mxu0 %v6865
    %9073 = vmatprep.subr.bf16.mxu0 %v6870
    %9074 = vmatpush1.bf16.msra.mxu0 %v6869
    %9075 = vmatprep.subr.bf16.mxu0 %v6874
    %9076 = vmatpush1.bf16.msra.mxu0 %v6873
    %9077 = vmatprep.subr.bf16.mxu0 %v6878
    %9078 = vmatpush1.bf16.msra.mxu0 %v6877
    %9079 = vmatprep.subr.bf16.mxu0 %v6882
    %9080 = vmatpush1.bf16.msra.mxu0 %v6881
    %9081 = vmatprep.subr.bf16.mxu0 %v6886
    %9082 = vmatpush1.bf16.msra.mxu0 %v6885
    %9083 = vmatprep.subr.bf16.mxu0 %v6890
    %9084 = vmatpush1.bf16.msra.mxu0 %v6889
    %9085 = vmatprep.subr.bf16.mxu0 0
    %9086 = vmatpush1.bf16.msra.mxu0 0
    %9087 = vmatprep.subr.bf16.mxu0 0
    %9088 = vmatpush1.bf16.msra.mxu0 0
    %9089 = vmatprep.subr.bf16.mxu0 0
    %9090 = vmatpush1.bf16.msra.mxu0 0
    %9091 = vmatprep.subr.bf16.mxu0 0
    %9092 = vmatpush1.bf16.msra.mxu0 0
    %9093 = vmatprep.subr.bf16.mxu0 0
    %9094 = vmatpush1.bf16.msra.mxu0 0
    %9095 = vmatprep.subr.bf16.mxu0 0
    %9096 = vmatpush1.bf16.msra.mxu0 0
    %9097 = vmatprep.subr.bf16.mxu0 0
    %9098 = vmatpush1.bf16.msra.mxu0 0
    %9099 = vmatprep.subr.bf16.mxu0 0
    %9100 = vmatpush1.bf16.msra.mxu0 0
    %9101 = vmatprep.mubr.bf16.mxu0 0
    %9102 = vmatmul.mubr.bf16.gmra.mrb[0].mxu0 %v9027
    %v9103 = vpop.f32.mrb[0].mxu0
    %v9104 = vadd.f32 0.0, %v9103
    %v9105 = vpop.f32.mrb[0].mxu0
    %v9106 = vadd.f32 0.0, %v9105
    %v9107 = vpop.f32.mrb[0].mxu0
    %v9108 = vpop.f32.mrb[0].mxu0
    %9109 = vdwg.mxu0
    %v9114 = vcombine.low %v9063, %v9065
    %v9115 = vcombine.low %v9104, %v9106
    %v9117 = vunpack.c.l.s4 1983009808
    %v9118 = vunpack.c.0.s8 %v9117
    %v9119 = vlaneseq
    %v9120 = vshrl.u32 %v9119, 7
    %v9121 = vsub.s32 %v9118, %v9120
    %v9122 = vrot.slane %v9114, %v9121
    %v9124 = vunpack.c.l.s4 1983009808
    %v9125 = vunpack.c.0.s8 %v9124
    %v9126 = vlaneseq
    %v9127 = vshrl.u32 %v9126, 7
    %v9128 = vsub.s32 %v9125, %v9127
    %v9129 = vrot.slane %v9115, %v9128
    %v9130 = vcombine.low %v9122, %v9129
    %v9132 = vadd.f32 %v9025, %v9130
    %v9133 = vpack.c.bf16 %v9022, %v9022
    %9134 = vmatprep.subr.bf16.mxu0 %v7125
    %9135 = vmatpush1.bf16.msra.mxu0 %v7124
    %9136 = vmatprep.subr.bf16.mxu0 %v7129
    %9137 = vmatpush1.bf16.msra.mxu0 %v7128
    %9138 = vmatprep.subr.bf16.mxu0 %v7133
    %9139 = vmatpush1.bf16.msra.mxu0 %v7132
    %9140 = vmatprep.subr.bf16.mxu0 %v7137
    %9141 = vmatpush1.bf16.msra.mxu0 %v7136
    %9142 = vmatprep.subr.bf16.mxu0 %v7141
    %9143 = vmatpush1.bf16.msra.mxu0 %v7140
    %9144 = vmatprep.subr.bf16.mxu0 %v7145
    %9145 = vmatpush1.bf16.msra.mxu0 %v7144
    %9146 = vmatprep.subr.bf16.mxu0 %v7149
    %9147 = vmatpush1.bf16.msra.mxu0 %v7148
    %9148 = vmatprep.subr.bf16.mxu0 %v7153
    %9149 = vmatpush1.bf16.msra.mxu0 %v7152
    %9150 = vmatprep.subr.bf16.mxu0 0
    %9151 = vmatpush1.bf16.msra.mxu0 0
    %9152 = vmatprep.subr.bf16.mxu0 0
    %9153 = vmatpush1.bf16.msra.mxu0 0
    %9154 = vmatprep.subr.bf16.mxu0 0
    %9155 = vmatpush1.bf16.msra.mxu0 0
    %9156 = vmatprep.subr.bf16.mxu0 0
    %9157 = vmatpush1.bf16.msra.mxu0 0
    %9158 = vmatprep.subr.bf16.mxu0 0
    %9159 = vmatpush1.bf16.msra.mxu0 0
    %9160 = vmatprep.subr.bf16.mxu0 0
    %9161 = vmatpush1.bf16.msra.mxu0 0
    %9162 = vmatprep.subr.bf16.mxu0 0
    %9163 = vmatpush1.bf16.msra.mxu0 0
    %9164 = vmatprep.subr.bf16.mxu0 0
    %9165 = vmatpush1.bf16.msra.mxu0 0
    %9166 = vmatprep.mubr.bf16.mxu0 0
    %9167 = vmatmul.mubr.bf16.gmra.mrb[0].mxu0 %v9133
    %v9168 = vpop.f32.mrb[0].mxu0
    %v9169 = vadd.f32 0.0, %v9168
    %v9170 = vpop.f32.mrb[0].mxu0
    %v9171 = vadd.f32 0.0, %v9170
    %v9172 = vpop.f32.mrb[0].mxu0
    %v9173 = vpop.f32.mrb[0].mxu0
    %9174 = vdwg.mxu0
    %9175 = vmatprep.subr.bf16.mxu0 %v7127
    %9176 = vmatpush1.bf16.msra.mxu0 %v7126
    %9177 = vmatprep.subr.bf16.mxu0 %v7131
    %9178 = vmatpush1.bf16.msra.mxu0 %v7130
    %9179 = vmatprep.subr.bf16.mxu0 %v7135
    %9180 = vmatpush1.bf16.msra.mxu0 %v7134
    %9181 = vmatprep.subr.bf16.mxu0 %v7139
    %9182 = vmatpush1.bf16.msra.mxu0 %v7138
    %9183 = vmatprep.subr.bf16.mxu0 %v7143
    %9184 = vmatpush1.bf16.msra.mxu0 %v7142
    %9185 = vmatprep.subr.bf16.mxu0 %v7147
    %9186 = vmatpush1.bf16.msra.mxu0 %v7146
    %9187 = vmatprep.subr.bf16.mxu0 %v7151
    %9188 = vmatpush1.bf16.msra.mxu0 %v7150
    %9189 = vmatprep.subr.bf16.mxu0 %v7155
    %9190 = vmatpush1.bf16.msra.mxu0 %v7154
    %9191 = vmatprep.subr.bf16.mxu0 0
    %9192 = vmatpush1.bf16.msra.mxu0 0
    %9193 = vmatprep.subr.bf16.mxu0 0
    %9194 = vmatpush1.bf16.msra.mxu0 0
    %9195 = vmatprep.subr.bf16.mxu0 0
    %9196 = vmatpush1.bf16.msra.mxu0 0
    %9197 = vmatprep.subr.bf16.mxu0 0
    %9198 = vmatpush1.bf16.msra.mxu0 0
    %9199 = vmatprep.subr.bf16.mxu0 0
    %9200 = vmatpush1.bf16.msra.mxu0 0
    %9201 = vmatprep.subr.bf16.mxu0 0
    %9202 = vmatpush1.bf16.msra.mxu0 0
    %9203 = vmatprep.subr.bf16.mxu0 0
    %9204 = vmatpush1.bf16.msra.mxu0 0
    %9205 = vmatprep.subr.bf16.mxu0 0
    %9206 = vmatpush1.bf16.msra.mxu0 0
    %9207 = vmatprep.mubr.bf16.mxu0 0
    %9208 = vmatmul.mubr.bf16.gmra.mrb[0].mxu0 %v9133
    %v9209 = vpop.f32.mrb[0].mxu0
    %v9210 = vadd.f32 0.0, %v9209
    %v9211 = vpop.f32.mrb[0].mxu0
    %v9212 = vadd.f32 0.0, %v9211
    %v9213 = vpop.f32.mrb[0].mxu0
    %v9214 = vpop.f32.mrb[0].mxu0
    %9215 = vdwg.mxu0
    %v9220 = vcombine.low %v9169, %v9171
    %v9221 = vcombine.low %v9210, %v9212
    %v9223 = vunpack.c.l.s4 1983009808
    %v9224 = vunpack.c.0.s8 %v9223
    %v9225 = vlaneseq
    %v9226 = vshrl.u32 %v9225, 7
    %v9227 = vsub.s32 %v9224, %v9226
    %v9228 = vrot.slane %v9220, %v9227
    %v9230 = vunpack.c.l.s4 1983009808
    %v9231 = vunpack.c.0.s8 %v9230
    %v9232 = vlaneseq
    %v9233 = vshrl.u32 %v9232, 7
    %v9234 = vsub.s32 %v9231, %v9233
    %v9235 = vrot.slane %v9221, %v9234
    %v9236 = vcombine.low %v9228, %v9235
    %v9238 = vadd.f32 %v9026, %v9236
    %v9239 = vxor.u32 %v9132, 2147483648
    %v9240 = vmul.f32 %v9239, 1.442695
    %v9241 = vpow.pop %v9240
    %v9242 = vadd.f32 %v9241, 1.0
    %v9243 = vrcp.pop %v9242
    %v9244 = vmul.f32 1.0, %v9243
    %v9246 = vrot.slane %v9132, 2
    %v9248 = vxor.u32 %v9246, 2147483648
    %v9249 = vmul.f32 %v9248, 1.442695
    %v9250 = vpow.pop %v9249
    %v9251 = vadd.f32 %v9250, 1.0
    %v9252 = vrcp.pop %v9251
    %v9253 = vmul.f32 1.0, %v9252
    %v9254 = vrot.slane %v9132, 4
    %v9256 = vtanh.pop %v9254
    %v9257 = vrot.slane %v9132, 6
    %v9259 = vxor.u32 %v9257, 2147483648
    %v9260 = vmul.f32 %v9259, 1.442695
    %v9261 = vpow.pop %v9260
    %v9262 = vadd.f32 %v9261, 1.0
    %v9263 = vrcp.pop %v9262
    %v9264 = vmul.f32 1.0, %v9263
    %v9265 = vmul.f32 %v9253, %v8989
    %v9266 = vmul.f32 %v9244, %v9256
    %v9267 = vadd.f32 %v9265, %v9266
    %v9268 = vtanh.pop %v9267
    %v9269 = vmul.f32 %v9264, %v9268
    %v9270 = vxor.u32 %v9238, 2147483648
    %v9271 = vmul.f32 %v9270, 1.442695
    %v9272 = vpow.pop %v9271
    %v9273 = vadd.f32 %v9272, 1.0
    %v9274 = vrcp.pop %v9273
    %v9275 = vmul.f32 1.0, %v9274
    %v9277 = vrot.slane %v9238, 2
    %v9279 = vxor.u32 %v9277, 2147483648
    %v9280 = vmul.f32 %v9279, 1.442695
    %v9281 = vpow.pop %v9280
    %v9282 = vadd.f32 %v9281, 1.0
    %v9283 = vrcp.pop %v9282
    %v9284 = vmul.f32 1.0, %v9283
    %v9285 = vrot.slane %v9238, 4
    %v9287 = vtanh.pop %v9285
    %v9288 = vrot.slane %v9238, 6
    %v9290 = vxor.u32 %v9288, 2147483648
    %v9291 = vmul.f32 %v9290, 1.442695
    %v9292 = vpow.pop %v9291
    %v9293 = vadd.f32 %v9292, 1.0
    %v9294 = vrcp.pop %v9293
    %v9295 = vmul.f32 1.0, %v9294
    %v9296 = vmul.f32 %v9284, %v9020
    %v9297 = vmul.f32 %v9275, %v9287
    %v9298 = vadd.f32 %v9296, %v9297
    %v9299 = vtanh.pop %v9298
    %v9300 = vmul.f32 %v9295, %v9299
    %9301 = vst [vmem:[%s5284] sm:$0x3] %v9269
    %9302 = vst [vmem:[#allocation4] sm:$0x3] %v9300
    %v9303 = vld [vmem:[#allocation3] sm:$0x3]
    %v9304 = vld [vmem:[#allocation3 + $0x2] sm:$0x3]
    %v9305 = vld [vmem:[#allocation3 + $0x4] sm:$0x3]
    %v9306 = vld [vmem:[#allocation3 + $0x6] sm:$0x3]
    %v9307 = vld [vmem:[#allocation3 + $0x8] sm:$0x3]
    %v9308 = vld [vmem:[#allocation3 + $0xa] sm:$0x3]
    %v9309 = vld [vmem:[#allocation3 + $0xc] sm:$0x3]
    %v9310 = vld [vmem:[#allocation3 + $0xe] sm:$0x3]
    %v9311 = vld [vmem:[#allocation4] sm:$0x3]
    %v9312 = vld [vmem:[#allocation4 + $0x2] sm:$0x3]
    %v9313 = vld [vmem:[#allocation4 + $0x4] sm:$0x3]
    %v9314 = vld [vmem:[#allocation4 + $0x6] sm:$0x3]
    %v9315 = vld [vmem:[#allocation4 + $0x8] sm:$0x3]
    %v9316 = vld [vmem:[#allocation4 + $0xa] sm:$0x3]
    %v9317 = vld [vmem:[#allocation4 + $0xc] sm:$0x3]
    %v9318 = vld [vmem:[#allocation4 + $0xe] sm:$0x3]
    %v9319 = vpack.c.bf16 %v9303, %v9303
    %v9320 = vpack.c.bf16 %v9311, %v9311
    %v9321 = vpack.c.bf16 %v9304, %v9304
    %v9322 = vpack.c.bf16 %v9312, %v9312
    %v9323 = vpack.c.bf16 %v9305, %v9305
    %v9324 = vpack.c.bf16 %v9313, %v9313
    %v9325 = vpack.c.bf16 %v9306, %v9306
    %v9326 = vpack.c.bf16 %v9314, %v9314
    %v9327 = vpack.c.bf16 %v9307, %v9307
    %v9328 = vpack.c.bf16 %v9315, %v9315
    %v9329 = vpack.c.bf16 %v9308, %v9308
    %v9330 = vpack.c.bf16 %v9316, %v9316
    %v9331 = vpack.c.bf16 %v9309, %v9309
    %v9332 = vpack.c.bf16 %v9317, %v9317
    %v9333 = vpack.c.bf16 %v9310, %v9310
    %v9334 = vpack.c.bf16 %v9318, %v9318
    %v9351 = vcombine.low %v9319, %v9320
    %v9353 = vunpack.c.l.s4 1966171168
    %v9354 = vunpack.c.0.s8 %v9353
    %v9355 = vlaneseq
    %v9356 = vshrl.u32 %v9355, 7
    %v9357 = vsub.s32 %v9354, %v9356
    %v9358 = vrot.slane %v9351, %v9357
    %v9360 = vunpack.c.l.s4 1966171168
    %v9361 = vunpack.c.0.s8 %v9360
    %v9362 = vlaneseq
    %v9363 = vshrl.u32 %v9362, 7
    %v9364 = vsub.s32 %v9361, %v9363
    %v9365 = vrot.slane %v9358, %v9364
    %v9366 = vcombine.low %v9321, %v9322
    %v9368 = vunpack.c.l.s4 1966171168
    %v9369 = vunpack.c.0.s8 %v9368
    %v9370 = vlaneseq
    %v9371 = vshrl.u32 %v9370, 7
    %v9372 = vsub.s32 %v9369, %v9371
    %v9373 = vrot.slane %v9366, %v9372
    %v9375 = vunpack.c.l.s4 1966171168
    %v9376 = vunpack.c.0.s8 %v9375
    %v9377 = vlaneseq
    %v9378 = vshrl.u32 %v9377, 7
    %v9379 = vsub.s32 %v9376, %v9378
    %v9380 = vrot.slane %v9373, %v9379
    %v9381 = vcombine.low %v9323, %v9324
    %v9383 = vunpack.c.l.s4 1966171168
    %v9384 = vunpack.c.0.s8 %v9383
    %v9385 = vlaneseq
    %v9386 = vshrl.u32 %v9385, 7
    %v9387 = vsub.s32 %v9384, %v9386
    %v9388 = vrot.slane %v9381, %v9387
    %v9390 = vunpack.c.l.s4 1966171168
    %v9391 = vunpack.c.0.s8 %v9390
    %v9392 = vlaneseq
    %v9393 = vshrl.u32 %v9392, 7
    %v9394 = vsub.s32 %v9391, %v9393
    %v9395 = vrot.slane %v9388, %v9394
    %v9396 = vcombine.low %v9325, %v9326
    %v9398 = vunpack.c.l.s4 1966171168
    %v9399 = vunpack.c.0.s8 %v9398
    %v9400 = vlaneseq
    %v9401 = vshrl.u32 %v9400, 7
    %v9402 = vsub.s32 %v9399, %v9401
    %v9403 = vrot.slane %v9396, %v9402
    %v9405 = vunpack.c.l.s4 1966171168
    %v9406 = vunpack.c.0.s8 %v9405
    %v9407 = vlaneseq
    %v9408 = vshrl.u32 %v9407, 7
    %v9409 = vsub.s32 %v9406, %v9408
    %v9410 = vrot.slane %v9403, %v9409
    %v9411 = vcombine.low %v9327, %v9328
    %v9413 = vunpack.c.l.s4 1966171168
    %v9414 = vunpack.c.0.s8 %v9413
    %v9415 = vlaneseq
    %v9416 = vshrl.u32 %v9415, 7
    %v9417 = vsub.s32 %v9414, %v9416
    %v9418 = vrot.slane %v9411, %v9417
    %v9420 = vunpack.c.l.s4 1966171168
    %v9421 = vunpack.c.0.s8 %v9420
    %v9422 = vlaneseq
    %v9423 = vshrl.u32 %v9422, 7
    %v9424 = vsub.s32 %v9421, %v9423
    %v9425 = vrot.slane %v9418, %v9424
    %v9426 = vcombine.low %v9329, %v9330
    %v9428 = vunpack.c.l.s4 1966171168
    %v9429 = vunpack.c.0.s8 %v9428
    %v9430 = vlaneseq
    %v9431 = vshrl.u32 %v9430, 7
    %v9432 = vsub.s32 %v9429, %v9431
    %v9433 = vrot.slane %v9426, %v9432
    %v9435 = vunpack.c.l.s4 1966171168
    %v9436 = vunpack.c.0.s8 %v9435
    %v9437 = vlaneseq
    %v9438 = vshrl.u32 %v9437, 7
    %v9439 = vsub.s32 %v9436, %v9438
    %v9440 = vrot.slane %v9433, %v9439
    %v9441 = vcombine.low %v9331, %v9332
    %v9443 = vunpack.c.l.s4 1966171168
    %v9444 = vunpack.c.0.s8 %v9443
    %v9445 = vlaneseq
    %v9446 = vshrl.u32 %v9445, 7
    %v9447 = vsub.s32 %v9444, %v9446
    %v9448 = vrot.slane %v9441, %v9447
    %v9450 = vunpack.c.l.s4 1966171168
    %v9451 = vunpack.c.0.s8 %v9450
    %v9452 = vlaneseq
    %v9453 = vshrl.u32 %v9452, 7
    %v9454 = vsub.s32 %v9451, %v9453
    %v9455 = vrot.slane %v9448, %v9454
    %v9456 = vcombine.low %v9333, %v9334
    %v9458 = vunpack.c.l.s4 1966171168
    %v9459 = vunpack.c.0.s8 %v9458
    %v9460 = vlaneseq
    %v9461 = vshrl.u32 %v9460, 7
    %v9462 = vsub.s32 %v9459, %v9461
    %v9463 = vrot.slane %v9456, %v9462
    %v9465 = vunpack.c.l.s4 1966171168
    %v9466 = vunpack.c.0.s8 %v9465
    %v9467 = vlaneseq
    %v9468 = vshrl.u32 %v9467, 7
    %v9469 = vsub.s32 %v9466, %v9468
    %v9470 = vrot.slane %v9463, %v9469
    %v9471 = vld [vmem:[%s7] sm:$0xf]
    %v9472 = vld [vmem:[%s7 + $0x4] sm:$0xf]
    %v9473 = vld [vmem:[%s7 + $0x8] sm:$0xf]
    %v9474 = vld [vmem:[%s7 + $0xc] sm:$0xf]
    %v9475 = vld [vmem:[%s7 + $0x10] sm:$0xf]
    %v9476 = vld [vmem:[%s7 + $0x14] sm:$0xf]
    %v9477 = vld [vmem:[%s7 + $0x18] sm:$0xf]
    %v9478 = vld [vmem:[%s7 + $0x1c] sm:$0xf]
    %v9479 = vld [vmem:[%s7 + $0x20] sm:$0xf]
    %v9480 = vld [vmem:[%s7 + $0x24] sm:$0xf]
    %v9481 = vld [vmem:[%s7 + $0x28] sm:$0xf]
    %v9482 = vld [vmem:[%s7 + $0x2c] sm:$0xf]
    %v9483 = vld [vmem:[%s7 + $0x30] sm:$0xf]
    %v9484 = vld [vmem:[%s7 + $0x34] sm:$0xf]
    %v9485 = vld [vmem:[%s7 + $0x38] sm:$0xf]
    %v9486 = vld [vmem:[%s7 + $0x3c] sm:$0xf]
    %v9487 = vld [vmem:[%s7 + $0x40] sm:$0xf]
    %v9488 = vld [vmem:[%s7 + $0x44] sm:$0xf]
    %v9489 = vld [vmem:[%s7 + $0x48] sm:$0xf]
    %v9490 = vld [vmem:[%s7 + $0x4c] sm:$0xf]
    %v9491 = vld [vmem:[%s7 + $0x50] sm:$0xf]
    %v9492 = vld [vmem:[%s7 + $0x54] sm:$0xf]
    %v9493 = vld [vmem:[%s7 + $0x58] sm:$0xf]
    %v9494 = vld [vmem:[%s7 + $0x5c] sm:$0xf]
    %v9495 = vld [vmem:[%s7 + $0x60] sm:$0xf]
    %v9496 = vld [vmem:[%s7 + $0x64] sm:$0xf]
    %v9497 = vld [vmem:[%s7 + $0x68] sm:$0xf]
    %v9498 = vld [vmem:[%s7 + $0x6c] sm:$0xf]
    %v9499 = vld [vmem:[%s7 + $0x70] sm:$0xf]
    %v9500 = vld [vmem:[%s7 + $0x74] sm:$0xf]
    %v9501 = vld [vmem:[%s7 + $0x78] sm:$0xf]
    %v9502 = vld [vmem:[%s7 + $0x7c] sm:$0xf]
    %v9503 = vld [vmem:[%s8] sm:$0x1]
    %v9505 = vlaneseq
    %v9506 = vshrl.u32 %v9505, 7
    %v9507 = vsub.s32 0, %v9506
    %v9508 = vrot.slane %v9503, %v9507
    %v9510 = vcombine.low %v9365, %v9380
    %v9511 = vcombine.low %v9395, %v9410
    %v9512 = vcombine.low %v9425, %v9440
    %v9513 = vcombine.low %v9455, %v9470
    %v9515 = vunpack.c.l.s4 1966171168
    %v9516 = vunpack.c.0.s8 %v9515
    %v9517 = vlaneseq
    %v9518 = vshrl.u32 %v9517, 7
    %v9519 = vsub.s32 %v9516, %v9518
    %v9520 = vrot.slane %v9510, %v9519
    %v9522 = vunpack.c.l.s4 1966171168
    %v9523 = vunpack.c.0.s8 %v9522
    %v9524 = vlaneseq
    %v9525 = vshrl.u32 %v9524, 7
    %v9526 = vsub.s32 %v9523, %v9525
    %v9527 = vrot.slane %v9511, %v9526
    %v9529 = vunpack.c.l.s4 1966171168
    %v9530 = vunpack.c.0.s8 %v9529
    %v9531 = vlaneseq
    %v9532 = vshrl.u32 %v9531, 7
    %v9533 = vsub.s32 %v9530, %v9532
    %v9534 = vrot.slane %v9512, %v9533
    %v9536 = vunpack.c.l.s4 1966171168
    %v9537 = vunpack.c.0.s8 %v9536
    %v9538 = vlaneseq
    %v9539 = vshrl.u32 %v9538, 7
    %v9540 = vsub.s32 %v9537, %v9539
    %v9541 = vrot.slane %v9513, %v9540
    %v9542 = vcombine.low %v9520, %v9527
    %v9543 = vcombine.high %v9520, %v9527
    %v9544 = vcombine.low %v9534, %v9541
    %v9545 = vcombine.high %v9534, %v9541
    %v9547 = vunpack.c.l.s4 1966171168
    %v9548 = vunpack.c.0.s8 %v9547
    %v9549 = vlaneseq
    %v9550 = vshrl.u32 %v9549, 7
    %v9551 = vsub.s32 %v9548, %v9550
    %v9552 = vrot.slane %v9542, %v9551
    %v9554 = vunpack.c.l.s4 1966171168
    %v9555 = vunpack.c.0.s8 %v9554
    %v9556 = vlaneseq
    %v9557 = vshrl.u32 %v9556, 7
    %v9558 = vsub.s32 %v9555, %v9557
    %v9559 = vrot.slane %v9543, %v9558
    %v9561 = vunpack.c.l.s4 1966171168
    %v9562 = vunpack.c.0.s8 %v9561
    %v9563 = vlaneseq
    %v9564 = vshrl.u32 %v9563, 7
    %v9565 = vsub.s32 %v9562, %v9564
    %v9566 = vrot.slane %v9544, %v9565
    %v9568 = vunpack.c.l.s4 1966171168
    %v9569 = vunpack.c.0.s8 %v9568
    %v9570 = vlaneseq
    %v9571 = vshrl.u32 %v9570, 7
    %v9572 = vsub.s32 %v9569, %v9571
    %v9573 = vrot.slane %v9545, %v9572
    %v9574 = vcombine.low %v9552, %v9566
    %v9575 = vcombine.low %v9559, %v9573
    %v9610 = vunpack.c.l.b16 %v9471
    %v9611 = vunpack.c.l.b16 %v9472
    %v9612 = vunpack.c.l.b16 %v9473
    %v9613 = vunpack.c.l.b16 %v9474
    %v9614 = vunpack.c.l.b16 %v9475
    %v9615 = vunpack.c.l.b16 %v9476
    %v9616 = vunpack.c.l.b16 %v9477
    %v9617 = vunpack.c.l.b16 %v9478
    %v9618 = vunpack.c.l.b16 %v9479
    %v9619 = vunpack.c.l.b16 %v9480
    %v9620 = vunpack.c.l.b16 %v9481
    %v9621 = vunpack.c.l.b16 %v9482
    %v9622 = vunpack.c.l.b16 %v9483
    %v9623 = vunpack.c.l.b16 %v9484
    %v9624 = vunpack.c.l.b16 %v9485
    %v9625 = vunpack.c.l.b16 %v9486
    %v9626 = vunpack.c.l.b16 %v9487
    %v9627 = vunpack.c.l.b16 %v9488
    %v9628 = vunpack.c.l.b16 %v9489
    %v9629 = vunpack.c.l.b16 %v9490
    %v9630 = vunpack.c.l.b16 %v9491
    %v9631 = vunpack.c.l.b16 %v9492
    %v9632 = vunpack.c.l.b16 %v9493
    %v9633 = vunpack.c.l.b16 %v9494
    %v9634 = vunpack.c.l.b16 %v9495
    %v9635 = vunpack.c.l.b16 %v9496
    %v9636 = vunpack.c.l.b16 %v9497
    %v9637 = vunpack.c.l.b16 %v9498
    %v9638 = vunpack.c.l.b16 %v9499
    %v9639 = vunpack.c.l.b16 %v9500
    %v9640 = vunpack.c.l.b16 %v9501
    %v9641 = vunpack.c.l.b16 %v9502
    %v9642 = vpack.c.b16 %v9611, %v9610
    %v9643 = vpack.c.b16 %v9613, %v9612
    %v9644 = vpack.c.b16 %v9615, %v9614
    %v9645 = vpack.c.b16 %v9617, %v9616
    %v9646 = vpack.c.b16 %v9619, %v9618
    %v9647 = vpack.c.b16 %v9621, %v9620
    %v9648 = vpack.c.b16 %v9623, %v9622
    %v9649 = vpack.c.b16 %v9625, %v9624
    %v9650 = vpack.c.b16 %v9627, %v9626
    %v9651 = vpack.c.b16 %v9629, %v9628
    %v9652 = vpack.c.b16 %v9631, %v9630
    %v9653 = vpack.c.b16 %v9633, %v9632
    %v9654 = vpack.c.b16 %v9635, %v9634
    %v9655 = vpack.c.b16 %v9637, %v9636
    %v9656 = vpack.c.b16 %v9639, %v9638
    %v9657 = vpack.c.b16 %v9641, %v9640
    %9674 = vmatprep.subr.bf16.mxu0 0
    %9675 = vmatpush1.bf16.msra.mxu0 %v9642
    %9676 = vmatprep.subr.bf16.mxu0 0
    %9677 = vmatpush1.bf16.msra.mxu0 %v9643
    %9678 = vmatprep.subr.bf16.mxu0 0
    %9679 = vmatpush1.bf16.msra.mxu0 %v9644
    %9680 = vmatprep.subr.bf16.mxu0 0
    %9681 = vmatpush1.bf16.msra.mxu0 %v9645
    %9682 = vmatprep.subr.bf16.mxu0 0
    %9683 = vmatpush1.bf16.msra.mxu0 %v9646
    %9684 = vmatprep.subr.bf16.mxu0 0
    %9685 = vmatpush1.bf16.msra.mxu0 %v9647
    %9686 = vmatprep.subr.bf16.mxu0 0
    %9687 = vmatpush1.bf16.msra.mxu0 %v9648
    %9688 = vmatprep.subr.bf16.mxu0 0
    %9689 = vmatpush1.bf16.msra.mxu0 %v9649
    %9690 = vmatprep.subr.bf16.mxu0 0
    %9691 = vmatpush1.bf16.msra.mxu0 %v9650
    %9692 = vmatprep.subr.bf16.mxu0 0
    %9693 = vmatpush1.bf16.msra.mxu0 %v9651
    %9694 = vmatprep.subr.bf16.mxu0 0
    %9695 = vmatpush1.bf16.msra.mxu0 %v9652
    %9696 = vmatprep.subr.bf16.mxu0 0
    %9697 = vmatpush1.bf16.msra.mxu0 %v9653
    %9698 = vmatprep.subr.bf16.mxu0 0
    %9699 = vmatpush1.bf16.msra.mxu0 %v9654
    %9700 = vmatprep.subr.bf16.mxu0 0
    %9701 = vmatpush1.bf16.msra.mxu0 %v9655
    %9702 = vmatprep.subr.bf16.mxu0 0
    %9703 = vmatpush1.bf16.msra.mxu0 %v9656
    %9704 = vmatprep.subr.bf16.mxu0 0
    %9705 = vmatpush1.bf16.msra.mxu0 %v9657
    %9706 = vmatprep.mubr.bf16.mxu0 %v9575
    %9707 = vmatmul.mubr.bf16.gmra.mrb[0].mxu0 %v9574
    %v9708 = vpop.f32.mrb[0].mxu0
    %v9709 = vadd.f32 %v9508, %v9708
    %v9710 = vpop.f32.mrb[0].mxu0
    %v9711 = vpop.f32.mrb[0].mxu0
    %v9712 = vadd.f32 %v9508, %v9711
    %v9713 = vpop.f32.mrb[0].mxu0
    %9714 = vdwg.mxu0
    %v9717 = vcombine.high %v9709, %v9709
    %v9719 = vunpack.c.l.s4 1983009808
    %v9720 = vunpack.c.0.s8 %v9719
    %v9721 = vlaneseq
    %v9722 = vshrl.u32 %v9721, 7
    %v9723 = vsub.s32 %v9720, %v9722
    %v9724 = vrot.slane %v9709, %v9723
    %v9726 = vunpack.c.l.s4 1983009808
    %v9727 = vunpack.c.0.s8 %v9726
    %v9728 = vlaneseq
    %v9729 = vshrl.u32 %v9728, 7
    %v9730 = vsub.s32 %v9727, %v9729
    %v9731 = vrot.slane %v9717, %v9730
    %v9732 = vcombine.high %v9724, %v9724
    %v9733 = vcombine.high %v9731, %v9731
    %v9734 = vcombine.high %v9712, %v9712
    %v9736 = vunpack.c.l.s4 1983009808
    %v9737 = vunpack.c.0.s8 %v9736
    %v9738 = vlaneseq
    %v9739 = vshrl.u32 %v9738, 7
    %v9740 = vsub.s32 %v9737, %v9739
    %v9741 = vrot.slane %v9712, %v9740
    %v9743 = vunpack.c.l.s4 1983009808
    %v9744 = vunpack.c.0.s8 %v9743
    %v9745 = vlaneseq
    %v9746 = vshrl.u32 %v9745, 7
    %v9747 = vsub.s32 %v9744, %v9746
    %v9748 = vrot.slane %v9734, %v9747
    %v9749 = vcombine.high %v9741, %v9741
    %v9750 = vcombine.high %v9748, %v9748
    %9759 = vst [vmem:[#allocation5] sm:$0x3] %v9724
    %9760 = vst [vmem:[#allocation5 + $0x2] sm:$0x3] %v9732
    %9761 = vst [vmem:[#allocation5 + $0x4] sm:$0x3] %v9731
    %9762 = vst [vmem:[#allocation5 + $0x6] sm:$0x3] %v9733
    %9763 = vst [vmem:[#allocation5 + $0x8] sm:$0x3] %v9741
    %9764 = vst [vmem:[#allocation5 + $0xa] sm:$0x3] %v9749
    %9765 = vst [vmem:[#allocation5 + $0xc] sm:$0x3] %v9748
    %9766 = vst [vmem:[#allocation5 + $0xe] sm:$0x3] %v9750
    // Predicated region
    $region38: #{captcha_solver_forward.3} parent=1 // pred_check
      _
    $region39: #{captcha_solver_forward.3} parent=1 // pred_check_branch
      %9768 = sbr.rel (0) target = $region41
    $region40: #{captcha_solver_forward.3} parent=1 // pred_region
      %s9770 = ssub.s32 256, 256
      %9771 = vsyncadd [#allocation6], %s9770
      %s9772 = sshll.u32 [#allocation5], 4
      %s9773 = int_to_ptr.vmem [resolvable:$true] %s9772
      %9778 = dma.vmem_to_hbm [thread:$0]  %s9773, 256, %s9, [#allocation6], 32, 32, 2
    $region41: #{captcha_solver_forward.3} parent=1 // pred_fallthru
      _
    // Predicated region
    $region42: #{captcha_solver_forward.3} parent=1 // pred_check
      _
    $region43: #{captcha_solver_forward.3} parent=1 // pred_check_branch
      %9780 = sbr.rel (0) target = $region45
    $region44: #{captcha_solver_forward.3} parent=1 // pred_region
      %9781 = dma.done [#allocation6], 256
    $region45: #{captcha_solver_forward.3} parent=1 // pred_fallthru
      _
    %9782 = vsyncpa [#allocation6], 1

</llo_original>
